<compile_context>
chip_gen: v5e
topology: v5e:2x2
jax: 0.10.0
libtpu: 0.0.40
codegen_flags: <defaults>
</compile_context>

<pallas_src>
import numpy as np

import jax
import jax.numpy as jnp
from jax import lax
from jax.experimental import pallas as pl
from jax.experimental.pallas import tpu as pltpu


_LEAKY_SLOPE = 0.01                                   # nn.LeakyReLU() default
_CONV_CFG = [(4, 2, 1), (4, 2, 1), (3, 2, 1), (4, 2, 0)]   # (k, s, p) per layer


def _out_hw(h, w, k, s, p):
    return (h + 2 * p - k) // s + 1, (w + 2 * p - k) // s + 1


def _leaky(x):
    return jnp.where(x > 0, x, _LEAKY_SLOPE * x)


def _exact_inv_f32(d, n):
    """Python float r (exactly an f32) with floor(i*r) == i//d for 0 <= i < n."""
    r = np.float32(1.0) / np.float32(d)
    i_f = np.arange(n, dtype=np.float32)
    want = np.arange(n) // d
    for _ in range(8):
        if np.array_equal(np.floor(i_f * r).astype(np.int64), want):
            return float(r)
        r = np.nextafter(r, np.float32(2.0))
    raise ValueError(f"no exact f32 reciprocal of {d} over [0, {n})")


# -----------------------------------------------------------------------------
# Builder: packs weights / the one small selector once, returns a jitted fwd.
# -----------------------------------------------------------------------------
def build_discriminator(params, batch, height, width):
    (cw1, cb1), (cw2, cb2), (cw3, cb3), (cw4, cb4) = params
    f32, bf16 = jnp.float32, jnp.bfloat16

    (k1, s1, p1c), (k2, s2, p2c), (k3, s3, p3c), (k4, s4, p4c) = _CONV_CFG
    c1, c2, c3 = cw1.shape[0], cw2.shape[0], cw3.shape[0]

    h0, w0 = height, width
    h1, w1 = _out_hw(h0, w0, k1, s1, p1c)
    h2, w2 = _out_hw(h1, w1, k2, s2, p2c)
    h3, w3 = _out_hw(h2, w2, k3, s3, p3c)
    h4, w4 = _out_hw(h3, w3, k4, s4, p4c)

    # The final conv must consume the whole h3 x w3 map in one window
    # (true for the MNIST-style 28x28 input this module is built for).
    assert (h4, w4) == (1, 1) and (h3, w3) == (k4, k4), (h3, w3, h4, w4)
    assert (c1 & (c1 - 1)) == 0 and ((k2 * c1) & (k2 * c1 - 1)) == 0

    m2, m3 = batch * h2 * w2, batch * h3 * w3        # layer-2/3 output rows
    hw2, hw3 = h2 * w2, h3 * w3
    t2n, t3n = k2 * k2, k3 * k3                      # taps per layer
    lane2 = t2n * c1                                 # layer-2 patch width

    # ---- pack weights once into per-layer (taps*Cin, Cout) matmul operands -
    w1p = jnp.transpose(cw1, (2, 3, 1, 0)).reshape(k1 * k1, c1).astype(bf16)
    w2p = jnp.transpose(cw2, (2, 3, 1, 0)).reshape(t2n * c1, c2).astype(bf16)
    w3p = jnp.transpose(cw3, (2, 3, 1, 0)).reshape(t3n * c2, c3).astype(bf16)
    w4p = jnp.transpose(cw4, (2, 3, 1, 0)).reshape(k4 * k4, c3).astype(f32)
    b1p = cb1.reshape(1, c1).astype(f32)
    b2p = cb2.reshape(1, c2).astype(f32)
    b3p = cb3.reshape(1, c3).astype(f32)
    b4p = cb4.reshape(1, 1).astype(f32)

    # ---- the only remaining gather constant: fused layer-2 -> 3 im2col -----
    sel3_np = np.zeros((t3n * m3, m2), np.float32)
    for n in range(batch):
        for y3 in range(h3):
            for x3 in range(w3):
                r3 = (n * h3 + y3) * w3 + x3
                for i in range(k3):
                    for j in range(k3):
                        y2 = s3 * y3 + i - p3c
                        x2 = s3 * x3 + j - p3c
                        if 0 <= y2 < h2 and 0 <= x2 < w2:
                            sel3_np[(i * k3 + j) * m3 + r3,
                                    (n * h2 + y2) * w2 + x2] = 1.0
    sel3 = jnp.asarray(sel3_np, bf16)

    # exact-floor reciprocals used by the in-kernel padding mask
    inv_hw2 = _exact_inv_f32(hw2, m2)
    inv_w2 = _exact_inv_f32(w2, hw2)
    inv_trow = 1.0 / float(k2 * c1)                  # power of two -> exact
    inv_c1 = 1.0 / float(c1)                         # power of two -> exact

    # -------------------------------------------------------------------------
    # The single fused kernel: all four conv layers, VMEM-resident end to end.
    # -------------------------------------------------------------------------
    def kernel(p1_ref, w1_ref, b1_ref, w2_ref, b2_ref, sel3_ref, w3_ref,
               b3_ref, w4_ref, b4_ref, out_ref, a1_s, g_s, p2_s, p3_s):
        # ---- layer 1: Conv2d(1, 64, 4, 2, 1) + LeakyReLU --------------------
        # p1_ref holds wrapper-built layer-1 patches duplicated in layer-2 tap
        # order (row = t2*m2 + m2_row) -> one matmul feeds all of layer 2.
        a1 = jnp.dot(p1_ref[...], w1_ref[...], preferred_element_type=jnp.float32)
        a1_s[...] = _leaky(a1 + b1_ref[...]).astype(jnp.bfloat16)

        # ---- assemble the (m2, t2n*c1) layer-2 patch matrix in VMEM ---------
        for t in range(t2n):
            p2_s[:, t * c1:(t + 1) * c1] = a1_s[t * m2:(t + 1) * m2, :]

        # zero taps that fall in layer-2's zero padding (mask built in-kernel
        # from iotas: no constant DMA, only pow2 / verified-exact float floors)
        rowf = lax.broadcasted_iota(jnp.int32, (m2, lane2), 0).astype(jnp.float32)
        lanef = lax.broadcasted_iota(jnp.int32, (m2, lane2), 1).astype(jnp.float32)
        i2 = jnp.floor(lanef * inv_trow)                       # tap row 0..k2-1
        j2 = jnp.floor(lanef * inv_c1) - i2 * float(k2)        # tap col 0..k2-1
        img = jnp.floor(rowf * inv_hw2)
        rem = rowf - img * float(hw2)
        y2 = jnp.floor(rem * inv_w2)
        x2 = rem - y2 * float(w2)
        u = float(s2) * y2 + i2 - float(p2c)                   # sampled L1 row
        v = float(s2) * x2 + j2 - float(p2c)                   # sampled L1 col
        valid = ((u >= 0.0) & (u <= float(h1 - 1)) &
                 (v >= 0.0) & (v <= float(w1 - 1)))
        p2v = p2_s[...]
        patch2 = jnp.where(valid, p2v, jnp.zeros_like(p2v))

        # ---- layer 2: Conv2d(64, 128, 4, 2, 1) + LeakyReLU ------------------
        a2 = jnp.dot(patch2, w2_ref[...], preferred_element_type=jnp.float32)
        a2 = _leaky(a2 + b2_ref[...]).astype(jnp.bfloat16)      # (m2, c2)

        # ---- layer 3: Conv2d(128, 256, 3, 2, 1) + LeakyReLU -----------------
        # single fused 0/1 gather matmul (exact row copies) builds all taps
        g_s[...] = jnp.dot(sel3_ref[...], a2,
                           preferred_element_type=jnp.float32).astype(jnp.bfloat16)
        for t in range(t3n):
            p3_s[:, t * c2:(t + 1) * c2] = g_s[t * m3:(t + 1) * m3, :]
        a3 = jnp.dot(p3_s[...], w3_ref[...], preferred_element_type=jnp.float32)
        a3 = _leaky(a3 + b3_ref[...])                           # (m3, c3) f32

        # ---- layer 4: Conv2d(256, 1, 4, 2, 0) + Sigmoid ---------------------
        # the 4x4 window covers the whole map -> VPU multiply + reduce
        for n in range(batch):
            prod = a3[n * hw3:(n + 1) * hw3, :] * w4_ref[...]   # (hw3, c3)
            logit = jnp.sum(prod, keepdims=True) + b4_ref[...]  # (1, 1)
            out_ref[n:n + 1, :] = 1.0 / (1.0 + jnp.exp(-logit))

    def full_spec(shape):
        nd = len(shape)
        return pl.BlockSpec(shape, lambda i, _nd=nd: (0,) * _nd)

    in_arrays_shapes = [(t2n * m2, k1 * k1), w1p.shape, b1p.shape, w2p.shape,
                        b2p.shape, sel3.shape, w3p.shape, b3p.shape,
                        w4p.shape, b4p.shape]

    fused = pl.pallas_call(
        kernel,
        out_shape=jax.ShapeDtypeStruct((batch, 1), jnp.float32),
        grid=(1,),                       # whole problem is one VMEM block
        in_specs=[full_spec(s) for s in in_arrays_shapes],
        out_specs=full_spec((batch, 1)),
        scratch_shapes=[
            pltpu.VMEM((t2n * m2, c1), jnp.bfloat16),   # layer-1 act (dup order)
            pltpu.VMEM((t3n * m3, c2), jnp.bfloat16),   # gathered layer-3 rows
            pltpu.VMEM((m2, t2n * c1), jnp.bfloat16),   # layer-2 patch matrix
            pltpu.VMEM((m3, t3n * c2), jnp.bfloat16),   # layer-3 patch matrix
        ],
        compiler_params=pltpu.CompilerParams(
            dimension_semantics=("arbitrary",)),
    )

    @jax.jit
    def forward(x_nchw):
        x = x_nchw.reshape(batch, h0, w0)               # C == 1
        # layer-1 im2col in the wrapper (tap order i1-major, j1-minor)
        xp = jnp.pad(x, ((0, 0), (p1c, p1c), (p1c, p1c)))
        cols = []
        for i in range(k1):
            for j in range(k1):
                cols.append(xp[:, i:i + s1 * (h1 - 1) + 1:s1,
                                  j:j + s1 * (w1 - 1) + 1:s1][..., None])
        patches_l1 = jnp.concatenate(cols, axis=-1)     # (B, h1, w1, k1*k1)

        # duplicate rows in layer-2 tap order so the kernel never gathers:
        # row = (i2*k2 + j2)*m2 + (n*h2 + y2)*w2 + x2
        pp = jnp.pad(patches_l1, ((0, 0), (p2c, p2c), (p2c, p2c), (0, 0)))
        blocks = []
        for i in range(k2):
            for j in range(k2):
                blk = pp[:, i:i + s2 * (h2 - 1) + 1:s2,
                            j:j + s2 * (w2 - 1) + 1:s2, :]
                blocks.append(blk.reshape(m2, k1 * k1))
        p1_dup = jnp.concatenate(blocks, axis=0).astype(jnp.bfloat16)

        out = fused(p1_dup, w1p, b1p, w2p, b2p, sel3, w3p, b3p, w4p, b4p)
        return out.reshape(batch, 1, h4, w4)

    return forward


# -----------------------------------------------------------------------------
# Deterministic parameter init (PyTorch-like uniform(-1/sqrt(fan_in), ...))
# -----------------------------------------------------------------------------
def init_params(key):
    shapes = [
        (64, 1, 4, 4),
        (128, 64, 4, 4),
        (256, 128, 3, 3),
        (1, 256, 4, 4),
    ]
    params = []
    for s in shapes:
        key, kw_, kb_ = jax.random.split(key, 3)
        fan_in = s[1] * s[2] * s[3]
        bound = 1.0 / jnp.sqrt(fan_in)
        w = jax.random.uniform(kw_, s, jnp.float32, -bound, bound)
        b = jax.random.uniform(kb_, (s[0],), jnp.float32, -bound, bound)
        params.append((w, b))
    return params


# -----------------------------------------------------------------------------
# Pure-JAX f32 reference (numerical sanity check)
# -----------------------------------------------------------------------------
def _reference_forward(x_nchw, params):
    acts = ["leaky", "leaky", "leaky", "sigmoid"]
    x = x_nchw
    for (w, b), (k, s, p), act in zip(params, _CONV_CFG, acts):
        x = jax.lax.conv_general_dilated(
            x, w, (s, s), ((p, p), (p, p)),
            dimension_numbers=("NCHW", "OIHW", "NCHW"),
        ) + b[None, :, None, None]
        if act == "leaky":
            x = jnp.where(x > 0, x, _LEAKY_SLOPE * x)
        else:
            x = jax.nn.sigmoid(x)
    return x


if __name__ == "__main__":
    key = jax.random.PRNGKey(0)
    k_in, k_p = jax.random.split(key)

    # MNIST-like input: batch=2, 1 channel, 28x28 -> output (2, 1, 1, 1)
    x = jax.random.normal(k_in, (2, 1, 28, 28), jnp.float32)
    params = init_params(k_p)

    forward = build_discriminator(params, batch=2, height=28, width=28)
    out = jax.block_until_ready(forward(x))
    assert out.shape == (2, 1, 1, 1), out.shape

    ref = jax.block_until_ready(_reference_forward(x, params))
    # bf16 MXU operands (input patches, conv weights of layers 1-3) with f32
    # accumulation and f32 bias/LeakyReLU/sigmoid: well within 1e-2.
    assert jnp.allclose(out, ref, atol=1e-2), (out, ref)

    print("KERNEL_OK")
</pallas_src>

<mosaic_0001>
module attributes {stable_mosaic.version = 11 : i64} {
  func.func @kernel(%arg0: i32, %arg1: memref<1568x16xbf16, #tpu.memory_space<vmem>>, %arg2: memref<16x64xbf16, #tpu.memory_space<vmem>>, %arg3: memref<1x64xf32, #tpu.memory_space<vmem>>, %arg4: memref<1024x128xbf16, #tpu.memory_space<vmem>>, %arg5: memref<1x128xf32, #tpu.memory_space<vmem>>, %arg6: memref<288x98xbf16, #tpu.memory_space<vmem>>, %arg7: memref<1152x256xbf16, #tpu.memory_space<vmem>>, %arg8: memref<1x256xf32, #tpu.memory_space<vmem>>, %arg9: memref<16x256xf32, #tpu.memory_space<vmem>>, %arg10: memref<1x1xf32, #tpu.memory_space<vmem>>, %arg11: memref<2x1xf32, #tpu.memory_space<vmem>>, %arg12: memref<1568x64xbf16, #tpu.memory_space<vmem>>, %arg13: memref<288x128xbf16, #tpu.memory_space<vmem>>, %arg14: memref<98x1024xbf16, #tpu.memory_space<vmem>>, %arg15: memref<32x1152xbf16, #tpu.memory_space<vmem>>) attributes {dimension_semantics = [#tpu.dimension_semantics<arbitrary>], iteration_bounds = array<i64: 1>, scalar_prefetch = 0 : i64, scratch_operands = 4 : i64, tpu.core_type = #tpu.core_type<tc>, window_params = [{pipeline_mode = #tpu.pipeline_mode<synchronous>, transform_indices = @transform_0, window_bounds = array<i64: 1568, 16>}, {pipeline_mode = #tpu.pipeline_mode<synchronous>, transform_indices = @transform_1, window_bounds = array<i64: 16, 64>}, {pipeline_mode = #tpu.pipeline_mode<synchronous>, transform_indices = @transform_2, window_bounds = array<i64: 1, 64>}, {pipeline_mode = #tpu.pipeline_mode<synchronous>, transform_indices = @transform_3, window_bounds = array<i64: 1024, 128>}, {pipeline_mode = #tpu.pipeline_mode<synchronous>, transform_indices = @transform_4, window_bounds = array<i64: 1, 128>}, {pipeline_mode = #tpu.pipeline_mode<synchronous>, transform_indices = @transform_5, window_bounds = array<i64: 288, 98>}, {pipeline_mode = #tpu.pipeline_mode<synchronous>, transform_indices = @transform_6, window_bounds = array<i64: 1152, 256>}, {pipeline_mode = #tpu.pipeline_mode<synchronous>, transform_indices = @transform_7, window_bounds = array<i64: 1, 256>}, {pipeline_mode = #tpu.pipeline_mode<synchronous>, transform_indices = @transform_8, window_bounds = array<i64: 16, 256>}, {pipeline_mode = #tpu.pipeline_mode<synchronous>, transform_indices = @transform_9, window_bounds = array<i64: 1, 1>}, {pipeline_mode = #tpu.pipeline_mode<synchronous>, transform_indices = @transform_10, window_bounds = array<i64: 2, 1>}]} {
    %c0 = arith.constant 0 : index
    %c0_0 = arith.constant 0 : index
    %0 = vector.load %arg1[%c0, %c0_0] : memref<1568x16xbf16, #tpu.memory_space<vmem>>, vector<1568x16xbf16>
    %c0_1 = arith.constant 0 : index
    %c0_2 = arith.constant 0 : index
    %1 = vector.load %arg2[%c0_1, %c0_2] : memref<16x64xbf16, #tpu.memory_space<vmem>>, vector<16x64xbf16>
    %cst = arith.constant dense<0.000000e+00> : vector<1568x64xf32>
    %2 = tpu.matmul %0, %1, %cst {dimension_numbers = #tpu.dot_dimension_numbers<[1], [0], [0], [1], [0, 0, 1, 1], [], []>} : vector<1568x16xbf16>, vector<16x64xbf16>, vector<1568x64xf32> -> vector<1568x64xf32>
    %c0_3 = arith.constant 0 : index
    %c0_4 = arith.constant 0 : index
    %3 = vector.load %arg3[%c0_3, %c0_4] : memref<1x64xf32, #tpu.memory_space<vmem>>, vector<1x64xf32>
    %4 = vector.broadcast %3 : vector<1x64xf32> to vector<1568x64xf32>
    %5 = arith.addf %2, %4 : vector<1568x64xf32>
    %cst_5 = arith.constant 0.000000e+00 : f32
    %6 = vector.broadcast %cst_5 : f32 to vector<1568x64xf32>
    %7 = arith.cmpf ogt, %5, %6 : vector<1568x64xf32>
    %cst_6 = arith.constant 0.00999999977 : f32
    %8 = vector.broadcast %cst_6 : f32 to vector<1568x64xf32>
    %9 = arith.mulf %8, %5 : vector<1568x64xf32>
    %10 = arith.select %7, %5, %9 : vector<1568x64xi1>, vector<1568x64xf32>
    %11 = arith.truncf %10 : vector<1568x64xf32> to vector<1568x64xbf16>
    %c0_7 = arith.constant 0 : index
    %c0_8 = arith.constant 0 : index
    %12 = vector.load %arg12[%c0_7, %c0_8] : memref<1568x64xbf16, #tpu.memory_space<vmem>>, vector<1568x64xbf16>
    tpu.vector_store %arg12[%c0_7, %c0_8], %11 {strides = array<i32>} : memref<1568x64xbf16, #tpu.memory_space<vmem>>, vector<1568x64xbf16>,
    %c0_9 = arith.constant 0 : index
    %c0_10 = arith.constant 0 : index
    %13 = vector.load %arg12[%c0_9, %c0_10] : memref<1568x64xbf16, #tpu.memory_space<vmem>>, vector<98x64xbf16>
    %c0_11 = arith.constant 0 : index
    %c0_12 = arith.constant 0 : index
    %14 = vector.load %arg14[%c0_11, %c0_12] : memref<98x1024xbf16, #tpu.memory_space<vmem>>, vector<98x64xbf16>
    tpu.vector_store %arg14[%c0_11, %c0_12], %13 {strides = array<i32>} : memref<98x1024xbf16, #tpu.memory_space<vmem>>, vector<98x64xbf16>,
    %c98 = arith.constant 98 : index
    %c0_13 = arith.constant 0 : index
    %15 = vector.load %arg12[%c98, %c0_13] : memref<1568x64xbf16, #tpu.memory_space<vmem>>, vector<98x64xbf16>
    %c0_14 = arith.constant 0 : index
    %c64 = arith.constant 64 : index
    %16 = vector.load %arg14[%c0_14, %c64] : memref<98x1024xbf16, #tpu.memory_space<vmem>>, vector<98x64xbf16>
    tpu.vector_store %arg14[%c0_14, %c64], %15 {strides = array<i32>} : memref<98x1024xbf16, #tpu.memory_space<vmem>>, vector<98x64xbf16>,
    %c196 = arith.constant 196 : index
    %c0_15 = arith.constant 0 : index
    %17 = vector.load %arg12[%c196, %c0_15] : memref<1568x64xbf16, #tpu.memory_space<vmem>>, vector<98x64xbf16>
    %c0_16 = arith.constant 0 : index
    %c128 = arith.constant 128 : index
    %18 = vector.load %arg14[%c0_16, %c128] : memref<98x1024xbf16, #tpu.memory_space<vmem>>, vector<98x64xbf16>
    tpu.vector_store %arg14[%c0_16, %c128], %17 {strides = array<i32>} : memref<98x1024xbf16, #tpu.memory_space<vmem>>, vector<98x64xbf16>,
    %c294 = arith.constant 294 : index
    %c0_17 = arith.constant 0 : index
    %19 = vector.load %arg12[%c294, %c0_17] : memref<1568x64xbf16, #tpu.memory_space<vmem>>, vector<98x64xbf16>
    %c0_18 = arith.constant 0 : index
    %c192 = arith.constant 192 : index
    %20 = vector.load %arg14[%c0_18, %c192] : memref<98x1024xbf16, #tpu.memory_space<vmem>>, vector<98x64xbf16>
    tpu.vector_store %arg14[%c0_18, %c192], %19 {strides = array<i32>} : memref<98x1024xbf16, #tpu.memory_space<vmem>>, vector<98x64xbf16>,
    %c392 = arith.constant 392 : index
    %c0_19 = arith.constant 0 : index
    %21 = vector.load %arg12[%c392, %c0_19] : memref<1568x64xbf16, #tpu.memory_space<vmem>>, vector<98x64xbf16>
    %c0_20 = arith.constant 0 : index
    %c256 = arith.constant 256 : index
    %22 = vector.load %arg14[%c0_20, %c256] : memref<98x1024xbf16, #tpu.memory_space<vmem>>, vector<98x64xbf16>
    tpu.vector_store %arg14[%c0_20, %c256], %21 {strides = array<i32>} : memref<98x1024xbf16, #tpu.memory_space<vmem>>, vector<98x64xbf16>,
    %c490 = arith.constant 490 : index
    %c0_21 = arith.constant 0 : index
    %23 = vector.load %arg12[%c490, %c0_21] : memref<1568x64xbf16, #tpu.memory_space<vmem>>, vector<98x64xbf16>
    %c0_22 = arith.constant 0 : index
    %c320 = arith.constant 320 : index
    %24 = vector.load %arg14[%c0_22, %c320] : memref<98x1024xbf16, #tpu.memory_space<vmem>>, vector<98x64xbf16>
    tpu.vector_store %arg14[%c0_22, %c320], %23 {strides = array<i32>} : memref<98x1024xbf16, #tpu.memory_space<vmem>>, vector<98x64xbf16>,
    %c588 = arith.constant 588 : index
    %c0_23 = arith.constant 0 : index
    %25 = vector.load %arg12[%c588, %c0_23] : memref<1568x64xbf16, #tpu.memory_space<vmem>>, vector<98x64xbf16>
    %c0_24 = arith.constant 0 : index
    %c384 = arith.constant 384 : index
    %26 = vector.load %arg14[%c0_24, %c384] : memref<98x1024xbf16, #tpu.memory_space<vmem>>, vector<98x64xbf16>
    tpu.vector_store %arg14[%c0_24, %c384], %25 {strides = array<i32>} : memref<98x1024xbf16, #tpu.memory_space<vmem>>, vector<98x64xbf16>,
    %c686 = arith.constant 686 : index
    %c0_25 = arith.constant 0 : index
    %27 = vector.load %arg12[%c686, %c0_25] : memref<1568x64xbf16, #tpu.memory_space<vmem>>, vector<98x64xbf16>
    %c0_26 = arith.constant 0 : index
    %c448 = arith.constant 448 : index
    %28 = vector.load %arg14[%c0_26, %c448] : memref<98x1024xbf16, #tpu.memory_space<vmem>>, vector<98x64xbf16>
    tpu.vector_store %arg14[%c0_26, %c448], %27 {strides = array<i32>} : memref<98x1024xbf16, #tpu.memory_space<vmem>>, vector<98x64xbf16>,
    %c784 = arith.constant 784 : index
    %c0_27 = arith.constant 0 : index
    %29 = vector.load %arg12[%c784, %c0_27] : memref<1568x64xbf16, #tpu.memory_space<vmem>>, vector<98x64xbf16>
    %c0_28 = arith.constant 0 : index
    %c512 = arith.constant 512 : index
    %30 = vector.load %arg14[%c0_28, %c512] : memref<98x1024xbf16, #tpu.memory_space<vmem>>, vector<98x64xbf16>
    tpu.vector_store %arg14[%c0_28, %c512], %29 {strides = array<i32>} : memref<98x1024xbf16, #tpu.memory_space<vmem>>, vector<98x64xbf16>,
    %c882 = arith.constant 882 : index
    %c0_29 = arith.constant 0 : index
    %31 = vector.load %arg12[%c882, %c0_29] : memref<1568x64xbf16, #tpu.memory_space<vmem>>, vector<98x64xbf16>
    %c0_30 = arith.constant 0 : index
    %c576 = arith.constant 576 : index
    %32 = vector.load %arg14[%c0_30, %c576] : memref<98x1024xbf16, #tpu.memory_space<vmem>>, vector<98x64xbf16>
    tpu.vector_store %arg14[%c0_30, %c576], %31 {strides = array<i32>} : memref<98x1024xbf16, #tpu.memory_space<vmem>>, vector<98x64xbf16>,
    %c980 = arith.constant 980 : index
    %c0_31 = arith.constant 0 : index
    %33 = vector.load %arg12[%c980, %c0_31] : memref<1568x64xbf16, #tpu.memory_space<vmem>>, vector<98x64xbf16>
    %c0_32 = arith.constant 0 : index
    %c640 = arith.constant 640 : index
    %34 = vector.load %arg14[%c0_32, %c640] : memref<98x1024xbf16, #tpu.memory_space<vmem>>, vector<98x64xbf16>
    tpu.vector_store %arg14[%c0_32, %c640], %33 {strides = array<i32>} : memref<98x1024xbf16, #tpu.memory_space<vmem>>, vector<98x64xbf16>,
    %c1078 = arith.constant 1078 : index
    %c0_33 = arith.constant 0 : index
    %35 = vector.load %arg12[%c1078, %c0_33] : memref<1568x64xbf16, #tpu.memory_space<vmem>>, vector<98x64xbf16>
    %c0_34 = arith.constant 0 : index
    %c704 = arith.constant 704 : index
    %36 = vector.load %arg14[%c0_34, %c704] : memref<98x1024xbf16, #tpu.memory_space<vmem>>, vector<98x64xbf16>
    tpu.vector_store %arg14[%c0_34, %c704], %35 {strides = array<i32>} : memref<98x1024xbf16, #tpu.memory_space<vmem>>, vector<98x64xbf16>,
    %c1176 = arith.constant 1176 : index
    %c0_35 = arith.constant 0 : index
    %37 = vector.load %arg12[%c1176, %c0_35] : memref<1568x64xbf16, #tpu.memory_space<vmem>>, vector<98x64xbf16>
    %c0_36 = arith.constant 0 : index
    %c768 = arith.constant 768 : index
    %38 = vector.load %arg14[%c0_36, %c768] : memref<98x1024xbf16, #tpu.memory_space<vmem>>, vector<98x64xbf16>
    tpu.vector_store %arg14[%c0_36, %c768], %37 {strides = array<i32>} : memref<98x1024xbf16, #tpu.memory_space<vmem>>, vector<98x64xbf16>,
    %c1274 = arith.constant 1274 : index
    %c0_37 = arith.constant 0 : index
    %39 = vector.load %arg12[%c1274, %c0_37] : memref<1568x64xbf16, #tpu.memory_space<vmem>>, vector<98x64xbf16>
    %c0_38 = arith.constant 0 : index
    %c832 = arith.constant 832 : index
    %40 = vector.load %arg14[%c0_38, %c832] : memref<98x1024xbf16, #tpu.memory_space<vmem>>, vector<98x64xbf16>
    tpu.vector_store %arg14[%c0_38, %c832], %39 {strides = array<i32>} : memref<98x1024xbf16, #tpu.memory_space<vmem>>, vector<98x64xbf16>,
    %c1372 = arith.constant 1372 : index
    %c0_39 = arith.constant 0 : index
    %41 = vector.load %arg12[%c1372, %c0_39] : memref<1568x64xbf16, #tpu.memory_space<vmem>>, vector<98x64xbf16>
    %c0_40 = arith.constant 0 : index
    %c896 = arith.constant 896 : index
    %42 = vector.load %arg14[%c0_40, %c896] : memref<98x1024xbf16, #tpu.memory_space<vmem>>, vector<98x64xbf16>
    tpu.vector_store %arg14[%c0_40, %c896], %41 {strides = array<i32>} : memref<98x1024xbf16, #tpu.memory_space<vmem>>, vector<98x64xbf16>,
    %c1470 = arith.constant 1470 : index
    %c0_41 = arith.constant 0 : index
    %43 = vector.load %arg12[%c1470, %c0_41] : memref<1568x64xbf16, #tpu.memory_space<vmem>>, vector<98x64xbf16>
    %c0_42 = arith.constant 0 : index
    %c960 = arith.constant 960 : index
    %44 = vector.load %arg14[%c0_42, %c960] : memref<98x1024xbf16, #tpu.memory_space<vmem>>, vector<98x64xbf16>
    tpu.vector_store %arg14[%c0_42, %c960], %43 {strides = array<i32>} : memref<98x1024xbf16, #tpu.memory_space<vmem>>, vector<98x64xbf16>,
    %45 = tpu.iota {dimensions = array<i32: 0>} : vector<98x1024xi32>
    %46 = arith.sitofp %45 : vector<98x1024xi32> to vector<98x1024xf32>
    %47 = tpu.iota {dimensions = array<i32: 1>} : vector<98x1024xi32>
    %48 = arith.sitofp %47 : vector<98x1024xi32> to vector<98x1024xf32>
    %cst_43 = arith.constant 3.906250e-03 : f32
    %49 = vector.broadcast %cst_43 : f32 to vector<98x1024xf32>
    %50 = arith.mulf %48, %49 : vector<98x1024xf32>
    %51 = math.floor %50 : vector<98x1024xf32>
    %cst_44 = arith.constant 1.562500e-02 : f32
    %52 = vector.broadcast %cst_44 : f32 to vector<98x1024xf32>
    %53 = arith.mulf %48, %52 : vector<98x1024xf32>
    %54 = math.floor %53 : vector<98x1024xf32>
    %cst_45 = arith.constant 4.000000e+00 : f32
    %55 = vector.broadcast %cst_45 : f32 to vector<98x1024xf32>
    %56 = arith.mulf %51, %55 : vector<98x1024xf32>
    %57 = arith.subf %54, %56 : vector<98x1024xf32>
    %cst_46 = arith.constant 0.0204081628 : f32
    %58 = vector.broadcast %cst_46 : f32 to vector<98x1024xf32>
    %59 = arith.mulf %46, %58 : vector<98x1024xf32>
    %60 = math.floor %59 : vector<98x1024xf32>
    %cst_47 = arith.constant 4.900000e+01 : f32
    %61 = vector.broadcast %cst_47 : f32 to vector<98x1024xf32>
    %62 = arith.mulf %60, %61 : vector<98x1024xf32>
    %63 = arith.subf %46, %62 : vector<98x1024xf32>
    %cst_48 = arith.constant 0.142857149 : f32
    %64 = vector.broadcast %cst_48 : f32 to vector<98x1024xf32>
    %65 = arith.mulf %63, %64 : vector<98x1024xf32>
    %66 = math.floor %65 : vector<98x1024xf32>
    %cst_49 = arith.constant 7.000000e+00 : f32
    %67 = vector.broadcast %cst_49 : f32 to vector<98x1024xf32>
    %68 = arith.mulf %66, %67 : vector<98x1024xf32>
    %69 = arith.subf %63, %68 : vector<98x1024xf32>
    %cst_50 = arith.constant 2.000000e+00 : f32
    %70 = vector.broadcast %cst_50 : f32 to vector<98x1024xf32>
    %71 = arith.mulf %70, %66 : vector<98x1024xf32>
    %72 = arith.addf %71, %51 : vector<98x1024xf32>
    %cst_51 = arith.constant 1.000000e+00 : f32
    %73 = vector.broadcast %cst_51 : f32 to vector<98x1024xf32>
    %74 = arith.subf %72, %73 : vector<98x1024xf32>
    %cst_52 = arith.constant 2.000000e+00 : f32
    %75 = vector.broadcast %cst_52 : f32 to vector<98x1024xf32>
    %76 = arith.mulf %75, %69 : vector<98x1024xf32>
    %77 = arith.addf %76, %57 : vector<98x1024xf32>
    %cst_53 = arith.constant 1.000000e+00 : f32
    %78 = vector.broadcast %cst_53 : f32 to vector<98x1024xf32>
    %79 = arith.subf %77, %78 : vector<98x1024xf32>
    %cst_54 = arith.constant 0.000000e+00 : f32
    %80 = vector.broadcast %cst_54 : f32 to vector<98x1024xf32>
    %81 = arith.cmpf oge, %74, %80 : vector<98x1024xf32>
    %cst_55 = arith.constant 1.300000e+01 : f32
    %82 = vector.broadcast %cst_55 : f32 to vector<98x1024xf32>
    %83 = arith.cmpf ole, %74, %82 : vector<98x1024xf32>
    %84 = arith.andi %81, %83 : vector<98x1024xi1>
    %cst_56 = arith.constant 0.000000e+00 : f32
    %85 = vector.broadcast %cst_56 : f32 to vector<98x1024xf32>
    %86 = arith.cmpf oge, %79, %85 : vector<98x1024xf32>
    %87 = arith.andi %84, %86 : vector<98x1024xi1>
    %cst_57 = arith.constant 1.300000e+01 : f32
    %88 = vector.broadcast %cst_57 : f32 to vector<98x1024xf32>
    %89 = arith.cmpf ole, %79, %88 : vector<98x1024xf32>
    %90 = arith.andi %87, %89 : vector<98x1024xi1>
    %c0_58 = arith.constant 0 : index
    %c0_59 = arith.constant 0 : index
    %91 = vector.load %arg14[%c0_58, %c0_59] : memref<98x1024xbf16, #tpu.memory_space<vmem>>, vector<98x1024xbf16>
    %cst_60 = arith.constant 0.000000e+00 : bf16
    %92 = vector.broadcast %cst_60 : bf16 to vector<98x1024xbf16>
    %93 = arith.select %90, %91, %92 : vector<98x1024xi1>, vector<98x1024xbf16>
    %c0_61 = arith.constant 0 : index
    %c0_62 = arith.constant 0 : index
    %94 = vector.load %arg4[%c0_61, %c0_62] : memref<1024x128xbf16, #tpu.memory_space<vmem>>, vector<1024x128xbf16>
    %cst_63 = arith.constant dense<0.000000e+00> : vector<98x128xf32>
    %95 = tpu.matmul %93, %94, %cst_63 {dimension_numbers = #tpu.dot_dimension_numbers<[1], [0], [0], [1], [0, 0, 1, 1], [], []>} : vector<98x1024xbf16>, vector<1024x128xbf16>, vector<98x128xf32> -> vector<98x128xf32>
    %c0_64 = arith.constant 0 : index
    %c0_65 = arith.constant 0 : index
    %96 = vector.load %arg5[%c0_64, %c0_65] : memref<1x128xf32, #tpu.memory_space<vmem>>, vector<1x128xf32>
    %97 = vector.broadcast %96 : vector<1x128xf32> to vector<98x128xf32>
    %98 = arith.addf %95, %97 : vector<98x128xf32>
    %cst_66 = arith.constant 0.000000e+00 : f32
    %99 = vector.broadcast %cst_66 : f32 to vector<98x128xf32>
    %100 = arith.cmpf ogt, %98, %99 : vector<98x128xf32>
    %cst_67 = arith.constant 0.00999999977 : f32
    %101 = vector.broadcast %cst_67 : f32 to vector<98x128xf32>
    %102 = arith.mulf %101, %98 : vector<98x128xf32>
    %103 = arith.select %100, %98, %102 : vector<98x128xi1>, vector<98x128xf32>
    %104 = arith.truncf %103 : vector<98x128xf32> to vector<98x128xbf16>
    %c0_68 = arith.constant 0 : index
    %c0_69 = arith.constant 0 : index
    %105 = vector.load %arg6[%c0_68, %c0_69] : memref<288x98xbf16, #tpu.memory_space<vmem>>, vector<288x98xbf16>
    %cst_70 = arith.constant dense<0.000000e+00> : vector<288x128xf32>
    %106 = tpu.matmul %105, %104, %cst_70 {dimension_numbers = #tpu.dot_dimension_numbers<[1], [0], [0], [1], [0, 0, 1, 1], [], []>} : vector<288x98xbf16>, vector<98x128xbf16>, vector<288x128xf32> -> vector<288x128xf32>
    %107 = arith.truncf %106 : vector<288x128xf32> to vector<288x128xbf16>
    %c0_71 = arith.constant 0 : index
    %c0_72 = arith.constant 0 : index
    %108 = vector.load %arg13[%c0_71, %c0_72] : memref<288x128xbf16, #tpu.memory_space<vmem>>, vector<288x128xbf16>
    tpu.vector_store %arg13[%c0_71, %c0_72], %107 {strides = array<i32>} : memref<288x128xbf16, #tpu.memory_space<vmem>>, vector<288x128xbf16>,
    %c0_73 = arith.constant 0 : index
    %c0_74 = arith.constant 0 : index
    %109 = vector.load %arg13[%c0_73, %c0_74] : memref<288x128xbf16, #tpu.memory_space<vmem>>, vector<32x128xbf16>
    %c0_75 = arith.constant 0 : index
    %c0_76 = arith.constant 0 : index
    %110 = vector.load %arg15[%c0_75, %c0_76] : memref<32x1152xbf16, #tpu.memory_space<vmem>>, vector<32x128xbf16>
    tpu.vector_store %arg15[%c0_75, %c0_76], %109 {strides = array<i32>} : memref<32x1152xbf16, #tpu.memory_space<vmem>>, vector<32x128xbf16>,
    %c32 = arith.constant 32 : index
    %c0_77 = arith.constant 0 : index
    %111 = vector.load %arg13[%c32, %c0_77] : memref<288x128xbf16, #tpu.memory_space<vmem>>, vector<32x128xbf16>
    %c0_78 = arith.constant 0 : index
    %c128_79 = arith.constant 128 : index
    %112 = vector.load %arg15[%c0_78, %c128_79] : memref<32x1152xbf16, #tpu.memory_space<vmem>>, vector<32x128xbf16>
    tpu.vector_store %arg15[%c0_78, %c128_79], %111 {strides = array<i32>} : memref<32x1152xbf16, #tpu.memory_space<vmem>>, vector<32x128xbf16>,
    %c64_80 = arith.constant 64 : index
    %c0_81 = arith.constant 0 : index
    %113 = vector.load %arg13[%c64_80, %c0_81] : memref<288x128xbf16, #tpu.memory_space<vmem>>, vector<32x128xbf16>
    %c0_82 = arith.constant 0 : index
    %c256_83 = arith.constant 256 : index
    %114 = vector.load %arg15[%c0_82, %c256_83] : memref<32x1152xbf16, #tpu.memory_space<vmem>>, vector<32x128xbf16>
    tpu.vector_store %arg15[%c0_82, %c256_83], %113 {strides = array<i32>} : memref<32x1152xbf16, #tpu.memory_space<vmem>>, vector<32x128xbf16>,
    %c96 = arith.constant 96 : index
    %c0_84 = arith.constant 0 : index
    %115 = vector.load %arg13[%c96, %c0_84] : memref<288x128xbf16, #tpu.memory_space<vmem>>, vector<32x128xbf16>
    %c0_85 = arith.constant 0 : index
    %c384_86 = arith.constant 384 : index
    %116 = vector.load %arg15[%c0_85, %c384_86] : memref<32x1152xbf16, #tpu.memory_space<vmem>>, vector<32x128xbf16>
    tpu.vector_store %arg15[%c0_85, %c384_86], %115 {strides = array<i32>} : memref<32x1152xbf16, #tpu.memory_space<vmem>>, vector<32x128xbf16>,
    %c128_87 = arith.constant 128 : index
    %c0_88 = arith.constant 0 : index
    %117 = vector.load %arg13[%c128_87, %c0_88] : memref<288x128xbf16, #tpu.memory_space<vmem>>, vector<32x128xbf16>
    %c0_89 = arith.constant 0 : index
    %c512_90 = arith.constant 512 : index
    %118 = vector.load %arg15[%c0_89, %c512_90] : memref<32x1152xbf16, #tpu.memory_space<vmem>>, vector<32x128xbf16>
    tpu.vector_store %arg15[%c0_89, %c512_90], %117 {strides = array<i32>} : memref<32x1152xbf16, #tpu.memory_space<vmem>>, vector<32x128xbf16>,
    %c160 = arith.constant 160 : index
    %c0_91 = arith.constant 0 : index
    %119 = vector.load %arg13[%c160, %c0_91] : memref<288x128xbf16, #tpu.memory_space<vmem>>, vector<32x128xbf16>
    %c0_92 = arith.constant 0 : index
    %c640_93 = arith.constant 640 : index
    %120 = vector.load %arg15[%c0_92, %c640_93] : memref<32x1152xbf16, #tpu.memory_space<vmem>>, vector<32x128xbf16>
    tpu.vector_store %arg15[%c0_92, %c640_93], %119 {strides = array<i32>} : memref<32x1152xbf16, #tpu.memory_space<vmem>>, vector<32x128xbf16>,
    %c192_94 = arith.constant 192 : index
    %c0_95 = arith.constant 0 : index
    %121 = vector.load %arg13[%c192_94, %c0_95] : memref<288x128xbf16, #tpu.memory_space<vmem>>, vector<32x128xbf16>
    %c0_96 = arith.constant 0 : index
    %c768_97 = arith.constant 768 : index
    %122 = vector.load %arg15[%c0_96, %c768_97] : memref<32x1152xbf16, #tpu.memory_space<vmem>>, vector<32x128xbf16>
    tpu.vector_store %arg15[%c0_96, %c768_97], %121 {strides = array<i32>} : memref<32x1152xbf16, #tpu.memory_space<vmem>>, vector<32x128xbf16>,
    %c224 = arith.constant 224 : index
    %c0_98 = arith.constant 0 : index
    %123 = vector.load %arg13[%c224, %c0_98] : memref<288x128xbf16, #tpu.memory_space<vmem>>, vector<32x128xbf16>
    %c0_99 = arith.constant 0 : index
    %c896_100 = arith.constant 896 : index
    %124 = vector.load %arg15[%c0_99, %c896_100] : memref<32x1152xbf16, #tpu.memory_space<vmem>>, vector<32x128xbf16>
    tpu.vector_store %arg15[%c0_99, %c896_100], %123 {strides = array<i32>} : memref<32x1152xbf16, #tpu.memory_space<vmem>>, vector<32x128xbf16>,
    %c256_101 = arith.constant 256 : index
    %c0_102 = arith.constant 0 : index
    %125 = vector.load %arg13[%c256_101, %c0_102] : memref<288x128xbf16, #tpu.memory_space<vmem>>, vector<32x128xbf16>
    %c0_103 = arith.constant 0 : index
    %c1024 = arith.constant 1024 : index
    %126 = vector.load %arg15[%c0_103, %c1024] : memref<32x1152xbf16, #tpu.memory_space<vmem>>, vector<32x128xbf16>
    tpu.vector_store %arg15[%c0_103, %c1024], %125 {strides = array<i32>} : memref<32x1152xbf16, #tpu.memory_space<vmem>>, vector<32x128xbf16>,
    %c0_104 = arith.constant 0 : index
    %c0_105 = arith.constant 0 : index
    %127 = vector.load %arg15[%c0_104, %c0_105] : memref<32x1152xbf16, #tpu.memory_space<vmem>>, vector<32x1152xbf16>
    %c0_106 = arith.constant 0 : index
    %c0_107 = arith.constant 0 : index
    %128 = vector.load %arg7[%c0_106, %c0_107] : memref<1152x256xbf16, #tpu.memory_space<vmem>>, vector<1152x256xbf16>
    %cst_108 = arith.constant dense<0.000000e+00> : vector<32x256xf32>
    %129 = tpu.matmul %127, %128, %cst_108 {dimension_numbers = #tpu.dot_dimension_numbers<[1], [0], [0], [1], [0, 0, 1, 1], [], []>} : vector<32x1152xbf16>, vector<1152x256xbf16>, vector<32x256xf32> -> vector<32x256xf32>
    %c0_109 = arith.constant 0 : index
    %c0_110 = arith.constant 0 : index
    %130 = vector.load %arg8[%c0_109, %c0_110] : memref<1x256xf32, #tpu.memory_space<vmem>>, vector<1x256xf32>
    %131 = vector.broadcast %130 : vector<1x256xf32> to vector<32x256xf32>
    %132 = arith.addf %129, %131 : vector<32x256xf32>
    %cst_111 = arith.constant 0.000000e+00 : f32
    %133 = vector.broadcast %cst_111 : f32 to vector<32x256xf32>
    %134 = arith.cmpf ogt, %132, %133 : vector<32x256xf32>
    %cst_112 = arith.constant 0.00999999977 : f32
    %135 = vector.broadcast %cst_112 : f32 to vector<32x256xf32>
    %136 = arith.mulf %135, %132 : vector<32x256xf32>
    %137 = arith.select %134, %132, %136 : vector<32x256xi1>, vector<32x256xf32>
    %138 = vector.extract_strided_slice %137 {offsets = [0, 0], sizes = [16, 256], strides = [1, 1]} : vector<32x256xf32> to vector<16x256xf32>
    %c0_113 = arith.constant 0 : index
    %c0_114 = arith.constant 0 : index
    %139 = vector.load %arg9[%c0_113, %c0_114] : memref<16x256xf32, #tpu.memory_space<vmem>>, vector<16x256xf32>
    %140 = arith.mulf %138, %139 : vector<16x256xf32>
    %141 = vector.shape_cast %140 : vector<16x256xf32> to vector<1x16x256xf32>
    %cst_115 = arith.constant dense<0.000000e+00> : vector<1xf32>
    %142 = vector.multi_reduction <add>, %141, %cst_115 [1, 2] : vector<1x16x256xf32> to vector<1xf32>
    %143 = vector.shape_cast %142 : vector<1xf32> to vector<1x1x1xf32>
    %144 = vector.extract %143[0, 0, 0] : f32 from vector<1x1x1xf32>
    %145 = vector.broadcast %144 : f32 to vector<1x1xf32>
    %c0_116 = arith.constant 0 : index
    %c0_117 = arith.constant 0 : index
    %146 = vector.load %arg10[%c0_116, %c0_117] : memref<1x1xf32, #tpu.memory_space<vmem>>, vector<1x1xf32>
    %147 = arith.addf %145, %146 : vector<1x1xf32>
    %cst_118 = arith.constant 0.000000e+00 : f32
    %148 = vector.broadcast %cst_118 : f32 to vector<1x1xf32>
    %149 = arith.subf %148, %147 : vector<1x1xf32>
    %150 = math.exp %149 : vector<1x1xf32>
    %cst_119 = arith.constant 1.000000e+00 : f32
    %151 = vector.broadcast %cst_119 : f32 to vector<1x1xf32>
    %152 = arith.addf %151, %150 : vector<1x1xf32>
    %cst_120 = arith.constant 1.000000e+00 : f32
    %153 = vector.broadcast %cst_120 : f32 to vector<1x1xf32>
    %154 = arith.divf %153, %152 : vector<1x1xf32>
    %c0_121 = arith.constant 0 : index
    %c0_122 = arith.constant 0 : index
    %155 = vector.load %arg11[%c0_121, %c0_122] : memref<2x1xf32, #tpu.memory_space<vmem>>, vector<1x1xf32>
    tpu.vector_store %arg11[%c0_121, %c0_122], %154 {strides = array<i32>} : memref<2x1xf32, #tpu.memory_space<vmem>>, vector<1x1xf32>,
    %156 = vector.extract_strided_slice %137 {offsets = [16, 0], sizes = [16, 256], strides = [1, 1]} : vector<32x256xf32> to vector<16x256xf32>
    %c0_123 = arith.constant 0 : index
    %c0_124 = arith.constant 0 : index
    %157 = vector.load %arg9[%c0_123, %c0_124] : memref<16x256xf32, #tpu.memory_space<vmem>>, vector<16x256xf32>
    %158 = arith.mulf %156, %157 : vector<16x256xf32>
    %159 = vector.shape_cast %158 : vector<16x256xf32> to vector<1x16x256xf32>
    %cst_125 = arith.constant dense<0.000000e+00> : vector<1xf32>
    %160 = vector.multi_reduction <add>, %159, %cst_125 [1, 2] : vector<1x16x256xf32> to vector<1xf32>
    %161 = vector.shape_cast %160 : vector<1xf32> to vector<1x1x1xf32>
    %162 = vector.extract %161[0, 0, 0] : f32 from vector<1x1x1xf32>
    %163 = vector.broadcast %162 : f32 to vector<1x1xf32>
    %c0_126 = arith.constant 0 : index
    %c0_127 = arith.constant 0 : index
    %164 = vector.load %arg10[%c0_126, %c0_127] : memref<1x1xf32, #tpu.memory_space<vmem>>, vector<1x1xf32>
    %165 = arith.addf %163, %164 : vector<1x1xf32>
    %cst_128 = arith.constant 0.000000e+00 : f32
    %166 = vector.broadcast %cst_128 : f32 to vector<1x1xf32>
    %167 = arith.subf %166, %165 : vector<1x1xf32>
    %168 = math.exp %167 : vector<1x1xf32>
    %cst_129 = arith.constant 1.000000e+00 : f32
    %169 = vector.broadcast %cst_129 : f32 to vector<1x1xf32>
    %170 = arith.addf %169, %168 : vector<1x1xf32>
    %cst_130 = arith.constant 1.000000e+00 : f32
    %171 = vector.broadcast %cst_130 : f32 to vector<1x1xf32>
    %172 = arith.divf %171, %170 : vector<1x1xf32>
    %c1 = arith.constant 1 : index
    %c0_131 = arith.constant 0 : index
    %173 = vector.load %arg11[%c1, %c0_131] : memref<2x1xf32, #tpu.memory_space<vmem>>, vector<1x1xf32>
    tpu.vector_store %arg11[%c1, %c0_131], %172 {strides = array<i32>} : memref<2x1xf32, #tpu.memory_space<vmem>>, vector<1x1xf32>,
    return
  }
  func.func @transform_0(%arg0: i32) -> (i32, i32) {
    %c0_i32 = arith.constant 0 : i32
    %c0_i32_0 = arith.constant 0 : i32
    %c0_i32_1 = arith.constant 0 : i32
    return %c0_i32, %c0_i32_0 : i32, i32
  }
  func.func @transform_1(%arg0: i32) -> (i32, i32) {
    %c0_i32 = arith.constant 0 : i32
    %c0_i32_0 = arith.constant 0 : i32
    %c0_i32_1 = arith.constant 0 : i32
    return %c0_i32, %c0_i32_0 : i32, i32
  }
  func.func @transform_2(%arg0: i32) -> (i32, i32) {
    %c0_i32 = arith.constant 0 : i32
    %c0_i32_0 = arith.constant 0 : i32
    %c0_i32_1 = arith.constant 0 : i32
    return %c0_i32, %c0_i32_0 : i32, i32
  }
  func.func @transform_3(%arg0: i32) -> (i32, i32) {
    %c0_i32 = arith.constant 0 : i32
    %c0_i32_0 = arith.constant 0 : i32
    %c0_i32_1 = arith.constant 0 : i32
    return %c0_i32, %c0_i32_0 : i32, i32
  }
  func.func @transform_4(%arg0: i32) -> (i32, i32) {
    %c0_i32 = arith.constant 0 : i32
    %c0_i32_0 = arith.constant 0 : i32
    %c0_i32_1 = arith.constant 0 : i32
    return %c0_i32, %c0_i32_0 : i32, i32
  }
  func.func @transform_5(%arg0: i32) -> (i32, i32) {
    %c0_i32 = arith.constant 0 : i32
    %c0_i32_0 = arith.constant 0 : i32
    %c0_i32_1 = arith.constant 0 : i32
    return %c0_i32, %c0_i32_0 : i32, i32
  }
  func.func @transform_6(%arg0: i32) -> (i32, i32) {
    %c0_i32 = arith.constant 0 : i32
    %c0_i32_0 = arith.constant 0 : i32
    %c0_i32_1 = arith.constant 0 : i32
    return %c0_i32, %c0_i32_0 : i32, i32
  }
  func.func @transform_7(%arg0: i32) -> (i32, i32) {
    %c0_i32 = arith.constant 0 : i32
    %c0_i32_0 = arith.constant 0 : i32
    %c0_i32_1 = arith.constant 0 : i32
    return %c0_i32, %c0_i32_0 : i32, i32
  }
  func.func @transform_8(%arg0: i32) -> (i32, i32) {
    %c0_i32 = arith.constant 0 : i32
    %c0_i32_0 = arith.constant 0 : i32
    %c0_i32_1 = arith.constant 0 : i32
    return %c0_i32, %c0_i32_0 : i32, i32
  }
  func.func @transform_9(%arg0: i32) -> (i32, i32) {
    %c0_i32 = arith.constant 0 : i32
    %c0_i32_0 = arith.constant 0 : i32
    %c0_i32_1 = arith.constant 0 : i32
    return %c0_i32, %c0_i32_0 : i32, i32
  }
  func.func @transform_10(%arg0: i32) -> (i32, i32) {
    %c0_i32 = arith.constant 0 : i32
    %c0_i32_0 = arith.constant 0 : i32
    %c0_i32_1 = arith.constant 0 : i32
    return %c0_i32, %c0_i32_0 : i32, i32
  }
}

</mosaic_0001>

<llo_original>
// kernel: forward.1
$region0: #{forward.1}
  #allocation0 [shape = 'u32[]', space=smem, size = 0x4, offset = 0x4, fixed_abs, tag = 'smem constant byte address 0x4 - core index']
  #allocation1 [shape = 'u32[72,128]{1,0:T(1,128)}', space=vmem, size = 0x9000, scoped, tag = 'internal scratch']
  #allocation2 [shape = 'bf16[1568,64]{1,0:T(8,128)(2,1)}', space=vmem, size = 0x62000, scoped, tag = 'scratch operand']
  #allocation3 [shape = 'bf16[288,128]{1,0:T(8,128)(2,1)}', space=vmem, size = 0x12000, scoped, tag = 'scratch operand']
  #allocation4 [shape = 'bf16[98,1024]{1,0:T(8,128)(2,1)}', space=vmem, size = 0x34000, scoped, tag = 'scratch operand']
  #allocation5 [shape = 'bf16[32,1152]{1,0:T(8,128)(2,1)}', space=vmem, size = 0x12000, scoped, tag = 'scratch operand']
  #allocation6 [shape = 'f32[1,1]{1,0:T(1,128)S(1)}', space=vmem, size = 0x200, scoped, tag = 'scoped memory for forward.1']
  %s0 = inlined_call_operand.vmem [shape: bf16[1568,16], index: 0, kind: input, shape index: {}]
  %s1 = inlined_call_operand.vmem [shape: bf16[16,64], index: 1, kind: input, shape index: {}]
  %s2 = inlined_call_operand.vmem [shape: f32[1,64], index: 2, kind: input, shape index: {}]
  %s3 = inlined_call_operand.vmem [shape: bf16[1024,128], index: 3, kind: input, shape index: {}]
  %s4 = inlined_call_operand.vmem [shape: f32[1,128], index: 4, kind: input, shape index: {}]
  %s5 = inlined_call_operand.vmem [shape: bf16[288,98], index: 5, kind: input, shape index: {}]
  %s6 = inlined_call_operand.vmem [shape: bf16[1152,256], index: 6, kind: input, shape index: {}]
  %s7 = inlined_call_operand.vmem [shape: f32[1,256], index: 7, kind: input, shape index: {}]
  %s8 = inlined_call_operand.vmem [shape: f32[16,256], index: 8, kind: input, shape index: {}]
  %s9 = inlined_call_operand.<no memory space> [shape: f32[1,1], index: 9, kind: input, shape index: {}]
  %s10 = inlined_call_operand.vmem [shape: f32[2,1], index: 10, kind: output, shape index: {}]
  %s11 = sld [smem:[#allocation0]]
  $region50: #{forward.1} parent=0
    _
  %s13 = ssub.s32 1, %s11
  %s14 = scalar_select 0, %s13, %s11
  %v15 = vstv %s9
  %16 = vst [vmem:[#allocation6] sm:$0x1] %v15
  // Predicated region
  $region2: #{forward.1} parent=0 // pred_check
    _
  $region3: #{forward.1} parent=0 // pred_check_branch
    %18 = sbr.rel (0) target = $region5
  $region4: #{forward.1} parent=0 // pred_region
    _
  $region5: #{forward.1} parent=0 // pred_fallthru
    _
  // Predicated region
  $region6: #{forward.1} parent=0 // pred_check
    _
  $region7: #{forward.1} parent=0 // pred_check_branch
    %20 = sbr.rel (0) target = $region9
  $region8: #{forward.1} parent=0 // pred_region
    _
  $region9: #{forward.1} parent=0 // pred_fallthru
    _
  // Predicated region
  $region10: #{forward.1} parent=0 // pred_check
    _
  $region11: #{forward.1} parent=0 // pred_check_branch
    %22 = sbr.rel (0) target = $region13
  $region12: #{forward.1} parent=0 // pred_region
    _
  $region13: #{forward.1} parent=0 // pred_fallthru
    _
  // Predicated region
  $region14: #{forward.1} parent=0 // pred_check
    _
  $region15: #{forward.1} parent=0 // pred_check_branch
    %24 = sbr.rel (0) target = $region17
  $region16: #{forward.1} parent=0 // pred_region
    _
  $region17: #{forward.1} parent=0 // pred_fallthru
    _
  // Predicated region
  $region18: #{forward.1} parent=0 // pred_check
    _
  $region19: #{forward.1} parent=0 // pred_check_branch
    %26 = sbr.rel (0) target = $region21
  $region20: #{forward.1} parent=0 // pred_region
    _
  $region21: #{forward.1} parent=0 // pred_fallthru
    _
  // Predicated region
  $region22: #{forward.1} parent=0 // pred_check
    _
  $region23: #{forward.1} parent=0 // pred_check_branch
    %28 = sbr.rel (0) target = $region25
  $region24: #{forward.1} parent=0 // pred_region
    _
  $region25: #{forward.1} parent=0 // pred_fallthru
    _
  // Predicated region
  $region26: #{forward.1} parent=0 // pred_check
    _
  $region27: #{forward.1} parent=0 // pred_check_branch
    %30 = sbr.rel (0) target = $region29
  $region28: #{forward.1} parent=0 // pred_region
    _
  $region29: #{forward.1} parent=0 // pred_fallthru
    _
  // Predicated region
  $region30: #{forward.1} parent=0 // pred_check
    _
  $region31: #{forward.1} parent=0 // pred_check_branch
    %32 = sbr.rel (0) target = $region33
  $region32: #{forward.1} parent=0 // pred_region
    _
  $region33: #{forward.1} parent=0 // pred_fallthru
    _
  // Predicated region
  $region34: #{forward.1} parent=0 // pred_check
    _
  $region35: #{forward.1} parent=0 // pred_check_branch
    %34 = sbr.rel (0) target = $region37
  $region36: #{forward.1} parent=0 // pred_region
    _
  $region37: #{forward.1} parent=0 // pred_fallthru
    _
  // Predicated region
  $region38: #{forward.1} parent=0 // pred_check
    _
  $region39: #{forward.1} parent=0 // pred_check_branch
    %36 = sbr.rel (0) target = $region41
  $region40: #{forward.1} parent=0 // pred_region
    _
  $region41: #{forward.1} parent=0 // pred_fallthru
    _
  %v38 = vld [vmem:[%s0] sm:$0xf]
  %v39 = vld [vmem:[%s0 + $0x4] sm:$0xf]
  %v40 = vld [vmem:[%s0 + $0x8] sm:$0xf]
  %v41 = vld [vmem:[%s0 + $0xc] sm:$0xf]
  %v42 = vld [vmem:[%s0 + $0x10] sm:$0xf]
  %v43 = vld [vmem:[%s0 + $0x14] sm:$0xf]
  %v44 = vld [vmem:[%s0 + $0x18] sm:$0xf]
  %v45 = vld [vmem:[%s0 + $0x1c] sm:$0xf]
  %v46 = vld [vmem:[%s0 + $0x20] sm:$0xf]
  %v47 = vld [vmem:[%s0 + $0x24] sm:$0xf]
  %v48 = vld [vmem:[%s0 + $0x28] sm:$0xf]
  %v49 = vld [vmem:[%s0 + $0x2c] sm:$0xf]
  %v50 = vld [vmem:[%s0 + $0x30] sm:$0xf]
  %v51 = vld [vmem:[%s0 + $0x34] sm:$0xf]
  %v52 = vld [vmem:[%s0 + $0x38] sm:$0xf]
  %v53 = vld [vmem:[%s0 + $0x3c] sm:$0xf]
  %v54 = vld [vmem:[%s0 + $0x40] sm:$0xf]
  %v55 = vld [vmem:[%s0 + $0x44] sm:$0xf]
  %v56 = vld [vmem:[%s0 + $0x48] sm:$0xf]
  %v57 = vld [vmem:[%s0 + $0x4c] sm:$0xf]
  %v58 = vld [vmem:[%s0 + $0x50] sm:$0xf]
  %v59 = vld [vmem:[%s0 + $0x54] sm:$0xf]
  %v60 = vld [vmem:[%s0 + $0x58] sm:$0xf]
  %v61 = vld [vmem:[%s0 + $0x5c] sm:$0xf]
  %v62 = vld [vmem:[%s0 + $0x60] sm:$0xf]
  %v63 = vld [vmem:[%s0 + $0x64] sm:$0xf]
  %v64 = vld [vmem:[%s0 + $0x68] sm:$0xf]
  %v65 = vld [vmem:[%s0 + $0x6c] sm:$0xf]
  %v66 = vld [vmem:[%s0 + $0x70] sm:$0xf]
  %v67 = vld [vmem:[%s0 + $0x74] sm:$0xf]
  %v68 = vld [vmem:[%s0 + $0x78] sm:$0xf]
  %v69 = vld [vmem:[%s0 + $0x7c] sm:$0xf]
  %v70 = vld [vmem:[%s0 + $0x80] sm:$0xf]
  %v71 = vld [vmem:[%s0 + $0x84] sm:$0xf]
  %v72 = vld [vmem:[%s0 + $0x88] sm:$0xf]
  %v73 = vld [vmem:[%s0 + $0x8c] sm:$0xf]
  %v74 = vld [vmem:[%s0 + $0x90] sm:$0xf]
  %v75 = vld [vmem:[%s0 + $0x94] sm:$0xf]
  %v76 = vld [vmem:[%s0 + $0x98] sm:$0xf]
  %v77 = vld [vmem:[%s0 + $0x9c] sm:$0xf]
  %v78 = vld [vmem:[%s0 + $0xa0] sm:$0xf]
  %v79 = vld [vmem:[%s0 + $0xa4] sm:$0xf]
  %v80 = vld [vmem:[%s0 + $0xa8] sm:$0xf]
  %v81 = vld [vmem:[%s0 + $0xac] sm:$0xf]
  %v82 = vld [vmem:[%s0 + $0xb0] sm:$0xf]
  %v83 = vld [vmem:[%s0 + $0xb4] sm:$0xf]
  %v84 = vld [vmem:[%s0 + $0xb8] sm:$0xf]
  %v85 = vld [vmem:[%s0 + $0xbc] sm:$0xf]
  %v86 = vld [vmem:[%s0 + $0xc0] sm:$0xf]
  %v87 = vld [vmem:[%s0 + $0xc4] sm:$0xf]
  %v88 = vld [vmem:[%s0 + $0xc8] sm:$0xf]
  %v89 = vld [vmem:[%s0 + $0xcc] sm:$0xf]
  %v90 = vld [vmem:[%s0 + $0xd0] sm:$0xf]
  %v91 = vld [vmem:[%s0 + $0xd4] sm:$0xf]
  %v92 = vld [vmem:[%s0 + $0xd8] sm:$0xf]
  %v93 = vld [vmem:[%s0 + $0xdc] sm:$0xf]
  %v94 = vld [vmem:[%s0 + $0xe0] sm:$0xf]
  %v95 = vld [vmem:[%s0 + $0xe4] sm:$0xf]
  %v96 = vld [vmem:[%s0 + $0xe8] sm:$0xf]
  %v97 = vld [vmem:[%s0 + $0xec] sm:$0xf]
  %v98 = vld [vmem:[%s0 + $0xf0] sm:$0xf]
  %v99 = vld [vmem:[%s0 + $0xf4] sm:$0xf]
  %v100 = vld [vmem:[%s0 + $0xf8] sm:$0xf]
  %v101 = vld [vmem:[%s0 + $0xfc] sm:$0xf]
  %v102 = vld [vmem:[%s0 + $0x100] sm:$0xf]
  %v103 = vld [vmem:[%s0 + $0x104] sm:$0xf]
  %v104 = vld [vmem:[%s0 + $0x108] sm:$0xf]
  %v105 = vld [vmem:[%s0 + $0x10c] sm:$0xf]
  %v106 = vld [vmem:[%s0 + $0x110] sm:$0xf]
  %v107 = vld [vmem:[%s0 + $0x114] sm:$0xf]
  %v108 = vld [vmem:[%s0 + $0x118] sm:$0xf]
  %v109 = vld [vmem:[%s0 + $0x11c] sm:$0xf]
  %v110 = vld [vmem:[%s0 + $0x120] sm:$0xf]
  %v111 = vld [vmem:[%s0 + $0x124] sm:$0xf]
  %v112 = vld [vmem:[%s0 + $0x128] sm:$0xf]
  %v113 = vld [vmem:[%s0 + $0x12c] sm:$0xf]
  %v114 = vld [vmem:[%s0 + $0x130] sm:$0xf]
  %v115 = vld [vmem:[%s0 + $0x134] sm:$0xf]
  %v116 = vld [vmem:[%s0 + $0x138] sm:$0xf]
  %v117 = vld [vmem:[%s0 + $0x13c] sm:$0xf]
  %v118 = vld [vmem:[%s0 + $0x140] sm:$0xf]
  %v119 = vld [vmem:[%s0 + $0x144] sm:$0xf]
  %v120 = vld [vmem:[%s0 + $0x148] sm:$0xf]
  %v121 = vld [vmem:[%s0 + $0x14c] sm:$0xf]
  %v122 = vld [vmem:[%s0 + $0x150] sm:$0xf]
  %v123 = vld [vmem:[%s0 + $0x154] sm:$0xf]
  %v124 = vld [vmem:[%s0 + $0x158] sm:$0xf]
  %v125 = vld [vmem:[%s0 + $0x15c] sm:$0xf]
  %v126 = vld [vmem:[%s0 + $0x160] sm:$0xf]
  %v127 = vld [vmem:[%s0 + $0x164] sm:$0xf]
  %v128 = vld [vmem:[%s0 + $0x168] sm:$0xf]
  %v129 = vld [vmem:[%s0 + $0x16c] sm:$0xf]
  %v130 = vld [vmem:[%s0 + $0x170] sm:$0xf]
  %v131 = vld [vmem:[%s0 + $0x174] sm:$0xf]
  %v132 = vld [vmem:[%s0 + $0x178] sm:$0xf]
  %v133 = vld [vmem:[%s0 + $0x17c] sm:$0xf]
  %v134 = vld [vmem:[%s0 + $0x180] sm:$0xf]
  %v135 = vld [vmem:[%s0 + $0x184] sm:$0xf]
  %v136 = vld [vmem:[%s0 + $0x188] sm:$0xf]
  %v137 = vld [vmem:[%s0 + $0x18c] sm:$0xf]
  %v138 = vld [vmem:[%s0 + $0x190] sm:$0xf]
  %v139 = vld [vmem:[%s0 + $0x194] sm:$0xf]
  %v140 = vld [vmem:[%s0 + $0x198] sm:$0xf]
  %v141 = vld [vmem:[%s0 + $0x19c] sm:$0xf]
  %v142 = vld [vmem:[%s0 + $0x1a0] sm:$0xf]
  %v143 = vld [vmem:[%s0 + $0x1a4] sm:$0xf]
  %v144 = vld [vmem:[%s0 + $0x1a8] sm:$0xf]
  %v145 = vld [vmem:[%s0 + $0x1ac] sm:$0xf]
  %v146 = vld [vmem:[%s0 + $0x1b0] sm:$0xf]
  %v147 = vld [vmem:[%s0 + $0x1b4] sm:$0xf]
  %v148 = vld [vmem:[%s0 + $0x1b8] sm:$0xf]
  %v149 = vld [vmem:[%s0 + $0x1bc] sm:$0xf]
  %v150 = vld [vmem:[%s0 + $0x1c0] sm:$0xf]
  %v151 = vld [vmem:[%s0 + $0x1c4] sm:$0xf]
  %v152 = vld [vmem:[%s0 + $0x1c8] sm:$0xf]
  %v153 = vld [vmem:[%s0 + $0x1cc] sm:$0xf]
  %v154 = vld [vmem:[%s0 + $0x1d0] sm:$0xf]
  %v155 = vld [vmem:[%s0 + $0x1d4] sm:$0xf]
  %v156 = vld [vmem:[%s0 + $0x1d8] sm:$0xf]
  %v157 = vld [vmem:[%s0 + $0x1dc] sm:$0xf]
  %v158 = vld [vmem:[%s0 + $0x1e0] sm:$0xf]
  %v159 = vld [vmem:[%s0 + $0x1e4] sm:$0xf]
  %v160 = vld [vmem:[%s0 + $0x1e8] sm:$0xf]
  %v161 = vld [vmem:[%s0 + $0x1ec] sm:$0xf]
  %v162 = vld [vmem:[%s0 + $0x1f0] sm:$0xf]
  %v163 = vld [vmem:[%s0 + $0x1f4] sm:$0xf]
  %v164 = vld [vmem:[%s0 + $0x1f8] sm:$0xf]
  %v165 = vld [vmem:[%s0 + $0x1fc] sm:$0xf]
  %v166 = vld [vmem:[%s0 + $0x200] sm:$0xf]
  %v167 = vld [vmem:[%s0 + $0x204] sm:$0xf]
  %v168 = vld [vmem:[%s0 + $0x208] sm:$0xf]
  %v169 = vld [vmem:[%s0 + $0x20c] sm:$0xf]
  %v170 = vld [vmem:[%s0 + $0x210] sm:$0xf]
  %v171 = vld [vmem:[%s0 + $0x214] sm:$0xf]
  %v172 = vld [vmem:[%s0 + $0x218] sm:$0xf]
  %v173 = vld [vmem:[%s0 + $0x21c] sm:$0xf]
  %v174 = vld [vmem:[%s0 + $0x220] sm:$0xf]
  %v175 = vld [vmem:[%s0 + $0x224] sm:$0xf]
  %v176 = vld [vmem:[%s0 + $0x228] sm:$0xf]
  %v177 = vld [vmem:[%s0 + $0x22c] sm:$0xf]
  %v178 = vld [vmem:[%s0 + $0x230] sm:$0xf]
  %v179 = vld [vmem:[%s0 + $0x234] sm:$0xf]
  %v180 = vld [vmem:[%s0 + $0x238] sm:$0xf]
  %v181 = vld [vmem:[%s0 + $0x23c] sm:$0xf]
  %v182 = vld [vmem:[%s0 + $0x240] sm:$0xf]
  %v183 = vld [vmem:[%s0 + $0x244] sm:$0xf]
  %v184 = vld [vmem:[%s0 + $0x248] sm:$0xf]
  %v185 = vld [vmem:[%s0 + $0x24c] sm:$0xf]
  %v186 = vld [vmem:[%s0 + $0x250] sm:$0xf]
  %v187 = vld [vmem:[%s0 + $0x254] sm:$0xf]
  %v188 = vld [vmem:[%s0 + $0x258] sm:$0xf]
  %v189 = vld [vmem:[%s0 + $0x25c] sm:$0xf]
  %v190 = vld [vmem:[%s0 + $0x260] sm:$0xf]
  %v191 = vld [vmem:[%s0 + $0x264] sm:$0xf]
  %v192 = vld [vmem:[%s0 + $0x268] sm:$0xf]
  %v193 = vld [vmem:[%s0 + $0x26c] sm:$0xf]
  %v194 = vld [vmem:[%s0 + $0x270] sm:$0xf]
  %v195 = vld [vmem:[%s0 + $0x274] sm:$0xf]
  %v196 = vld [vmem:[%s0 + $0x278] sm:$0xf]
  %v197 = vld [vmem:[%s0 + $0x27c] sm:$0xf]
  %v198 = vld [vmem:[%s0 + $0x280] sm:$0xf]
  %v199 = vld [vmem:[%s0 + $0x284] sm:$0xf]
  %v200 = vld [vmem:[%s0 + $0x288] sm:$0xf]
  %v201 = vld [vmem:[%s0 + $0x28c] sm:$0xf]
  %v202 = vld [vmem:[%s0 + $0x290] sm:$0xf]
  %v203 = vld [vmem:[%s0 + $0x294] sm:$0xf]
  %v204 = vld [vmem:[%s0 + $0x298] sm:$0xf]
  %v205 = vld [vmem:[%s0 + $0x29c] sm:$0xf]
  %v206 = vld [vmem:[%s0 + $0x2a0] sm:$0xf]
  %v207 = vld [vmem:[%s0 + $0x2a4] sm:$0xf]
  %v208 = vld [vmem:[%s0 + $0x2a8] sm:$0xf]
  %v209 = vld [vmem:[%s0 + $0x2ac] sm:$0xf]
  %v210 = vld [vmem:[%s0 + $0x2b0] sm:$0xf]
  %v211 = vld [vmem:[%s0 + $0x2b4] sm:$0xf]
  %v212 = vld [vmem:[%s0 + $0x2b8] sm:$0xf]
  %v213 = vld [vmem:[%s0 + $0x2bc] sm:$0xf]
  %v214 = vld [vmem:[%s0 + $0x2c0] sm:$0xf]
  %v215 = vld [vmem:[%s0 + $0x2c4] sm:$0xf]
  %v216 = vld [vmem:[%s0 + $0x2c8] sm:$0xf]
  %v217 = vld [vmem:[%s0 + $0x2cc] sm:$0xf]
  %v218 = vld [vmem:[%s0 + $0x2d0] sm:$0xf]
  %v219 = vld [vmem:[%s0 + $0x2d4] sm:$0xf]
  %v220 = vld [vmem:[%s0 + $0x2d8] sm:$0xf]
  %v221 = vld [vmem:[%s0 + $0x2dc] sm:$0xf]
  %v222 = vld [vmem:[%s0 + $0x2e0] sm:$0xf]
  %v223 = vld [vmem:[%s0 + $0x2e4] sm:$0xf]
  %v224 = vld [vmem:[%s0 + $0x2e8] sm:$0xf]
  %v225 = vld [vmem:[%s0 + $0x2ec] sm:$0xf]
  %v226 = vld [vmem:[%s0 + $0x2f0] sm:$0xf]
  %v227 = vld [vmem:[%s0 + $0x2f4] sm:$0xf]
  %v228 = vld [vmem:[%s0 + $0x2f8] sm:$0xf]
  %v229 = vld [vmem:[%s0 + $0x2fc] sm:$0xf]
  %v230 = vld [vmem:[%s0 + $0x300] sm:$0xf]
  %v231 = vld [vmem:[%s0 + $0x304] sm:$0xf]
  %v232 = vld [vmem:[%s0 + $0x308] sm:$0xf]
  %v233 = vld [vmem:[%s0 + $0x30c] sm:$0xf]
  %v234 = vld [vmem:[%s1] sm:$0xf]
  %v235 = vld [vmem:[%s1 + $0x4] sm:$0xf]
  %v236 = vld [vmem:[%s2] sm:$0x1]
  %v238 = vperm.slane %v236, 0
  %v436 = vunpack.c.l.b16 %v38
  %v437 = vunpack.c.l.b16 %v39
  %v438 = vunpack.c.l.b16 %v40
  %v439 = vunpack.c.l.b16 %v41
  %v440 = vunpack.c.l.b16 %v42
  %v441 = vunpack.c.l.b16 %v43
  %v442 = vunpack.c.l.b16 %v44
  %v443 = vunpack.c.l.b16 %v45
  %v444 = vunpack.c.l.b16 %v46
  %v445 = vunpack.c.l.b16 %v47
  %v446 = vunpack.c.l.b16 %v48
  %v447 = vunpack.c.l.b16 %v49
  %v448 = vunpack.c.l.b16 %v50
  %v449 = vunpack.c.l.b16 %v51
  %v450 = vunpack.c.l.b16 %v52
  %v451 = vunpack.c.l.b16 %v53
  %v452 = vunpack.c.l.b16 %v54
  %v453 = vunpack.c.l.b16 %v55
  %v454 = vunpack.c.l.b16 %v56
  %v455 = vunpack.c.l.b16 %v57
  %v456 = vunpack.c.l.b16 %v58
  %v457 = vunpack.c.l.b16 %v59
  %v458 = vunpack.c.l.b16 %v60
  %v459 = vunpack.c.l.b16 %v61
  %v460 = vunpack.c.l.b16 %v62
  %v461 = vunpack.c.l.b16 %v63
  %v462 = vunpack.c.l.b16 %v64
  %v463 = vunpack.c.l.b16 %v65
  %v464 = vunpack.c.l.b16 %v66
  %v465 = vunpack.c.l.b16 %v67
  %v466 = vunpack.c.l.b16 %v68
  %v467 = vunpack.c.l.b16 %v69
  %v468 = vunpack.c.l.b16 %v70
  %v469 = vunpack.c.l.b16 %v71
  %v470 = vunpack.c.l.b16 %v72
  %v471 = vunpack.c.l.b16 %v73
  %v472 = vunpack.c.l.b16 %v74
  %v473 = vunpack.c.l.b16 %v75
  %v474 = vunpack.c.l.b16 %v76
  %v475 = vunpack.c.l.b16 %v77
  %v476 = vunpack.c.l.b16 %v78
  %v477 = vunpack.c.l.b16 %v79
  %v478 = vunpack.c.l.b16 %v80
  %v479 = vunpack.c.l.b16 %v81
  %v480 = vunpack.c.l.b16 %v82
  %v481 = vunpack.c.l.b16 %v83
  %v482 = vunpack.c.l.b16 %v84
  %v483 = vunpack.c.l.b16 %v85
  %v484 = vunpack.c.l.b16 %v86
  %v485 = vunpack.c.l.b16 %v87
  %v486 = vunpack.c.l.b16 %v88
  %v487 = vunpack.c.l.b16 %v89
  %v488 = vunpack.c.l.b16 %v90
  %v489 = vunpack.c.l.b16 %v91
  %v490 = vunpack.c.l.b16 %v92
  %v491 = vunpack.c.l.b16 %v93
  %v492 = vunpack.c.l.b16 %v94
  %v493 = vunpack.c.l.b16 %v95
  %v494 = vunpack.c.l.b16 %v96
  %v495 = vunpack.c.l.b16 %v97
  %v496 = vunpack.c.l.b16 %v98
  %v497 = vunpack.c.l.b16 %v99
  %v498 = vunpack.c.l.b16 %v100
  %v499 = vunpack.c.l.b16 %v101
  %v500 = vunpack.c.l.b16 %v102
  %v501 = vunpack.c.l.b16 %v103
  %v502 = vunpack.c.l.b16 %v104
  %v503 = vunpack.c.l.b16 %v105
  %v504 = vunpack.c.l.b16 %v106
  %v505 = vunpack.c.l.b16 %v107
  %v506 = vunpack.c.l.b16 %v108
  %v507 = vunpack.c.l.b16 %v109
  %v508 = vunpack.c.l.b16 %v110
  %v509 = vunpack.c.l.b16 %v111
  %v510 = vunpack.c.l.b16 %v112
  %v511 = vunpack.c.l.b16 %v113
  %v512 = vunpack.c.l.b16 %v114
  %v513 = vunpack.c.l.b16 %v115
  %v514 = vunpack.c.l.b16 %v116
  %v515 = vunpack.c.l.b16 %v117
  %v516 = vunpack.c.l.b16 %v118
  %v517 = vunpack.c.l.b16 %v119
  %v518 = vunpack.c.l.b16 %v120
  %v519 = vunpack.c.l.b16 %v121
  %v520 = vunpack.c.l.b16 %v122
  %v521 = vunpack.c.l.b16 %v123
  %v522 = vunpack.c.l.b16 %v124
  %v523 = vunpack.c.l.b16 %v125
  %v524 = vunpack.c.l.b16 %v126
  %v525 = vunpack.c.l.b16 %v127
  %v526 = vunpack.c.l.b16 %v128
  %v527 = vunpack.c.l.b16 %v129
  %v528 = vunpack.c.l.b16 %v130
  %v529 = vunpack.c.l.b16 %v131
  %v530 = vunpack.c.l.b16 %v132
  %v531 = vunpack.c.l.b16 %v133
  %v532 = vunpack.c.l.b16 %v134
  %v533 = vunpack.c.l.b16 %v135
  %v534 = vunpack.c.l.b16 %v136
  %v535 = vunpack.c.l.b16 %v137
  %v536 = vunpack.c.l.b16 %v138
  %v537 = vunpack.c.l.b16 %v139
  %v538 = vunpack.c.l.b16 %v140
  %v539 = vunpack.c.l.b16 %v141
  %v540 = vunpack.c.l.b16 %v142
  %v541 = vunpack.c.l.b16 %v143
  %v542 = vunpack.c.l.b16 %v144
  %v543 = vunpack.c.l.b16 %v145
  %v544 = vunpack.c.l.b16 %v146
  %v545 = vunpack.c.l.b16 %v147
  %v546 = vunpack.c.l.b16 %v148
  %v547 = vunpack.c.l.b16 %v149
  %v548 = vunpack.c.l.b16 %v150
  %v549 = vunpack.c.l.b16 %v151
  %v550 = vunpack.c.l.b16 %v152
  %v551 = vunpack.c.l.b16 %v153
  %v552 = vunpack.c.l.b16 %v154
  %v553 = vunpack.c.l.b16 %v155
  %v554 = vunpack.c.l.b16 %v156
  %v555 = vunpack.c.l.b16 %v157
  %v556 = vunpack.c.l.b16 %v158
  %v557 = vunpack.c.l.b16 %v159
  %v558 = vunpack.c.l.b16 %v160
  %v559 = vunpack.c.l.b16 %v161
  %v560 = vunpack.c.l.b16 %v162
  %v561 = vunpack.c.l.b16 %v163
  %v562 = vunpack.c.l.b16 %v164
  %v563 = vunpack.c.l.b16 %v165
  %v564 = vunpack.c.l.b16 %v166
  %v565 = vunpack.c.l.b16 %v167
  %v566 = vunpack.c.l.b16 %v168
  %v567 = vunpack.c.l.b16 %v169
  %v568 = vunpack.c.l.b16 %v170
  %v569 = vunpack.c.l.b16 %v171
  %v570 = vunpack.c.l.b16 %v172
  %v571 = vunpack.c.l.b16 %v173
  %v572 = vunpack.c.l.b16 %v174
  %v573 = vunpack.c.l.b16 %v175
  %v574 = vunpack.c.l.b16 %v176
  %v575 = vunpack.c.l.b16 %v177
  %v576 = vunpack.c.l.b16 %v178
  %v577 = vunpack.c.l.b16 %v179
  %v578 = vunpack.c.l.b16 %v180
  %v579 = vunpack.c.l.b16 %v181
  %v580 = vunpack.c.l.b16 %v182
  %v581 = vunpack.c.l.b16 %v183
  %v582 = vunpack.c.l.b16 %v184
  %v583 = vunpack.c.l.b16 %v185
  %v584 = vunpack.c.l.b16 %v186
  %v585 = vunpack.c.l.b16 %v187
  %v586 = vunpack.c.l.b16 %v188
  %v587 = vunpack.c.l.b16 %v189
  %v588 = vunpack.c.l.b16 %v190
  %v589 = vunpack.c.l.b16 %v191
  %v590 = vunpack.c.l.b16 %v192
  %v591 = vunpack.c.l.b16 %v193
  %v592 = vunpack.c.l.b16 %v194
  %v593 = vunpack.c.l.b16 %v195
  %v594 = vunpack.c.l.b16 %v196
  %v595 = vunpack.c.l.b16 %v197
  %v596 = vunpack.c.l.b16 %v198
  %v597 = vunpack.c.l.b16 %v199
  %v598 = vunpack.c.l.b16 %v200
  %v599 = vunpack.c.l.b16 %v201
  %v600 = vunpack.c.l.b16 %v202
  %v601 = vunpack.c.l.b16 %v203
  %v602 = vunpack.c.l.b16 %v204
  %v603 = vunpack.c.l.b16 %v205
  %v604 = vunpack.c.l.b16 %v206
  %v605 = vunpack.c.l.b16 %v207
  %v606 = vunpack.c.l.b16 %v208
  %v607 = vunpack.c.l.b16 %v209
  %v608 = vunpack.c.l.b16 %v210
  %v609 = vunpack.c.l.b16 %v211
  %v610 = vunpack.c.l.b16 %v212
  %v611 = vunpack.c.l.b16 %v213
  %v612 = vunpack.c.l.b16 %v214
  %v613 = vunpack.c.l.b16 %v215
  %v614 = vunpack.c.l.b16 %v216
  %v615 = vunpack.c.l.b16 %v217
  %v616 = vunpack.c.l.b16 %v218
  %v617 = vunpack.c.l.b16 %v219
  %v618 = vunpack.c.l.b16 %v220
  %v619 = vunpack.c.l.b16 %v221
  %v620 = vunpack.c.l.b16 %v222
  %v621 = vunpack.c.l.b16 %v223
  %v622 = vunpack.c.l.b16 %v224
  %v623 = vunpack.c.l.b16 %v225
  %v624 = vunpack.c.l.b16 %v226
  %v625 = vunpack.c.l.b16 %v227
  %v626 = vunpack.c.l.b16 %v228
  %v627 = vunpack.c.l.b16 %v229
  %v628 = vunpack.c.l.b16 %v230
  %v629 = vunpack.c.l.b16 %v231
  %v630 = vunpack.c.l.b16 %v232
  %v631 = vunpack.c.l.b16 %v233
  %v632 = vpack.c.b16 %v437, %v436
  %v633 = vpack.c.b16 %v439, %v438
  %v634 = vpack.c.b16 %v441, %v440
  %v635 = vpack.c.b16 %v443, %v442
  %v636 = vpack.c.b16 %v445, %v444
  %v637 = vpack.c.b16 %v447, %v446
  %v638 = vpack.c.b16 %v449, %v448
  %v639 = vpack.c.b16 %v451, %v450
  %v640 = vpack.c.b16 %v453, %v452
  %v641 = vpack.c.b16 %v455, %v454
  %v642 = vpack.c.b16 %v457, %v456
  %v643 = vpack.c.b16 %v459, %v458
  %v644 = vpack.c.b16 %v461, %v460
  %v645 = vpack.c.b16 %v463, %v462
  %v646 = vpack.c.b16 %v465, %v464
  %v647 = vpack.c.b16 %v467, %v466
  %v648 = vpack.c.b16 %v469, %v468
  %v649 = vpack.c.b16 %v471, %v470
  %v650 = vpack.c.b16 %v473, %v472
  %v651 = vpack.c.b16 %v475, %v474
  %v652 = vpack.c.b16 %v477, %v476
  %v653 = vpack.c.b16 %v479, %v478
  %v654 = vpack.c.b16 %v481, %v480
  %v655 = vpack.c.b16 %v483, %v482
  %v656 = vpack.c.b16 %v485, %v484
  %v657 = vpack.c.b16 %v487, %v486
  %v658 = vpack.c.b16 %v489, %v488
  %v659 = vpack.c.b16 %v491, %v490
  %v660 = vpack.c.b16 %v493, %v492
  %v661 = vpack.c.b16 %v495, %v494
  %v662 = vpack.c.b16 %v497, %v496
  %v663 = vpack.c.b16 %v499, %v498
  %v664 = vpack.c.b16 %v501, %v500
  %v665 = vpack.c.b16 %v503, %v502
  %v666 = vpack.c.b16 %v505, %v504
  %v667 = vpack.c.b16 %v507, %v506
  %v668 = vpack.c.b16 %v509, %v508
  %v669 = vpack.c.b16 %v511, %v510
  %v670 = vpack.c.b16 %v513, %v512
  %v671 = vpack.c.b16 %v515, %v514
  %v672 = vpack.c.b16 %v517, %v516
  %v673 = vpack.c.b16 %v519, %v518
  %v674 = vpack.c.b16 %v521, %v520
  %v675 = vpack.c.b16 %v523, %v522
  %v676 = vpack.c.b16 %v525, %v524
  %v677 = vpack.c.b16 %v527, %v526
  %v678 = vpack.c.b16 %v529, %v528
  %v679 = vpack.c.b16 %v531, %v530
  %v680 = vpack.c.b16 %v533, %v532
  %v681 = vpack.c.b16 %v535, %v534
  %v682 = vpack.c.b16 %v537, %v536
  %v683 = vpack.c.b16 %v539, %v538
  %v684 = vpack.c.b16 %v541, %v540
  %v685 = vpack.c.b16 %v543, %v542
  %v686 = vpack.c.b16 %v545, %v544
  %v687 = vpack.c.b16 %v547, %v546
  %v688 = vpack.c.b16 %v549, %v548
  %v689 = vpack.c.b16 %v551, %v550
  %v690 = vpack.c.b16 %v553, %v552
  %v691 = vpack.c.b16 %v555, %v554
  %v692 = vpack.c.b16 %v557, %v556
  %v693 = vpack.c.b16 %v559, %v558
  %v694 = vpack.c.b16 %v561, %v560
  %v695 = vpack.c.b16 %v563, %v562
  %v696 = vpack.c.b16 %v565, %v564
  %v697 = vpack.c.b16 %v567, %v566
  %v698 = vpack.c.b16 %v569, %v568
  %v699 = vpack.c.b16 %v571, %v570
  %v700 = vpack.c.b16 %v573, %v572
  %v701 = vpack.c.b16 %v575, %v574
  %v702 = vpack.c.b16 %v577, %v576
  %v703 = vpack.c.b16 %v579, %v578
  %v704 = vpack.c.b16 %v581, %v580
  %v705 = vpack.c.b16 %v583, %v582
  %v706 = vpack.c.b16 %v585, %v584
  %v707 = vpack.c.b16 %v587, %v586
  %v708 = vpack.c.b16 %v589, %v588
  %v709 = vpack.c.b16 %v591, %v590
  %v710 = vpack.c.b16 %v593, %v592
  %v711 = vpack.c.b16 %v595, %v594
  %v712 = vpack.c.b16 %v597, %v596
  %v713 = vpack.c.b16 %v599, %v598
  %v714 = vpack.c.b16 %v601, %v600
  %v715 = vpack.c.b16 %v603, %v602
  %v716 = vpack.c.b16 %v605, %v604
  %v717 = vpack.c.b16 %v607, %v606
  %v718 = vpack.c.b16 %v609, %v608
  %v719 = vpack.c.b16 %v611, %v610
  %v720 = vpack.c.b16 %v613, %v612
  %v721 = vpack.c.b16 %v615, %v614
  %v722 = vpack.c.b16 %v617, %v616
  %v723 = vpack.c.b16 %v619, %v618
  %v724 = vpack.c.b16 %v621, %v620
  %v725 = vpack.c.b16 %v623, %v622
  %v726 = vpack.c.b16 %v625, %v624
  %v727 = vpack.c.b16 %v627, %v626
  %v728 = vpack.c.b16 %v629, %v628
  %v729 = vpack.c.b16 %v631, %v630
  %v732 = vunpack.c.l.b16 %v234
  %v733 = vunpack.c.l.b16 %v235
  %v734 = vpack.c.b16 %v733, %v732
  %vm736 = vcmask 130048
  %v738 = vsel %vm736, %v632, 0
  %v741 = vsel %vm736, %v633, 0
  %v744 = vsel %vm736, %v634, 0
  %v747 = vsel %vm736, %v635, 0
  %v750 = vsel %vm736, %v636, 0
  %v753 = vsel %vm736, %v637, 0
  %v756 = vsel %vm736, %v638, 0
  %v759 = vsel %vm736, %v639, 0
  %v762 = vsel %vm736, %v640, 0
  %v765 = vsel %vm736, %v641, 0
  %v768 = vsel %vm736, %v642, 0
  %v771 = vsel %vm736, %v643, 0
  %v774 = vsel %vm736, %v644, 0
  %v777 = vsel %vm736, %v645, 0
  %v780 = vsel %vm736, %v646, 0
  %v783 = vsel %vm736, %v647, 0
  %v786 = vsel %vm736, %v648, 0
  %v789 = vsel %vm736, %v649, 0
  %v792 = vsel %vm736, %v650, 0
  %v795 = vsel %vm736, %v651, 0
  %v798 = vsel %vm736, %v652, 0
  %v801 = vsel %vm736, %v653, 0
  %v804 = vsel %vm736, %v654, 0
  %v807 = vsel %vm736, %v655, 0
  %v810 = vsel %vm736, %v656, 0
  %v813 = vsel %vm736, %v657, 0
  %v816 = vsel %vm736, %v658, 0
  %v819 = vsel %vm736, %v659, 0
  %v822 = vsel %vm736, %v660, 0
  %v825 = vsel %vm736, %v661, 0
  %v828 = vsel %vm736, %v662, 0
  %v831 = vsel %vm736, %v663, 0
  %v834 = vsel %vm736, %v664, 0
  %v837 = vsel %vm736, %v665, 0
  %v840 = vsel %vm736, %v666, 0
  %v843 = vsel %vm736, %v667, 0
  %v846 = vsel %vm736, %v668, 0
  %v849 = vsel %vm736, %v669, 0
  %v852 = vsel %vm736, %v670, 0
  %v855 = vsel %vm736, %v671, 0
  %v858 = vsel %vm736, %v672, 0
  %v861 = vsel %vm736, %v673, 0
  %v864 = vsel %vm736, %v674, 0
  %v867 = vsel %vm736, %v675, 0
  %v870 = vsel %vm736, %v676, 0
  %v873 = vsel %vm736, %v677, 0
  %v876 = vsel %vm736, %v678, 0
  %v879 = vsel %vm736, %v679, 0
  %v882 = vsel %vm736, %v680, 0
  %v885 = vsel %vm736, %v681, 0
  %v888 = vsel %vm736, %v682, 0
  %v891 = vsel %vm736, %v683, 0
  %v894 = vsel %vm736, %v684, 0
  %v897 = vsel %vm736, %v685, 0
  %v900 = vsel %vm736, %v686, 0
  %v903 = vsel %vm736, %v687, 0
  %v906 = vsel %vm736, %v688, 0
  %v909 = vsel %vm736, %v689, 0
  %v912 = vsel %vm736, %v690, 0
  %v915 = vsel %vm736, %v691, 0
  %v918 = vsel %vm736, %v692, 0
  %v921 = vsel %vm736, %v693, 0
  %v924 = vsel %vm736, %v694, 0
  %v927 = vsel %vm736, %v695, 0
  %v930 = vsel %vm736, %v696, 0
  %v933 = vsel %vm736, %v697, 0
  %v936 = vsel %vm736, %v698, 0
  %v939 = vsel %vm736, %v699, 0
  %v942 = vsel %vm736, %v700, 0
  %v945 = vsel %vm736, %v701, 0
  %v948 = vsel %vm736, %v702, 0
  %v951 = vsel %vm736, %v703, 0
  %v954 = vsel %vm736, %v704, 0
  %v957 = vsel %vm736, %v705, 0
  %v960 = vsel %vm736, %v706, 0
  %v963 = vsel %vm736, %v707, 0
  %v966 = vsel %vm736, %v708, 0
  %v969 = vsel %vm736, %v709, 0
  %v972 = vsel %vm736, %v710, 0
  %v975 = vsel %vm736, %v711, 0
  %v978 = vsel %vm736, %v712, 0
  %v981 = vsel %vm736, %v713, 0
  %v984 = vsel %vm736, %v714, 0
  %v987 = vsel %vm736, %v715, 0
  %v990 = vsel %vm736, %v716, 0
  %v993 = vsel %vm736, %v717, 0
  %v996 = vsel %vm736, %v718, 0
  %v999 = vsel %vm736, %v719, 0
  %v1002 = vsel %vm736, %v720, 0
  %v1005 = vsel %vm736, %v721, 0
  %v1008 = vsel %vm736, %v722, 0
  %v1011 = vsel %vm736, %v723, 0
  %v1014 = vsel %vm736, %v724, 0
  %v1017 = vsel %vm736, %v725, 0
  %v1020 = vsel %vm736, %v726, 0
  %v1023 = vsel %vm736, %v727, 0
  %v1026 = vsel %vm736, %v728, 0
  %v1029 = vsel %vm736, %v729, 0
  %1031 = vmatpush.bf16.msra.mxu0 0
  %1032 = vmatpush.bf16.msra.mxu0 0
  %1033 = vmatpush.bf16.msra.mxu0 0
  %1034 = vmatpush.bf16.msra.mxu0 0
  %1035 = vmatpush.bf16.msra.mxu0 0
  %1036 = vmatpush.bf16.msra.mxu0 0
  %1037 = vmatpush.bf16.msra.mxu0 0
  %1038 = vmatpush.bf16.msra.mxu0 %v734
  %1039 = vmatmul.bf16.gmra.mxu0 %v738
  %v1040 = vpop.f32.mrf.mxu0
  %v1041 = vadd.f32 %v238, %v1040
  %v1042 = vpop.f32.mrf.mxu0
  %v1043 = vadd.f32 %v238, %v1042
  %1044 = vmatmul.bf16.gmra.mxu0 %v741
  %v1045 = vpop.f32.mrf.mxu0
  %v1046 = vadd.f32 %v238, %v1045
  %v1047 = vpop.f32.mrf.mxu0
  %v1048 = vadd.f32 %v238, %v1047
  %1049 = vmatmul.bf16.gmra.mxu0 %v744
  %v1050 = vpop.f32.mrf.mxu0
  %v1051 = vadd.f32 %v238, %v1050
  %v1052 = vpop.f32.mrf.mxu0
  %v1053 = vadd.f32 %v238, %v1052
  %1054 = vmatmul.bf16.gmra.mxu0 %v747
  %v1055 = vpop.f32.mrf.mxu0
  %v1056 = vadd.f32 %v238, %v1055
  %v1057 = vpop.f32.mrf.mxu0
  %v1058 = vadd.f32 %v238, %v1057
  %1059 = vmatmul.bf16.gmra.mxu0 %v750
  %v1060 = vpop.f32.mrf.mxu0
  %v1061 = vadd.f32 %v238, %v1060
  %v1062 = vpop.f32.mrf.mxu0
  %v1063 = vadd.f32 %v238, %v1062
  %1064 = vmatmul.bf16.gmra.mxu0 %v753
  %v1065 = vpop.f32.mrf.mxu0
  %v1066 = vadd.f32 %v238, %v1065
  %v1067 = vpop.f32.mrf.mxu0
  %v1068 = vadd.f32 %v238, %v1067
  %1069 = vmatmul.bf16.gmra.mxu0 %v756
  %v1070 = vpop.f32.mrf.mxu0
  %v1071 = vadd.f32 %v238, %v1070
  %v1072 = vpop.f32.mrf.mxu0
  %v1073 = vadd.f32 %v238, %v1072
  %1074 = vmatmul.bf16.gmra.mxu0 %v759
  %v1075 = vpop.f32.mrf.mxu0
  %v1076 = vadd.f32 %v238, %v1075
  %v1077 = vpop.f32.mrf.mxu0
  %v1078 = vadd.f32 %v238, %v1077
  %1079 = vmatmul.bf16.gmra.mxu0 %v762
  %v1080 = vpop.f32.mrf.mxu0
  %v1081 = vadd.f32 %v238, %v1080
  %v1082 = vpop.f32.mrf.mxu0
  %v1083 = vadd.f32 %v238, %v1082
  %1084 = vmatmul.bf16.gmra.mxu0 %v765
  %v1085 = vpop.f32.mrf.mxu0
  %v1086 = vadd.f32 %v238, %v1085
  %v1087 = vpop.f32.mrf.mxu0
  %v1088 = vadd.f32 %v238, %v1087
  %1089 = vmatmul.bf16.gmra.mxu0 %v768
  %v1090 = vpop.f32.mrf.mxu0
  %v1091 = vadd.f32 %v238, %v1090
  %v1092 = vpop.f32.mrf.mxu0
  %v1093 = vadd.f32 %v238, %v1092
  %1094 = vmatmul.bf16.gmra.mxu0 %v771
  %v1095 = vpop.f32.mrf.mxu0
  %v1096 = vadd.f32 %v238, %v1095
  %v1097 = vpop.f32.mrf.mxu0
  %v1098 = vadd.f32 %v238, %v1097
  %1099 = vmatmul.bf16.gmra.mxu0 %v774
  %v1100 = vpop.f32.mrf.mxu0
  %v1101 = vadd.f32 %v238, %v1100
  %v1102 = vpop.f32.mrf.mxu0
  %v1103 = vadd.f32 %v238, %v1102
  %1104 = vmatmul.bf16.gmra.mxu0 %v777
  %v1105 = vpop.f32.mrf.mxu0
  %v1106 = vadd.f32 %v238, %v1105
  %v1107 = vpop.f32.mrf.mxu0
  %v1108 = vadd.f32 %v238, %v1107
  %1109 = vmatmul.bf16.gmra.mxu0 %v780
  %v1110 = vpop.f32.mrf.mxu0
  %v1111 = vadd.f32 %v238, %v1110
  %v1112 = vpop.f32.mrf.mxu0
  %v1113 = vadd.f32 %v238, %v1112
  %1114 = vmatmul.bf16.gmra.mxu0 %v783
  %v1115 = vpop.f32.mrf.mxu0
  %v1116 = vadd.f32 %v238, %v1115
  %v1117 = vpop.f32.mrf.mxu0
  %v1118 = vadd.f32 %v238, %v1117
  %1119 = vmatmul.bf16.gmra.mxu0 %v786
  %v1120 = vpop.f32.mrf.mxu0
  %v1121 = vadd.f32 %v238, %v1120
  %v1122 = vpop.f32.mrf.mxu0
  %v1123 = vadd.f32 %v238, %v1122
  %1124 = vmatmul.bf16.gmra.mxu0 %v789
  %v1125 = vpop.f32.mrf.mxu0
  %v1126 = vadd.f32 %v238, %v1125
  %v1127 = vpop.f32.mrf.mxu0
  %v1128 = vadd.f32 %v238, %v1127
  %1129 = vmatmul.bf16.gmra.mxu0 %v792
  %v1130 = vpop.f32.mrf.mxu0
  %v1131 = vadd.f32 %v238, %v1130
  %v1132 = vpop.f32.mrf.mxu0
  %v1133 = vadd.f32 %v238, %v1132
  %1134 = vmatmul.bf16.gmra.mxu0 %v795
  %v1135 = vpop.f32.mrf.mxu0
  %v1136 = vadd.f32 %v238, %v1135
  %v1137 = vpop.f32.mrf.mxu0
  %v1138 = vadd.f32 %v238, %v1137
  %1139 = vmatmul.bf16.gmra.mxu0 %v798
  %v1140 = vpop.f32.mrf.mxu0
  %v1141 = vadd.f32 %v238, %v1140
  %v1142 = vpop.f32.mrf.mxu0
  %v1143 = vadd.f32 %v238, %v1142
  %1144 = vmatmul.bf16.gmra.mxu0 %v801
  %v1145 = vpop.f32.mrf.mxu0
  %v1146 = vadd.f32 %v238, %v1145
  %v1147 = vpop.f32.mrf.mxu0
  %v1148 = vadd.f32 %v238, %v1147
  %1149 = vmatmul.bf16.gmra.mxu0 %v804
  %v1150 = vpop.f32.mrf.mxu0
  %v1151 = vadd.f32 %v238, %v1150
  %v1152 = vpop.f32.mrf.mxu0
  %v1153 = vadd.f32 %v238, %v1152
  %1154 = vmatmul.bf16.gmra.mxu0 %v807
  %v1155 = vpop.f32.mrf.mxu0
  %v1156 = vadd.f32 %v238, %v1155
  %v1157 = vpop.f32.mrf.mxu0
  %v1158 = vadd.f32 %v238, %v1157
  %1159 = vmatmul.bf16.gmra.mxu0 %v810
  %v1160 = vpop.f32.mrf.mxu0
  %v1161 = vadd.f32 %v238, %v1160
  %v1162 = vpop.f32.mrf.mxu0
  %v1163 = vadd.f32 %v238, %v1162
  %1164 = vmatmul.bf16.gmra.mxu0 %v813
  %v1165 = vpop.f32.mrf.mxu0
  %v1166 = vadd.f32 %v238, %v1165
  %v1167 = vpop.f32.mrf.mxu0
  %v1168 = vadd.f32 %v238, %v1167
  %1169 = vmatmul.bf16.gmra.mxu0 %v816
  %v1170 = vpop.f32.mrf.mxu0
  %v1171 = vadd.f32 %v238, %v1170
  %v1172 = vpop.f32.mrf.mxu0
  %v1173 = vadd.f32 %v238, %v1172
  %1174 = vmatmul.bf16.gmra.mxu0 %v819
  %v1175 = vpop.f32.mrf.mxu0
  %v1176 = vadd.f32 %v238, %v1175
  %v1177 = vpop.f32.mrf.mxu0
  %v1178 = vadd.f32 %v238, %v1177
  %1179 = vmatmul.bf16.gmra.mxu0 %v822
  %v1180 = vpop.f32.mrf.mxu0
  %v1181 = vadd.f32 %v238, %v1180
  %v1182 = vpop.f32.mrf.mxu0
  %v1183 = vadd.f32 %v238, %v1182
  %1184 = vmatmul.bf16.gmra.mxu0 %v825
  %v1185 = vpop.f32.mrf.mxu0
  %v1186 = vadd.f32 %v238, %v1185
  %v1187 = vpop.f32.mrf.mxu0
  %v1188 = vadd.f32 %v238, %v1187
  %1189 = vmatmul.bf16.gmra.mxu0 %v828
  %v1190 = vpop.f32.mrf.mxu0
  %v1191 = vadd.f32 %v238, %v1190
  %v1192 = vpop.f32.mrf.mxu0
  %v1193 = vadd.f32 %v238, %v1192
  %1194 = vmatmul.bf16.gmra.mxu0 %v831
  %v1195 = vpop.f32.mrf.mxu0
  %v1196 = vadd.f32 %v238, %v1195
  %v1197 = vpop.f32.mrf.mxu0
  %v1198 = vadd.f32 %v238, %v1197
  %1199 = vmatmul.bf16.gmra.mxu0 %v834
  %v1200 = vpop.f32.mrf.mxu0
  %v1201 = vadd.f32 %v238, %v1200
  %v1202 = vpop.f32.mrf.mxu0
  %v1203 = vadd.f32 %v238, %v1202
  %1204 = vmatmul.bf16.gmra.mxu0 %v837
  %v1205 = vpop.f32.mrf.mxu0
  %v1206 = vadd.f32 %v238, %v1205
  %v1207 = vpop.f32.mrf.mxu0
  %v1208 = vadd.f32 %v238, %v1207
  %1209 = vmatmul.bf16.gmra.mxu0 %v840
  %v1210 = vpop.f32.mrf.mxu0
  %v1211 = vadd.f32 %v238, %v1210
  %v1212 = vpop.f32.mrf.mxu0
  %v1213 = vadd.f32 %v238, %v1212
  %1214 = vmatmul.bf16.gmra.mxu0 %v843
  %v1215 = vpop.f32.mrf.mxu0
  %v1216 = vadd.f32 %v238, %v1215
  %v1217 = vpop.f32.mrf.mxu0
  %v1218 = vadd.f32 %v238, %v1217
  %1219 = vmatmul.bf16.gmra.mxu0 %v846
  %v1220 = vpop.f32.mrf.mxu0
  %v1221 = vadd.f32 %v238, %v1220
  %v1222 = vpop.f32.mrf.mxu0
  %v1223 = vadd.f32 %v238, %v1222
  %1224 = vmatmul.bf16.gmra.mxu0 %v849
  %v1225 = vpop.f32.mrf.mxu0
  %v1226 = vadd.f32 %v238, %v1225
  %v1227 = vpop.f32.mrf.mxu0
  %v1228 = vadd.f32 %v238, %v1227
  %1229 = vmatmul.bf16.gmra.mxu0 %v852
  %v1230 = vpop.f32.mrf.mxu0
  %v1231 = vadd.f32 %v238, %v1230
  %v1232 = vpop.f32.mrf.mxu0
  %v1233 = vadd.f32 %v238, %v1232
  %1234 = vmatmul.bf16.gmra.mxu0 %v855
  %v1235 = vpop.f32.mrf.mxu0
  %v1236 = vadd.f32 %v238, %v1235
  %v1237 = vpop.f32.mrf.mxu0
  %v1238 = vadd.f32 %v238, %v1237
  %1239 = vmatmul.bf16.gmra.mxu0 %v858
  %v1240 = vpop.f32.mrf.mxu0
  %v1241 = vadd.f32 %v238, %v1240
  %v1242 = vpop.f32.mrf.mxu0
  %v1243 = vadd.f32 %v238, %v1242
  %1244 = vmatmul.bf16.gmra.mxu0 %v861
  %v1245 = vpop.f32.mrf.mxu0
  %v1246 = vadd.f32 %v238, %v1245
  %v1247 = vpop.f32.mrf.mxu0
  %v1248 = vadd.f32 %v238, %v1247
  %1249 = vmatmul.bf16.gmra.mxu0 %v864
  %v1250 = vpop.f32.mrf.mxu0
  %v1251 = vadd.f32 %v238, %v1250
  %v1252 = vpop.f32.mrf.mxu0
  %v1253 = vadd.f32 %v238, %v1252
  %1254 = vmatmul.bf16.gmra.mxu0 %v867
  %v1255 = vpop.f32.mrf.mxu0
  %v1256 = vadd.f32 %v238, %v1255
  %v1257 = vpop.f32.mrf.mxu0
  %v1258 = vadd.f32 %v238, %v1257
  %1259 = vmatmul.bf16.gmra.mxu0 %v870
  %v1260 = vpop.f32.mrf.mxu0
  %v1261 = vadd.f32 %v238, %v1260
  %v1262 = vpop.f32.mrf.mxu0
  %v1263 = vadd.f32 %v238, %v1262
  %1264 = vmatmul.bf16.gmra.mxu0 %v873
  %v1265 = vpop.f32.mrf.mxu0
  %v1266 = vadd.f32 %v238, %v1265
  %v1267 = vpop.f32.mrf.mxu0
  %v1268 = vadd.f32 %v238, %v1267
  %1269 = vmatmul.bf16.gmra.mxu0 %v876
  %v1270 = vpop.f32.mrf.mxu0
  %v1271 = vadd.f32 %v238, %v1270
  %v1272 = vpop.f32.mrf.mxu0
  %v1273 = vadd.f32 %v238, %v1272
  %1274 = vmatmul.bf16.gmra.mxu0 %v879
  %v1275 = vpop.f32.mrf.mxu0
  %v1276 = vadd.f32 %v238, %v1275
  %v1277 = vpop.f32.mrf.mxu0
  %v1278 = vadd.f32 %v238, %v1277
  %1279 = vmatmul.bf16.gmra.mxu0 %v882
  %v1280 = vpop.f32.mrf.mxu0
  %v1281 = vadd.f32 %v238, %v1280
  %v1282 = vpop.f32.mrf.mxu0
  %v1283 = vadd.f32 %v238, %v1282
  %1284 = vmatmul.bf16.gmra.mxu0 %v885
  %v1285 = vpop.f32.mrf.mxu0
  %v1286 = vadd.f32 %v238, %v1285
  %v1287 = vpop.f32.mrf.mxu0
  %v1288 = vadd.f32 %v238, %v1287
  %1289 = vmatmul.bf16.gmra.mxu0 %v888
  %v1290 = vpop.f32.mrf.mxu0
  %v1291 = vadd.f32 %v238, %v1290
  %v1292 = vpop.f32.mrf.mxu0
  %v1293 = vadd.f32 %v238, %v1292
  %1294 = vmatmul.bf16.gmra.mxu0 %v891
  %v1295 = vpop.f32.mrf.mxu0
  %v1296 = vadd.f32 %v238, %v1295
  %v1297 = vpop.f32.mrf.mxu0
  %v1298 = vadd.f32 %v238, %v1297
  %1299 = vmatmul.bf16.gmra.mxu0 %v894
  %v1300 = vpop.f32.mrf.mxu0
  %v1301 = vadd.f32 %v238, %v1300
  %v1302 = vpop.f32.mrf.mxu0
  %v1303 = vadd.f32 %v238, %v1302
  %1304 = vmatmul.bf16.gmra.mxu0 %v897
  %v1305 = vpop.f32.mrf.mxu0
  %v1306 = vadd.f32 %v238, %v1305
  %v1307 = vpop.f32.mrf.mxu0
  %v1308 = vadd.f32 %v238, %v1307
  %1309 = vmatmul.bf16.gmra.mxu0 %v900
  %v1310 = vpop.f32.mrf.mxu0
  %v1311 = vadd.f32 %v238, %v1310
  %v1312 = vpop.f32.mrf.mxu0
  %v1313 = vadd.f32 %v238, %v1312
  %1314 = vmatmul.bf16.gmra.mxu0 %v903
  %v1315 = vpop.f32.mrf.mxu0
  %v1316 = vadd.f32 %v238, %v1315
  %v1317 = vpop.f32.mrf.mxu0
  %v1318 = vadd.f32 %v238, %v1317
  %1319 = vmatmul.bf16.gmra.mxu0 %v906
  %v1320 = vpop.f32.mrf.mxu0
  %v1321 = vadd.f32 %v238, %v1320
  %v1322 = vpop.f32.mrf.mxu0
  %v1323 = vadd.f32 %v238, %v1322
  %1324 = vmatmul.bf16.gmra.mxu0 %v909
  %v1325 = vpop.f32.mrf.mxu0
  %v1326 = vadd.f32 %v238, %v1325
  %v1327 = vpop.f32.mrf.mxu0
  %v1328 = vadd.f32 %v238, %v1327
  %1329 = vmatmul.bf16.gmra.mxu0 %v912
  %v1330 = vpop.f32.mrf.mxu0
  %v1331 = vadd.f32 %v238, %v1330
  %v1332 = vpop.f32.mrf.mxu0
  %v1333 = vadd.f32 %v238, %v1332
  %1334 = vmatmul.bf16.gmra.mxu0 %v915
  %v1335 = vpop.f32.mrf.mxu0
  %v1336 = vadd.f32 %v238, %v1335
  %v1337 = vpop.f32.mrf.mxu0
  %v1338 = vadd.f32 %v238, %v1337
  %1339 = vmatmul.bf16.gmra.mxu0 %v918
  %v1340 = vpop.f32.mrf.mxu0
  %v1341 = vadd.f32 %v238, %v1340
  %v1342 = vpop.f32.mrf.mxu0
  %v1343 = vadd.f32 %v238, %v1342
  %1344 = vmatmul.bf16.gmra.mxu0 %v921
  %v1345 = vpop.f32.mrf.mxu0
  %v1346 = vadd.f32 %v238, %v1345
  %v1347 = vpop.f32.mrf.mxu0
  %v1348 = vadd.f32 %v238, %v1347
  %1349 = vmatmul.bf16.gmra.mxu0 %v924
  %v1350 = vpop.f32.mrf.mxu0
  %v1351 = vadd.f32 %v238, %v1350
  %v1352 = vpop.f32.mrf.mxu0
  %v1353 = vadd.f32 %v238, %v1352
  %1354 = vmatmul.bf16.gmra.mxu0 %v927
  %v1355 = vpop.f32.mrf.mxu0
  %v1356 = vadd.f32 %v238, %v1355
  %v1357 = vpop.f32.mrf.mxu0
  %v1358 = vadd.f32 %v238, %v1357
  %1359 = vmatmul.bf16.gmra.mxu0 %v930
  %v1360 = vpop.f32.mrf.mxu0
  %v1361 = vadd.f32 %v238, %v1360
  %v1362 = vpop.f32.mrf.mxu0
  %v1363 = vadd.f32 %v238, %v1362
  %1364 = vmatmul.bf16.gmra.mxu0 %v933
  %v1365 = vpop.f32.mrf.mxu0
  %v1366 = vadd.f32 %v238, %v1365
  %v1367 = vpop.f32.mrf.mxu0
  %v1368 = vadd.f32 %v238, %v1367
  %1369 = vmatmul.bf16.gmra.mxu0 %v936
  %v1370 = vpop.f32.mrf.mxu0
  %v1371 = vadd.f32 %v238, %v1370
  %v1372 = vpop.f32.mrf.mxu0
  %v1373 = vadd.f32 %v238, %v1372
  %1374 = vmatmul.bf16.gmra.mxu0 %v939
  %v1375 = vpop.f32.mrf.mxu0
  %v1376 = vadd.f32 %v238, %v1375
  %v1377 = vpop.f32.mrf.mxu0
  %v1378 = vadd.f32 %v238, %v1377
  %1379 = vmatmul.bf16.gmra.mxu0 %v942
  %v1380 = vpop.f32.mrf.mxu0
  %v1381 = vadd.f32 %v238, %v1380
  %v1382 = vpop.f32.mrf.mxu0
  %v1383 = vadd.f32 %v238, %v1382
  %1384 = vmatmul.bf16.gmra.mxu0 %v945
  %v1385 = vpop.f32.mrf.mxu0
  %v1386 = vadd.f32 %v238, %v1385
  %v1387 = vpop.f32.mrf.mxu0
  %v1388 = vadd.f32 %v238, %v1387
  %1389 = vmatmul.bf16.gmra.mxu0 %v948
  %v1390 = vpop.f32.mrf.mxu0
  %v1391 = vadd.f32 %v238, %v1390
  %v1392 = vpop.f32.mrf.mxu0
  %v1393 = vadd.f32 %v238, %v1392
  %1394 = vmatmul.bf16.gmra.mxu0 %v951
  %v1395 = vpop.f32.mrf.mxu0
  %v1396 = vadd.f32 %v238, %v1395
  %v1397 = vpop.f32.mrf.mxu0
  %v1398 = vadd.f32 %v238, %v1397
  %1399 = vmatmul.bf16.gmra.mxu0 %v954
  %v1400 = vpop.f32.mrf.mxu0
  %v1401 = vadd.f32 %v238, %v1400
  %v1402 = vpop.f32.mrf.mxu0
  %v1403 = vadd.f32 %v238, %v1402
  %1404 = vmatmul.bf16.gmra.mxu0 %v957
  %v1405 = vpop.f32.mrf.mxu0
  %v1406 = vadd.f32 %v238, %v1405
  %v1407 = vpop.f32.mrf.mxu0
  %v1408 = vadd.f32 %v238, %v1407
  %1409 = vmatmul.bf16.gmra.mxu0 %v960
  %v1410 = vpop.f32.mrf.mxu0
  %v1411 = vadd.f32 %v238, %v1410
  %v1412 = vpop.f32.mrf.mxu0
  %v1413 = vadd.f32 %v238, %v1412
  %1414 = vmatmul.bf16.gmra.mxu0 %v963
  %v1415 = vpop.f32.mrf.mxu0
  %v1416 = vadd.f32 %v238, %v1415
  %v1417 = vpop.f32.mrf.mxu0
  %v1418 = vadd.f32 %v238, %v1417
  %1419 = vmatmul.bf16.gmra.mxu0 %v966
  %v1420 = vpop.f32.mrf.mxu0
  %v1421 = vadd.f32 %v238, %v1420
  %v1422 = vpop.f32.mrf.mxu0
  %v1423 = vadd.f32 %v238, %v1422
  %1424 = vmatmul.bf16.gmra.mxu0 %v969
  %v1425 = vpop.f32.mrf.mxu0
  %v1426 = vadd.f32 %v238, %v1425
  %v1427 = vpop.f32.mrf.mxu0
  %v1428 = vadd.f32 %v238, %v1427
  %1429 = vmatmul.bf16.gmra.mxu0 %v972
  %v1430 = vpop.f32.mrf.mxu0
  %v1431 = vadd.f32 %v238, %v1430
  %v1432 = vpop.f32.mrf.mxu0
  %v1433 = vadd.f32 %v238, %v1432
  %1434 = vmatmul.bf16.gmra.mxu0 %v975
  %v1435 = vpop.f32.mrf.mxu0
  %v1436 = vadd.f32 %v238, %v1435
  %v1437 = vpop.f32.mrf.mxu0
  %v1438 = vadd.f32 %v238, %v1437
  %1439 = vmatmul.bf16.gmra.mxu0 %v978
  %v1440 = vpop.f32.mrf.mxu0
  %v1441 = vadd.f32 %v238, %v1440
  %v1442 = vpop.f32.mrf.mxu0
  %v1443 = vadd.f32 %v238, %v1442
  %1444 = vmatmul.bf16.gmra.mxu0 %v981
  %v1445 = vpop.f32.mrf.mxu0
  %v1446 = vadd.f32 %v238, %v1445
  %v1447 = vpop.f32.mrf.mxu0
  %v1448 = vadd.f32 %v238, %v1447
  %1449 = vmatmul.bf16.gmra.mxu0 %v984
  %v1450 = vpop.f32.mrf.mxu0
  %v1451 = vadd.f32 %v238, %v1450
  %v1452 = vpop.f32.mrf.mxu0
  %v1453 = vadd.f32 %v238, %v1452
  %1454 = vmatmul.bf16.gmra.mxu0 %v987
  %v1455 = vpop.f32.mrf.mxu0
  %v1456 = vadd.f32 %v238, %v1455
  %v1457 = vpop.f32.mrf.mxu0
  %v1458 = vadd.f32 %v238, %v1457
  %1459 = vmatmul.bf16.gmra.mxu0 %v990
  %v1460 = vpop.f32.mrf.mxu0
  %v1461 = vadd.f32 %v238, %v1460
  %v1462 = vpop.f32.mrf.mxu0
  %v1463 = vadd.f32 %v238, %v1462
  %1464 = vmatmul.bf16.gmra.mxu0 %v993
  %v1465 = vpop.f32.mrf.mxu0
  %v1466 = vadd.f32 %v238, %v1465
  %v1467 = vpop.f32.mrf.mxu0
  %v1468 = vadd.f32 %v238, %v1467
  %1469 = vmatmul.bf16.gmra.mxu0 %v996
  %v1470 = vpop.f32.mrf.mxu0
  %v1471 = vadd.f32 %v238, %v1470
  %v1472 = vpop.f32.mrf.mxu0
  %v1473 = vadd.f32 %v238, %v1472
  %1474 = vmatmul.bf16.gmra.mxu0 %v999
  %v1475 = vpop.f32.mrf.mxu0
  %v1476 = vadd.f32 %v238, %v1475
  %v1477 = vpop.f32.mrf.mxu0
  %v1478 = vadd.f32 %v238, %v1477
  %1479 = vmatmul.bf16.gmra.mxu0 %v1002
  %v1480 = vpop.f32.mrf.mxu0
  %v1481 = vadd.f32 %v238, %v1480
  %v1482 = vpop.f32.mrf.mxu0
  %v1483 = vadd.f32 %v238, %v1482
  %1484 = vmatmul.bf16.gmra.mxu0 %v1005
  %v1485 = vpop.f32.mrf.mxu0
  %v1486 = vadd.f32 %v238, %v1485
  %v1487 = vpop.f32.mrf.mxu0
  %v1488 = vadd.f32 %v238, %v1487
  %1489 = vmatmul.bf16.gmra.mxu0 %v1008
  %v1490 = vpop.f32.mrf.mxu0
  %v1491 = vadd.f32 %v238, %v1490
  %v1492 = vpop.f32.mrf.mxu0
  %v1493 = vadd.f32 %v238, %v1492
  %1494 = vmatmul.bf16.gmra.mxu0 %v1011
  %v1495 = vpop.f32.mrf.mxu0
  %v1496 = vadd.f32 %v238, %v1495
  %v1497 = vpop.f32.mrf.mxu0
  %v1498 = vadd.f32 %v238, %v1497
  %1499 = vmatmul.bf16.gmra.mxu0 %v1014
  %v1500 = vpop.f32.mrf.mxu0
  %v1501 = vadd.f32 %v238, %v1500
  %v1502 = vpop.f32.mrf.mxu0
  %v1503 = vadd.f32 %v238, %v1502
  %1504 = vmatmul.bf16.gmra.mxu0 %v1017
  %v1505 = vpop.f32.mrf.mxu0
  %v1506 = vadd.f32 %v238, %v1505
  %v1507 = vpop.f32.mrf.mxu0
  %v1508 = vadd.f32 %v238, %v1507
  %1509 = vmatmul.bf16.gmra.mxu0 %v1020
  %v1510 = vpop.f32.mrf.mxu0
  %v1511 = vadd.f32 %v238, %v1510
  %v1512 = vpop.f32.mrf.mxu0
  %v1513 = vadd.f32 %v238, %v1512
  %1514 = vmatmul.bf16.gmra.mxu0 %v1023
  %v1515 = vpop.f32.mrf.mxu0
  %v1516 = vadd.f32 %v238, %v1515
  %v1517 = vpop.f32.mrf.mxu0
  %v1518 = vadd.f32 %v238, %v1517
  %1519 = vmatmul.bf16.gmra.mxu0 %v1026
  %v1520 = vpop.f32.mrf.mxu0
  %v1521 = vadd.f32 %v238, %v1520
  %v1522 = vpop.f32.mrf.mxu0
  %v1523 = vadd.f32 %v238, %v1522
  %1524 = vmatmul.bf16.gmra.mxu0 %v1029
  %v1525 = vpop.f32.mrf.mxu0
  %v1526 = vadd.f32 %v238, %v1525
  %v1527 = vpop.f32.mrf.mxu0
  %v1528 = vadd.f32 %v238, %v1527
  %1529 = vdwg.mxu0
  %vm1530 = vcmp.gt.f32.partialorder %v1041, 0.0
  %vm1531 = vcmp.gt.f32.partialorder %v1043, 0.0
  %vm1532 = vcmp.gt.f32.partialorder %v1046, 0.0
  %vm1533 = vcmp.gt.f32.partialorder %v1048, 0.0
  %vm1534 = vcmp.gt.f32.partialorder %v1051, 0.0
  %vm1535 = vcmp.gt.f32.partialorder %v1053, 0.0
  %vm1536 = vcmp.gt.f32.partialorder %v1056, 0.0
  %vm1537 = vcmp.gt.f32.partialorder %v1058, 0.0
  %vm1538 = vcmp.gt.f32.partialorder %v1061, 0.0
  %vm1539 = vcmp.gt.f32.partialorder %v1063, 0.0
  %vm1540 = vcmp.gt.f32.partialorder %v1066, 0.0
  %vm1541 = vcmp.gt.f32.partialorder %v1068, 0.0
  %vm1542 = vcmp.gt.f32.partialorder %v1071, 0.0
  %vm1543 = vcmp.gt.f32.partialorder %v1073, 0.0
  %vm1544 = vcmp.gt.f32.partialorder %v1076, 0.0
  %vm1545 = vcmp.gt.f32.partialorder %v1078, 0.0
  %vm1546 = vcmp.gt.f32.partialorder %v1081, 0.0
  %vm1547 = vcmp.gt.f32.partialorder %v1083, 0.0
  %vm1548 = vcmp.gt.f32.partialorder %v1086, 0.0
  %vm1549 = vcmp.gt.f32.partialorder %v1088, 0.0
  %vm1550 = vcmp.gt.f32.partialorder %v1091, 0.0
  %vm1551 = vcmp.gt.f32.partialorder %v1093, 0.0
  %vm1552 = vcmp.gt.f32.partialorder %v1096, 0.0
  %vm1553 = vcmp.gt.f32.partialorder %v1098, 0.0
  %vm1554 = vcmp.gt.f32.partialorder %v1101, 0.0
  %vm1555 = vcmp.gt.f32.partialorder %v1103, 0.0
  %vm1556 = vcmp.gt.f32.partialorder %v1106, 0.0
  %vm1557 = vcmp.gt.f32.partialorder %v1108, 0.0
  %vm1558 = vcmp.gt.f32.partialorder %v1111, 0.0
  %vm1559 = vcmp.gt.f32.partialorder %v1113, 0.0
  %vm1560 = vcmp.gt.f32.partialorder %v1116, 0.0
  %vm1561 = vcmp.gt.f32.partialorder %v1118, 0.0
  %vm1562 = vcmp.gt.f32.partialorder %v1121, 0.0
  %vm1563 = vcmp.gt.f32.partialorder %v1123, 0.0
  %vm1564 = vcmp.gt.f32.partialorder %v1126, 0.0
  %vm1565 = vcmp.gt.f32.partialorder %v1128, 0.0
  %vm1566 = vcmp.gt.f32.partialorder %v1131, 0.0
  %vm1567 = vcmp.gt.f32.partialorder %v1133, 0.0
  %vm1568 = vcmp.gt.f32.partialorder %v1136, 0.0
  %vm1569 = vcmp.gt.f32.partialorder %v1138, 0.0
  %vm1570 = vcmp.gt.f32.partialorder %v1141, 0.0
  %vm1571 = vcmp.gt.f32.partialorder %v1143, 0.0
  %vm1572 = vcmp.gt.f32.partialorder %v1146, 0.0
  %vm1573 = vcmp.gt.f32.partialorder %v1148, 0.0
  %vm1574 = vcmp.gt.f32.partialorder %v1151, 0.0
  %vm1575 = vcmp.gt.f32.partialorder %v1153, 0.0
  %vm1576 = vcmp.gt.f32.partialorder %v1156, 0.0
  %vm1577 = vcmp.gt.f32.partialorder %v1158, 0.0
  %vm1578 = vcmp.gt.f32.partialorder %v1161, 0.0
  %vm1579 = vcmp.gt.f32.partialorder %v1163, 0.0
  %vm1580 = vcmp.gt.f32.partialorder %v1166, 0.0
  %vm1581 = vcmp.gt.f32.partialorder %v1168, 0.0
  %vm1582 = vcmp.gt.f32.partialorder %v1171, 0.0
  %vm1583 = vcmp.gt.f32.partialorder %v1173, 0.0
  %vm1584 = vcmp.gt.f32.partialorder %v1176, 0.0
  %vm1585 = vcmp.gt.f32.partialorder %v1178, 0.0
  %vm1586 = vcmp.gt.f32.partialorder %v1181, 0.0
  %vm1587 = vcmp.gt.f32.partialorder %v1183, 0.0
  %vm1588 = vcmp.gt.f32.partialorder %v1186, 0.0
  %vm1589 = vcmp.gt.f32.partialorder %v1188, 0.0
  %vm1590 = vcmp.gt.f32.partialorder %v1191, 0.0
  %vm1591 = vcmp.gt.f32.partialorder %v1193, 0.0
  %vm1592 = vcmp.gt.f32.partialorder %v1196, 0.0
  %vm1593 = vcmp.gt.f32.partialorder %v1198, 0.0
  %vm1594 = vcmp.gt.f32.partialorder %v1201, 0.0
  %vm1595 = vcmp.gt.f32.partialorder %v1203, 0.0
  %vm1596 = vcmp.gt.f32.partialorder %v1206, 0.0
  %vm1597 = vcmp.gt.f32.partialorder %v1208, 0.0
  %vm1598 = vcmp.gt.f32.partialorder %v1211, 0.0
  %vm1599 = vcmp.gt.f32.partialorder %v1213, 0.0
  %vm1600 = vcmp.gt.f32.partialorder %v1216, 0.0
  %vm1601 = vcmp.gt.f32.partialorder %v1218, 0.0
  %vm1602 = vcmp.gt.f32.partialorder %v1221, 0.0
  %vm1603 = vcmp.gt.f32.partialorder %v1223, 0.0
  %vm1604 = vcmp.gt.f32.partialorder %v1226, 0.0
  %vm1605 = vcmp.gt.f32.partialorder %v1228, 0.0
  %vm1606 = vcmp.gt.f32.partialorder %v1231, 0.0
  %vm1607 = vcmp.gt.f32.partialorder %v1233, 0.0
  %vm1608 = vcmp.gt.f32.partialorder %v1236, 0.0
  %vm1609 = vcmp.gt.f32.partialorder %v1238, 0.0
  %vm1610 = vcmp.gt.f32.partialorder %v1241, 0.0
  %vm1611 = vcmp.gt.f32.partialorder %v1243, 0.0
  %vm1612 = vcmp.gt.f32.partialorder %v1246, 0.0
  %vm1613 = vcmp.gt.f32.partialorder %v1248, 0.0
  %vm1614 = vcmp.gt.f32.partialorder %v1251, 0.0
  %vm1615 = vcmp.gt.f32.partialorder %v1253, 0.0
  %vm1616 = vcmp.gt.f32.partialorder %v1256, 0.0
  %vm1617 = vcmp.gt.f32.partialorder %v1258, 0.0
  %vm1618 = vcmp.gt.f32.partialorder %v1261, 0.0
  %vm1619 = vcmp.gt.f32.partialorder %v1263, 0.0
  %vm1620 = vcmp.gt.f32.partialorder %v1266, 0.0
  %vm1621 = vcmp.gt.f32.partialorder %v1268, 0.0
  %vm1622 = vcmp.gt.f32.partialorder %v1271, 0.0
  %vm1623 = vcmp.gt.f32.partialorder %v1273, 0.0
  %vm1624 = vcmp.gt.f32.partialorder %v1276, 0.0
  %vm1625 = vcmp.gt.f32.partialorder %v1278, 0.0
  %vm1626 = vcmp.gt.f32.partialorder %v1281, 0.0
  %vm1627 = vcmp.gt.f32.partialorder %v1283, 0.0
  %vm1628 = vcmp.gt.f32.partialorder %v1286, 0.0
  %vm1629 = vcmp.gt.f32.partialorder %v1288, 0.0
  %vm1630 = vcmp.gt.f32.partialorder %v1291, 0.0
  %vm1631 = vcmp.gt.f32.partialorder %v1293, 0.0
  %vm1632 = vcmp.gt.f32.partialorder %v1296, 0.0
  %vm1633 = vcmp.gt.f32.partialorder %v1298, 0.0
  %vm1634 = vcmp.gt.f32.partialorder %v1301, 0.0
  %vm1635 = vcmp.gt.f32.partialorder %v1303, 0.0
  %vm1636 = vcmp.gt.f32.partialorder %v1306, 0.0
  %vm1637 = vcmp.gt.f32.partialorder %v1308, 0.0
  %vm1638 = vcmp.gt.f32.partialorder %v1311, 0.0
  %vm1639 = vcmp.gt.f32.partialorder %v1313, 0.0
  %vm1640 = vcmp.gt.f32.partialorder %v1316, 0.0
  %vm1641 = vcmp.gt.f32.partialorder %v1318, 0.0
  %vm1642 = vcmp.gt.f32.partialorder %v1321, 0.0
  %vm1643 = vcmp.gt.f32.partialorder %v1323, 0.0
  %vm1644 = vcmp.gt.f32.partialorder %v1326, 0.0
  %vm1645 = vcmp.gt.f32.partialorder %v1328, 0.0
  %vm1646 = vcmp.gt.f32.partialorder %v1331, 0.0
  %vm1647 = vcmp.gt.f32.partialorder %v1333, 0.0
  %vm1648 = vcmp.gt.f32.partialorder %v1336, 0.0
  %vm1649 = vcmp.gt.f32.partialorder %v1338, 0.0
  %vm1650 = vcmp.gt.f32.partialorder %v1341, 0.0
  %vm1651 = vcmp.gt.f32.partialorder %v1343, 0.0
  %vm1652 = vcmp.gt.f32.partialorder %v1346, 0.0
  %vm1653 = vcmp.gt.f32.partialorder %v1348, 0.0
  %vm1654 = vcmp.gt.f32.partialorder %v1351, 0.0
  %vm1655 = vcmp.gt.f32.partialorder %v1353, 0.0
  %vm1656 = vcmp.gt.f32.partialorder %v1356, 0.0
  %vm1657 = vcmp.gt.f32.partialorder %v1358, 0.0
  %vm1658 = vcmp.gt.f32.partialorder %v1361, 0.0
  %vm1659 = vcmp.gt.f32.partialorder %v1363, 0.0
  %vm1660 = vcmp.gt.f32.partialorder %v1366, 0.0
  %vm1661 = vcmp.gt.f32.partialorder %v1368, 0.0
  %vm1662 = vcmp.gt.f32.partialorder %v1371, 0.0
  %vm1663 = vcmp.gt.f32.partialorder %v1373, 0.0
  %vm1664 = vcmp.gt.f32.partialorder %v1376, 0.0
  %vm1665 = vcmp.gt.f32.partialorder %v1378, 0.0
  %vm1666 = vcmp.gt.f32.partialorder %v1381, 0.0
  %vm1667 = vcmp.gt.f32.partialorder %v1383, 0.0
  %vm1668 = vcmp.gt.f32.partialorder %v1386, 0.0
  %vm1669 = vcmp.gt.f32.partialorder %v1388, 0.0
  %vm1670 = vcmp.gt.f32.partialorder %v1391, 0.0
  %vm1671 = vcmp.gt.f32.partialorder %v1393, 0.0
  %vm1672 = vcmp.gt.f32.partialorder %v1396, 0.0
  %vm1673 = vcmp.gt.f32.partialorder %v1398, 0.0
  %vm1674 = vcmp.gt.f32.partialorder %v1401, 0.0
  %vm1675 = vcmp.gt.f32.partialorder %v1403, 0.0
  %vm1676 = vcmp.gt.f32.partialorder %v1406, 0.0
  %vm1677 = vcmp.gt.f32.partialorder %v1408, 0.0
  %vm1678 = vcmp.gt.f32.partialorder %v1411, 0.0
  %vm1679 = vcmp.gt.f32.partialorder %v1413, 0.0
  %vm1680 = vcmp.gt.f32.partialorder %v1416, 0.0
  %vm1681 = vcmp.gt.f32.partialorder %v1418, 0.0
  %vm1682 = vcmp.gt.f32.partialorder %v1421, 0.0
  %vm1683 = vcmp.gt.f32.partialorder %v1423, 0.0
  %vm1684 = vcmp.gt.f32.partialorder %v1426, 0.0
  %vm1685 = vcmp.gt.f32.partialorder %v1428, 0.0
  %vm1686 = vcmp.gt.f32.partialorder %v1431, 0.0
  %vm1687 = vcmp.gt.f32.partialorder %v1433, 0.0
  %vm1688 = vcmp.gt.f32.partialorder %v1436, 0.0
  %vm1689 = vcmp.gt.f32.partialorder %v1438, 0.0
  %vm1690 = vcmp.gt.f32.partialorder %v1441, 0.0
  %vm1691 = vcmp.gt.f32.partialorder %v1443, 0.0
  %vm1692 = vcmp.gt.f32.partialorder %v1446, 0.0
  %vm1693 = vcmp.gt.f32.partialorder %v1448, 0.0
  %vm1694 = vcmp.gt.f32.partialorder %v1451, 0.0
  %vm1695 = vcmp.gt.f32.partialorder %v1453, 0.0
  %vm1696 = vcmp.gt.f32.partialorder %v1456, 0.0
  %vm1697 = vcmp.gt.f32.partialorder %v1458, 0.0
  %vm1698 = vcmp.gt.f32.partialorder %v1461, 0.0
  %vm1699 = vcmp.gt.f32.partialorder %v1463, 0.0
  %vm1700 = vcmp.gt.f32.partialorder %v1466, 0.0
  %vm1701 = vcmp.gt.f32.partialorder %v1468, 0.0
  %vm1702 = vcmp.gt.f32.partialorder %v1471, 0.0
  %vm1703 = vcmp.gt.f32.partialorder %v1473, 0.0
  %vm1704 = vcmp.gt.f32.partialorder %v1476, 0.0
  %vm1705 = vcmp.gt.f32.partialorder %v1478, 0.0
  %vm1706 = vcmp.gt.f32.partialorder %v1481, 0.0
  %vm1707 = vcmp.gt.f32.partialorder %v1483, 0.0
  %vm1708 = vcmp.gt.f32.partialorder %v1486, 0.0
  %vm1709 = vcmp.gt.f32.partialorder %v1488, 0.0
  %vm1710 = vcmp.gt.f32.partialorder %v1491, 0.0
  %vm1711 = vcmp.gt.f32.partialorder %v1493, 0.0
  %vm1712 = vcmp.gt.f32.partialorder %v1496, 0.0
  %vm1713 = vcmp.gt.f32.partialorder %v1498, 0.0
  %vm1714 = vcmp.gt.f32.partialorder %v1501, 0.0
  %vm1715 = vcmp.gt.f32.partialorder %v1503, 0.0
  %vm1716 = vcmp.gt.f32.partialorder %v1506, 0.0
  %vm1717 = vcmp.gt.f32.partialorder %v1508, 0.0
  %vm1718 = vcmp.gt.f32.partialorder %v1511, 0.0
  %vm1719 = vcmp.gt.f32.partialorder %v1513, 0.0
  %vm1720 = vcmp.gt.f32.partialorder %v1516, 0.0
  %vm1721 = vcmp.gt.f32.partialorder %v1518, 0.0
  %vm1722 = vcmp.gt.f32.partialorder %v1521, 0.0
  %vm1723 = vcmp.gt.f32.partialorder %v1523, 0.0
  %vm1724 = vcmp.gt.f32.partialorder %v1526, 0.0
  %vm1725 = vcmp.gt.f32.partialorder %v1528, 0.0
  %v1726 = vmul.f32 %v1041, 0.01
  %v1727 = vmul.f32 %v1043, 0.01
  %v1728 = vmul.f32 %v1046, 0.01
  %v1729 = vmul.f32 %v1048, 0.01
  %v1730 = vmul.f32 %v1051, 0.01
  %v1731 = vmul.f32 %v1053, 0.01
  %v1732 = vmul.f32 %v1056, 0.01
  %v1733 = vmul.f32 %v1058, 0.01
  %v1734 = vmul.f32 %v1061, 0.01
  %v1735 = vmul.f32 %v1063, 0.01
  %v1736 = vmul.f32 %v1066, 0.01
  %v1737 = vmul.f32 %v1068, 0.01
  %v1738 = vmul.f32 %v1071, 0.01
  %v1739 = vmul.f32 %v1073, 0.01
  %v1740 = vmul.f32 %v1076, 0.01
  %v1741 = vmul.f32 %v1078, 0.01
  %v1742 = vmul.f32 %v1081, 0.01
  %v1743 = vmul.f32 %v1083, 0.01
  %v1744 = vmul.f32 %v1086, 0.01
  %v1745 = vmul.f32 %v1088, 0.01
  %v1746 = vmul.f32 %v1091, 0.01
  %v1747 = vmul.f32 %v1093, 0.01
  %v1748 = vmul.f32 %v1096, 0.01
  %v1749 = vmul.f32 %v1098, 0.01
  %v1750 = vmul.f32 %v1101, 0.01
  %v1751 = vmul.f32 %v1103, 0.01
  %v1752 = vmul.f32 %v1106, 0.01
  %v1753 = vmul.f32 %v1108, 0.01
  %v1754 = vmul.f32 %v1111, 0.01
  %v1755 = vmul.f32 %v1113, 0.01
  %v1756 = vmul.f32 %v1116, 0.01
  %v1757 = vmul.f32 %v1118, 0.01
  %v1758 = vmul.f32 %v1121, 0.01
  %v1759 = vmul.f32 %v1123, 0.01
  %v1760 = vmul.f32 %v1126, 0.01
  %v1761 = vmul.f32 %v1128, 0.01
  %v1762 = vmul.f32 %v1131, 0.01
  %v1763 = vmul.f32 %v1133, 0.01
  %v1764 = vmul.f32 %v1136, 0.01
  %v1765 = vmul.f32 %v1138, 0.01
  %v1766 = vmul.f32 %v1141, 0.01
  %v1767 = vmul.f32 %v1143, 0.01
  %v1768 = vmul.f32 %v1146, 0.01
  %v1769 = vmul.f32 %v1148, 0.01
  %v1770 = vmul.f32 %v1151, 0.01
  %v1771 = vmul.f32 %v1153, 0.01
  %v1772 = vmul.f32 %v1156, 0.01
  %v1773 = vmul.f32 %v1158, 0.01
  %v1774 = vmul.f32 %v1161, 0.01
  %v1775 = vmul.f32 %v1163, 0.01
  %v1776 = vmul.f32 %v1166, 0.01
  %v1777 = vmul.f32 %v1168, 0.01
  %v1778 = vmul.f32 %v1171, 0.01
  %v1779 = vmul.f32 %v1173, 0.01
  %v1780 = vmul.f32 %v1176, 0.01
  %v1781 = vmul.f32 %v1178, 0.01
  %v1782 = vmul.f32 %v1181, 0.01
  %v1783 = vmul.f32 %v1183, 0.01
  %v1784 = vmul.f32 %v1186, 0.01
  %v1785 = vmul.f32 %v1188, 0.01
  %v1786 = vmul.f32 %v1191, 0.01
  %v1787 = vmul.f32 %v1193, 0.01
  %v1788 = vmul.f32 %v1196, 0.01
  %v1789 = vmul.f32 %v1198, 0.01
  %v1790 = vmul.f32 %v1201, 0.01
  %v1791 = vmul.f32 %v1203, 0.01
  %v1792 = vmul.f32 %v1206, 0.01
  %v1793 = vmul.f32 %v1208, 0.01
  %v1794 = vmul.f32 %v1211, 0.01
  %v1795 = vmul.f32 %v1213, 0.01
  %v1796 = vmul.f32 %v1216, 0.01
  %v1797 = vmul.f32 %v1218, 0.01
  %v1798 = vmul.f32 %v1221, 0.01
  %v1799 = vmul.f32 %v1223, 0.01
  %v1800 = vmul.f32 %v1226, 0.01
  %v1801 = vmul.f32 %v1228, 0.01
  %v1802 = vmul.f32 %v1231, 0.01
  %v1803 = vmul.f32 %v1233, 0.01
  %v1804 = vmul.f32 %v1236, 0.01
  %v1805 = vmul.f32 %v1238, 0.01
  %v1806 = vmul.f32 %v1241, 0.01
  %v1807 = vmul.f32 %v1243, 0.01
  %v1808 = vmul.f32 %v1246, 0.01
  %v1809 = vmul.f32 %v1248, 0.01
  %v1810 = vmul.f32 %v1251, 0.01
  %v1811 = vmul.f32 %v1253, 0.01
  %v1812 = vmul.f32 %v1256, 0.01
  %v1813 = vmul.f32 %v1258, 0.01
  %v1814 = vmul.f32 %v1261, 0.01
  %v1815 = vmul.f32 %v1263, 0.01
  %v1816 = vmul.f32 %v1266, 0.01
  %v1817 = vmul.f32 %v1268, 0.01
  %v1818 = vmul.f32 %v1271, 0.01
  %v1819 = vmul.f32 %v1273, 0.01
  %v1820 = vmul.f32 %v1276, 0.01
  %v1821 = vmul.f32 %v1278, 0.01
  %v1822 = vmul.f32 %v1281, 0.01
  %v1823 = vmul.f32 %v1283, 0.01
  %v1824 = vmul.f32 %v1286, 0.01
  %v1825 = vmul.f32 %v1288, 0.01
  %v1826 = vmul.f32 %v1291, 0.01
  %v1827 = vmul.f32 %v1293, 0.01
  %v1828 = vmul.f32 %v1296, 0.01
  %v1829 = vmul.f32 %v1298, 0.01
  %v1830 = vmul.f32 %v1301, 0.01
  %v1831 = vmul.f32 %v1303, 0.01
  %v1832 = vmul.f32 %v1306, 0.01
  %v1833 = vmul.f32 %v1308, 0.01
  %v1834 = vmul.f32 %v1311, 0.01
  %v1835 = vmul.f32 %v1313, 0.01
  %v1836 = vmul.f32 %v1316, 0.01
  %v1837 = vmul.f32 %v1318, 0.01
  %v1838 = vmul.f32 %v1321, 0.01
  %v1839 = vmul.f32 %v1323, 0.01
  %v1840 = vmul.f32 %v1326, 0.01
  %v1841 = vmul.f32 %v1328, 0.01
  %v1842 = vmul.f32 %v1331, 0.01
  %v1843 = vmul.f32 %v1333, 0.01
  %v1844 = vmul.f32 %v1336, 0.01
  %v1845 = vmul.f32 %v1338, 0.01
  %v1846 = vmul.f32 %v1341, 0.01
  %v1847 = vmul.f32 %v1343, 0.01
  %v1848 = vmul.f32 %v1346, 0.01
  %v1849 = vmul.f32 %v1348, 0.01
  %v1850 = vmul.f32 %v1351, 0.01
  %v1851 = vmul.f32 %v1353, 0.01
  %v1852 = vmul.f32 %v1356, 0.01
  %v1853 = vmul.f32 %v1358, 0.01
  %v1854 = vmul.f32 %v1361, 0.01
  %v1855 = vmul.f32 %v1363, 0.01
  %v1856 = vmul.f32 %v1366, 0.01
  %v1857 = vmul.f32 %v1368, 0.01
  %v1858 = vmul.f32 %v1371, 0.01
  %v1859 = vmul.f32 %v1373, 0.01
  %v1860 = vmul.f32 %v1376, 0.01
  %v1861 = vmul.f32 %v1378, 0.01
  %v1862 = vmul.f32 %v1381, 0.01
  %v1863 = vmul.f32 %v1383, 0.01
  %v1864 = vmul.f32 %v1386, 0.01
  %v1865 = vmul.f32 %v1388, 0.01
  %v1866 = vmul.f32 %v1391, 0.01
  %v1867 = vmul.f32 %v1393, 0.01
  %v1868 = vmul.f32 %v1396, 0.01
  %v1869 = vmul.f32 %v1398, 0.01
  %v1870 = vmul.f32 %v1401, 0.01
  %v1871 = vmul.f32 %v1403, 0.01
  %v1872 = vmul.f32 %v1406, 0.01
  %v1873 = vmul.f32 %v1408, 0.01
  %v1874 = vmul.f32 %v1411, 0.01
  %v1875 = vmul.f32 %v1413, 0.01
  %v1876 = vmul.f32 %v1416, 0.01
  %v1877 = vmul.f32 %v1418, 0.01
  %v1878 = vmul.f32 %v1421, 0.01
  %v1879 = vmul.f32 %v1423, 0.01
  %v1880 = vmul.f32 %v1426, 0.01
  %v1881 = vmul.f32 %v1428, 0.01
  %v1882 = vmul.f32 %v1431, 0.01
  %v1883 = vmul.f32 %v1433, 0.01
  %v1884 = vmul.f32 %v1436, 0.01
  %v1885 = vmul.f32 %v1438, 0.01
  %v1886 = vmul.f32 %v1441, 0.01
  %v1887 = vmul.f32 %v1443, 0.01
  %v1888 = vmul.f32 %v1446, 0.01
  %v1889 = vmul.f32 %v1448, 0.01
  %v1890 = vmul.f32 %v1451, 0.01
  %v1891 = vmul.f32 %v1453, 0.01
  %v1892 = vmul.f32 %v1456, 0.01
  %v1893 = vmul.f32 %v1458, 0.01
  %v1894 = vmul.f32 %v1461, 0.01
  %v1895 = vmul.f32 %v1463, 0.01
  %v1896 = vmul.f32 %v1466, 0.01
  %v1897 = vmul.f32 %v1468, 0.01
  %v1898 = vmul.f32 %v1471, 0.01
  %v1899 = vmul.f32 %v1473, 0.01
  %v1900 = vmul.f32 %v1476, 0.01
  %v1901 = vmul.f32 %v1478, 0.01
  %v1902 = vmul.f32 %v1481, 0.01
  %v1903 = vmul.f32 %v1483, 0.01
  %v1904 = vmul.f32 %v1486, 0.01
  %v1905 = vmul.f32 %v1488, 0.01
  %v1906 = vmul.f32 %v1491, 0.01
  %v1907 = vmul.f32 %v1493, 0.01
  %v1908 = vmul.f32 %v1496, 0.01
  %v1909 = vmul.f32 %v1498, 0.01
  %v1910 = vmul.f32 %v1501, 0.01
  %v1911 = vmul.f32 %v1503, 0.01
  %v1912 = vmul.f32 %v1506, 0.01
  %v1913 = vmul.f32 %v1508, 0.01
  %v1914 = vmul.f32 %v1511, 0.01
  %v1915 = vmul.f32 %v1513, 0.01
  %v1916 = vmul.f32 %v1516, 0.01
  %v1917 = vmul.f32 %v1518, 0.01
  %v1918 = vmul.f32 %v1521, 0.01
  %v1919 = vmul.f32 %v1523, 0.01
  %v1920 = vmul.f32 %v1526, 0.01
  %v1921 = vmul.f32 %v1528, 0.01
  %v1922 = vsel %vm1530, %v1041, %v1726
  %v1923 = vsel %vm1531, %v1043, %v1727
  %v1924 = vsel %vm1532, %v1046, %v1728
  %v1925 = vsel %vm1533, %v1048, %v1729
  %v1926 = vsel %vm1534, %v1051, %v1730
  %v1927 = vsel %vm1535, %v1053, %v1731
  %v1928 = vsel %vm1536, %v1056, %v1732
  %v1929 = vsel %vm1537, %v1058, %v1733
  %v1930 = vsel %vm1538, %v1061, %v1734
  %v1931 = vsel %vm1539, %v1063, %v1735
  %v1932 = vsel %vm1540, %v1066, %v1736
  %v1933 = vsel %vm1541, %v1068, %v1737
  %v1934 = vsel %vm1542, %v1071, %v1738
  %v1935 = vsel %vm1543, %v1073, %v1739
  %v1936 = vsel %vm1544, %v1076, %v1740
  %v1937 = vsel %vm1545, %v1078, %v1741
  %v1938 = vsel %vm1546, %v1081, %v1742
  %v1939 = vsel %vm1547, %v1083, %v1743
  %v1940 = vsel %vm1548, %v1086, %v1744
  %v1941 = vsel %vm1549, %v1088, %v1745
  %v1942 = vsel %vm1550, %v1091, %v1746
  %v1943 = vsel %vm1551, %v1093, %v1747
  %v1944 = vsel %vm1552, %v1096, %v1748
  %v1945 = vsel %vm1553, %v1098, %v1749
  %v1946 = vsel %vm1554, %v1101, %v1750
  %v1947 = vsel %vm1555, %v1103, %v1751
  %v1948 = vsel %vm1556, %v1106, %v1752
  %v1949 = vsel %vm1557, %v1108, %v1753
  %v1950 = vsel %vm1558, %v1111, %v1754
  %v1951 = vsel %vm1559, %v1113, %v1755
  %v1952 = vsel %vm1560, %v1116, %v1756
  %v1953 = vsel %vm1561, %v1118, %v1757
  %v1954 = vsel %vm1562, %v1121, %v1758
  %v1955 = vsel %vm1563, %v1123, %v1759
  %v1956 = vsel %vm1564, %v1126, %v1760
  %v1957 = vsel %vm1565, %v1128, %v1761
  %v1958 = vsel %vm1566, %v1131, %v1762
  %v1959 = vsel %vm1567, %v1133, %v1763
  %v1960 = vsel %vm1568, %v1136, %v1764
  %v1961 = vsel %vm1569, %v1138, %v1765
  %v1962 = vsel %vm1570, %v1141, %v1766
  %v1963 = vsel %vm1571, %v1143, %v1767
  %v1964 = vsel %vm1572, %v1146, %v1768
  %v1965 = vsel %vm1573, %v1148, %v1769
  %v1966 = vsel %vm1574, %v1151, %v1770
  %v1967 = vsel %vm1575, %v1153, %v1771
  %v1968 = vsel %vm1576, %v1156, %v1772
  %v1969 = vsel %vm1577, %v1158, %v1773
  %v1970 = vsel %vm1578, %v1161, %v1774
  %v1971 = vsel %vm1579, %v1163, %v1775
  %v1972 = vsel %vm1580, %v1166, %v1776
  %v1973 = vsel %vm1581, %v1168, %v1777
  %v1974 = vsel %vm1582, %v1171, %v1778
  %v1975 = vsel %vm1583, %v1173, %v1779
  %v1976 = vsel %vm1584, %v1176, %v1780
  %v1977 = vsel %vm1585, %v1178, %v1781
  %v1978 = vsel %vm1586, %v1181, %v1782
  %v1979 = vsel %vm1587, %v1183, %v1783
  %v1980 = vsel %vm1588, %v1186, %v1784
  %v1981 = vsel %vm1589, %v1188, %v1785
  %v1982 = vsel %vm1590, %v1191, %v1786
  %v1983 = vsel %vm1591, %v1193, %v1787
  %v1984 = vsel %vm1592, %v1196, %v1788
  %v1985 = vsel %vm1593, %v1198, %v1789
  %v1986 = vsel %vm1594, %v1201, %v1790
  %v1987 = vsel %vm1595, %v1203, %v1791
  %v1988 = vsel %vm1596, %v1206, %v1792
  %v1989 = vsel %vm1597, %v1208, %v1793
  %v1990 = vsel %vm1598, %v1211, %v1794
  %v1991 = vsel %vm1599, %v1213, %v1795
  %v1992 = vsel %vm1600, %v1216, %v1796
  %v1993 = vsel %vm1601, %v1218, %v1797
  %v1994 = vsel %vm1602, %v1221, %v1798
  %v1995 = vsel %vm1603, %v1223, %v1799
  %v1996 = vsel %vm1604, %v1226, %v1800
  %v1997 = vsel %vm1605, %v1228, %v1801
  %v1998 = vsel %vm1606, %v1231, %v1802
  %v1999 = vsel %vm1607, %v1233, %v1803
  %v2000 = vsel %vm1608, %v1236, %v1804
  %v2001 = vsel %vm1609, %v1238, %v1805
  %v2002 = vsel %vm1610, %v1241, %v1806
  %v2003 = vsel %vm1611, %v1243, %v1807
  %v2004 = vsel %vm1612, %v1246, %v1808
  %v2005 = vsel %vm1613, %v1248, %v1809
  %v2006 = vsel %vm1614, %v1251, %v1810
  %v2007 = vsel %vm1615, %v1253, %v1811
  %v2008 = vsel %vm1616, %v1256, %v1812
  %v2009 = vsel %vm1617, %v1258, %v1813
  %v2010 = vsel %vm1618, %v1261, %v1814
  %v2011 = vsel %vm1619, %v1263, %v1815
  %v2012 = vsel %vm1620, %v1266, %v1816
  %v2013 = vsel %vm1621, %v1268, %v1817
  %v2014 = vsel %vm1622, %v1271, %v1818
  %v2015 = vsel %vm1623, %v1273, %v1819
  %v2016 = vsel %vm1624, %v1276, %v1820
  %v2017 = vsel %vm1625, %v1278, %v1821
  %v2018 = vsel %vm1626, %v1281, %v1822
  %v2019 = vsel %vm1627, %v1283, %v1823
  %v2020 = vsel %vm1628, %v1286, %v1824
  %v2021 = vsel %vm1629, %v1288, %v1825
  %v2022 = vsel %vm1630, %v1291, %v1826
  %v2023 = vsel %vm1631, %v1293, %v1827
  %v2024 = vsel %vm1632, %v1296, %v1828
  %v2025 = vsel %vm1633, %v1298, %v1829
  %v2026 = vsel %vm1634, %v1301, %v1830
  %v2027 = vsel %vm1635, %v1303, %v1831
  %v2028 = vsel %vm1636, %v1306, %v1832
  %v2029 = vsel %vm1637, %v1308, %v1833
  %v2030 = vsel %vm1638, %v1311, %v1834
  %v2031 = vsel %vm1639, %v1313, %v1835
  %v2032 = vsel %vm1640, %v1316, %v1836
  %v2033 = vsel %vm1641, %v1318, %v1837
  %v2034 = vsel %vm1642, %v1321, %v1838
  %v2035 = vsel %vm1643, %v1323, %v1839
  %v2036 = vsel %vm1644, %v1326, %v1840
  %v2037 = vsel %vm1645, %v1328, %v1841
  %v2038 = vsel %vm1646, %v1331, %v1842
  %v2039 = vsel %vm1647, %v1333, %v1843
  %v2040 = vsel %vm1648, %v1336, %v1844
  %v2041 = vsel %vm1649, %v1338, %v1845
  %v2042 = vsel %vm1650, %v1341, %v1846
  %v2043 = vsel %vm1651, %v1343, %v1847
  %v2044 = vsel %vm1652, %v1346, %v1848
  %v2045 = vsel %vm1653, %v1348, %v1849
  %v2046 = vsel %vm1654, %v1351, %v1850
  %v2047 = vsel %vm1655, %v1353, %v1851
  %v2048 = vsel %vm1656, %v1356, %v1852
  %v2049 = vsel %vm1657, %v1358, %v1853
  %v2050 = vsel %vm1658, %v1361, %v1854
  %v2051 = vsel %vm1659, %v1363, %v1855
  %v2052 = vsel %vm1660, %v1366, %v1856
  %v2053 = vsel %vm1661, %v1368, %v1857
  %v2054 = vsel %vm1662, %v1371, %v1858
  %v2055 = vsel %vm1663, %v1373, %v1859
  %v2056 = vsel %vm1664, %v1376, %v1860
  %v2057 = vsel %vm1665, %v1378, %v1861
  %v2058 = vsel %vm1666, %v1381, %v1862
  %v2059 = vsel %vm1667, %v1383, %v1863
  %v2060 = vsel %vm1668, %v1386, %v1864
  %v2061 = vsel %vm1669, %v1388, %v1865
  %v2062 = vsel %vm1670, %v1391, %v1866
  %v2063 = vsel %vm1671, %v1393, %v1867
  %v2064 = vsel %vm1672, %v1396, %v1868
  %v2065 = vsel %vm1673, %v1398, %v1869
  %v2066 = vsel %vm1674, %v1401, %v1870
  %v2067 = vsel %vm1675, %v1403, %v1871
  %v2068 = vsel %vm1676, %v1406, %v1872
  %v2069 = vsel %vm1677, %v1408, %v1873
  %v2070 = vsel %vm1678, %v1411, %v1874
  %v2071 = vsel %vm1679, %v1413, %v1875
  %v2072 = vsel %vm1680, %v1416, %v1876
  %v2073 = vsel %vm1681, %v1418, %v1877
  %v2074 = vsel %vm1682, %v1421, %v1878
  %v2075 = vsel %vm1683, %v1423, %v1879
  %v2076 = vsel %vm1684, %v1426, %v1880
  %v2077 = vsel %vm1685, %v1428, %v1881
  %v2078 = vsel %vm1686, %v1431, %v1882
  %v2079 = vsel %vm1687, %v1433, %v1883
  %v2080 = vsel %vm1688, %v1436, %v1884
  %v2081 = vsel %vm1689, %v1438, %v1885
  %v2082 = vsel %vm1690, %v1441, %v1886
  %v2083 = vsel %vm1691, %v1443, %v1887
  %v2084 = vsel %vm1692, %v1446, %v1888
  %v2085 = vsel %vm1693, %v1448, %v1889
  %v2086 = vsel %vm1694, %v1451, %v1890
  %v2087 = vsel %vm1695, %v1453, %v1891
  %v2088 = vsel %vm1696, %v1456, %v1892
  %v2089 = vsel %vm1697, %v1458, %v1893
  %v2090 = vsel %vm1698, %v1461, %v1894
  %v2091 = vsel %vm1699, %v1463, %v1895
  %v2092 = vsel %vm1700, %v1466, %v1896
  %v2093 = vsel %vm1701, %v1468, %v1897
  %v2094 = vsel %vm1702, %v1471, %v1898
  %v2095 = vsel %vm1703, %v1473, %v1899
  %v2096 = vsel %vm1704, %v1476, %v1900
  %v2097 = vsel %vm1705, %v1478, %v1901
  %v2098 = vsel %vm1706, %v1481, %v1902
  %v2099 = vsel %vm1707, %v1483, %v1903
  %v2100 = vsel %vm1708, %v1486, %v1904
  %v2101 = vsel %vm1709, %v1488, %v1905
  %v2102 = vsel %vm1710, %v1491, %v1906
  %v2103 = vsel %vm1711, %v1493, %v1907
  %v2104 = vsel %vm1712, %v1496, %v1908
  %v2105 = vsel %vm1713, %v1498, %v1909
  %v2106 = vsel %vm1714, %v1501, %v1910
  %v2107 = vsel %vm1715, %v1503, %v1911
  %v2108 = vsel %vm1716, %v1506, %v1912
  %v2109 = vsel %vm1717, %v1508, %v1913
  %v2110 = vsel %vm1718, %v1511, %v1914
  %v2111 = vsel %vm1719, %v1513, %v1915
  %v2112 = vsel %vm1720, %v1516, %v1916
  %v2113 = vsel %vm1721, %v1518, %v1917
  %v2114 = vsel %vm1722, %v1521, %v1918
  %v2115 = vsel %vm1723, %v1523, %v1919
  %v2116 = vsel %vm1724, %v1526, %v1920
  %v2117 = vsel %vm1725, %v1528, %v1921
  %v2118 = vpack.c.bf16 %v1922, %v1922
  %v2119 = vpack.c.bf16 %v1923, %v1923
  %v2120 = vpack.c.bf16 %v1924, %v1924
  %v2121 = vpack.c.bf16 %v1925, %v1925
  %v2122 = vpack.c.bf16 %v1926, %v1926
  %v2123 = vpack.c.bf16 %v1927, %v1927
  %v2124 = vpack.c.bf16 %v1928, %v1928
  %v2125 = vpack.c.bf16 %v1929, %v1929
  %v2126 = vpack.c.bf16 %v1930, %v1930
  %v2127 = vpack.c.bf16 %v1931, %v1931
  %v2128 = vpack.c.bf16 %v1932, %v1932
  %v2129 = vpack.c.bf16 %v1933, %v1933
  %v2130 = vpack.c.bf16 %v1934, %v1934
  %v2131 = vpack.c.bf16 %v1935, %v1935
  %v2132 = vpack.c.bf16 %v1936, %v1936
  %v2133 = vpack.c.bf16 %v1937, %v1937
  %v2134 = vpack.c.bf16 %v1938, %v1938
  %v2135 = vpack.c.bf16 %v1939, %v1939
  %v2136 = vpack.c.bf16 %v1940, %v1940
  %v2137 = vpack.c.bf16 %v1941, %v1941
  %v2138 = vpack.c.bf16 %v1942, %v1942
  %v2139 = vpack.c.bf16 %v1943, %v1943
  %v2140 = vpack.c.bf16 %v1944, %v1944
  %v2141 = vpack.c.bf16 %v1945, %v1945
  %v2142 = vpack.c.bf16 %v1946, %v1946
  %v2143 = vpack.c.bf16 %v1947, %v1947
  %v2144 = vpack.c.bf16 %v1948, %v1948
  %v2145 = vpack.c.bf16 %v1949, %v1949
  %v2146 = vpack.c.bf16 %v1950, %v1950
  %v2147 = vpack.c.bf16 %v1951, %v1951
  %v2148 = vpack.c.bf16 %v1952, %v1952
  %v2149 = vpack.c.bf16 %v1953, %v1953
  %v2150 = vpack.c.bf16 %v1954, %v1954
  %v2151 = vpack.c.bf16 %v1955, %v1955
  %v2152 = vpack.c.bf16 %v1956, %v1956
  %v2153 = vpack.c.bf16 %v1957, %v1957
  %v2154 = vpack.c.bf16 %v1958, %v1958
  %v2155 = vpack.c.bf16 %v1959, %v1959
  %v2156 = vpack.c.bf16 %v1960, %v1960
  %v2157 = vpack.c.bf16 %v1961, %v1961
  %v2158 = vpack.c.bf16 %v1962, %v1962
  %v2159 = vpack.c.bf16 %v1963, %v1963
  %v2160 = vpack.c.bf16 %v1964, %v1964
  %v2161 = vpack.c.bf16 %v1965, %v1965
  %v2162 = vpack.c.bf16 %v1966, %v1966
  %v2163 = vpack.c.bf16 %v1967, %v1967
  %v2164 = vpack.c.bf16 %v1968, %v1968
  %v2165 = vpack.c.bf16 %v1969, %v1969
  %v2166 = vpack.c.bf16 %v1970, %v1970
  %v2167 = vpack.c.bf16 %v1971, %v1971
  %v2168 = vpack.c.bf16 %v1972, %v1972
  %v2169 = vpack.c.bf16 %v1973, %v1973
  %v2170 = vpack.c.bf16 %v1974, %v1974
  %v2171 = vpack.c.bf16 %v1975, %v1975
  %v2172 = vpack.c.bf16 %v1976, %v1976
  %v2173 = vpack.c.bf16 %v1977, %v1977
  %v2174 = vpack.c.bf16 %v1978, %v1978
  %v2175 = vpack.c.bf16 %v1979, %v1979
  %v2176 = vpack.c.bf16 %v1980, %v1980
  %v2177 = vpack.c.bf16 %v1981, %v1981
  %v2178 = vpack.c.bf16 %v1982, %v1982
  %v2179 = vpack.c.bf16 %v1983, %v1983
  %v2180 = vpack.c.bf16 %v1984, %v1984
  %v2181 = vpack.c.bf16 %v1985, %v1985
  %v2182 = vpack.c.bf16 %v1986, %v1986
  %v2183 = vpack.c.bf16 %v1987, %v1987
  %v2184 = vpack.c.bf16 %v1988, %v1988
  %v2185 = vpack.c.bf16 %v1989, %v1989
  %v2186 = vpack.c.bf16 %v1990, %v1990
  %v2187 = vpack.c.bf16 %v1991, %v1991
  %v2188 = vpack.c.bf16 %v1992, %v1992
  %v2189 = vpack.c.bf16 %v1993, %v1993
  %v2190 = vpack.c.bf16 %v1994, %v1994
  %v2191 = vpack.c.bf16 %v1995, %v1995
  %v2192 = vpack.c.bf16 %v1996, %v1996
  %v2193 = vpack.c.bf16 %v1997, %v1997
  %v2194 = vpack.c.bf16 %v1998, %v1998
  %v2195 = vpack.c.bf16 %v1999, %v1999
  %v2196 = vpack.c.bf16 %v2000, %v2000
  %v2197 = vpack.c.bf16 %v2001, %v2001
  %v2198 = vpack.c.bf16 %v2002, %v2002
  %v2199 = vpack.c.bf16 %v2003, %v2003
  %v2200 = vpack.c.bf16 %v2004, %v2004
  %v2201 = vpack.c.bf16 %v2005, %v2005
  %v2202 = vpack.c.bf16 %v2006, %v2006
  %v2203 = vpack.c.bf16 %v2007, %v2007
  %v2204 = vpack.c.bf16 %v2008, %v2008
  %v2205 = vpack.c.bf16 %v2009, %v2009
  %v2206 = vpack.c.bf16 %v2010, %v2010
  %v2207 = vpack.c.bf16 %v2011, %v2011
  %v2208 = vpack.c.bf16 %v2012, %v2012
  %v2209 = vpack.c.bf16 %v2013, %v2013
  %v2210 = vpack.c.bf16 %v2014, %v2014
  %v2211 = vpack.c.bf16 %v2015, %v2015
  %v2212 = vpack.c.bf16 %v2016, %v2016
  %v2213 = vpack.c.bf16 %v2017, %v2017
  %v2214 = vpack.c.bf16 %v2018, %v2018
  %v2215 = vpack.c.bf16 %v2019, %v2019
  %v2216 = vpack.c.bf16 %v2020, %v2020
  %v2217 = vpack.c.bf16 %v2021, %v2021
  %v2218 = vpack.c.bf16 %v2022, %v2022
  %v2219 = vpack.c.bf16 %v2023, %v2023
  %v2220 = vpack.c.bf16 %v2024, %v2024
  %v2221 = vpack.c.bf16 %v2025, %v2025
  %v2222 = vpack.c.bf16 %v2026, %v2026
  %v2223 = vpack.c.bf16 %v2027, %v2027
  %v2224 = vpack.c.bf16 %v2028, %v2028
  %v2225 = vpack.c.bf16 %v2029, %v2029
  %v2226 = vpack.c.bf16 %v2030, %v2030
  %v2227 = vpack.c.bf16 %v2031, %v2031
  %v2228 = vpack.c.bf16 %v2032, %v2032
  %v2229 = vpack.c.bf16 %v2033, %v2033
  %v2230 = vpack.c.bf16 %v2034, %v2034
  %v2231 = vpack.c.bf16 %v2035, %v2035
  %v2232 = vpack.c.bf16 %v2036, %v2036
  %v2233 = vpack.c.bf16 %v2037, %v2037
  %v2234 = vpack.c.bf16 %v2038, %v2038
  %v2235 = vpack.c.bf16 %v2039, %v2039
  %v2236 = vpack.c.bf16 %v2040, %v2040
  %v2237 = vpack.c.bf16 %v2041, %v2041
  %v2238 = vpack.c.bf16 %v2042, %v2042
  %v2239 = vpack.c.bf16 %v2043, %v2043
  %v2240 = vpack.c.bf16 %v2044, %v2044
  %v2241 = vpack.c.bf16 %v2045, %v2045
  %v2242 = vpack.c.bf16 %v2046, %v2046
  %v2243 = vpack.c.bf16 %v2047, %v2047
  %v2244 = vpack.c.bf16 %v2048, %v2048
  %v2245 = vpack.c.bf16 %v2049, %v2049
  %v2246 = vpack.c.bf16 %v2050, %v2050
  %v2247 = vpack.c.bf16 %v2051, %v2051
  %v2248 = vpack.c.bf16 %v2052, %v2052
  %v2249 = vpack.c.bf16 %v2053, %v2053
  %v2250 = vpack.c.bf16 %v2054, %v2054
  %v2251 = vpack.c.bf16 %v2055, %v2055
  %v2252 = vpack.c.bf16 %v2056, %v2056
  %v2253 = vpack.c.bf16 %v2057, %v2057
  %v2254 = vpack.c.bf16 %v2058, %v2058
  %v2255 = vpack.c.bf16 %v2059, %v2059
  %v2256 = vpack.c.bf16 %v2060, %v2060
  %v2257 = vpack.c.bf16 %v2061, %v2061
  %v2258 = vpack.c.bf16 %v2062, %v2062
  %v2259 = vpack.c.bf16 %v2063, %v2063
  %v2260 = vpack.c.bf16 %v2064, %v2064
  %v2261 = vpack.c.bf16 %v2065, %v2065
  %v2262 = vpack.c.bf16 %v2066, %v2066
  %v2263 = vpack.c.bf16 %v2067, %v2067
  %v2264 = vpack.c.bf16 %v2068, %v2068
  %v2265 = vpack.c.bf16 %v2069, %v2069
  %v2266 = vpack.c.bf16 %v2070, %v2070
  %v2267 = vpack.c.bf16 %v2071, %v2071
  %v2268 = vpack.c.bf16 %v2072, %v2072
  %v2269 = vpack.c.bf16 %v2073, %v2073
  %v2270 = vpack.c.bf16 %v2074, %v2074
  %v2271 = vpack.c.bf16 %v2075, %v2075
  %v2272 = vpack.c.bf16 %v2076, %v2076
  %v2273 = vpack.c.bf16 %v2077, %v2077
  %v2274 = vpack.c.bf16 %v2078, %v2078
  %v2275 = vpack.c.bf16 %v2079, %v2079
  %v2276 = vpack.c.bf16 %v2080, %v2080
  %v2277 = vpack.c.bf16 %v2081, %v2081
  %v2278 = vpack.c.bf16 %v2082, %v2082
  %v2279 = vpack.c.bf16 %v2083, %v2083
  %v2280 = vpack.c.bf16 %v2084, %v2084
  %v2281 = vpack.c.bf16 %v2085, %v2085
  %v2282 = vpack.c.bf16 %v2086, %v2086
  %v2283 = vpack.c.bf16 %v2087, %v2087
  %v2284 = vpack.c.bf16 %v2088, %v2088
  %v2285 = vpack.c.bf16 %v2089, %v2089
  %v2286 = vpack.c.bf16 %v2090, %v2090
  %v2287 = vpack.c.bf16 %v2091, %v2091
  %v2288 = vpack.c.bf16 %v2092, %v2092
  %v2289 = vpack.c.bf16 %v2093, %v2093
  %v2290 = vpack.c.bf16 %v2094, %v2094
  %v2291 = vpack.c.bf16 %v2095, %v2095
  %v2292 = vpack.c.bf16 %v2096, %v2096
  %v2293 = vpack.c.bf16 %v2097, %v2097
  %v2294 = vpack.c.bf16 %v2098, %v2098
  %v2295 = vpack.c.bf16 %v2099, %v2099
  %v2296 = vpack.c.bf16 %v2100, %v2100
  %v2297 = vpack.c.bf16 %v2101, %v2101
  %v2298 = vpack.c.bf16 %v2102, %v2102
  %v2299 = vpack.c.bf16 %v2103, %v2103
  %v2300 = vpack.c.bf16 %v2104, %v2104
  %v2301 = vpack.c.bf16 %v2105, %v2105
  %v2302 = vpack.c.bf16 %v2106, %v2106
  %v2303 = vpack.c.bf16 %v2107, %v2107
  %v2304 = vpack.c.bf16 %v2108, %v2108
  %v2305 = vpack.c.bf16 %v2109, %v2109
  %v2306 = vpack.c.bf16 %v2110, %v2110
  %v2307 = vpack.c.bf16 %v2111, %v2111
  %v2308 = vpack.c.bf16 %v2112, %v2112
  %v2309 = vpack.c.bf16 %v2113, %v2113
  %v2310 = vpack.c.bf16 %v2114, %v2114
  %v2311 = vpack.c.bf16 %v2115, %v2115
  %v2312 = vpack.c.bf16 %v2116, %v2116
  %v2313 = vpack.c.bf16 %v2117, %v2117
  %vm2314 = vcmask 519168
  %2315 = vst.msk [vmem:[#allocation2] sm:$0xf] %vm2314, %v2118
  %2316 = vst.msk [vmem:[#allocation2 + $0x4] sm:$0xf] %vm2314, %v2119
  %2317 = vst.msk [vmem:[#allocation2 + $0x8] sm:$0xf] %vm2314, %v2120
  %2318 = vst.msk [vmem:[#allocation2 + $0xc] sm:$0xf] %vm2314, %v2121
  %2319 = vst.msk [vmem:[#allocation2 + $0x10] sm:$0xf] %vm2314, %v2122
  %2320 = vst.msk [vmem:[#allocation2 + $0x14] sm:$0xf] %vm2314, %v2123
  %2321 = vst.msk [vmem:[#allocation2 + $0x18] sm:$0xf] %vm2314, %v2124
  %2322 = vst.msk [vmem:[#allocation2 + $0x1c] sm:$0xf] %vm2314, %v2125
  %2323 = vst.msk [vmem:[#allocation2 + $0x20] sm:$0xf] %vm2314, %v2126
  %2324 = vst.msk [vmem:[#allocation2 + $0x24] sm:$0xf] %vm2314, %v2127
  %2325 = vst.msk [vmem:[#allocation2 + $0x28] sm:$0xf] %vm2314, %v2128
  %2326 = vst.msk [vmem:[#allocation2 + $0x2c] sm:$0xf] %vm2314, %v2129
  %2327 = vst.msk [vmem:[#allocation2 + $0x30] sm:$0xf] %vm2314, %v2130
  %2328 = vst.msk [vmem:[#allocation2 + $0x34] sm:$0xf] %vm2314, %v2131
  %2329 = vst.msk [vmem:[#allocation2 + $0x38] sm:$0xf] %vm2314, %v2132
  %2330 = vst.msk [vmem:[#allocation2 + $0x3c] sm:$0xf] %vm2314, %v2133
  %2331 = vst.msk [vmem:[#allocation2 + $0x40] sm:$0xf] %vm2314, %v2134
  %2332 = vst.msk [vmem:[#allocation2 + $0x44] sm:$0xf] %vm2314, %v2135
  %2333 = vst.msk [vmem:[#allocation2 + $0x48] sm:$0xf] %vm2314, %v2136
  %2334 = vst.msk [vmem:[#allocation2 + $0x4c] sm:$0xf] %vm2314, %v2137
  %2335 = vst.msk [vmem:[#allocation2 + $0x50] sm:$0xf] %vm2314, %v2138
  %2336 = vst.msk [vmem:[#allocation2 + $0x54] sm:$0xf] %vm2314, %v2139
  %2337 = vst.msk [vmem:[#allocation2 + $0x58] sm:$0xf] %vm2314, %v2140
  %2338 = vst.msk [vmem:[#allocation2 + $0x5c] sm:$0xf] %vm2314, %v2141
  %2339 = vst.msk [vmem:[#allocation2 + $0x60] sm:$0xf] %vm2314, %v2142
  %2340 = vst.msk [vmem:[#allocation2 + $0x64] sm:$0xf] %vm2314, %v2143
  %2341 = vst.msk [vmem:[#allocation2 + $0x68] sm:$0xf] %vm2314, %v2144
  %2342 = vst.msk [vmem:[#allocation2 + $0x6c] sm:$0xf] %vm2314, %v2145
  %2343 = vst.msk [vmem:[#allocation2 + $0x70] sm:$0xf] %vm2314, %v2146
  %2344 = vst.msk [vmem:[#allocation2 + $0x74] sm:$0xf] %vm2314, %v2147
  %2345 = vst.msk [vmem:[#allocation2 + $0x78] sm:$0xf] %vm2314, %v2148
  %2346 = vst.msk [vmem:[#allocation2 + $0x7c] sm:$0xf] %vm2314, %v2149
  %2347 = vst.msk [vmem:[#allocation2 + $0x80] sm:$0xf] %vm2314, %v2150
  %2348 = vst.msk [vmem:[#allocation2 + $0x84] sm:$0xf] %vm2314, %v2151
  %2349 = vst.msk [vmem:[#allocation2 + $0x88] sm:$0xf] %vm2314, %v2152
  %2350 = vst.msk [vmem:[#allocation2 + $0x8c] sm:$0xf] %vm2314, %v2153
  %2351 = vst.msk [vmem:[#allocation2 + $0x90] sm:$0xf] %vm2314, %v2154
  %2352 = vst.msk [vmem:[#allocation2 + $0x94] sm:$0xf] %vm2314, %v2155
  %2353 = vst.msk [vmem:[#allocation2 + $0x98] sm:$0xf] %vm2314, %v2156
  %2354 = vst.msk [vmem:[#allocation2 + $0x9c] sm:$0xf] %vm2314, %v2157
  %2355 = vst.msk [vmem:[#allocation2 + $0xa0] sm:$0xf] %vm2314, %v2158
  %2356 = vst.msk [vmem:[#allocation2 + $0xa4] sm:$0xf] %vm2314, %v2159
  %2357 = vst.msk [vmem:[#allocation2 + $0xa8] sm:$0xf] %vm2314, %v2160
  %2358 = vst.msk [vmem:[#allocation2 + $0xac] sm:$0xf] %vm2314, %v2161
  %2359 = vst.msk [vmem:[#allocation2 + $0xb0] sm:$0xf] %vm2314, %v2162
  %2360 = vst.msk [vmem:[#allocation2 + $0xb4] sm:$0xf] %vm2314, %v2163
  %2361 = vst.msk [vmem:[#allocation2 + $0xb8] sm:$0xf] %vm2314, %v2164
  %2362 = vst.msk [vmem:[#allocation2 + $0xbc] sm:$0xf] %vm2314, %v2165
  %2363 = vst.msk [vmem:[#allocation2 + $0xc0] sm:$0xf] %vm2314, %v2166
  %2364 = vst.msk [vmem:[#allocation2 + $0xc4] sm:$0xf] %vm2314, %v2167
  %2365 = vst.msk [vmem:[#allocation2 + $0xc8] sm:$0xf] %vm2314, %v2168
  %2366 = vst.msk [vmem:[#allocation2 + $0xcc] sm:$0xf] %vm2314, %v2169
  %2367 = vst.msk [vmem:[#allocation2 + $0xd0] sm:$0xf] %vm2314, %v2170
  %2368 = vst.msk [vmem:[#allocation2 + $0xd4] sm:$0xf] %vm2314, %v2171
  %2369 = vst.msk [vmem:[#allocation2 + $0xd8] sm:$0xf] %vm2314, %v2172
  %2370 = vst.msk [vmem:[#allocation2 + $0xdc] sm:$0xf] %vm2314, %v2173
  %2371 = vst.msk [vmem:[#allocation2 + $0xe0] sm:$0xf] %vm2314, %v2174
  %2372 = vst.msk [vmem:[#allocation2 + $0xe4] sm:$0xf] %vm2314, %v2175
  %2373 = vst.msk [vmem:[#allocation2 + $0xe8] sm:$0xf] %vm2314, %v2176
  %2374 = vst.msk [vmem:[#allocation2 + $0xec] sm:$0xf] %vm2314, %v2177
  %2375 = vst.msk [vmem:[#allocation2 + $0xf0] sm:$0xf] %vm2314, %v2178
  %2376 = vst.msk [vmem:[#allocation2 + $0xf4] sm:$0xf] %vm2314, %v2179
  %2377 = vst.msk [vmem:[#allocation2 + $0xf8] sm:$0xf] %vm2314, %v2180
  %2378 = vst.msk [vmem:[#allocation2 + $0xfc] sm:$0xf] %vm2314, %v2181
  %2379 = vst.msk [vmem:[#allocation2 + $0x100] sm:$0xf] %vm2314, %v2182
  %2380 = vst.msk [vmem:[#allocation2 + $0x104] sm:$0xf] %vm2314, %v2183
  %2381 = vst.msk [vmem:[#allocation2 + $0x108] sm:$0xf] %vm2314, %v2184
  %2382 = vst.msk [vmem:[#allocation2 + $0x10c] sm:$0xf] %vm2314, %v2185
  %2383 = vst.msk [vmem:[#allocation2 + $0x110] sm:$0xf] %vm2314, %v2186
  %2384 = vst.msk [vmem:[#allocation2 + $0x114] sm:$0xf] %vm2314, %v2187
  %2385 = vst.msk [vmem:[#allocation2 + $0x118] sm:$0xf] %vm2314, %v2188
  %2386 = vst.msk [vmem:[#allocation2 + $0x11c] sm:$0xf] %vm2314, %v2189
  %2387 = vst.msk [vmem:[#allocation2 + $0x120] sm:$0xf] %vm2314, %v2190
  %2388 = vst.msk [vmem:[#allocation2 + $0x124] sm:$0xf] %vm2314, %v2191
  %2389 = vst.msk [vmem:[#allocation2 + $0x128] sm:$0xf] %vm2314, %v2192
  %2390 = vst.msk [vmem:[#allocation2 + $0x12c] sm:$0xf] %vm2314, %v2193
  %2391 = vst.msk [vmem:[#allocation2 + $0x130] sm:$0xf] %vm2314, %v2194
  %2392 = vst.msk [vmem:[#allocation2 + $0x134] sm:$0xf] %vm2314, %v2195
  %2393 = vst.msk [vmem:[#allocation2 + $0x138] sm:$0xf] %vm2314, %v2196
  %2394 = vst.msk [vmem:[#allocation2 + $0x13c] sm:$0xf] %vm2314, %v2197
  %2395 = vst.msk [vmem:[#allocation2 + $0x140] sm:$0xf] %vm2314, %v2198
  %2396 = vst.msk [vmem:[#allocation2 + $0x144] sm:$0xf] %vm2314, %v2199
  %2397 = vst.msk [vmem:[#allocation2 + $0x148] sm:$0xf] %vm2314, %v2200
  %2398 = vst.msk [vmem:[#allocation2 + $0x14c] sm:$0xf] %vm2314, %v2201
  %2399 = vst.msk [vmem:[#allocation2 + $0x150] sm:$0xf] %vm2314, %v2202
  %2400 = vst.msk [vmem:[#allocation2 + $0x154] sm:$0xf] %vm2314, %v2203
  %2401 = vst.msk [vmem:[#allocation2 + $0x158] sm:$0xf] %vm2314, %v2204
  %2402 = vst.msk [vmem:[#allocation2 + $0x15c] sm:$0xf] %vm2314, %v2205
  %2403 = vst.msk [vmem:[#allocation2 + $0x160] sm:$0xf] %vm2314, %v2206
  %2404 = vst.msk [vmem:[#allocation2 + $0x164] sm:$0xf] %vm2314, %v2207
  %2405 = vst.msk [vmem:[#allocation2 + $0x168] sm:$0xf] %vm2314, %v2208
  %2406 = vst.msk [vmem:[#allocation2 + $0x16c] sm:$0xf] %vm2314, %v2209
  %2407 = vst.msk [vmem:[#allocation2 + $0x170] sm:$0xf] %vm2314, %v2210
  %2408 = vst.msk [vmem:[#allocation2 + $0x174] sm:$0xf] %vm2314, %v2211
  %2409 = vst.msk [vmem:[#allocation2 + $0x178] sm:$0xf] %vm2314, %v2212
  %2410 = vst.msk [vmem:[#allocation2 + $0x17c] sm:$0xf] %vm2314, %v2213
  %2411 = vst.msk [vmem:[#allocation2 + $0x180] sm:$0xf] %vm2314, %v2214
  %2412 = vst.msk [vmem:[#allocation2 + $0x184] sm:$0xf] %vm2314, %v2215
  %2413 = vst.msk [vmem:[#allocation2 + $0x188] sm:$0xf] %vm2314, %v2216
  %2414 = vst.msk [vmem:[#allocation2 + $0x18c] sm:$0xf] %vm2314, %v2217
  %2415 = vst.msk [vmem:[#allocation2 + $0x190] sm:$0xf] %vm2314, %v2218
  %2416 = vst.msk [vmem:[#allocation2 + $0x194] sm:$0xf] %vm2314, %v2219
  %2417 = vst.msk [vmem:[#allocation2 + $0x198] sm:$0xf] %vm2314, %v2220
  %2418 = vst.msk [vmem:[#allocation2 + $0x19c] sm:$0xf] %vm2314, %v2221
  %2419 = vst.msk [vmem:[#allocation2 + $0x1a0] sm:$0xf] %vm2314, %v2222
  %2420 = vst.msk [vmem:[#allocation2 + $0x1a4] sm:$0xf] %vm2314, %v2223
  %2421 = vst.msk [vmem:[#allocation2 + $0x1a8] sm:$0xf] %vm2314, %v2224
  %2422 = vst.msk [vmem:[#allocation2 + $0x1ac] sm:$0xf] %vm2314, %v2225
  %2423 = vst.msk [vmem:[#allocation2 + $0x1b0] sm:$0xf] %vm2314, %v2226
  %2424 = vst.msk [vmem:[#allocation2 + $0x1b4] sm:$0xf] %vm2314, %v2227
  %2425 = vst.msk [vmem:[#allocation2 + $0x1b8] sm:$0xf] %vm2314, %v2228
  %2426 = vst.msk [vmem:[#allocation2 + $0x1bc] sm:$0xf] %vm2314, %v2229
  %2427 = vst.msk [vmem:[#allocation2 + $0x1c0] sm:$0xf] %vm2314, %v2230
  %2428 = vst.msk [vmem:[#allocation2 + $0x1c4] sm:$0xf] %vm2314, %v2231
  %2429 = vst.msk [vmem:[#allocation2 + $0x1c8] sm:$0xf] %vm2314, %v2232
  %2430 = vst.msk [vmem:[#allocation2 + $0x1cc] sm:$0xf] %vm2314, %v2233
  %2431 = vst.msk [vmem:[#allocation2 + $0x1d0] sm:$0xf] %vm2314, %v2234
  %2432 = vst.msk [vmem:[#allocation2 + $0x1d4] sm:$0xf] %vm2314, %v2235
  %2433 = vst.msk [vmem:[#allocation2 + $0x1d8] sm:$0xf] %vm2314, %v2236
  %2434 = vst.msk [vmem:[#allocation2 + $0x1dc] sm:$0xf] %vm2314, %v2237
  %2435 = vst.msk [vmem:[#allocation2 + $0x1e0] sm:$0xf] %vm2314, %v2238
  %2436 = vst.msk [vmem:[#allocation2 + $0x1e4] sm:$0xf] %vm2314, %v2239
  %2437 = vst.msk [vmem:[#allocation2 + $0x1e8] sm:$0xf] %vm2314, %v2240
  %2438 = vst.msk [vmem:[#allocation2 + $0x1ec] sm:$0xf] %vm2314, %v2241
  %2439 = vst.msk [vmem:[#allocation2 + $0x1f0] sm:$0xf] %vm2314, %v2242
  %2440 = vst.msk [vmem:[#allocation2 + $0x1f4] sm:$0xf] %vm2314, %v2243
  %2441 = vst.msk [vmem:[#allocation2 + $0x1f8] sm:$0xf] %vm2314, %v2244
  %2442 = vst.msk [vmem:[#allocation2 + $0x1fc] sm:$0xf] %vm2314, %v2245
  %2443 = vst.msk [vmem:[#allocation2 + $0x200] sm:$0xf] %vm2314, %v2246
  %2444 = vst.msk [vmem:[#allocation2 + $0x204] sm:$0xf] %vm2314, %v2247
  %2445 = vst.msk [vmem:[#allocation2 + $0x208] sm:$0xf] %vm2314, %v2248
  %2446 = vst.msk [vmem:[#allocation2 + $0x20c] sm:$0xf] %vm2314, %v2249
  %2447 = vst.msk [vmem:[#allocation2 + $0x210] sm:$0xf] %vm2314, %v2250
  %2448 = vst.msk [vmem:[#allocation2 + $0x214] sm:$0xf] %vm2314, %v2251
  %2449 = vst.msk [vmem:[#allocation2 + $0x218] sm:$0xf] %vm2314, %v2252
  %2450 = vst.msk [vmem:[#allocation2 + $0x21c] sm:$0xf] %vm2314, %v2253
  %2451 = vst.msk [vmem:[#allocation2 + $0x220] sm:$0xf] %vm2314, %v2254
  %2452 = vst.msk [vmem:[#allocation2 + $0x224] sm:$0xf] %vm2314, %v2255
  %2453 = vst.msk [vmem:[#allocation2 + $0x228] sm:$0xf] %vm2314, %v2256
  %2454 = vst.msk [vmem:[#allocation2 + $0x22c] sm:$0xf] %vm2314, %v2257
  %2455 = vst.msk [vmem:[#allocation2 + $0x230] sm:$0xf] %vm2314, %v2258
  %2456 = vst.msk [vmem:[#allocation2 + $0x234] sm:$0xf] %vm2314, %v2259
  %2457 = vst.msk [vmem:[#allocation2 + $0x238] sm:$0xf] %vm2314, %v2260
  %2458 = vst.msk [vmem:[#allocation2 + $0x23c] sm:$0xf] %vm2314, %v2261
  %2459 = vst.msk [vmem:[#allocation2 + $0x240] sm:$0xf] %vm2314, %v2262
  %2460 = vst.msk [vmem:[#allocation2 + $0x244] sm:$0xf] %vm2314, %v2263
  %2461 = vst.msk [vmem:[#allocation2 + $0x248] sm:$0xf] %vm2314, %v2264
  %2462 = vst.msk [vmem:[#allocation2 + $0x24c] sm:$0xf] %vm2314, %v2265
  %2463 = vst.msk [vmem:[#allocation2 + $0x250] sm:$0xf] %vm2314, %v2266
  %2464 = vst.msk [vmem:[#allocation2 + $0x254] sm:$0xf] %vm2314, %v2267
  %2465 = vst.msk [vmem:[#allocation2 + $0x258] sm:$0xf] %vm2314, %v2268
  %2466 = vst.msk [vmem:[#allocation2 + $0x25c] sm:$0xf] %vm2314, %v2269
  %2467 = vst.msk [vmem:[#allocation2 + $0x260] sm:$0xf] %vm2314, %v2270
  %2468 = vst.msk [vmem:[#allocation2 + $0x264] sm:$0xf] %vm2314, %v2271
  %2469 = vst.msk [vmem:[#allocation2 + $0x268] sm:$0xf] %vm2314, %v2272
  %2470 = vst.msk [vmem:[#allocation2 + $0x26c] sm:$0xf] %vm2314, %v2273
  %2471 = vst.msk [vmem:[#allocation2 + $0x270] sm:$0xf] %vm2314, %v2274
  %2472 = vst.msk [vmem:[#allocation2 + $0x274] sm:$0xf] %vm2314, %v2275
  %2473 = vst.msk [vmem:[#allocation2 + $0x278] sm:$0xf] %vm2314, %v2276
  %2474 = vst.msk [vmem:[#allocation2 + $0x27c] sm:$0xf] %vm2314, %v2277
  %2475 = vst.msk [vmem:[#allocation2 + $0x280] sm:$0xf] %vm2314, %v2278
  %2476 = vst.msk [vmem:[#allocation2 + $0x284] sm:$0xf] %vm2314, %v2279
  %2477 = vst.msk [vmem:[#allocation2 + $0x288] sm:$0xf] %vm2314, %v2280
  %2478 = vst.msk [vmem:[#allocation2 + $0x28c] sm:$0xf] %vm2314, %v2281
  %2479 = vst.msk [vmem:[#allocation2 + $0x290] sm:$0xf] %vm2314, %v2282
  %2480 = vst.msk [vmem:[#allocation2 + $0x294] sm:$0xf] %vm2314, %v2283
  %2481 = vst.msk [vmem:[#allocation2 + $0x298] sm:$0xf] %vm2314, %v2284
  %2482 = vst.msk [vmem:[#allocation2 + $0x29c] sm:$0xf] %vm2314, %v2285
  %2483 = vst.msk [vmem:[#allocation2 + $0x2a0] sm:$0xf] %vm2314, %v2286
  %2484 = vst.msk [vmem:[#allocation2 + $0x2a4] sm:$0xf] %vm2314, %v2287
  %2485 = vst.msk [vmem:[#allocation2 + $0x2a8] sm:$0xf] %vm2314, %v2288
  %2486 = vst.msk [vmem:[#allocation2 + $0x2ac] sm:$0xf] %vm2314, %v2289
  %2487 = vst.msk [vmem:[#allocation2 + $0x2b0] sm:$0xf] %vm2314, %v2290
  %2488 = vst.msk [vmem:[#allocation2 + $0x2b4] sm:$0xf] %vm2314, %v2291
  %2489 = vst.msk [vmem:[#allocation2 + $0x2b8] sm:$0xf] %vm2314, %v2292
  %2490 = vst.msk [vmem:[#allocation2 + $0x2bc] sm:$0xf] %vm2314, %v2293
  %2491 = vst.msk [vmem:[#allocation2 + $0x2c0] sm:$0xf] %vm2314, %v2294
  %2492 = vst.msk [vmem:[#allocation2 + $0x2c4] sm:$0xf] %vm2314, %v2295
  %2493 = vst.msk [vmem:[#allocation2 + $0x2c8] sm:$0xf] %vm2314, %v2296
  %2494 = vst.msk [vmem:[#allocation2 + $0x2cc] sm:$0xf] %vm2314, %v2297
  %2495 = vst.msk [vmem:[#allocation2 + $0x2d0] sm:$0xf] %vm2314, %v2298
  %2496 = vst.msk [vmem:[#allocation2 + $0x2d4] sm:$0xf] %vm2314, %v2299
  %2497 = vst.msk [vmem:[#allocation2 + $0x2d8] sm:$0xf] %vm2314, %v2300
  %2498 = vst.msk [vmem:[#allocation2 + $0x2dc] sm:$0xf] %vm2314, %v2301
  %2499 = vst.msk [vmem:[#allocation2 + $0x2e0] sm:$0xf] %vm2314, %v2302
  %2500 = vst.msk [vmem:[#allocation2 + $0x2e4] sm:$0xf] %vm2314, %v2303
  %2501 = vst.msk [vmem:[#allocation2 + $0x2e8] sm:$0xf] %vm2314, %v2304
  %2502 = vst.msk [vmem:[#allocation2 + $0x2ec] sm:$0xf] %vm2314, %v2305
  %2503 = vst.msk [vmem:[#allocation2 + $0x2f0] sm:$0xf] %vm2314, %v2306
  %2504 = vst.msk [vmem:[#allocation2 + $0x2f4] sm:$0xf] %vm2314, %v2307
  %2505 = vst.msk [vmem:[#allocation2 + $0x2f8] sm:$0xf] %vm2314, %v2308
  %2506 = vst.msk [vmem:[#allocation2 + $0x2fc] sm:$0xf] %vm2314, %v2309
  %2507 = vst.msk [vmem:[#allocation2 + $0x300] sm:$0xf] %vm2314, %v2310
  %2508 = vst.msk [vmem:[#allocation2 + $0x304] sm:$0xf] %vm2314, %v2311
  %2509 = vst.msk [vmem:[#allocation2 + $0x308] sm:$0xf] %vm2314, %v2312
  %2510 = vst.msk [vmem:[#allocation2 + $0x30c] sm:$0xf] %vm2314, %v2313
  %v2511 = vld [vmem:[#allocation2] sm:$0xf]
  %v2512 = vld [vmem:[#allocation2 + $0x4] sm:$0xf]
  %v2513 = vld [vmem:[#allocation2 + $0x8] sm:$0xf]
  %v2514 = vld [vmem:[#allocation2 + $0xc] sm:$0xf]
  %v2515 = vld [vmem:[#allocation2 + $0x10] sm:$0xf]
  %v2516 = vld [vmem:[#allocation2 + $0x14] sm:$0xf]
  %v2517 = vld [vmem:[#allocation2 + $0x18] sm:$0xf]
  %v2518 = vld [vmem:[#allocation2 + $0x1c] sm:$0xf]
  %v2519 = vld [vmem:[#allocation2 + $0x20] sm:$0xf]
  %v2520 = vld [vmem:[#allocation2 + $0x24] sm:$0xf]
  %v2521 = vld [vmem:[#allocation2 + $0x28] sm:$0xf]
  %v2522 = vld [vmem:[#allocation2 + $0x2c] sm:$0xf]
  %v2523 = vld [vmem:[#allocation2 + $0x30] sm:$0x1]
  %2524 = vst.msk [vmem:[#allocation4] sm:$0xf] %vm2314, %v2511
  %2525 = vst.msk [vmem:[#allocation4 + $0x20] sm:$0xf] %vm2314, %v2512
  %2526 = vst.msk [vmem:[#allocation4 + $0x40] sm:$0xf] %vm2314, %v2513
  %2527 = vst.msk [vmem:[#allocation4 + $0x60] sm:$0xf] %vm2314, %v2514
  %2528 = vst.msk [vmem:[#allocation4 + $0x80] sm:$0xf] %vm2314, %v2515
  %2529 = vst.msk [vmem:[#allocation4 + $0xa0] sm:$0xf] %vm2314, %v2516
  %2530 = vst.msk [vmem:[#allocation4 + $0xc0] sm:$0xf] %vm2314, %v2517
  %2531 = vst.msk [vmem:[#allocation4 + $0xe0] sm:$0xf] %vm2314, %v2518
  %2532 = vst.msk [vmem:[#allocation4 + $0x100] sm:$0xf] %vm2314, %v2519
  %2533 = vst.msk [vmem:[#allocation4 + $0x120] sm:$0xf] %vm2314, %v2520
  %2534 = vst.msk [vmem:[#allocation4 + $0x140] sm:$0xf] %vm2314, %v2521
  %2535 = vst.msk [vmem:[#allocation4 + $0x160] sm:$0xf] %vm2314, %v2522
  %vm2536 = vcmask 516096
  %2537 = vst.msk [vmem:[#allocation4 + $0x180] sm:$0x1] %vm2536, %v2523
  %v2538 = vld [vmem:[#allocation2 + $0x30] sm:$0xe]
  %v2539 = vld [vmem:[#allocation2 + $0x34] sm:$0xf]
  %v2540 = vld [vmem:[#allocation2 + $0x38] sm:$0xf]
  %v2541 = vld [vmem:[#allocation2 + $0x3c] sm:$0xf]
  %v2542 = vld [vmem:[#allocation2 + $0x40] sm:$0xf]
  %v2543 = vld [vmem:[#allocation2 + $0x44] sm:$0xf]
  %v2544 = vld [vmem:[#allocation2 + $0x48] sm:$0xf]
  %v2545 = vld [vmem:[#allocation2 + $0x4c] sm:$0xf]
  %v2546 = vld [vmem:[#allocation2 + $0x50] sm:$0xf]
  %v2547 = vld [vmem:[#allocation2 + $0x54] sm:$0xf]
  %v2548 = vld [vmem:[#allocation2 + $0x58] sm:$0xf]
  %v2549 = vld [vmem:[#allocation2 + $0x5c] sm:$0xf]
  %v2550 = vld [vmem:[#allocation2 + $0x60] sm:$0x3]
  %vm2564 = vcmask 1042432
  %vm2565 = vcmask 1046532
  %vm2566 = vmor %vm2564, %vm2565
  %v2567 = vrot.slane %v2538, 5
  %v2568 = vrot.slane %v2567, 4
  %v2569 = vrot.slane %v2539, 5
  %v2570 = vsel %vm2566, %v2568, %v2569
  %v2571 = vrot.slane %v2569, 4
  %v2572 = vrot.slane %v2540, 5
  %v2573 = vsel %vm2566, %v2571, %v2572
  %v2574 = vrot.slane %v2572, 4
  %v2575 = vrot.slane %v2541, 5
  %v2576 = vsel %vm2566, %v2574, %v2575
  %v2577 = vrot.slane %v2575, 4
  %v2578 = vrot.slane %v2542, 5
  %v2579 = vsel %vm2566, %v2577, %v2578
  %v2580 = vrot.slane %v2578, 4
  %v2581 = vrot.slane %v2543, 5
  %v2582 = vsel %vm2566, %v2580, %v2581
  %v2583 = vrot.slane %v2581, 4
  %v2584 = vrot.slane %v2544, 5
  %v2585 = vsel %vm2566, %v2583, %v2584
  %v2586 = vrot.slane %v2584, 4
  %v2587 = vrot.slane %v2545, 5
  %v2588 = vsel %vm2566, %v2586, %v2587
  %v2589 = vrot.slane %v2587, 4
  %v2590 = vrot.slane %v2546, 5
  %v2591 = vsel %vm2566, %v2589, %v2590
  %v2592 = vrot.slane %v2590, 4
  %v2593 = vrot.slane %v2547, 5
  %v2594 = vsel %vm2566, %v2592, %v2593
  %v2595 = vrot.slane %v2593, 4
  %v2596 = vrot.slane %v2548, 5
  %v2597 = vsel %vm2566, %v2595, %v2596
  %v2598 = vrot.slane %v2596, 4
  %v2599 = vrot.slane %v2549, 5
  %v2600 = vsel %vm2566, %v2598, %v2599
  %v2601 = vrot.slane %v2599, 4
  %v2602 = vrot.slane %v2550, 5
  %v2603 = vsel %vm2566, %v2601, %v2602
  %v2604 = vrot.slane %v2602, 4
  %2605 = vrot.lane.b32.xlu0 %v2570, 64
  %v2606 = vpop.permute.xlu0 %2605
  %2607 = vrot.lane.b32.xlu0 %v2573, 64
  %v2608 = vpop.permute.xlu0 %2607
  %2609 = vrot.lane.b32.xlu0 %v2576, 64
  %v2610 = vpop.permute.xlu0 %2609
  %2611 = vrot.lane.b32.xlu0 %v2579, 64
  %v2612 = vpop.permute.xlu0 %2611
  %2613 = vrot.lane.b32.xlu0 %v2582, 64
  %v2614 = vpop.permute.xlu0 %2613
  %2615 = vrot.lane.b32.xlu0 %v2585, 64
  %v2616 = vpop.permute.xlu0 %2615
  %2617 = vrot.lane.b32.xlu0 %v2588, 64
  %v2618 = vpop.permute.xlu0 %2617
  %2619 = vrot.lane.b32.xlu0 %v2591, 64
  %v2620 = vpop.permute.xlu0 %2619
  %2621 = vrot.lane.b32.xlu0 %v2594, 64
  %v2622 = vpop.permute.xlu0 %2621
  %2623 = vrot.lane.b32.xlu0 %v2597, 64
  %v2624 = vpop.permute.xlu0 %2623
  %2625 = vrot.lane.b32.xlu0 %v2600, 64
  %v2626 = vpop.permute.xlu0 %2625
  %2627 = vrot.lane.b32.xlu0 %v2603, 64
  %v2628 = vpop.permute.xlu0 %2627
  %2629 = vrot.lane.b32.xlu0 %v2604, 64
  %v2630 = vpop.permute.xlu0 %2629
  %vm2644 = vcmask 1043968
  %2645 = vst.msk [vmem:[#allocation4] sm:$0xf] %vm2644, %v2606
  %2646 = vst.msk [vmem:[#allocation4 + $0x20] sm:$0xf] %vm2644, %v2608
  %2647 = vst.msk [vmem:[#allocation4 + $0x40] sm:$0xf] %vm2644, %v2610
  %2648 = vst.msk [vmem:[#allocation4 + $0x60] sm:$0xf] %vm2644, %v2612
  %2649 = vst.msk [vmem:[#allocation4 + $0x80] sm:$0xf] %vm2644, %v2614
  %2650 = vst.msk [vmem:[#allocation4 + $0xa0] sm:$0xf] %vm2644, %v2616
  %2651 = vst.msk [vmem:[#allocation4 + $0xc0] sm:$0xf] %vm2644, %v2618
  %2652 = vst.msk [vmem:[#allocation4 + $0xe0] sm:$0xf] %vm2644, %v2620
  %2653 = vst.msk [vmem:[#allocation4 + $0x100] sm:$0xf] %vm2644, %v2622
  %2654 = vst.msk [vmem:[#allocation4 + $0x120] sm:$0xf] %vm2644, %v2624
  %2655 = vst.msk [vmem:[#allocation4 + $0x140] sm:$0xf] %vm2644, %v2626
  %2656 = vst.msk [vmem:[#allocation4 + $0x160] sm:$0xf] %vm2644, %v2628
  %vm2657 = vcmask 1040896
  %2658 = vst.msk [vmem:[#allocation4 + $0x180] sm:$0x1] %vm2657, %v2630
  %v2659 = vld [vmem:[#allocation2 + $0x60] sm:$0xc]
  %v2660 = vld [vmem:[#allocation2 + $0x64] sm:$0xf]
  %v2661 = vld [vmem:[#allocation2 + $0x68] sm:$0xf]
  %v2662 = vld [vmem:[#allocation2 + $0x6c] sm:$0xf]
  %v2663 = vld [vmem:[#allocation2 + $0x70] sm:$0xf]
  %v2664 = vld [vmem:[#allocation2 + $0x74] sm:$0xf]
  %v2665 = vld [vmem:[#allocation2 + $0x78] sm:$0xf]
  %v2666 = vld [vmem:[#allocation2 + $0x7c] sm:$0xf]
  %v2667 = vld [vmem:[#allocation2 + $0x80] sm:$0xf]
  %v2668 = vld [vmem:[#allocation2 + $0x84] sm:$0xf]
  %v2669 = vld [vmem:[#allocation2 + $0x88] sm:$0xf]
  %v2670 = vld [vmem:[#allocation2 + $0x8c] sm:$0xf]
  %v2671 = vld [vmem:[#allocation2 + $0x90] sm:$0x7]
  %vm2685 = vcmask 1041408
  %vm2686 = vcmask 1045508
  %vm2687 = vmor %vm2685, %vm2686
  %v2688 = vrot.slane %v2659, 6
  %v2689 = vrot.slane %v2688, 4
  %v2690 = vrot.slane %v2660, 6
  %v2691 = vsel %vm2687, %v2689, %v2690
  %v2692 = vrot.slane %v2690, 4
  %v2693 = vrot.slane %v2661, 6
  %v2694 = vsel %vm2687, %v2692, %v2693
  %v2695 = vrot.slane %v2693, 4
  %v2696 = vrot.slane %v2662, 6
  %v2697 = vsel %vm2687, %v2695, %v2696
  %v2698 = vrot.slane %v2696, 4
  %v2699 = vrot.slane %v2663, 6
  %v2700 = vsel %vm2687, %v2698, %v2699
  %v2701 = vrot.slane %v2699, 4
  %v2702 = vrot.slane %v2664, 6
  %v2703 = vsel %vm2687, %v2701, %v2702
  %v2704 = vrot.slane %v2702, 4
  %v2705 = vrot.slane %v2665, 6
  %v2706 = vsel %vm2687, %v2704, %v2705
  %v2707 = vrot.slane %v2705, 4
  %v2708 = vrot.slane %v2666, 6
  %v2709 = vsel %vm2687, %v2707, %v2708
  %v2710 = vrot.slane %v2708, 4
  %v2711 = vrot.slane %v2667, 6
  %v2712 = vsel %vm2687, %v2710, %v2711
  %v2713 = vrot.slane %v2711, 4
  %v2714 = vrot.slane %v2668, 6
  %v2715 = vsel %vm2687, %v2713, %v2714
  %v2716 = vrot.slane %v2714, 4
  %v2717 = vrot.slane %v2669, 6
  %v2718 = vsel %vm2687, %v2716, %v2717
  %v2719 = vrot.slane %v2717, 4
  %v2720 = vrot.slane %v2670, 6
  %v2721 = vsel %vm2687, %v2719, %v2720
  %v2722 = vrot.slane %v2720, 4
  %v2723 = vrot.slane %v2671, 6
  %v2724 = vsel %vm2687, %v2722, %v2723
  %v2725 = vrot.slane %v2723, 4
  %2739 = vst.msk [vmem:[#allocation4 + $0x4] sm:$0xf] %vm2314, %v2691
  %2740 = vst.msk [vmem:[#allocation4 + $0x24] sm:$0xf] %vm2314, %v2694
  %2741 = vst.msk [vmem:[#allocation4 + $0x44] sm:$0xf] %vm2314, %v2697
  %2742 = vst.msk [vmem:[#allocation4 + $0x64] sm:$0xf] %vm2314, %v2700
  %2743 = vst.msk [vmem:[#allocation4 + $0x84] sm:$0xf] %vm2314, %v2703
  %2744 = vst.msk [vmem:[#allocation4 + $0xa4] sm:$0xf] %vm2314, %v2706
  %2745 = vst.msk [vmem:[#allocation4 + $0xc4] sm:$0xf] %vm2314, %v2709
  %2746 = vst.msk [vmem:[#allocation4 + $0xe4] sm:$0xf] %vm2314, %v2712
  %2747 = vst.msk [vmem:[#allocation4 + $0x104] sm:$0xf] %vm2314, %v2715
  %2748 = vst.msk [vmem:[#allocation4 + $0x124] sm:$0xf] %vm2314, %v2718
  %2749 = vst.msk [vmem:[#allocation4 + $0x144] sm:$0xf] %vm2314, %v2721
  %2750 = vst.msk [vmem:[#allocation4 + $0x164] sm:$0xf] %vm2314, %v2724
  %2751 = vst.msk [vmem:[#allocation4 + $0x184] sm:$0x1] %vm2536, %v2725
  %v2752 = vld [vmem:[#allocation2 + $0x90] sm:$0x8]
  %v2753 = vld [vmem:[#allocation2 + $0x94] sm:$0xf]
  %v2754 = vld [vmem:[#allocation2 + $0x98] sm:$0xf]
  %v2755 = vld [vmem:[#allocation2 + $0x9c] sm:$0xf]
  %v2756 = vld [vmem:[#allocation2 + $0xa0] sm:$0xf]
  %v2757 = vld [vmem:[#allocation2 + $0xa4] sm:$0xf]
  %v2758 = vld [vmem:[#allocation2 + $0xa8] sm:$0xf]
  %v2759 = vld [vmem:[#allocation2 + $0xac] sm:$0xf]
  %v2760 = vld [vmem:[#allocation2 + $0xb0] sm:$0xf]
  %v2761 = vld [vmem:[#allocation2 + $0xb4] sm:$0xf]
  %v2762 = vld [vmem:[#allocation2 + $0xb8] sm:$0xf]
  %v2763 = vld [vmem:[#allocation2 + $0xbc] sm:$0xf]
  %v2764 = vld [vmem:[#allocation2 + $0xc0] sm:$0xf]
  %vm2778 = vcmask 1040384
  %vm2779 = vcmask 1044484
  %vm2780 = vmor %vm2778, %vm2779
  %v2781 = vrot.slane %v2752, 7
  %v2782 = vrot.slane %v2781, 4
  %v2783 = vrot.slane %v2753, 7
  %v2784 = vsel %vm2780, %v2782, %v2783
  %v2785 = vrot.slane %v2783, 4
  %v2786 = vrot.slane %v2754, 7
  %v2787 = vsel %vm2780, %v2785, %v2786
  %v2788 = vrot.slane %v2786, 4
  %v2789 = vrot.slane %v2755, 7
  %v2790 = vsel %vm2780, %v2788, %v2789
  %v2791 = vrot.slane %v2789, 4
  %v2792 = vrot.slane %v2756, 7
  %v2793 = vsel %vm2780, %v2791, %v2792
  %v2794 = vrot.slane %v2792, 4
  %v2795 = vrot.slane %v2757, 7
  %v2796 = vsel %vm2780, %v2794, %v2795
  %v2797 = vrot.slane %v2795, 4
  %v2798 = vrot.slane %v2758, 7
  %v2799 = vsel %vm2780, %v2797, %v2798
  %v2800 = vrot.slane %v2798, 4
  %v2801 = vrot.slane %v2759, 7
  %v2802 = vsel %vm2780, %v2800, %v2801
  %v2803 = vrot.slane %v2801, 4
  %v2804 = vrot.slane %v2760, 7
  %v2805 = vsel %vm2780, %v2803, %v2804
  %v2806 = vrot.slane %v2804, 4
  %v2807 = vrot.slane %v2761, 7
  %v2808 = vsel %vm2780, %v2806, %v2807
  %v2809 = vrot.slane %v2807, 4
  %v2810 = vrot.slane %v2762, 7
  %v2811 = vsel %vm2780, %v2809, %v2810
  %v2812 = vrot.slane %v2810, 4
  %v2813 = vrot.slane %v2763, 7
  %v2814 = vsel %vm2780, %v2812, %v2813
  %v2815 = vrot.slane %v2813, 4
  %v2816 = vrot.slane %v2764, 7
  %v2817 = vsel %vm2780, %v2815, %v2816
  %v2818 = vrot.slane %v2816, 4
  %2819 = vrot.lane.b32.xlu0 %v2784, 64
  %v2820 = vpop.permute.xlu0 %2819
  %2821 = vrot.lane.b32.xlu0 %v2787, 64
  %v2822 = vpop.permute.xlu0 %2821
  %2823 = vrot.lane.b32.xlu0 %v2790, 64
  %v2824 = vpop.permute.xlu0 %2823
  %2825 = vrot.lane.b32.xlu0 %v2793, 64
  %v2826 = vpop.permute.xlu0 %2825
  %2827 = vrot.lane.b32.xlu0 %v2796, 64
  %v2828 = vpop.permute.xlu0 %2827
  %2829 = vrot.lane.b32.xlu0 %v2799, 64
  %v2830 = vpop.permute.xlu0 %2829
  %2831 = vrot.lane.b32.xlu0 %v2802, 64
  %v2832 = vpop.permute.xlu0 %2831
  %2833 = vrot.lane.b32.xlu0 %v2805, 64
  %v2834 = vpop.permute.xlu0 %2833
  %2835 = vrot.lane.b32.xlu0 %v2808, 64
  %v2836 = vpop.permute.xlu0 %2835
  %2837 = vrot.lane.b32.xlu0 %v2811, 64
  %v2838 = vpop.permute.xlu0 %2837
  %2839 = vrot.lane.b32.xlu0 %v2814, 64
  %v2840 = vpop.permute.xlu0 %2839
  %2841 = vrot.lane.b32.xlu0 %v2817, 64
  %v2842 = vpop.permute.xlu0 %2841
  %2843 = vrot.lane.b32.xlu0 %v2818, 64
  %v2844 = vpop.permute.xlu0 %2843
  %2858 = vst.msk [vmem:[#allocation4 + $0x4] sm:$0xf] %vm2644, %v2820
  %2859 = vst.msk [vmem:[#allocation4 + $0x24] sm:$0xf] %vm2644, %v2822
  %2860 = vst.msk [vmem:[#allocation4 + $0x44] sm:$0xf] %vm2644, %v2824
  %2861 = vst.msk [vmem:[#allocation4 + $0x64] sm:$0xf] %vm2644, %v2826
  %2862 = vst.msk [vmem:[#allocation4 + $0x84] sm:$0xf] %vm2644, %v2828
  %2863 = vst.msk [vmem:[#allocation4 + $0xa4] sm:$0xf] %vm2644, %v2830
  %2864 = vst.msk [vmem:[#allocation4 + $0xc4] sm:$0xf] %vm2644, %v2832
  %2865 = vst.msk [vmem:[#allocation4 + $0xe4] sm:$0xf] %vm2644, %v2834
  %2866 = vst.msk [vmem:[#allocation4 + $0x104] sm:$0xf] %vm2644, %v2836
  %2867 = vst.msk [vmem:[#allocation4 + $0x124] sm:$0xf] %vm2644, %v2838
  %2868 = vst.msk [vmem:[#allocation4 + $0x144] sm:$0xf] %vm2644, %v2840
  %2869 = vst.msk [vmem:[#allocation4 + $0x164] sm:$0xf] %vm2644, %v2842
  %2870 = vst.msk [vmem:[#allocation4 + $0x184] sm:$0x1] %vm2657, %v2844
  %v2871 = vld [vmem:[#allocation2 + $0xc4] sm:$0xf]
  %v2872 = vld [vmem:[#allocation2 + $0xc8] sm:$0xf]
  %v2873 = vld [vmem:[#allocation2 + $0xcc] sm:$0xf]
  %v2874 = vld [vmem:[#allocation2 + $0xd0] sm:$0xf]
  %v2875 = vld [vmem:[#allocation2 + $0xd4] sm:$0xf]
  %v2876 = vld [vmem:[#allocation2 + $0xd8] sm:$0xf]
  %v2877 = vld [vmem:[#allocation2 + $0xdc] sm:$0xf]
  %v2878 = vld [vmem:[#allocation2 + $0xe0] sm:$0xf]
  %v2879 = vld [vmem:[#allocation2 + $0xe4] sm:$0xf]
  %v2880 = vld [vmem:[#allocation2 + $0xe8] sm:$0xf]
  %v2881 = vld [vmem:[#allocation2 + $0xec] sm:$0xf]
  %v2882 = vld [vmem:[#allocation2 + $0xf0] sm:$0xf]
  %v2883 = vld [vmem:[#allocation2 + $0xf4] sm:$0x1]
  %2884 = vst.msk [vmem:[#allocation4 + $0x8] sm:$0xf] %vm2314, %v2871
  %2885 = vst.msk [vmem:[#allocation4 + $0x28] sm:$0xf] %vm2314, %v2872
  %2886 = vst.msk [vmem:[#allocation4 + $0x48] sm:$0xf] %vm2314, %v2873
  %2887 = vst.msk [vmem:[#allocation4 + $0x68] sm:$0xf] %vm2314, %v2874
  %2888 = vst.msk [vmem:[#allocation4 + $0x88] sm:$0xf] %vm2314, %v2875
  %2889 = vst.msk [vmem:[#allocation4 + $0xa8] sm:$0xf] %vm2314, %v2876
  %2890 = vst.msk [vmem:[#allocation4 + $0xc8] sm:$0xf] %vm2314, %v2877
  %2891 = vst.msk [vmem:[#allocation4 + $0xe8] sm:$0xf] %vm2314, %v2878
  %2892 = vst.msk [vmem:[#allocation4 + $0x108] sm:$0xf] %vm2314, %v2879
  %2893 = vst.msk [vmem:[#allocation4 + $0x128] sm:$0xf] %vm2314, %v2880
  %2894 = vst.msk [vmem:[#allocation4 + $0x148] sm:$0xf] %vm2314, %v2881
  %2895 = vst.msk [vmem:[#allocation4 + $0x168] sm:$0xf] %vm2314, %v2882
  %2896 = vst.msk [vmem:[#allocation4 + $0x188] sm:$0x1] %vm2536, %v2883
  %v2897 = vld [vmem:[#allocation2 + $0xf4] sm:$0xe]
  %v2898 = vld [vmem:[#allocation2 + $0xf8] sm:$0xf]
  %v2899 = vld [vmem:[#allocation2 + $0xfc] sm:$0xf]
  %v2900 = vld [vmem:[#allocation2 + $0x100] sm:$0xf]
  %v2901 = vld [vmem:[#allocation2 + $0x104] sm:$0xf]
  %v2902 = vld [vmem:[#allocation2 + $0x108] sm:$0xf]
  %v2903 = vld [vmem:[#allocation2 + $0x10c] sm:$0xf]
  %v2904 = vld [vmem:[#allocation2 + $0x110] sm:$0xf]
  %v2905 = vld [vmem:[#allocation2 + $0x114] sm:$0xf]
  %v2906 = vld [vmem:[#allocation2 + $0x118] sm:$0xf]
  %v2907 = vld [vmem:[#allocation2 + $0x11c] sm:$0xf]
  %v2908 = vld [vmem:[#allocation2 + $0x120] sm:$0xf]
  %v2909 = vld [vmem:[#allocation2 + $0x124] sm:$0x3]
  %v2923 = vrot.slane %v2897, 5
  %v2924 = vrot.slane %v2923, 4
  %v2925 = vrot.slane %v2898, 5
  %v2926 = vsel %vm2566, %v2924, %v2925
  %v2927 = vrot.slane %v2925, 4
  %v2928 = vrot.slane %v2899, 5
  %v2929 = vsel %vm2566, %v2927, %v2928
  %v2930 = vrot.slane %v2928, 4
  %v2931 = vrot.slane %v2900, 5
  %v2932 = vsel %vm2566, %v2930, %v2931
  %v2933 = vrot.slane %v2931, 4
  %v2934 = vrot.slane %v2901, 5
  %v2935 = vsel %vm2566, %v2933, %v2934
  %v2936 = vrot.slane %v2934, 4
  %v2937 = vrot.slane %v2902, 5
  %v2938 = vsel %vm2566, %v2936, %v2937
  %v2939 = vrot.slane %v2937, 4
  %v2940 = vrot.slane %v2903, 5
  %v2941 = vsel %vm2566, %v2939, %v2940
  %v2942 = vrot.slane %v2940, 4
  %v2943 = vrot.slane %v2904, 5
  %v2944 = vsel %vm2566, %v2942, %v2943
  %v2945 = vrot.slane %v2943, 4
  %v2946 = vrot.slane %v2905, 5
  %v2947 = vsel %vm2566, %v2945, %v2946
  %v2948 = vrot.slane %v2946, 4
  %v2949 = vrot.slane %v2906, 5
  %v2950 = vsel %vm2566, %v2948, %v2949
  %v2951 = vrot.slane %v2949, 4
  %v2952 = vrot.slane %v2907, 5
  %v2953 = vsel %vm2566, %v2951, %v2952
  %v2954 = vrot.slane %v2952, 4
  %v2955 = vrot.slane %v2908, 5
  %v2956 = vsel %vm2566, %v2954, %v2955
  %v2957 = vrot.slane %v2955, 4
  %v2958 = vrot.slane %v2909, 5
  %v2959 = vsel %vm2566, %v2957, %v2958
  %v2960 = vrot.slane %v2958, 4
  %2961 = vrot.lane.b32.xlu0 %v2926, 64
  %v2962 = vpop.permute.xlu0 %2961
  %2963 = vrot.lane.b32.xlu0 %v2929, 64
  %v2964 = vpop.permute.xlu0 %2963
  %2965 = vrot.lane.b32.xlu0 %v2932, 64
  %v2966 = vpop.permute.xlu0 %2965
  %2967 = vrot.lane.b32.xlu0 %v2935, 64
  %v2968 = vpop.permute.xlu0 %2967
  %2969 = vrot.lane.b32.xlu0 %v2938, 64
  %v2970 = vpop.permute.xlu0 %2969
  %2971 = vrot.lane.b32.xlu0 %v2941, 64
  %v2972 = vpop.permute.xlu0 %2971
  %2973 = vrot.lane.b32.xlu0 %v2944, 64
  %v2974 = vpop.permute.xlu0 %2973
  %2975 = vrot.lane.b32.xlu0 %v2947, 64
  %v2976 = vpop.permute.xlu0 %2975
  %2977 = vrot.lane.b32.xlu0 %v2950, 64
  %v2978 = vpop.permute.xlu0 %2977
  %2979 = vrot.lane.b32.xlu0 %v2953, 64
  %v2980 = vpop.permute.xlu0 %2979
  %2981 = vrot.lane.b32.xlu0 %v2956, 64
  %v2982 = vpop.permute.xlu0 %2981
  %2983 = vrot.lane.b32.xlu0 %v2959, 64
  %v2984 = vpop.permute.xlu0 %2983
  %2985 = vrot.lane.b32.xlu0 %v2960, 64
  %v2986 = vpop.permute.xlu0 %2985
  %3000 = vst.msk [vmem:[#allocation4 + $0x8] sm:$0xf] %vm2644, %v2962
  %3001 = vst.msk [vmem:[#allocation4 + $0x28] sm:$0xf] %vm2644, %v2964
  %3002 = vst.msk [vmem:[#allocation4 + $0x48] sm:$0xf] %vm2644, %v2966
  %3003 = vst.msk [vmem:[#allocation4 + $0x68] sm:$0xf] %vm2644, %v2968
  %3004 = vst.msk [vmem:[#allocation4 + $0x88] sm:$0xf] %vm2644, %v2970
  %3005 = vst.msk [vmem:[#allocation4 + $0xa8] sm:$0xf] %vm2644, %v2972
  %3006 = vst.msk [vmem:[#allocation4 + $0xc8] sm:$0xf] %vm2644, %v2974
  %3007 = vst.msk [vmem:[#allocation4 + $0xe8] sm:$0xf] %vm2644, %v2976
  %3008 = vst.msk [vmem:[#allocation4 + $0x108] sm:$0xf] %vm2644, %v2978
  %3009 = vst.msk [vmem:[#allocation4 + $0x128] sm:$0xf] %vm2644, %v2980
  %3010 = vst.msk [vmem:[#allocation4 + $0x148] sm:$0xf] %vm2644, %v2982
  %3011 = vst.msk [vmem:[#allocation4 + $0x168] sm:$0xf] %vm2644, %v2984
  %3012 = vst.msk [vmem:[#allocation4 + $0x188] sm:$0x1] %vm2657, %v2986
  %v3013 = vld [vmem:[#allocation2 + $0x124] sm:$0xc]
  %v3014 = vld [vmem:[#allocation2 + $0x128] sm:$0xf]
  %v3015 = vld [vmem:[#allocation2 + $0x12c] sm:$0xf]
  %v3016 = vld [vmem:[#allocation2 + $0x130] sm:$0xf]
  %v3017 = vld [vmem:[#allocation2 + $0x134] sm:$0xf]
  %v3018 = vld [vmem:[#allocation2 + $0x138] sm:$0xf]
  %v3019 = vld [vmem:[#allocation2 + $0x13c] sm:$0xf]
  %v3020 = vld [vmem:[#allocation2 + $0x140] sm:$0xf]
  %v3021 = vld [vmem:[#allocation2 + $0x144] sm:$0xf]
  %v3022 = vld [vmem:[#allocation2 + $0x148] sm:$0xf]
  %v3023 = vld [vmem:[#allocation2 + $0x14c] sm:$0xf]
  %v3024 = vld [vmem:[#allocation2 + $0x150] sm:$0xf]
  %v3025 = vld [vmem:[#allocation2 + $0x154] sm:$0x7]
  %v3039 = vrot.slane %v3013, 6
  %v3040 = vrot.slane %v3039, 4
  %v3041 = vrot.slane %v3014, 6
  %v3042 = vsel %vm2687, %v3040, %v3041
  %v3043 = vrot.slane %v3041, 4
  %v3044 = vrot.slane %v3015, 6
  %v3045 = vsel %vm2687, %v3043, %v3044
  %v3046 = vrot.slane %v3044, 4
  %v3047 = vrot.slane %v3016, 6
  %v3048 = vsel %vm2687, %v3046, %v3047
  %v3049 = vrot.slane %v3047, 4
  %v3050 = vrot.slane %v3017, 6
  %v3051 = vsel %vm2687, %v3049, %v3050
  %v3052 = vrot.slane %v3050, 4
  %v3053 = vrot.slane %v3018, 6
  %v3054 = vsel %vm2687, %v3052, %v3053
  %v3055 = vrot.slane %v3053, 4
  %v3056 = vrot.slane %v3019, 6
  %v3057 = vsel %vm2687, %v3055, %v3056
  %v3058 = vrot.slane %v3056, 4
  %v3059 = vrot.slane %v3020, 6
  %v3060 = vsel %vm2687, %v3058, %v3059
  %v3061 = vrot.slane %v3059, 4
  %v3062 = vrot.slane %v3021, 6
  %v3063 = vsel %vm2687, %v3061, %v3062
  %v3064 = vrot.slane %v3062, 4
  %v3065 = vrot.slane %v3022, 6
  %v3066 = vsel %vm2687, %v3064, %v3065
  %v3067 = vrot.slane %v3065, 4
  %v3068 = vrot.slane %v3023, 6
  %v3069 = vsel %vm2687, %v3067, %v3068
  %v3070 = vrot.slane %v3068, 4
  %v3071 = vrot.slane %v3024, 6
  %v3072 = vsel %vm2687, %v3070, %v3071
  %v3073 = vrot.slane %v3071, 4
  %v3074 = vrot.slane %v3025, 6
  %v3075 = vsel %vm2687, %v3073, %v3074
  %v3076 = vrot.slane %v3074, 4
  %3090 = vst.msk [vmem:[#allocation4 + $0xc] sm:$0xf] %vm2314, %v3042
  %3091 = vst.msk [vmem:[#allocation4 + $0x2c] sm:$0xf] %vm2314, %v3045
  %3092 = vst.msk [vmem:[#allocation4 + $0x4c] sm:$0xf] %vm2314, %v3048
  %3093 = vst.msk [vmem:[#allocation4 + $0x6c] sm:$0xf] %vm2314, %v3051
  %3094 = vst.msk [vmem:[#allocation4 + $0x8c] sm:$0xf] %vm2314, %v3054
  %3095 = vst.msk [vmem:[#allocation4 + $0xac] sm:$0xf] %vm2314, %v3057
  %3096 = vst.msk [vmem:[#allocation4 + $0xcc] sm:$0xf] %vm2314, %v3060
  %3097 = vst.msk [vmem:[#allocation4 + $0xec] sm:$0xf] %vm2314, %v3063
  %3098 = vst.msk [vmem:[#allocation4 + $0x10c] sm:$0xf] %vm2314, %v3066
  %3099 = vst.msk [vmem:[#allocation4 + $0x12c] sm:$0xf] %vm2314, %v3069
  %3100 = vst.msk [vmem:[#allocation4 + $0x14c] sm:$0xf] %vm2314, %v3072
  %3101 = vst.msk [vmem:[#allocation4 + $0x16c] sm:$0xf] %vm2314, %v3075
  %3102 = vst.msk [vmem:[#allocation4 + $0x18c] sm:$0x1] %vm2536, %v3076
  %v3103 = vld [vmem:[#allocation2 + $0x154] sm:$0x8]
  %v3104 = vld [vmem:[#allocation2 + $0x158] sm:$0xf]
  %v3105 = vld [vmem:[#allocation2 + $0x15c] sm:$0xf]
  %v3106 = vld [vmem:[#allocation2 + $0x160] sm:$0xf]
  %v3107 = vld [vmem:[#allocation2 + $0x164] sm:$0xf]
  %v3108 = vld [vmem:[#allocation2 + $0x168] sm:$0xf]
  %v3109 = vld [vmem:[#allocation2 + $0x16c] sm:$0xf]
  %v3110 = vld [vmem:[#allocation2 + $0x170] sm:$0xf]
  %v3111 = vld [vmem:[#allocation2 + $0x174] sm:$0xf]
  %v3112 = vld [vmem:[#allocation2 + $0x178] sm:$0xf]
  %v3113 = vld [vmem:[#allocation2 + $0x17c] sm:$0xf]
  %v3114 = vld [vmem:[#allocation2 + $0x180] sm:$0xf]
  %v3115 = vld [vmem:[#allocation2 + $0x184] sm:$0xf]
  %v3129 = vrot.slane %v3103, 7
  %v3130 = vrot.slane %v3129, 4
  %v3131 = vrot.slane %v3104, 7
  %v3132 = vsel %vm2780, %v3130, %v3131
  %v3133 = vrot.slane %v3131, 4
  %v3134 = vrot.slane %v3105, 7
  %v3135 = vsel %vm2780, %v3133, %v3134
  %v3136 = vrot.slane %v3134, 4
  %v3137 = vrot.slane %v3106, 7
  %v3138 = vsel %vm2780, %v3136, %v3137
  %v3139 = vrot.slane %v3137, 4
  %v3140 = vrot.slane %v3107, 7
  %v3141 = vsel %vm2780, %v3139, %v3140
  %v3142 = vrot.slane %v3140, 4
  %v3143 = vrot.slane %v3108, 7
  %v3144 = vsel %vm2780, %v3142, %v3143
  %v3145 = vrot.slane %v3143, 4
  %v3146 = vrot.slane %v3109, 7
  %v3147 = vsel %vm2780, %v3145, %v3146
  %v3148 = vrot.slane %v3146, 4
  %v3149 = vrot.slane %v3110, 7
  %v3150 = vsel %vm2780, %v3148, %v3149
  %v3151 = vrot.slane %v3149, 4
  %v3152 = vrot.slane %v3111, 7
  %v3153 = vsel %vm2780, %v3151, %v3152
  %v3154 = vrot.slane %v3152, 4
  %v3155 = vrot.slane %v3112, 7
  %v3156 = vsel %vm2780, %v3154, %v3155
  %v3157 = vrot.slane %v3155, 4
  %v3158 = vrot.slane %v3113, 7
  %v3159 = vsel %vm2780, %v3157, %v3158
  %v3160 = vrot.slane %v3158, 4
  %v3161 = vrot.slane %v3114, 7
  %v3162 = vsel %vm2780, %v3160, %v3161
  %v3163 = vrot.slane %v3161, 4
  %v3164 = vrot.slane %v3115, 7
  %v3165 = vsel %vm2780, %v3163, %v3164
  %v3166 = vrot.slane %v3164, 4
  %3167 = vrot.lane.b32.xlu0 %v3132, 64
  %v3168 = vpop.permute.xlu0 %3167
  %3169 = vrot.lane.b32.xlu0 %v3135, 64
  %v3170 = vpop.permute.xlu0 %3169
  %3171 = vrot.lane.b32.xlu0 %v3138, 64
  %v3172 = vpop.permute.xlu0 %3171
  %3173 = vrot.lane.b32.xlu0 %v3141, 64
  %v3174 = vpop.permute.xlu0 %3173
  %3175 = vrot.lane.b32.xlu0 %v3144, 64
  %v3176 = vpop.permute.xlu0 %3175
  %3177 = vrot.lane.b32.xlu0 %v3147, 64
  %v3178 = vpop.permute.xlu0 %3177
  %3179 = vrot.lane.b32.xlu0 %v3150, 64
  %v3180 = vpop.permute.xlu0 %3179
  %3181 = vrot.lane.b32.xlu0 %v3153, 64
  %v3182 = vpop.permute.xlu0 %3181
  %3183 = vrot.lane.b32.xlu0 %v3156, 64
  %v3184 = vpop.permute.xlu0 %3183
  %3185 = vrot.lane.b32.xlu0 %v3159, 64
  %v3186 = vpop.permute.xlu0 %3185
  %3187 = vrot.lane.b32.xlu0 %v3162, 64
  %v3188 = vpop.permute.xlu0 %3187
  %3189 = vrot.lane.b32.xlu0 %v3165, 64
  %v3190 = vpop.permute.xlu0 %3189
  %3191 = vrot.lane.b32.xlu0 %v3166, 64
  %v3192 = vpop.permute.xlu0 %3191
  %3206 = vst.msk [vmem:[#allocation4 + $0xc] sm:$0xf] %vm2644, %v3168
  %3207 = vst.msk [vmem:[#allocation4 + $0x2c] sm:$0xf] %vm2644, %v3170
  %3208 = vst.msk [vmem:[#allocation4 + $0x4c] sm:$0xf] %vm2644, %v3172
  %3209 = vst.msk [vmem:[#allocation4 + $0x6c] sm:$0xf] %vm2644, %v3174
  %3210 = vst.msk [vmem:[#allocation4 + $0x8c] sm:$0xf] %vm2644, %v3176
  %3211 = vst.msk [vmem:[#allocation4 + $0xac] sm:$0xf] %vm2644, %v3178
  %3212 = vst.msk [vmem:[#allocation4 + $0xcc] sm:$0xf] %vm2644, %v3180
  %3213 = vst.msk [vmem:[#allocation4 + $0xec] sm:$0xf] %vm2644, %v3182
  %3214 = vst.msk [vmem:[#allocation4 + $0x10c] sm:$0xf] %vm2644, %v3184
  %3215 = vst.msk [vmem:[#allocation4 + $0x12c] sm:$0xf] %vm2644, %v3186
  %3216 = vst.msk [vmem:[#allocation4 + $0x14c] sm:$0xf] %vm2644, %v3188
  %3217 = vst.msk [vmem:[#allocation4 + $0x16c] sm:$0xf] %vm2644, %v3190
  %3218 = vst.msk [vmem:[#allocation4 + $0x18c] sm:$0x1] %vm2657, %v3192
  %v3219 = vld [vmem:[#allocation2 + $0x188] sm:$0xf]
  %v3220 = vld [vmem:[#allocation2 + $0x18c] sm:$0xf]
  %v3221 = vld [vmem:[#allocation2 + $0x190] sm:$0xf]
  %v3222 = vld [vmem:[#allocation2 + $0x194] sm:$0xf]
  %v3223 = vld [vmem:[#allocation2 + $0x198] sm:$0xf]
  %v3224 = vld [vmem:[#allocation2 + $0x19c] sm:$0xf]
  %v3225 = vld [vmem:[#allocation2 + $0x1a0] sm:$0xf]
  %v3226 = vld [vmem:[#allocation2 + $0x1a4] sm:$0xf]
  %v3227 = vld [vmem:[#allocation2 + $0x1a8] sm:$0xf]
  %v3228 = vld [vmem:[#allocation2 + $0x1ac] sm:$0xf]
  %v3229 = vld [vmem:[#allocation2 + $0x1b0] sm:$0xf]
  %v3230 = vld [vmem:[#allocation2 + $0x1b4] sm:$0xf]
  %v3231 = vld [vmem:[#allocation2 + $0x1b8] sm:$0x1]
  %3232 = vst.msk [vmem:[#allocation4 + $0x10] sm:$0xf] %vm2314, %v3219
  %3233 = vst.msk [vmem:[#allocation4 + $0x30] sm:$0xf] %vm2314, %v3220
  %3234 = vst.msk [vmem:[#allocation4 + $0x50] sm:$0xf] %vm2314, %v3221
  %3235 = vst.msk [vmem:[#allocation4 + $0x70] sm:$0xf] %vm2314, %v3222
  %3236 = vst.msk [vmem:[#allocation4 + $0x90] sm:$0xf] %vm2314, %v3223
  %3237 = vst.msk [vmem:[#allocation4 + $0xb0] sm:$0xf] %vm2314, %v3224
  %3238 = vst.msk [vmem:[#allocation4 + $0xd0] sm:$0xf] %vm2314, %v3225
  %3239 = vst.msk [vmem:[#allocation4 + $0xf0] sm:$0xf] %vm2314, %v3226
  %3240 = vst.msk [vmem:[#allocation4 + $0x110] sm:$0xf] %vm2314, %v3227
  %3241 = vst.msk [vmem:[#allocation4 + $0x130] sm:$0xf] %vm2314, %v3228
  %3242 = vst.msk [vmem:[#allocation4 + $0x150] sm:$0xf] %vm2314, %v3229
  %3243 = vst.msk [vmem:[#allocation4 + $0x170] sm:$0xf] %vm2314, %v3230
  %3244 = vst.msk [vmem:[#allocation4 + $0x190] sm:$0x1] %vm2536, %v3231
  %v3245 = vld [vmem:[#allocation2 + $0x1b8] sm:$0xe]
  %v3246 = vld [vmem:[#allocation2 + $0x1bc] sm:$0xf]
  %v3247 = vld [vmem:[#allocation2 + $0x1c0] sm:$0xf]
  %v3248 = vld [vmem:[#allocation2 + $0x1c4] sm:$0xf]
  %v3249 = vld [vmem:[#allocation2 + $0x1c8] sm:$0xf]
  %v3250 = vld [vmem:[#allocation2 + $0x1cc] sm:$0xf]
  %v3251 = vld [vmem:[#allocation2 + $0x1d0] sm:$0xf]
  %v3252 = vld [vmem:[#allocation2 + $0x1d4] sm:$0xf]
  %v3253 = vld [vmem:[#allocation2 + $0x1d8] sm:$0xf]
  %v3254 = vld [vmem:[#allocation2 + $0x1dc] sm:$0xf]
  %v3255 = vld [vmem:[#allocation2 + $0x1e0] sm:$0xf]
  %v3256 = vld [vmem:[#allocation2 + $0x1e4] sm:$0xf]
  %v3257 = vld [vmem:[#allocation2 + $0x1e8] sm:$0x3]
  %v3271 = vrot.slane %v3245, 5
  %v3272 = vrot.slane %v3271, 4
  %v3273 = vrot.slane %v3246, 5
  %v3274 = vsel %vm2566, %v3272, %v3273
  %v3275 = vrot.slane %v3273, 4
  %v3276 = vrot.slane %v3247, 5
  %v3277 = vsel %vm2566, %v3275, %v3276
  %v3278 = vrot.slane %v3276, 4
  %v3279 = vrot.slane %v3248, 5
  %v3280 = vsel %vm2566, %v3278, %v3279
  %v3281 = vrot.slane %v3279, 4
  %v3282 = vrot.slane %v3249, 5
  %v3283 = vsel %vm2566, %v3281, %v3282
  %v3284 = vrot.slane %v3282, 4
  %v3285 = vrot.slane %v3250, 5
  %v3286 = vsel %vm2566, %v3284, %v3285
  %v3287 = vrot.slane %v3285, 4
  %v3288 = vrot.slane %v3251, 5
  %v3289 = vsel %vm2566, %v3287, %v3288
  %v3290 = vrot.slane %v3288, 4
  %v3291 = vrot.slane %v3252, 5
  %v3292 = vsel %vm2566, %v3290, %v3291
  %v3293 = vrot.slane %v3291, 4
  %v3294 = vrot.slane %v3253, 5
  %v3295 = vsel %vm2566, %v3293, %v3294
  %v3296 = vrot.slane %v3294, 4
  %v3297 = vrot.slane %v3254, 5
  %v3298 = vsel %vm2566, %v3296, %v3297
  %v3299 = vrot.slane %v3297, 4
  %v3300 = vrot.slane %v3255, 5
  %v3301 = vsel %vm2566, %v3299, %v3300
  %v3302 = vrot.slane %v3300, 4
  %v3303 = vrot.slane %v3256, 5
  %v3304 = vsel %vm2566, %v3302, %v3303
  %v3305 = vrot.slane %v3303, 4
  %v3306 = vrot.slane %v3257, 5
  %v3307 = vsel %vm2566, %v3305, %v3306
  %v3308 = vrot.slane %v3306, 4
  %3309 = vrot.lane.b32.xlu0 %v3274, 64
  %v3310 = vpop.permute.xlu0 %3309
  %3311 = vrot.lane.b32.xlu0 %v3277, 64
  %v3312 = vpop.permute.xlu0 %3311
  %3313 = vrot.lane.b32.xlu0 %v3280, 64
  %v3314 = vpop.permute.xlu0 %3313
  %3315 = vrot.lane.b32.xlu0 %v3283, 64
  %v3316 = vpop.permute.xlu0 %3315
  %3317 = vrot.lane.b32.xlu0 %v3286, 64
  %v3318 = vpop.permute.xlu0 %3317
  %3319 = vrot.lane.b32.xlu0 %v3289, 64
  %v3320 = vpop.permute.xlu0 %3319
  %3321 = vrot.lane.b32.xlu0 %v3292, 64
  %v3322 = vpop.permute.xlu0 %3321
  %3323 = vrot.lane.b32.xlu0 %v3295, 64
  %v3324 = vpop.permute.xlu0 %3323
  %3325 = vrot.lane.b32.xlu0 %v3298, 64
  %v3326 = vpop.permute.xlu0 %3325
  %3327 = vrot.lane.b32.xlu0 %v3301, 64
  %v3328 = vpop.permute.xlu0 %3327
  %3329 = vrot.lane.b32.xlu0 %v3304, 64
  %v3330 = vpop.permute.xlu0 %3329
  %3331 = vrot.lane.b32.xlu0 %v3307, 64
  %v3332 = vpop.permute.xlu0 %3331
  %3333 = vrot.lane.b32.xlu0 %v3308, 64
  %v3334 = vpop.permute.xlu0 %3333
  %3348 = vst.msk [vmem:[#allocation4 + $0x10] sm:$0xf] %vm2644, %v3310
  %3349 = vst.msk [vmem:[#allocation4 + $0x30] sm:$0xf] %vm2644, %v3312
  %3350 = vst.msk [vmem:[#allocation4 + $0x50] sm:$0xf] %vm2644, %v3314
  %3351 = vst.msk [vmem:[#allocation4 + $0x70] sm:$0xf] %vm2644, %v3316
  %3352 = vst.msk [vmem:[#allocation4 + $0x90] sm:$0xf] %vm2644, %v3318
  %3353 = vst.msk [vmem:[#allocation4 + $0xb0] sm:$0xf] %vm2644, %v3320
  %3354 = vst.msk [vmem:[#allocation4 + $0xd0] sm:$0xf] %vm2644, %v3322
  %3355 = vst.msk [vmem:[#allocation4 + $0xf0] sm:$0xf] %vm2644, %v3324
  %3356 = vst.msk [vmem:[#allocation4 + $0x110] sm:$0xf] %vm2644, %v3326
  %3357 = vst.msk [vmem:[#allocation4 + $0x130] sm:$0xf] %vm2644, %v3328
  %3358 = vst.msk [vmem:[#allocation4 + $0x150] sm:$0xf] %vm2644, %v3330
  %3359 = vst.msk [vmem:[#allocation4 + $0x170] sm:$0xf] %vm2644, %v3332
  %3360 = vst.msk [vmem:[#allocation4 + $0x190] sm:$0x1] %vm2657, %v3334
  %v3361 = vld [vmem:[#allocation2 + $0x1e8] sm:$0xc]
  %v3362 = vld [vmem:[#allocation2 + $0x1ec] sm:$0xf]
  %v3363 = vld [vmem:[#allocation2 + $0x1f0] sm:$0xf]
  %v3364 = vld [vmem:[#allocation2 + $0x1f4] sm:$0xf]
  %v3365 = vld [vmem:[#allocation2 + $0x1f8] sm:$0xf]
  %v3366 = vld [vmem:[#allocation2 + $0x1fc] sm:$0xf]
  %v3367 = vld [vmem:[#allocation2 + $0x200] sm:$0xf]
  %v3368 = vld [vmem:[#allocation2 + $0x204] sm:$0xf]
  %v3369 = vld [vmem:[#allocation2 + $0x208] sm:$0xf]
  %v3370 = vld [vmem:[#allocation2 + $0x20c] sm:$0xf]
  %v3371 = vld [vmem:[#allocation2 + $0x210] sm:$0xf]
  %v3372 = vld [vmem:[#allocation2 + $0x214] sm:$0xf]
  %v3373 = vld [vmem:[#allocation2 + $0x218] sm:$0x7]
  %v3387 = vrot.slane %v3361, 6
  %v3388 = vrot.slane %v3387, 4
  %v3389 = vrot.slane %v3362, 6
  %v3390 = vsel %vm2687, %v3388, %v3389
  %v3391 = vrot.slane %v3389, 4
  %v3392 = vrot.slane %v3363, 6
  %v3393 = vsel %vm2687, %v3391, %v3392
  %v3394 = vrot.slane %v3392, 4
  %v3395 = vrot.slane %v3364, 6
  %v3396 = vsel %vm2687, %v3394, %v3395
  %v3397 = vrot.slane %v3395, 4
  %v3398 = vrot.slane %v3365, 6
  %v3399 = vsel %vm2687, %v3397, %v3398
  %v3400 = vrot.slane %v3398, 4
  %v3401 = vrot.slane %v3366, 6
  %v3402 = vsel %vm2687, %v3400, %v3401
  %v3403 = vrot.slane %v3401, 4
  %v3404 = vrot.slane %v3367, 6
  %v3405 = vsel %vm2687, %v3403, %v3404
  %v3406 = vrot.slane %v3404, 4
  %v3407 = vrot.slane %v3368, 6
  %v3408 = vsel %vm2687, %v3406, %v3407
  %v3409 = vrot.slane %v3407, 4
  %v3410 = vrot.slane %v3369, 6
  %v3411 = vsel %vm2687, %v3409, %v3410
  %v3412 = vrot.slane %v3410, 4
  %v3413 = vrot.slane %v3370, 6
  %v3414 = vsel %vm2687, %v3412, %v3413
  %v3415 = vrot.slane %v3413, 4
  %v3416 = vrot.slane %v3371, 6
  %v3417 = vsel %vm2687, %v3415, %v3416
  %v3418 = vrot.slane %v3416, 4
  %v3419 = vrot.slane %v3372, 6
  %v3420 = vsel %vm2687, %v3418, %v3419
  %v3421 = vrot.slane %v3419, 4
  %v3422 = vrot.slane %v3373, 6
  %v3423 = vsel %vm2687, %v3421, %v3422
  %v3424 = vrot.slane %v3422, 4
  %3438 = vst.msk [vmem:[#allocation4 + $0x14] sm:$0xf] %vm2314, %v3390
  %3439 = vst.msk [vmem:[#allocation4 + $0x34] sm:$0xf] %vm2314, %v3393
  %3440 = vst.msk [vmem:[#allocation4 + $0x54] sm:$0xf] %vm2314, %v3396
  %3441 = vst.msk [vmem:[#allocation4 + $0x74] sm:$0xf] %vm2314, %v3399
  %3442 = vst.msk [vmem:[#allocation4 + $0x94] sm:$0xf] %vm2314, %v3402
  %3443 = vst.msk [vmem:[#allocation4 + $0xb4] sm:$0xf] %vm2314, %v3405
  %3444 = vst.msk [vmem:[#allocation4 + $0xd4] sm:$0xf] %vm2314, %v3408
  %3445 = vst.msk [vmem:[#allocation4 + $0xf4] sm:$0xf] %vm2314, %v3411
  %3446 = vst.msk [vmem:[#allocation4 + $0x114] sm:$0xf] %vm2314, %v3414
  %3447 = vst.msk [vmem:[#allocation4 + $0x134] sm:$0xf] %vm2314, %v3417
  %3448 = vst.msk [vmem:[#allocation4 + $0x154] sm:$0xf] %vm2314, %v3420
  %3449 = vst.msk [vmem:[#allocation4 + $0x174] sm:$0xf] %vm2314, %v3423
  %3450 = vst.msk [vmem:[#allocation4 + $0x194] sm:$0x1] %vm2536, %v3424
  %v3451 = vld [vmem:[#allocation2 + $0x218] sm:$0x8]
  %v3452 = vld [vmem:[#allocation2 + $0x21c] sm:$0xf]
  %v3453 = vld [vmem:[#allocation2 + $0x220] sm:$0xf]
  %v3454 = vld [vmem:[#allocation2 + $0x224] sm:$0xf]
  %v3455 = vld [vmem:[#allocation2 + $0x228] sm:$0xf]
  %v3456 = vld [vmem:[#allocation2 + $0x22c] sm:$0xf]
  %v3457 = vld [vmem:[#allocation2 + $0x230] sm:$0xf]
  %v3458 = vld [vmem:[#allocation2 + $0x234] sm:$0xf]
  %v3459 = vld [vmem:[#allocation2 + $0x238] sm:$0xf]
  %v3460 = vld [vmem:[#allocation2 + $0x23c] sm:$0xf]
  %v3461 = vld [vmem:[#allocation2 + $0x240] sm:$0xf]
  %v3462 = vld [vmem:[#allocation2 + $0x244] sm:$0xf]
  %v3463 = vld [vmem:[#allocation2 + $0x248] sm:$0xf]
  %v3477 = vrot.slane %v3451, 7
  %v3478 = vrot.slane %v3477, 4
  %v3479 = vrot.slane %v3452, 7
  %v3480 = vsel %vm2780, %v3478, %v3479
  %v3481 = vrot.slane %v3479, 4
  %v3482 = vrot.slane %v3453, 7
  %v3483 = vsel %vm2780, %v3481, %v3482
  %v3484 = vrot.slane %v3482, 4
  %v3485 = vrot.slane %v3454, 7
  %v3486 = vsel %vm2780, %v3484, %v3485
  %v3487 = vrot.slane %v3485, 4
  %v3488 = vrot.slane %v3455, 7
  %v3489 = vsel %vm2780, %v3487, %v3488
  %v3490 = vrot.slane %v3488, 4
  %v3491 = vrot.slane %v3456, 7
  %v3492 = vsel %vm2780, %v3490, %v3491
  %v3493 = vrot.slane %v3491, 4
  %v3494 = vrot.slane %v3457, 7
  %v3495 = vsel %vm2780, %v3493, %v3494
  %v3496 = vrot.slane %v3494, 4
  %v3497 = vrot.slane %v3458, 7
  %v3498 = vsel %vm2780, %v3496, %v3497
  %v3499 = vrot.slane %v3497, 4
  %v3500 = vrot.slane %v3459, 7
  %v3501 = vsel %vm2780, %v3499, %v3500
  %v3502 = vrot.slane %v3500, 4
  %v3503 = vrot.slane %v3460, 7
  %v3504 = vsel %vm2780, %v3502, %v3503
  %v3505 = vrot.slane %v3503, 4
  %v3506 = vrot.slane %v3461, 7
  %v3507 = vsel %vm2780, %v3505, %v3506
  %v3508 = vrot.slane %v3506, 4
  %v3509 = vrot.slane %v3462, 7
  %v3510 = vsel %vm2780, %v3508, %v3509
  %v3511 = vrot.slane %v3509, 4
  %v3512 = vrot.slane %v3463, 7
  %v3513 = vsel %vm2780, %v3511, %v3512
  %v3514 = vrot.slane %v3512, 4
  %3515 = vrot.lane.b32.xlu0 %v3480, 64
  %v3516 = vpop.permute.xlu0 %3515
  %3517 = vrot.lane.b32.xlu0 %v3483, 64
  %v3518 = vpop.permute.xlu0 %3517
  %3519 = vrot.lane.b32.xlu0 %v3486, 64
  %v3520 = vpop.permute.xlu0 %3519
  %3521 = vrot.lane.b32.xlu0 %v3489, 64
  %v3522 = vpop.permute.xlu0 %3521
  %3523 = vrot.lane.b32.xlu0 %v3492, 64
  %v3524 = vpop.permute.xlu0 %3523
  %3525 = vrot.lane.b32.xlu0 %v3495, 64
  %v3526 = vpop.permute.xlu0 %3525
  %3527 = vrot.lane.b32.xlu0 %v3498, 64
  %v3528 = vpop.permute.xlu0 %3527
  %3529 = vrot.lane.b32.xlu0 %v3501, 64
  %v3530 = vpop.permute.xlu0 %3529
  %3531 = vrot.lane.b32.xlu0 %v3504, 64
  %v3532 = vpop.permute.xlu0 %3531
  %3533 = vrot.lane.b32.xlu0 %v3507, 64
  %v3534 = vpop.permute.xlu0 %3533
  %3535 = vrot.lane.b32.xlu0 %v3510, 64
  %v3536 = vpop.permute.xlu0 %3535
  %3537 = vrot.lane.b32.xlu0 %v3513, 64
  %v3538 = vpop.permute.xlu0 %3537
  %3539 = vrot.lane.b32.xlu0 %v3514, 64
  %v3540 = vpop.permute.xlu0 %3539
  %3554 = vst.msk [vmem:[#allocation4 + $0x14] sm:$0xf] %vm2644, %v3516
  %3555 = vst.msk [vmem:[#allocation4 + $0x34] sm:$0xf] %vm2644, %v3518
  %3556 = vst.msk [vmem:[#allocation4 + $0x54] sm:$0xf] %vm2644, %v3520
  %3557 = vst.msk [vmem:[#allocation4 + $0x74] sm:$0xf] %vm2644, %v3522
  %3558 = vst.msk [vmem:[#allocation4 + $0x94] sm:$0xf] %vm2644, %v3524
  %3559 = vst.msk [vmem:[#allocation4 + $0xb4] sm:$0xf] %vm2644, %v3526
  %3560 = vst.msk [vmem:[#allocation4 + $0xd4] sm:$0xf] %vm2644, %v3528
  %3561 = vst.msk [vmem:[#allocation4 + $0xf4] sm:$0xf] %vm2644, %v3530
  %3562 = vst.msk [vmem:[#allocation4 + $0x114] sm:$0xf] %vm2644, %v3532
  %3563 = vst.msk [vmem:[#allocation4 + $0x134] sm:$0xf] %vm2644, %v3534
  %3564 = vst.msk [vmem:[#allocation4 + $0x154] sm:$0xf] %vm2644, %v3536
  %3565 = vst.msk [vmem:[#allocation4 + $0x174] sm:$0xf] %vm2644, %v3538
  %3566 = vst.msk [vmem:[#allocation4 + $0x194] sm:$0x1] %vm2657, %v3540
  %v3567 = vld [vmem:[#allocation2 + $0x24c] sm:$0xf]
  %v3568 = vld [vmem:[#allocation2 + $0x250] sm:$0xf]
  %v3569 = vld [vmem:[#allocation2 + $0x254] sm:$0xf]
  %v3570 = vld [vmem:[#allocation2 + $0x258] sm:$0xf]
  %v3571 = vld [vmem:[#allocation2 + $0x25c] sm:$0xf]
  %v3572 = vld [vmem:[#allocation2 + $0x260] sm:$0xf]
  %v3573 = vld [vmem:[#allocation2 + $0x264] sm:$0xf]
  %v3574 = vld [vmem:[#allocation2 + $0x268] sm:$0xf]
  %v3575 = vld [vmem:[#allocation2 + $0x26c] sm:$0xf]
  %v3576 = vld [vmem:[#allocation2 + $0x270] sm:$0xf]
  %v3577 = vld [vmem:[#allocation2 + $0x274] sm:$0xf]
  %v3578 = vld [vmem:[#allocation2 + $0x278] sm:$0xf]
  %v3579 = vld [vmem:[#allocation2 + $0x27c] sm:$0x1]
  %3580 = vst.msk [vmem:[#allocation4 + $0x18] sm:$0xf] %vm2314, %v3567
  %3581 = vst.msk [vmem:[#allocation4 + $0x38] sm:$0xf] %vm2314, %v3568
  %3582 = vst.msk [vmem:[#allocation4 + $0x58] sm:$0xf] %vm2314, %v3569
  %3583 = vst.msk [vmem:[#allocation4 + $0x78] sm:$0xf] %vm2314, %v3570
  %3584 = vst.msk [vmem:[#allocation4 + $0x98] sm:$0xf] %vm2314, %v3571
  %3585 = vst.msk [vmem:[#allocation4 + $0xb8] sm:$0xf] %vm2314, %v3572
  %3586 = vst.msk [vmem:[#allocation4 + $0xd8] sm:$0xf] %vm2314, %v3573
  %3587 = vst.msk [vmem:[#allocation4 + $0xf8] sm:$0xf] %vm2314, %v3574
  %3588 = vst.msk [vmem:[#allocation4 + $0x118] sm:$0xf] %vm2314, %v3575
  %3589 = vst.msk [vmem:[#allocation4 + $0x138] sm:$0xf] %vm2314, %v3576
  %3590 = vst.msk [vmem:[#allocation4 + $0x158] sm:$0xf] %vm2314, %v3577
  %3591 = vst.msk [vmem:[#allocation4 + $0x178] sm:$0xf] %vm2314, %v3578
  %3592 = vst.msk [vmem:[#allocation4 + $0x198] sm:$0x1] %vm2536, %v3579
  %v3593 = vld [vmem:[#allocation2 + $0x27c] sm:$0xe]
  %v3594 = vld [vmem:[#allocation2 + $0x280] sm:$0xf]
  %v3595 = vld [vmem:[#allocation2 + $0x284] sm:$0xf]
  %v3596 = vld [vmem:[#allocation2 + $0x288] sm:$0xf]
  %v3597 = vld [vmem:[#allocation2 + $0x28c] sm:$0xf]
  %v3598 = vld [vmem:[#allocation2 + $0x290] sm:$0xf]
  %v3599 = vld [vmem:[#allocation2 + $0x294] sm:$0xf]
  %v3600 = vld [vmem:[#allocation2 + $0x298] sm:$0xf]
  %v3601 = vld [vmem:[#allocation2 + $0x29c] sm:$0xf]
  %v3602 = vld [vmem:[#allocation2 + $0x2a0] sm:$0xf]
  %v3603 = vld [vmem:[#allocation2 + $0x2a4] sm:$0xf]
  %v3604 = vld [vmem:[#allocation2 + $0x2a8] sm:$0xf]
  %v3605 = vld [vmem:[#allocation2 + $0x2ac] sm:$0x3]
  %v3619 = vrot.slane %v3593, 5
  %v3620 = vrot.slane %v3619, 4
  %v3621 = vrot.slane %v3594, 5
  %v3622 = vsel %vm2566, %v3620, %v3621
  %v3623 = vrot.slane %v3621, 4
  %v3624 = vrot.slane %v3595, 5
  %v3625 = vsel %vm2566, %v3623, %v3624
  %v3626 = vrot.slane %v3624, 4
  %v3627 = vrot.slane %v3596, 5
  %v3628 = vsel %vm2566, %v3626, %v3627
  %v3629 = vrot.slane %v3627, 4
  %v3630 = vrot.slane %v3597, 5
  %v3631 = vsel %vm2566, %v3629, %v3630
  %v3632 = vrot.slane %v3630, 4
  %v3633 = vrot.slane %v3598, 5
  %v3634 = vsel %vm2566, %v3632, %v3633
  %v3635 = vrot.slane %v3633, 4
  %v3636 = vrot.slane %v3599, 5
  %v3637 = vsel %vm2566, %v3635, %v3636
  %v3638 = vrot.slane %v3636, 4
  %v3639 = vrot.slane %v3600, 5
  %v3640 = vsel %vm2566, %v3638, %v3639
  %v3641 = vrot.slane %v3639, 4
  %v3642 = vrot.slane %v3601, 5
  %v3643 = vsel %vm2566, %v3641, %v3642
  %v3644 = vrot.slane %v3642, 4
  %v3645 = vrot.slane %v3602, 5
  %v3646 = vsel %vm2566, %v3644, %v3645
  %v3647 = vrot.slane %v3645, 4
  %v3648 = vrot.slane %v3603, 5
  %v3649 = vsel %vm2566, %v3647, %v3648
  %v3650 = vrot.slane %v3648, 4
  %v3651 = vrot.slane %v3604, 5
  %v3652 = vsel %vm2566, %v3650, %v3651
  %v3653 = vrot.slane %v3651, 4
  %v3654 = vrot.slane %v3605, 5
  %v3655 = vsel %vm2566, %v3653, %v3654
  %v3656 = vrot.slane %v3654, 4
  %3657 = vrot.lane.b32.xlu0 %v3622, 64
  %v3658 = vpop.permute.xlu0 %3657
  %3659 = vrot.lane.b32.xlu0 %v3625, 64
  %v3660 = vpop.permute.xlu0 %3659
  %3661 = vrot.lane.b32.xlu0 %v3628, 64
  %v3662 = vpop.permute.xlu0 %3661
  %3663 = vrot.lane.b32.xlu0 %v3631, 64
  %v3664 = vpop.permute.xlu0 %3663
  %3665 = vrot.lane.b32.xlu0 %v3634, 64
  %v3666 = vpop.permute.xlu0 %3665
  %3667 = vrot.lane.b32.xlu0 %v3637, 64
  %v3668 = vpop.permute.xlu0 %3667
  %3669 = vrot.lane.b32.xlu0 %v3640, 64
  %v3670 = vpop.permute.xlu0 %3669
  %3671 = vrot.lane.b32.xlu0 %v3643, 64
  %v3672 = vpop.permute.xlu0 %3671
  %3673 = vrot.lane.b32.xlu0 %v3646, 64
  %v3674 = vpop.permute.xlu0 %3673
  %3675 = vrot.lane.b32.xlu0 %v3649, 64
  %v3676 = vpop.permute.xlu0 %3675
  %3677 = vrot.lane.b32.xlu0 %v3652, 64
  %v3678 = vpop.permute.xlu0 %3677
  %3679 = vrot.lane.b32.xlu0 %v3655, 64
  %v3680 = vpop.permute.xlu0 %3679
  %3681 = vrot.lane.b32.xlu0 %v3656, 64
  %v3682 = vpop.permute.xlu0 %3681
  %3696 = vst.msk [vmem:[#allocation4 + $0x18] sm:$0xf] %vm2644, %v3658
  %3697 = vst.msk [vmem:[#allocation4 + $0x38] sm:$0xf] %vm2644, %v3660
  %3698 = vst.msk [vmem:[#allocation4 + $0x58] sm:$0xf] %vm2644, %v3662
  %3699 = vst.msk [vmem:[#allocation4 + $0x78] sm:$0xf] %vm2644, %v3664
  %3700 = vst.msk [vmem:[#allocation4 + $0x98] sm:$0xf] %vm2644, %v3666
  %3701 = vst.msk [vmem:[#allocation4 + $0xb8] sm:$0xf] %vm2644, %v3668
  %3702 = vst.msk [vmem:[#allocation4 + $0xd8] sm:$0xf] %vm2644, %v3670
  %3703 = vst.msk [vmem:[#allocation4 + $0xf8] sm:$0xf] %vm2644, %v3672
  %3704 = vst.msk [vmem:[#allocation4 + $0x118] sm:$0xf] %vm2644, %v3674
  %3705 = vst.msk [vmem:[#allocation4 + $0x138] sm:$0xf] %vm2644, %v3676
  %3706 = vst.msk [vmem:[#allocation4 + $0x158] sm:$0xf] %vm2644, %v3678
  %3707 = vst.msk [vmem:[#allocation4 + $0x178] sm:$0xf] %vm2644, %v3680
  %3708 = vst.msk [vmem:[#allocation4 + $0x198] sm:$0x1] %vm2657, %v3682
  %v3709 = vld [vmem:[#allocation2 + $0x2ac] sm:$0xc]
  %v3710 = vld [vmem:[#allocation2 + $0x2b0] sm:$0xf]
  %v3711 = vld [vmem:[#allocation2 + $0x2b4] sm:$0xf]
  %v3712 = vld [vmem:[#allocation2 + $0x2b8] sm:$0xf]
  %v3713 = vld [vmem:[#allocation2 + $0x2bc] sm:$0xf]
  %v3714 = vld [vmem:[#allocation2 + $0x2c0] sm:$0xf]
  %v3715 = vld [vmem:[#allocation2 + $0x2c4] sm:$0xf]
  %v3716 = vld [vmem:[#allocation2 + $0x2c8] sm:$0xf]
  %v3717 = vld [vmem:[#allocation2 + $0x2cc] sm:$0xf]
  %v3718 = vld [vmem:[#allocation2 + $0x2d0] sm:$0xf]
  %v3719 = vld [vmem:[#allocation2 + $0x2d4] sm:$0xf]
  %v3720 = vld [vmem:[#allocation2 + $0x2d8] sm:$0xf]
  %v3721 = vld [vmem:[#allocation2 + $0x2dc] sm:$0x7]
  %v3735 = vrot.slane %v3709, 6
  %v3736 = vrot.slane %v3735, 4
  %v3737 = vrot.slane %v3710, 6
  %v3738 = vsel %vm2687, %v3736, %v3737
  %v3739 = vrot.slane %v3737, 4
  %v3740 = vrot.slane %v3711, 6
  %v3741 = vsel %vm2687, %v3739, %v3740
  %v3742 = vrot.slane %v3740, 4
  %v3743 = vrot.slane %v3712, 6
  %v3744 = vsel %vm2687, %v3742, %v3743
  %v3745 = vrot.slane %v3743, 4
  %v3746 = vrot.slane %v3713, 6
  %v3747 = vsel %vm2687, %v3745, %v3746
  %v3748 = vrot.slane %v3746, 4
  %v3749 = vrot.slane %v3714, 6
  %v3750 = vsel %vm2687, %v3748, %v3749
  %v3751 = vrot.slane %v3749, 4
  %v3752 = vrot.slane %v3715, 6
  %v3753 = vsel %vm2687, %v3751, %v3752
  %v3754 = vrot.slane %v3752, 4
  %v3755 = vrot.slane %v3716, 6
  %v3756 = vsel %vm2687, %v3754, %v3755
  %v3757 = vrot.slane %v3755, 4
  %v3758 = vrot.slane %v3717, 6
  %v3759 = vsel %vm2687, %v3757, %v3758
  %v3760 = vrot.slane %v3758, 4
  %v3761 = vrot.slane %v3718, 6
  %v3762 = vsel %vm2687, %v3760, %v3761
  %v3763 = vrot.slane %v3761, 4
  %v3764 = vrot.slane %v3719, 6
  %v3765 = vsel %vm2687, %v3763, %v3764
  %v3766 = vrot.slane %v3764, 4
  %v3767 = vrot.slane %v3720, 6
  %v3768 = vsel %vm2687, %v3766, %v3767
  %v3769 = vrot.slane %v3767, 4
  %v3770 = vrot.slane %v3721, 6
  %v3771 = vsel %vm2687, %v3769, %v3770
  %v3772 = vrot.slane %v3770, 4
  %3786 = vst.msk [vmem:[#allocation4 + $0x1c] sm:$0xf] %vm2314, %v3738
  %3787 = vst.msk [vmem:[#allocation4 + $0x3c] sm:$0xf] %vm2314, %v3741
  %3788 = vst.msk [vmem:[#allocation4 + $0x5c] sm:$0xf] %vm2314, %v3744
  %3789 = vst.msk [vmem:[#allocation4 + $0x7c] sm:$0xf] %vm2314, %v3747
  %3790 = vst.msk [vmem:[#allocation4 + $0x9c] sm:$0xf] %vm2314, %v3750
  %3791 = vst.msk [vmem:[#allocation4 + $0xbc] sm:$0xf] %vm2314, %v3753
  %3792 = vst.msk [vmem:[#allocation4 + $0xdc] sm:$0xf] %vm2314, %v3756
  %3793 = vst.msk [vmem:[#allocation4 + $0xfc] sm:$0xf] %vm2314, %v3759
  %3794 = vst.msk [vmem:[#allocation4 + $0x11c] sm:$0xf] %vm2314, %v3762
  %3795 = vst.msk [vmem:[#allocation4 + $0x13c] sm:$0xf] %vm2314, %v3765
  %3796 = vst.msk [vmem:[#allocation4 + $0x15c] sm:$0xf] %vm2314, %v3768
  %3797 = vst.msk [vmem:[#allocation4 + $0x17c] sm:$0xf] %vm2314, %v3771
  %3798 = vst.msk [vmem:[#allocation4 + $0x19c] sm:$0x1] %vm2536, %v3772
  %v3799 = vld [vmem:[#allocation2 + $0x2dc] sm:$0x8]
  %v3800 = vld [vmem:[#allocation2 + $0x2e0] sm:$0xf]
  %v3801 = vld [vmem:[#allocation2 + $0x2e4] sm:$0xf]
  %v3802 = vld [vmem:[#allocation2 + $0x2e8] sm:$0xf]
  %v3803 = vld [vmem:[#allocation2 + $0x2ec] sm:$0xf]
  %v3804 = vld [vmem:[#allocation2 + $0x2f0] sm:$0xf]
  %v3805 = vld [vmem:[#allocation2 + $0x2f4] sm:$0xf]
  %v3806 = vld [vmem:[#allocation2 + $0x2f8] sm:$0xf]
  %v3807 = vld [vmem:[#allocation2 + $0x2fc] sm:$0xf]
  %v3808 = vld [vmem:[#allocation2 + $0x300] sm:$0xf]
  %v3809 = vld [vmem:[#allocation2 + $0x304] sm:$0xf]
  %v3810 = vld [vmem:[#allocation2 + $0x308] sm:$0xf]
  %v3811 = vld [vmem:[#allocation2 + $0x30c] sm:$0xf]
  %v3825 = vrot.slane %v3799, 7
  %v3826 = vrot.slane %v3825, 4
  %v3827 = vrot.slane %v3800, 7
  %v3828 = vsel %vm2780, %v3826, %v3827
  %v3829 = vrot.slane %v3827, 4
  %v3830 = vrot.slane %v3801, 7
  %v3831 = vsel %vm2780, %v3829, %v3830
  %v3832 = vrot.slane %v3830, 4
  %v3833 = vrot.slane %v3802, 7
  %v3834 = vsel %vm2780, %v3832, %v3833
  %v3835 = vrot.slane %v3833, 4
  %v3836 = vrot.slane %v3803, 7
  %v3837 = vsel %vm2780, %v3835, %v3836
  %v3838 = vrot.slane %v3836, 4
  %v3839 = vrot.slane %v3804, 7
  %v3840 = vsel %vm2780, %v3838, %v3839
  %v3841 = vrot.slane %v3839, 4
  %v3842 = vrot.slane %v3805, 7
  %v3843 = vsel %vm2780, %v3841, %v3842
  %v3844 = vrot.slane %v3842, 4
  %v3845 = vrot.slane %v3806, 7
  %v3846 = vsel %vm2780, %v3844, %v3845
  %v3847 = vrot.slane %v3845, 4
  %v3848 = vrot.slane %v3807, 7
  %v3849 = vsel %vm2780, %v3847, %v3848
  %v3850 = vrot.slane %v3848, 4
  %v3851 = vrot.slane %v3808, 7
  %v3852 = vsel %vm2780, %v3850, %v3851
  %v3853 = vrot.slane %v3851, 4
  %v3854 = vrot.slane %v3809, 7
  %v3855 = vsel %vm2780, %v3853, %v3854
  %v3856 = vrot.slane %v3854, 4
  %v3857 = vrot.slane %v3810, 7
  %v3858 = vsel %vm2780, %v3856, %v3857
  %v3859 = vrot.slane %v3857, 4
  %v3860 = vrot.slane %v3811, 7
  %v3861 = vsel %vm2780, %v3859, %v3860
  %v3862 = vrot.slane %v3860, 4
  %3863 = vrot.lane.b32.xlu0 %v3828, 64
  %v3864 = vpop.permute.xlu0 %3863
  %3865 = vrot.lane.b32.xlu0 %v3831, 64
  %v3866 = vpop.permute.xlu0 %3865
  %3867 = vrot.lane.b32.xlu0 %v3834, 64
  %v3868 = vpop.permute.xlu0 %3867
  %3869 = vrot.lane.b32.xlu0 %v3837, 64
  %v3870 = vpop.permute.xlu0 %3869
  %3871 = vrot.lane.b32.xlu0 %v3840, 64
  %v3872 = vpop.permute.xlu0 %3871
  %3873 = vrot.lane.b32.xlu0 %v3843, 64
  %v3874 = vpop.permute.xlu0 %3873
  %3875 = vrot.lane.b32.xlu0 %v3846, 64
  %v3876 = vpop.permute.xlu0 %3875
  %3877 = vrot.lane.b32.xlu0 %v3849, 64
  %v3878 = vpop.permute.xlu0 %3877
  %3879 = vrot.lane.b32.xlu0 %v3852, 64
  %v3880 = vpop.permute.xlu0 %3879
  %3881 = vrot.lane.b32.xlu0 %v3855, 64
  %v3882 = vpop.permute.xlu0 %3881
  %3883 = vrot.lane.b32.xlu0 %v3858, 64
  %v3884 = vpop.permute.xlu0 %3883
  %3885 = vrot.lane.b32.xlu0 %v3861, 64
  %v3886 = vpop.permute.xlu0 %3885
  %3887 = vrot.lane.b32.xlu0 %v3862, 64
  %v3888 = vpop.permute.xlu0 %3887
  %3902 = vst.msk [vmem:[#allocation4 + $0x1c] sm:$0xf] %vm2644, %v3864
  %3903 = vst.msk [vmem:[#allocation4 + $0x3c] sm:$0xf] %vm2644, %v3866
  %3904 = vst.msk [vmem:[#allocation4 + $0x5c] sm:$0xf] %vm2644, %v3868
  %3905 = vst.msk [vmem:[#allocation4 + $0x7c] sm:$0xf] %vm2644, %v3870
  %3906 = vst.msk [vmem:[#allocation4 + $0x9c] sm:$0xf] %vm2644, %v3872
  %3907 = vst.msk [vmem:[#allocation4 + $0xbc] sm:$0xf] %vm2644, %v3874
  %3908 = vst.msk [vmem:[#allocation4 + $0xdc] sm:$0xf] %vm2644, %v3876
  %3909 = vst.msk [vmem:[#allocation4 + $0xfc] sm:$0xf] %vm2644, %v3878
  %3910 = vst.msk [vmem:[#allocation4 + $0x11c] sm:$0xf] %vm2644, %v3880
  %3911 = vst.msk [vmem:[#allocation4 + $0x13c] sm:$0xf] %vm2644, %v3882
  %3912 = vst.msk [vmem:[#allocation4 + $0x15c] sm:$0xf] %vm2644, %v3884
  %3913 = vst.msk [vmem:[#allocation4 + $0x17c] sm:$0xf] %vm2644, %v3886
  %3914 = vst.msk [vmem:[#allocation4 + $0x19c] sm:$0x1] %vm2657, %v3888
  %v3915 = vlaneseq
  %v3916 = vshrl.u32 %v3915, 7
  %v3917 = vadd.s32 %v3916, 8
  %v3918 = vadd.s32 %v3916, 16
  %v3919 = vadd.s32 %v3916, 24
  %v3920 = vadd.s32 %v3916, 32
  %v3921 = vadd.s32 %v3916, 40
  %v3922 = vadd.s32 %v3916, 48
  %v3923 = vadd.s32 %v3916, 56
  %v3924 = vadd.s32 %v3916, 64
  %v3925 = vadd.s32 %v3916, 72
  %v3926 = vadd.s32 %v3916, 80
  %v3927 = vadd.s32 %v3916, 88
  %v3928 = vadd.s32 %v3916, 96
  %v3929 = vcvt.s32.f32 %v3916
  %v3930 = vcvt.s32.f32 %v3917
  %v3931 = vcvt.s32.f32 %v3918
  %v3932 = vcvt.s32.f32 %v3919
  %v3933 = vcvt.s32.f32 %v3920
  %v3934 = vcvt.s32.f32 %v3921
  %v3935 = vcvt.s32.f32 %v3922
  %v3936 = vcvt.s32.f32 %v3923
  %v3937 = vcvt.s32.f32 %v3924
  %v3938 = vcvt.s32.f32 %v3925
  %v3939 = vcvt.s32.f32 %v3926
  %v3940 = vcvt.s32.f32 %v3927
  %v3941 = vcvt.s32.f32 %v3928
  %v3942 = vlaneseq
  %v3943 = vand.u32 %v3942, 127
  %v3944 = vadd.s32 %v3943, 128
  %v3945 = vadd.s32 %v3943, 256
  %v3946 = vadd.s32 %v3943, 384
  %v3947 = vadd.s32 %v3943, 512
  %v3948 = vadd.s32 %v3943, 640
  %v3949 = vadd.s32 %v3943, 768
  %v3950 = vadd.s32 %v3943, 896
  %v3951 = vcvt.s32.f32 %v3943
  %v3952 = vcvt.s32.f32 %v3944
  %v3953 = vcvt.s32.f32 %v3945
  %v3954 = vcvt.s32.f32 %v3946
  %v3955 = vcvt.s32.f32 %v3947
  %v3956 = vcvt.s32.f32 %v3948
  %v3957 = vcvt.s32.f32 %v3949
  %v3958 = vcvt.s32.f32 %v3950
  %v3959 = vmul.f32 %v3951, 0.00390625
  %v3960 = vmul.f32 %v3952, 0.00390625
  %v3961 = vmul.f32 %v3953, 0.00390625
  %v3962 = vmul.f32 %v3954, 0.00390625
  %v3963 = vmul.f32 %v3955, 0.00390625
  %v3964 = vmul.f32 %v3956, 0.00390625
  %v3965 = vmul.f32 %v3957, 0.00390625
  %v3966 = vmul.f32 %v3958, 0.00390625
  %v3967 = vfloor.f32 %v3959
  %v3968 = vfloor.f32 %v3960
  %v3969 = vfloor.f32 %v3961
  %v3970 = vfloor.f32 %v3962
  %v3971 = vfloor.f32 %v3963
  %v3972 = vfloor.f32 %v3964
  %v3973 = vfloor.f32 %v3965
  %v3974 = vfloor.f32 %v3966
  %v3975 = vmul.f32 %v3951, 0.015625
  %v3976 = vmul.f32 %v3952, 0.015625
  %v3977 = vmul.f32 %v3953, 0.015625
  %v3978 = vmul.f32 %v3954, 0.015625
  %v3979 = vmul.f32 %v3955, 0.015625
  %v3980 = vmul.f32 %v3956, 0.015625
  %v3981 = vmul.f32 %v3957, 0.015625
  %v3982 = vmul.f32 %v3958, 0.015625
  %v3983 = vfloor.f32 %v3975
  %v3984 = vfloor.f32 %v3976
  %v3985 = vfloor.f32 %v3977
  %v3986 = vfloor.f32 %v3978
  %v3987 = vfloor.f32 %v3979
  %v3988 = vfloor.f32 %v3980
  %v3989 = vfloor.f32 %v3981
  %v3990 = vfloor.f32 %v3982
  %v3991 = vmul.f32 %v3967, 4.0
  %v3992 = vmul.f32 %v3968, 4.0
  %v3993 = vmul.f32 %v3969, 4.0
  %v3994 = vmul.f32 %v3970, 4.0
  %v3995 = vmul.f32 %v3971, 4.0
  %v3996 = vmul.f32 %v3972, 4.0
  %v3997 = vmul.f32 %v3973, 4.0
  %v3998 = vmul.f32 %v3974, 4.0
  %v3999 = vsub.f32 %v3983, %v3991
  %v4000 = vsub.f32 %v3984, %v3992
  %v4001 = vsub.f32 %v3985, %v3993
  %v4002 = vsub.f32 %v3986, %v3994
  %v4003 = vsub.f32 %v3987, %v3995
  %v4004 = vsub.f32 %v3988, %v3996
  %v4005 = vsub.f32 %v3989, %v3997
  %v4006 = vsub.f32 %v3990, %v3998
  %v4007 = vmul.f32 %v3929, 0.020408163
  %v4008 = vmul.f32 %v3930, 0.020408163
  %v4009 = vmul.f32 %v3931, 0.020408163
  %v4010 = vmul.f32 %v3932, 0.020408163
  %v4011 = vmul.f32 %v3933, 0.020408163
  %v4012 = vmul.f32 %v3934, 0.020408163
  %v4013 = vmul.f32 %v3935, 0.020408163
  %v4014 = vmul.f32 %v3936, 0.020408163
  %v4015 = vmul.f32 %v3937, 0.020408163
  %v4016 = vmul.f32 %v3938, 0.020408163
  %v4017 = vmul.f32 %v3939, 0.020408163
  %v4018 = vmul.f32 %v3940, 0.020408163
  %v4019 = vmul.f32 %v3941, 0.020408163
  %v4020 = vfloor.f32 %v4007
  %v4021 = vfloor.f32 %v4008
  %v4022 = vfloor.f32 %v4009
  %v4023 = vfloor.f32 %v4010
  %v4024 = vfloor.f32 %v4011
  %v4025 = vfloor.f32 %v4012
  %v4026 = vfloor.f32 %v4013
  %v4027 = vfloor.f32 %v4014
  %v4028 = vfloor.f32 %v4015
  %v4029 = vfloor.f32 %v4016
  %v4030 = vfloor.f32 %v4017
  %v4031 = vfloor.f32 %v4018
  %v4032 = vfloor.f32 %v4019
  %v4033 = vmul.f32 %v4020, 49.0
  %v4034 = vmul.f32 %v4021, 49.0
  %v4035 = vmul.f32 %v4022, 49.0
  %v4036 = vmul.f32 %v4023, 49.0
  %v4037 = vmul.f32 %v4024, 49.0
  %v4038 = vmul.f32 %v4025, 49.0
  %v4039 = vmul.f32 %v4026, 49.0
  %v4040 = vmul.f32 %v4027, 49.0
  %v4041 = vmul.f32 %v4028, 49.0
  %v4042 = vmul.f32 %v4029, 49.0
  %v4043 = vmul.f32 %v4030, 49.0
  %v4044 = vmul.f32 %v4031, 49.0
  %v4045 = vmul.f32 %v4032, 49.0
  %v4046 = vsub.f32 %v3929, %v4033
  %v4047 = vsub.f32 %v3930, %v4034
  %v4048 = vsub.f32 %v3931, %v4035
  %v4049 = vsub.f32 %v3932, %v4036
  %v4050 = vsub.f32 %v3933, %v4037
  %v4051 = vsub.f32 %v3934, %v4038
  %v4052 = vsub.f32 %v3935, %v4039
  %v4053 = vsub.f32 %v3936, %v4040
  %v4054 = vsub.f32 %v3937, %v4041
  %v4055 = vsub.f32 %v3938, %v4042
  %v4056 = vsub.f32 %v3939, %v4043
  %v4057 = vsub.f32 %v3940, %v4044
  %v4058 = vsub.f32 %v3941, %v4045
  %v4059 = vmul.f32 %v4046, 0.14285715
  %v4060 = vmul.f32 %v4047, 0.14285715
  %v4061 = vmul.f32 %v4048, 0.14285715
  %v4062 = vmul.f32 %v4049, 0.14285715
  %v4063 = vmul.f32 %v4050, 0.14285715
  %v4064 = vmul.f32 %v4051, 0.14285715
  %v4065 = vmul.f32 %v4052, 0.14285715
  %v4066 = vmul.f32 %v4053, 0.14285715
  %v4067 = vmul.f32 %v4054, 0.14285715
  %v4068 = vmul.f32 %v4055, 0.14285715
  %v4069 = vmul.f32 %v4056, 0.14285715
  %v4070 = vmul.f32 %v4057, 0.14285715
  %v4071 = vmul.f32 %v4058, 0.14285715
  %v4072 = vfloor.f32 %v4059
  %v4073 = vfloor.f32 %v4060
  %v4074 = vfloor.f32 %v4061
  %v4075 = vfloor.f32 %v4062
  %v4076 = vfloor.f32 %v4063
  %v4077 = vfloor.f32 %v4064
  %v4078 = vfloor.f32 %v4065
  %v4079 = vfloor.f32 %v4066
  %v4080 = vfloor.f32 %v4067
  %v4081 = vfloor.f32 %v4068
  %v4082 = vfloor.f32 %v4069
  %v4083 = vfloor.f32 %v4070
  %v4084 = vfloor.f32 %v4071
  %v4085 = vmul.f32 %v4072, 7.0
  %v4086 = vmul.f32 %v4073, 7.0
  %v4087 = vmul.f32 %v4074, 7.0
  %v4088 = vmul.f32 %v4075, 7.0
  %v4089 = vmul.f32 %v4076, 7.0
  %v4090 = vmul.f32 %v4077, 7.0
  %v4091 = vmul.f32 %v4078, 7.0
  %v4092 = vmul.f32 %v4079, 7.0
  %v4093 = vmul.f32 %v4080, 7.0
  %v4094 = vmul.f32 %v4081, 7.0
  %v4095 = vmul.f32 %v4082, 7.0
  %v4096 = vmul.f32 %v4083, 7.0
  %v4097 = vmul.f32 %v4084, 7.0
  %v4098 = vsub.f32 %v4046, %v4085
  %v4099 = vsub.f32 %v4047, %v4086
  %v4100 = vsub.f32 %v4048, %v4087
  %v4101 = vsub.f32 %v4049, %v4088
  %v4102 = vsub.f32 %v4050, %v4089
  %v4103 = vsub.f32 %v4051, %v4090
  %v4104 = vsub.f32 %v4052, %v4091
  %v4105 = vsub.f32 %v4053, %v4092
  %v4106 = vsub.f32 %v4054, %v4093
  %v4107 = vsub.f32 %v4055, %v4094
  %v4108 = vsub.f32 %v4056, %v4095
  %v4109 = vsub.f32 %v4057, %v4096
  %v4110 = vsub.f32 %v4058, %v4097
  %v4111 = vmul.f32 %v4072, 2.0
  %v4112 = vmul.f32 %v4073, 2.0
  %v4113 = vmul.f32 %v4074, 2.0
  %v4114 = vmul.f32 %v4075, 2.0
  %v4115 = vmul.f32 %v4076, 2.0
  %v4116 = vmul.f32 %v4077, 2.0
  %v4117 = vmul.f32 %v4078, 2.0
  %v4118 = vmul.f32 %v4079, 2.0
  %v4119 = vmul.f32 %v4080, 2.0
  %v4120 = vmul.f32 %v4081, 2.0
  %v4121 = vmul.f32 %v4082, 2.0
  %v4122 = vmul.f32 %v4083, 2.0
  %v4123 = vmul.f32 %v4084, 2.0
  %v4124 = vadd.f32 %v4111, %v3967
  %v4125 = vadd.f32 %v4111, %v3968
  %v4126 = vadd.f32 %v4111, %v3969
  %v4127 = vadd.f32 %v4111, %v3970
  %v4128 = vadd.f32 %v4111, %v3971
  %v4129 = vadd.f32 %v4111, %v3972
  %v4130 = vadd.f32 %v4111, %v3973
  %v4131 = vadd.f32 %v4111, %v3974
  %v4132 = vadd.f32 %v4112, %v3967
  %v4133 = vadd.f32 %v4112, %v3968
  %v4134 = vadd.f32 %v4112, %v3969
  %v4135 = vadd.f32 %v4112, %v3970
  %v4136 = vadd.f32 %v4112, %v3971
  %v4137 = vadd.f32 %v4112, %v3972
  %v4138 = vadd.f32 %v4112, %v3973
  %v4139 = vadd.f32 %v4112, %v3974
  %v4140 = vadd.f32 %v4113, %v3967
  %v4141 = vadd.f32 %v4113, %v3968
  %v4142 = vadd.f32 %v4113, %v3969
  %v4143 = vadd.f32 %v4113, %v3970
  %v4144 = vadd.f32 %v4113, %v3971
  %v4145 = vadd.f32 %v4113, %v3972
  %v4146 = vadd.f32 %v4113, %v3973
  %v4147 = vadd.f32 %v4113, %v3974
  %v4148 = vadd.f32 %v4114, %v3967
  %v4149 = vadd.f32 %v4114, %v3968
  %v4150 = vadd.f32 %v4114, %v3969
  %v4151 = vadd.f32 %v4114, %v3970
  %v4152 = vadd.f32 %v4114, %v3971
  %v4153 = vadd.f32 %v4114, %v3972
  %v4154 = vadd.f32 %v4114, %v3973
  %v4155 = vadd.f32 %v4114, %v3974
  %v4156 = vadd.f32 %v4115, %v3967
  %v4157 = vadd.f32 %v4115, %v3968
  %v4158 = vadd.f32 %v4115, %v3969
  %v4159 = vadd.f32 %v4115, %v3970
  %v4160 = vadd.f32 %v4115, %v3971
  %v4161 = vadd.f32 %v4115, %v3972
  %v4162 = vadd.f32 %v4115, %v3973
  %v4163 = vadd.f32 %v4115, %v3974
  %v4164 = vadd.f32 %v4116, %v3967
  %v4165 = vadd.f32 %v4116, %v3968
  %v4166 = vadd.f32 %v4116, %v3969
  %v4167 = vadd.f32 %v4116, %v3970
  %v4168 = vadd.f32 %v4116, %v3971
  %v4169 = vadd.f32 %v4116, %v3972
  %v4170 = vadd.f32 %v4116, %v3973
  %v4171 = vadd.f32 %v4116, %v3974
  %v4172 = vadd.f32 %v4117, %v3967
  %v4173 = vadd.f32 %v4117, %v3968
  %v4174 = vadd.f32 %v4117, %v3969
  %v4175 = vadd.f32 %v4117, %v3970
  %v4176 = vadd.f32 %v4117, %v3971
  %v4177 = vadd.f32 %v4117, %v3972
  %v4178 = vadd.f32 %v4117, %v3973
  %v4179 = vadd.f32 %v4117, %v3974
  %v4180 = vadd.f32 %v4118, %v3967
  %v4181 = vadd.f32 %v4118, %v3968
  %v4182 = vadd.f32 %v4118, %v3969
  %v4183 = vadd.f32 %v4118, %v3970
  %v4184 = vadd.f32 %v4118, %v3971
  %v4185 = vadd.f32 %v4118, %v3972
  %v4186 = vadd.f32 %v4118, %v3973
  %v4187 = vadd.f32 %v4118, %v3974
  %v4188 = vadd.f32 %v4119, %v3967
  %v4189 = vadd.f32 %v4119, %v3968
  %v4190 = vadd.f32 %v4119, %v3969
  %v4191 = vadd.f32 %v4119, %v3970
  %v4192 = vadd.f32 %v4119, %v3971
  %v4193 = vadd.f32 %v4119, %v3972
  %v4194 = vadd.f32 %v4119, %v3973
  %v4195 = vadd.f32 %v4119, %v3974
  %v4196 = vadd.f32 %v4120, %v3967
  %v4197 = vadd.f32 %v4120, %v3968
  %v4198 = vadd.f32 %v4120, %v3969
  %v4199 = vadd.f32 %v4120, %v3970
  %v4200 = vadd.f32 %v4120, %v3971
  %v4201 = vadd.f32 %v4120, %v3972
  %v4202 = vadd.f32 %v4120, %v3973
  %v4203 = vadd.f32 %v4120, %v3974
  %v4204 = vadd.f32 %v4121, %v3967
  %v4205 = vadd.f32 %v4121, %v3968
  %v4206 = vadd.f32 %v4121, %v3969
  %v4207 = vadd.f32 %v4121, %v3970
  %v4208 = vadd.f32 %v4121, %v3971
  %v4209 = vadd.f32 %v4121, %v3972
  %v4210 = vadd.f32 %v4121, %v3973
  %v4211 = vadd.f32 %v4121, %v3974
  %v4212 = vadd.f32 %v4122, %v3967
  %v4213 = vadd.f32 %v4122, %v3968
  %v4214 = vadd.f32 %v4122, %v3969
  %v4215 = vadd.f32 %v4122, %v3970
  %v4216 = vadd.f32 %v4122, %v3971
  %v4217 = vadd.f32 %v4122, %v3972
  %v4218 = vadd.f32 %v4122, %v3973
  %v4219 = vadd.f32 %v4122, %v3974
  %v4220 = vadd.f32 %v4123, %v3967
  %v4221 = vadd.f32 %v4123, %v3968
  %v4222 = vadd.f32 %v4123, %v3969
  %v4223 = vadd.f32 %v4123, %v3970
  %v4224 = vadd.f32 %v4123, %v3971
  %v4225 = vadd.f32 %v4123, %v3972
  %v4226 = vadd.f32 %v4123, %v3973
  %v4227 = vadd.f32 %v4123, %v3974
  %v4228 = vsub.f32 %v4124, 1.0
  %v4229 = vsub.f32 %v4125, 1.0
  %v4230 = vsub.f32 %v4126, 1.0
  %v4231 = vsub.f32 %v4127, 1.0
  %v4232 = vsub.f32 %v4128, 1.0
  %v4233 = vsub.f32 %v4129, 1.0
  %v4234 = vsub.f32 %v4130, 1.0
  %v4235 = vsub.f32 %v4131, 1.0
  %v4236 = vsub.f32 %v4132, 1.0
  %v4237 = vsub.f32 %v4133, 1.0
  %v4238 = vsub.f32 %v4134, 1.0
  %v4239 = vsub.f32 %v4135, 1.0
  %v4240 = vsub.f32 %v4136, 1.0
  %v4241 = vsub.f32 %v4137, 1.0
  %v4242 = vsub.f32 %v4138, 1.0
  %v4243 = vsub.f32 %v4139, 1.0
  %v4244 = vsub.f32 %v4140, 1.0
  %v4245 = vsub.f32 %v4141, 1.0
  %v4246 = vsub.f32 %v4142, 1.0
  %v4247 = vsub.f32 %v4143, 1.0
  %v4248 = vsub.f32 %v4144, 1.0
  %v4249 = vsub.f32 %v4145, 1.0
  %v4250 = vsub.f32 %v4146, 1.0
  %v4251 = vsub.f32 %v4147, 1.0
  %v4252 = vsub.f32 %v4148, 1.0
  %v4253 = vsub.f32 %v4149, 1.0
  %v4254 = vsub.f32 %v4150, 1.0
  %v4255 = vsub.f32 %v4151, 1.0
  %v4256 = vsub.f32 %v4152, 1.0
  %v4257 = vsub.f32 %v4153, 1.0
  %v4258 = vsub.f32 %v4154, 1.0
  %v4259 = vsub.f32 %v4155, 1.0
  %v4260 = vsub.f32 %v4156, 1.0
  %v4261 = vsub.f32 %v4157, 1.0
  %v4262 = vsub.f32 %v4158, 1.0
  %v4263 = vsub.f32 %v4159, 1.0
  %v4264 = vsub.f32 %v4160, 1.0
  %v4265 = vsub.f32 %v4161, 1.0
  %v4266 = vsub.f32 %v4162, 1.0
  %v4267 = vsub.f32 %v4163, 1.0
  %v4268 = vsub.f32 %v4164, 1.0
  %v4269 = vsub.f32 %v4165, 1.0
  %v4270 = vsub.f32 %v4166, 1.0
  %v4271 = vsub.f32 %v4167, 1.0
  %v4272 = vsub.f32 %v4168, 1.0
  %v4273 = vsub.f32 %v4169, 1.0
  %v4274 = vsub.f32 %v4170, 1.0
  %v4275 = vsub.f32 %v4171, 1.0
  %v4276 = vsub.f32 %v4172, 1.0
  %v4277 = vsub.f32 %v4173, 1.0
  %v4278 = vsub.f32 %v4174, 1.0
  %v4279 = vsub.f32 %v4175, 1.0
  %v4280 = vsub.f32 %v4176, 1.0
  %v4281 = vsub.f32 %v4177, 1.0
  %v4282 = vsub.f32 %v4178, 1.0
  %v4283 = vsub.f32 %v4179, 1.0
  %v4284 = vsub.f32 %v4180, 1.0
  %v4285 = vsub.f32 %v4181, 1.0
  %v4286 = vsub.f32 %v4182, 1.0
  %v4287 = vsub.f32 %v4183, 1.0
  %v4288 = vsub.f32 %v4184, 1.0
  %v4289 = vsub.f32 %v4185, 1.0
  %v4290 = vsub.f32 %v4186, 1.0
  %v4291 = vsub.f32 %v4187, 1.0
  %v4292 = vsub.f32 %v4188, 1.0
  %v4293 = vsub.f32 %v4189, 1.0
  %v4294 = vsub.f32 %v4190, 1.0
  %v4295 = vsub.f32 %v4191, 1.0
  %v4296 = vsub.f32 %v4192, 1.0
  %v4297 = vsub.f32 %v4193, 1.0
  %v4298 = vsub.f32 %v4194, 1.0
  %v4299 = vsub.f32 %v4195, 1.0
  %v4300 = vsub.f32 %v4196, 1.0
  %v4301 = vsub.f32 %v4197, 1.0
  %v4302 = vsub.f32 %v4198, 1.0
  %v4303 = vsub.f32 %v4199, 1.0
  %v4304 = vsub.f32 %v4200, 1.0
  %v4305 = vsub.f32 %v4201, 1.0
  %v4306 = vsub.f32 %v4202, 1.0
  %v4307 = vsub.f32 %v4203, 1.0
  %v4308 = vsub.f32 %v4204, 1.0
  %v4309 = vsub.f32 %v4205, 1.0
  %v4310 = vsub.f32 %v4206, 1.0
  %v4311 = vsub.f32 %v4207, 1.0
  %v4312 = vsub.f32 %v4208, 1.0
  %v4313 = vsub.f32 %v4209, 1.0
  %v4314 = vsub.f32 %v4210, 1.0
  %v4315 = vsub.f32 %v4211, 1.0
  %v4316 = vsub.f32 %v4212, 1.0
  %v4317 = vsub.f32 %v4213, 1.0
  %v4318 = vsub.f32 %v4214, 1.0
  %v4319 = vsub.f32 %v4215, 1.0
  %v4320 = vsub.f32 %v4216, 1.0
  %v4321 = vsub.f32 %v4217, 1.0
  %v4322 = vsub.f32 %v4218, 1.0
  %v4323 = vsub.f32 %v4219, 1.0
  %v4324 = vsub.f32 %v4220, 1.0
  %v4325 = vsub.f32 %v4221, 1.0
  %v4326 = vsub.f32 %v4222, 1.0
  %v4327 = vsub.f32 %v4223, 1.0
  %v4328 = vsub.f32 %v4224, 1.0
  %v4329 = vsub.f32 %v4225, 1.0
  %v4330 = vsub.f32 %v4226, 1.0
  %v4331 = vsub.f32 %v4227, 1.0
  %v4332 = vmul.f32 %v4098, 2.0
  %v4333 = vmul.f32 %v4099, 2.0
  %v4334 = vmul.f32 %v4100, 2.0
  %v4335 = vmul.f32 %v4101, 2.0
  %v4336 = vmul.f32 %v4102, 2.0
  %v4337 = vmul.f32 %v4103, 2.0
  %v4338 = vmul.f32 %v4104, 2.0
  %v4339 = vmul.f32 %v4105, 2.0
  %v4340 = vmul.f32 %v4106, 2.0
  %v4341 = vmul.f32 %v4107, 2.0
  %v4342 = vmul.f32 %v4108, 2.0
  %v4343 = vmul.f32 %v4109, 2.0
  %v4344 = vmul.f32 %v4110, 2.0
  %v4345 = vadd.f32 %v4332, %v3999
  %v4346 = vadd.f32 %v4332, %v4000
  %v4347 = vadd.f32 %v4332, %v4001
  %v4348 = vadd.f32 %v4332, %v4002
  %v4349 = vadd.f32 %v4332, %v4003
  %v4350 = vadd.f32 %v4332, %v4004
  %v4351 = vadd.f32 %v4332, %v4005
  %v4352 = vadd.f32 %v4332, %v4006
  %v4353 = vadd.f32 %v4333, %v3999
  %v4354 = vadd.f32 %v4333, %v4000
  %v4355 = vadd.f32 %v4333, %v4001
  %v4356 = vadd.f32 %v4333, %v4002
  %v4357 = vadd.f32 %v4333, %v4003
  %v4358 = vadd.f32 %v4333, %v4004
  %v4359 = vadd.f32 %v4333, %v4005
  %v4360 = vadd.f32 %v4333, %v4006
  %v4361 = vadd.f32 %v4334, %v3999
  %v4362 = vadd.f32 %v4334, %v4000
  %v4363 = vadd.f32 %v4334, %v4001
  %v4364 = vadd.f32 %v4334, %v4002
  %v4365 = vadd.f32 %v4334, %v4003
  %v4366 = vadd.f32 %v4334, %v4004
  %v4367 = vadd.f32 %v4334, %v4005
  %v4368 = vadd.f32 %v4334, %v4006
  %v4369 = vadd.f32 %v4335, %v3999
  %v4370 = vadd.f32 %v4335, %v4000
  %v4371 = vadd.f32 %v4335, %v4001
  %v4372 = vadd.f32 %v4335, %v4002
  %v4373 = vadd.f32 %v4335, %v4003
  %v4374 = vadd.f32 %v4335, %v4004
  %v4375 = vadd.f32 %v4335, %v4005
  %v4376 = vadd.f32 %v4335, %v4006
  %v4377 = vadd.f32 %v4336, %v3999
  %v4378 = vadd.f32 %v4336, %v4000
  %v4379 = vadd.f32 %v4336, %v4001
  %v4380 = vadd.f32 %v4336, %v4002
  %v4381 = vadd.f32 %v4336, %v4003
  %v4382 = vadd.f32 %v4336, %v4004
  %v4383 = vadd.f32 %v4336, %v4005
  %v4384 = vadd.f32 %v4336, %v4006
  %v4385 = vadd.f32 %v4337, %v3999
  %v4386 = vadd.f32 %v4337, %v4000
  %v4387 = vadd.f32 %v4337, %v4001
  %v4388 = vadd.f32 %v4337, %v4002
  %v4389 = vadd.f32 %v4337, %v4003
  %v4390 = vadd.f32 %v4337, %v4004
  %v4391 = vadd.f32 %v4337, %v4005
  %v4392 = vadd.f32 %v4337, %v4006
  %v4393 = vadd.f32 %v4338, %v3999
  %v4394 = vadd.f32 %v4338, %v4000
  %v4395 = vadd.f32 %v4338, %v4001
  %v4396 = vadd.f32 %v4338, %v4002
  %v4397 = vadd.f32 %v4338, %v4003
  %v4398 = vadd.f32 %v4338, %v4004
  %v4399 = vadd.f32 %v4338, %v4005
  %v4400 = vadd.f32 %v4338, %v4006
  %v4401 = vadd.f32 %v4339, %v3999
  %v4402 = vadd.f32 %v4339, %v4000
  %v4403 = vadd.f32 %v4339, %v4001
  %v4404 = vadd.f32 %v4339, %v4002
  %v4405 = vadd.f32 %v4339, %v4003
  %v4406 = vadd.f32 %v4339, %v4004
  %v4407 = vadd.f32 %v4339, %v4005
  %v4408 = vadd.f32 %v4339, %v4006
  %v4409 = vadd.f32 %v4340, %v3999
  %v4410 = vadd.f32 %v4340, %v4000
  %v4411 = vadd.f32 %v4340, %v4001
  %v4412 = vadd.f32 %v4340, %v4002
  %v4413 = vadd.f32 %v4340, %v4003
  %v4414 = vadd.f32 %v4340, %v4004
  %v4415 = vadd.f32 %v4340, %v4005
  %v4416 = vadd.f32 %v4340, %v4006
  %v4417 = vadd.f32 %v4341, %v3999
  %v4418 = vadd.f32 %v4341, %v4000
  %v4419 = vadd.f32 %v4341, %v4001
  %v4420 = vadd.f32 %v4341, %v4002
  %v4421 = vadd.f32 %v4341, %v4003
  %v4422 = vadd.f32 %v4341, %v4004
  %v4423 = vadd.f32 %v4341, %v4005
  %v4424 = vadd.f32 %v4341, %v4006
  %v4425 = vadd.f32 %v4342, %v3999
  %v4426 = vadd.f32 %v4342, %v4000
  %v4427 = vadd.f32 %v4342, %v4001
  %v4428 = vadd.f32 %v4342, %v4002
  %v4429 = vadd.f32 %v4342, %v4003
  %v4430 = vadd.f32 %v4342, %v4004
  %v4431 = vadd.f32 %v4342, %v4005
  %v4432 = vadd.f32 %v4342, %v4006
  %v4433 = vadd.f32 %v4343, %v3999
  %v4434 = vadd.f32 %v4343, %v4000
  %v4435 = vadd.f32 %v4343, %v4001
  %v4436 = vadd.f32 %v4343, %v4002
  %v4437 = vadd.f32 %v4343, %v4003
  %v4438 = vadd.f32 %v4343, %v4004
  %v4439 = vadd.f32 %v4343, %v4005
  %v4440 = vadd.f32 %v4343, %v4006
  %v4441 = vadd.f32 %v4344, %v3999
  %v4442 = vadd.f32 %v4344, %v4000
  %v4443 = vadd.f32 %v4344, %v4001
  %v4444 = vadd.f32 %v4344, %v4002
  %v4445 = vadd.f32 %v4344, %v4003
  %v4446 = vadd.f32 %v4344, %v4004
  %v4447 = vadd.f32 %v4344, %v4005
  %v4448 = vadd.f32 %v4344, %v4006
  %v4449 = vsub.f32 %v4345, 1.0
  %v4450 = vsub.f32 %v4346, 1.0
  %v4451 = vsub.f32 %v4347, 1.0
  %v4452 = vsub.f32 %v4348, 1.0
  %v4453 = vsub.f32 %v4349, 1.0
  %v4454 = vsub.f32 %v4350, 1.0
  %v4455 = vsub.f32 %v4351, 1.0
  %v4456 = vsub.f32 %v4352, 1.0
  %v4457 = vsub.f32 %v4353, 1.0
  %v4458 = vsub.f32 %v4354, 1.0
  %v4459 = vsub.f32 %v4355, 1.0
  %v4460 = vsub.f32 %v4356, 1.0
  %v4461 = vsub.f32 %v4357, 1.0
  %v4462 = vsub.f32 %v4358, 1.0
  %v4463 = vsub.f32 %v4359, 1.0
  %v4464 = vsub.f32 %v4360, 1.0
  %v4465 = vsub.f32 %v4361, 1.0
  %v4466 = vsub.f32 %v4362, 1.0
  %v4467 = vsub.f32 %v4363, 1.0
  %v4468 = vsub.f32 %v4364, 1.0
  %v4469 = vsub.f32 %v4365, 1.0
  %v4470 = vsub.f32 %v4366, 1.0
  %v4471 = vsub.f32 %v4367, 1.0
  %v4472 = vsub.f32 %v4368, 1.0
  %v4473 = vsub.f32 %v4369, 1.0
  %v4474 = vsub.f32 %v4370, 1.0
  %v4475 = vsub.f32 %v4371, 1.0
  %v4476 = vsub.f32 %v4372, 1.0
  %v4477 = vsub.f32 %v4373, 1.0
  %v4478 = vsub.f32 %v4374, 1.0
  %v4479 = vsub.f32 %v4375, 1.0
  %v4480 = vsub.f32 %v4376, 1.0
  %v4481 = vsub.f32 %v4377, 1.0
  %v4482 = vsub.f32 %v4378, 1.0
  %v4483 = vsub.f32 %v4379, 1.0
  %v4484 = vsub.f32 %v4380, 1.0
  %v4485 = vsub.f32 %v4381, 1.0
  %v4486 = vsub.f32 %v4382, 1.0
  %v4487 = vsub.f32 %v4383, 1.0
  %v4488 = vsub.f32 %v4384, 1.0
  %v4489 = vsub.f32 %v4385, 1.0
  %v4490 = vsub.f32 %v4386, 1.0
  %v4491 = vsub.f32 %v4387, 1.0
  %v4492 = vsub.f32 %v4388, 1.0
  %v4493 = vsub.f32 %v4389, 1.0
  %v4494 = vsub.f32 %v4390, 1.0
  %v4495 = vsub.f32 %v4391, 1.0
  %v4496 = vsub.f32 %v4392, 1.0
  %v4497 = vsub.f32 %v4393, 1.0
  %v4498 = vsub.f32 %v4394, 1.0
  %v4499 = vsub.f32 %v4395, 1.0
  %v4500 = vsub.f32 %v4396, 1.0
  %v4501 = vsub.f32 %v4397, 1.0
  %v4502 = vsub.f32 %v4398, 1.0
  %v4503 = vsub.f32 %v4399, 1.0
  %v4504 = vsub.f32 %v4400, 1.0
  %v4505 = vsub.f32 %v4401, 1.0
  %v4506 = vsub.f32 %v4402, 1.0
  %v4507 = vsub.f32 %v4403, 1.0
  %v4508 = vsub.f32 %v4404, 1.0
  %v4509 = vsub.f32 %v4405, 1.0
  %v4510 = vsub.f32 %v4406, 1.0
  %v4511 = vsub.f32 %v4407, 1.0
  %v4512 = vsub.f32 %v4408, 1.0
  %v4513 = vsub.f32 %v4409, 1.0
  %v4514 = vsub.f32 %v4410, 1.0
  %v4515 = vsub.f32 %v4411, 1.0
  %v4516 = vsub.f32 %v4412, 1.0
  %v4517 = vsub.f32 %v4413, 1.0
  %v4518 = vsub.f32 %v4414, 1.0
  %v4519 = vsub.f32 %v4415, 1.0
  %v4520 = vsub.f32 %v4416, 1.0
  %v4521 = vsub.f32 %v4417, 1.0
  %v4522 = vsub.f32 %v4418, 1.0
  %v4523 = vsub.f32 %v4419, 1.0
  %v4524 = vsub.f32 %v4420, 1.0
  %v4525 = vsub.f32 %v4421, 1.0
  %v4526 = vsub.f32 %v4422, 1.0
  %v4527 = vsub.f32 %v4423, 1.0
  %v4528 = vsub.f32 %v4424, 1.0
  %v4529 = vsub.f32 %v4425, 1.0
  %v4530 = vsub.f32 %v4426, 1.0
  %v4531 = vsub.f32 %v4427, 1.0
  %v4532 = vsub.f32 %v4428, 1.0
  %v4533 = vsub.f32 %v4429, 1.0
  %v4534 = vsub.f32 %v4430, 1.0
  %v4535 = vsub.f32 %v4431, 1.0
  %v4536 = vsub.f32 %v4432, 1.0
  %v4537 = vsub.f32 %v4433, 1.0
  %v4538 = vsub.f32 %v4434, 1.0
  %v4539 = vsub.f32 %v4435, 1.0
  %v4540 = vsub.f32 %v4436, 1.0
  %v4541 = vsub.f32 %v4437, 1.0
  %v4542 = vsub.f32 %v4438, 1.0
  %v4543 = vsub.f32 %v4439, 1.0
  %v4544 = vsub.f32 %v4440, 1.0
  %v4545 = vsub.f32 %v4441, 1.0
  %v4546 = vsub.f32 %v4442, 1.0
  %v4547 = vsub.f32 %v4443, 1.0
  %v4548 = vsub.f32 %v4444, 1.0
  %v4549 = vsub.f32 %v4445, 1.0
  %v4550 = vsub.f32 %v4446, 1.0
  %v4551 = vsub.f32 %v4447, 1.0
  %v4552 = vsub.f32 %v4448, 1.0
  %vm4553 = vcmp.ge.f32.partialorder %v4228, 0.0
  %vm4554 = vcmp.ge.f32.partialorder %v4229, 0.0
  %vm4555 = vcmp.ge.f32.partialorder %v4230, 0.0
  %vm4556 = vcmp.ge.f32.partialorder %v4231, 0.0
  %vm4557 = vcmp.ge.f32.partialorder %v4232, 0.0
  %vm4558 = vcmp.ge.f32.partialorder %v4233, 0.0
  %vm4559 = vcmp.ge.f32.partialorder %v4234, 0.0
  %vm4560 = vcmp.ge.f32.partialorder %v4235, 0.0
  %vm4561 = vcmp.ge.f32.partialorder %v4236, 0.0
  %vm4562 = vcmp.ge.f32.partialorder %v4237, 0.0
  %vm4563 = vcmp.ge.f32.partialorder %v4238, 0.0
  %vm4564 = vcmp.ge.f32.partialorder %v4239, 0.0
  %vm4565 = vcmp.ge.f32.partialorder %v4240, 0.0
  %vm4566 = vcmp.ge.f32.partialorder %v4241, 0.0
  %vm4567 = vcmp.ge.f32.partialorder %v4242, 0.0
  %vm4568 = vcmp.ge.f32.partialorder %v4243, 0.0
  %vm4569 = vcmp.ge.f32.partialorder %v4244, 0.0
  %vm4570 = vcmp.ge.f32.partialorder %v4245, 0.0
  %vm4571 = vcmp.ge.f32.partialorder %v4246, 0.0
  %vm4572 = vcmp.ge.f32.partialorder %v4247, 0.0
  %vm4573 = vcmp.ge.f32.partialorder %v4248, 0.0
  %vm4574 = vcmp.ge.f32.partialorder %v4249, 0.0
  %vm4575 = vcmp.ge.f32.partialorder %v4250, 0.0
  %vm4576 = vcmp.ge.f32.partialorder %v4251, 0.0
  %vm4577 = vcmp.ge.f32.partialorder %v4252, 0.0
  %vm4578 = vcmp.ge.f32.partialorder %v4253, 0.0
  %vm4579 = vcmp.ge.f32.partialorder %v4254, 0.0
  %vm4580 = vcmp.ge.f32.partialorder %v4255, 0.0
  %vm4581 = vcmp.ge.f32.partialorder %v4256, 0.0
  %vm4582 = vcmp.ge.f32.partialorder %v4257, 0.0
  %vm4583 = vcmp.ge.f32.partialorder %v4258, 0.0
  %vm4584 = vcmp.ge.f32.partialorder %v4259, 0.0
  %vm4585 = vcmp.ge.f32.partialorder %v4260, 0.0
  %vm4586 = vcmp.ge.f32.partialorder %v4261, 0.0
  %vm4587 = vcmp.ge.f32.partialorder %v4262, 0.0
  %vm4588 = vcmp.ge.f32.partialorder %v4263, 0.0
  %vm4589 = vcmp.ge.f32.partialorder %v4264, 0.0
  %vm4590 = vcmp.ge.f32.partialorder %v4265, 0.0
  %vm4591 = vcmp.ge.f32.partialorder %v4266, 0.0
  %vm4592 = vcmp.ge.f32.partialorder %v4267, 0.0
  %vm4593 = vcmp.ge.f32.partialorder %v4268, 0.0
  %vm4594 = vcmp.ge.f32.partialorder %v4269, 0.0
  %vm4595 = vcmp.ge.f32.partialorder %v4270, 0.0
  %vm4596 = vcmp.ge.f32.partialorder %v4271, 0.0
  %vm4597 = vcmp.ge.f32.partialorder %v4272, 0.0
  %vm4598 = vcmp.ge.f32.partialorder %v4273, 0.0
  %vm4599 = vcmp.ge.f32.partialorder %v4274, 0.0
  %vm4600 = vcmp.ge.f32.partialorder %v4275, 0.0
  %vm4601 = vcmp.ge.f32.partialorder %v4276, 0.0
  %vm4602 = vcmp.ge.f32.partialorder %v4277, 0.0
  %vm4603 = vcmp.ge.f32.partialorder %v4278, 0.0
  %vm4604 = vcmp.ge.f32.partialorder %v4279, 0.0
  %vm4605 = vcmp.ge.f32.partialorder %v4280, 0.0
  %vm4606 = vcmp.ge.f32.partialorder %v4281, 0.0
  %vm4607 = vcmp.ge.f32.partialorder %v4282, 0.0
  %vm4608 = vcmp.ge.f32.partialorder %v4283, 0.0
  %vm4609 = vcmp.ge.f32.partialorder %v4284, 0.0
  %vm4610 = vcmp.ge.f32.partialorder %v4285, 0.0
  %vm4611 = vcmp.ge.f32.partialorder %v4286, 0.0
  %vm4612 = vcmp.ge.f32.partialorder %v4287, 0.0
  %vm4613 = vcmp.ge.f32.partialorder %v4288, 0.0
  %vm4614 = vcmp.ge.f32.partialorder %v4289, 0.0
  %vm4615 = vcmp.ge.f32.partialorder %v4290, 0.0
  %vm4616 = vcmp.ge.f32.partialorder %v4291, 0.0
  %vm4617 = vcmp.ge.f32.partialorder %v4292, 0.0
  %vm4618 = vcmp.ge.f32.partialorder %v4293, 0.0
  %vm4619 = vcmp.ge.f32.partialorder %v4294, 0.0
  %vm4620 = vcmp.ge.f32.partialorder %v4295, 0.0
  %vm4621 = vcmp.ge.f32.partialorder %v4296, 0.0
  %vm4622 = vcmp.ge.f32.partialorder %v4297, 0.0
  %vm4623 = vcmp.ge.f32.partialorder %v4298, 0.0
  %vm4624 = vcmp.ge.f32.partialorder %v4299, 0.0
  %vm4625 = vcmp.ge.f32.partialorder %v4300, 0.0
  %vm4626 = vcmp.ge.f32.partialorder %v4301, 0.0
  %vm4627 = vcmp.ge.f32.partialorder %v4302, 0.0
  %vm4628 = vcmp.ge.f32.partialorder %v4303, 0.0
  %vm4629 = vcmp.ge.f32.partialorder %v4304, 0.0
  %vm4630 = vcmp.ge.f32.partialorder %v4305, 0.0
  %vm4631 = vcmp.ge.f32.partialorder %v4306, 0.0
  %vm4632 = vcmp.ge.f32.partialorder %v4307, 0.0
  %vm4633 = vcmp.ge.f32.partialorder %v4308, 0.0
  %vm4634 = vcmp.ge.f32.partialorder %v4309, 0.0
  %vm4635 = vcmp.ge.f32.partialorder %v4310, 0.0
  %vm4636 = vcmp.ge.f32.partialorder %v4311, 0.0
  %vm4637 = vcmp.ge.f32.partialorder %v4312, 0.0
  %vm4638 = vcmp.ge.f32.partialorder %v4313, 0.0
  %vm4639 = vcmp.ge.f32.partialorder %v4314, 0.0
  %vm4640 = vcmp.ge.f32.partialorder %v4315, 0.0
  %vm4641 = vcmp.ge.f32.partialorder %v4316, 0.0
  %vm4642 = vcmp.ge.f32.partialorder %v4317, 0.0
  %vm4643 = vcmp.ge.f32.partialorder %v4318, 0.0
  %vm4644 = vcmp.ge.f32.partialorder %v4319, 0.0
  %vm4645 = vcmp.ge.f32.partialorder %v4320, 0.0
  %vm4646 = vcmp.ge.f32.partialorder %v4321, 0.0
  %vm4647 = vcmp.ge.f32.partialorder %v4322, 0.0
  %vm4648 = vcmp.ge.f32.partialorder %v4323, 0.0
  %vm4649 = vcmp.ge.f32.partialorder %v4324, 0.0
  %vm4650 = vcmp.ge.f32.partialorder %v4325, 0.0
  %vm4651 = vcmp.ge.f32.partialorder %v4326, 0.0
  %vm4652 = vcmp.ge.f32.partialorder %v4327, 0.0
  %vm4653 = vcmp.ge.f32.partialorder %v4328, 0.0
  %vm4654 = vcmp.ge.f32.partialorder %v4329, 0.0
  %vm4655 = vcmp.ge.f32.partialorder %v4330, 0.0
  %vm4656 = vcmp.ge.f32.partialorder %v4331, 0.0
  %vm4657 = vcmp.le.f32.partialorder %v4228, 13.0
  %vm4658 = vcmp.le.f32.partialorder %v4229, 13.0
  %vm4659 = vcmp.le.f32.partialorder %v4230, 13.0
  %vm4660 = vcmp.le.f32.partialorder %v4231, 13.0
  %vm4661 = vcmp.le.f32.partialorder %v4232, 13.0
  %vm4662 = vcmp.le.f32.partialorder %v4233, 13.0
  %vm4663 = vcmp.le.f32.partialorder %v4234, 13.0
  %vm4664 = vcmp.le.f32.partialorder %v4235, 13.0
  %vm4665 = vcmp.le.f32.partialorder %v4236, 13.0
  %vm4666 = vcmp.le.f32.partialorder %v4237, 13.0
  %vm4667 = vcmp.le.f32.partialorder %v4238, 13.0
  %vm4668 = vcmp.le.f32.partialorder %v4239, 13.0
  %vm4669 = vcmp.le.f32.partialorder %v4240, 13.0
  %vm4670 = vcmp.le.f32.partialorder %v4241, 13.0
  %vm4671 = vcmp.le.f32.partialorder %v4242, 13.0
  %vm4672 = vcmp.le.f32.partialorder %v4243, 13.0
  %vm4673 = vcmp.le.f32.partialorder %v4244, 13.0
  %vm4674 = vcmp.le.f32.partialorder %v4245, 13.0
  %vm4675 = vcmp.le.f32.partialorder %v4246, 13.0
  %vm4676 = vcmp.le.f32.partialorder %v4247, 13.0
  %vm4677 = vcmp.le.f32.partialorder %v4248, 13.0
  %vm4678 = vcmp.le.f32.partialorder %v4249, 13.0
  %vm4679 = vcmp.le.f32.partialorder %v4250, 13.0
  %vm4680 = vcmp.le.f32.partialorder %v4251, 13.0
  %vm4681 = vcmp.le.f32.partialorder %v4252, 13.0
  %vm4682 = vcmp.le.f32.partialorder %v4253, 13.0
  %vm4683 = vcmp.le.f32.partialorder %v4254, 13.0
  %vm4684 = vcmp.le.f32.partialorder %v4255, 13.0
  %vm4685 = vcmp.le.f32.partialorder %v4256, 13.0
  %vm4686 = vcmp.le.f32.partialorder %v4257, 13.0
  %vm4687 = vcmp.le.f32.partialorder %v4258, 13.0
  %vm4688 = vcmp.le.f32.partialorder %v4259, 13.0
  %vm4689 = vcmp.le.f32.partialorder %v4260, 13.0
  %vm4690 = vcmp.le.f32.partialorder %v4261, 13.0
  %vm4691 = vcmp.le.f32.partialorder %v4262, 13.0
  %vm4692 = vcmp.le.f32.partialorder %v4263, 13.0
  %vm4693 = vcmp.le.f32.partialorder %v4264, 13.0
  %vm4694 = vcmp.le.f32.partialorder %v4265, 13.0
  %vm4695 = vcmp.le.f32.partialorder %v4266, 13.0
  %vm4696 = vcmp.le.f32.partialorder %v4267, 13.0
  %vm4697 = vcmp.le.f32.partialorder %v4268, 13.0
  %vm4698 = vcmp.le.f32.partialorder %v4269, 13.0
  %vm4699 = vcmp.le.f32.partialorder %v4270, 13.0
  %vm4700 = vcmp.le.f32.partialorder %v4271, 13.0
  %vm4701 = vcmp.le.f32.partialorder %v4272, 13.0
  %vm4702 = vcmp.le.f32.partialorder %v4273, 13.0
  %vm4703 = vcmp.le.f32.partialorder %v4274, 13.0
  %vm4704 = vcmp.le.f32.partialorder %v4275, 13.0
  %vm4705 = vcmp.le.f32.partialorder %v4276, 13.0
  %vm4706 = vcmp.le.f32.partialorder %v4277, 13.0
  %vm4707 = vcmp.le.f32.partialorder %v4278, 13.0
  %vm4708 = vcmp.le.f32.partialorder %v4279, 13.0
  %vm4709 = vcmp.le.f32.partialorder %v4280, 13.0
  %vm4710 = vcmp.le.f32.partialorder %v4281, 13.0
  %vm4711 = vcmp.le.f32.partialorder %v4282, 13.0
  %vm4712 = vcmp.le.f32.partialorder %v4283, 13.0
  %vm4713 = vcmp.le.f32.partialorder %v4284, 13.0
  %vm4714 = vcmp.le.f32.partialorder %v4285, 13.0
  %vm4715 = vcmp.le.f32.partialorder %v4286, 13.0
  %vm4716 = vcmp.le.f32.partialorder %v4287, 13.0
  %vm4717 = vcmp.le.f32.partialorder %v4288, 13.0
  %vm4718 = vcmp.le.f32.partialorder %v4289, 13.0
  %vm4719 = vcmp.le.f32.partialorder %v4290, 13.0
  %vm4720 = vcmp.le.f32.partialorder %v4291, 13.0
  %vm4721 = vcmp.le.f32.partialorder %v4292, 13.0
  %vm4722 = vcmp.le.f32.partialorder %v4293, 13.0
  %vm4723 = vcmp.le.f32.partialorder %v4294, 13.0
  %vm4724 = vcmp.le.f32.partialorder %v4295, 13.0
  %vm4725 = vcmp.le.f32.partialorder %v4296, 13.0
  %vm4726 = vcmp.le.f32.partialorder %v4297, 13.0
  %vm4727 = vcmp.le.f32.partialorder %v4298, 13.0
  %vm4728 = vcmp.le.f32.partialorder %v4299, 13.0
  %vm4729 = vcmp.le.f32.partialorder %v4300, 13.0
  %vm4730 = vcmp.le.f32.partialorder %v4301, 13.0
  %vm4731 = vcmp.le.f32.partialorder %v4302, 13.0
  %vm4732 = vcmp.le.f32.partialorder %v4303, 13.0
  %vm4733 = vcmp.le.f32.partialorder %v4304, 13.0
  %vm4734 = vcmp.le.f32.partialorder %v4305, 13.0
  %vm4735 = vcmp.le.f32.partialorder %v4306, 13.0
  %vm4736 = vcmp.le.f32.partialorder %v4307, 13.0
  %vm4737 = vcmp.le.f32.partialorder %v4308, 13.0
  %vm4738 = vcmp.le.f32.partialorder %v4309, 13.0
  %vm4739 = vcmp.le.f32.partialorder %v4310, 13.0
  %vm4740 = vcmp.le.f32.partialorder %v4311, 13.0
  %vm4741 = vcmp.le.f32.partialorder %v4312, 13.0
  %vm4742 = vcmp.le.f32.partialorder %v4313, 13.0
  %vm4743 = vcmp.le.f32.partialorder %v4314, 13.0
  %vm4744 = vcmp.le.f32.partialorder %v4315, 13.0
  %vm4745 = vcmp.le.f32.partialorder %v4316, 13.0
  %vm4746 = vcmp.le.f32.partialorder %v4317, 13.0
  %vm4747 = vcmp.le.f32.partialorder %v4318, 13.0
  %vm4748 = vcmp.le.f32.partialorder %v4319, 13.0
  %vm4749 = vcmp.le.f32.partialorder %v4320, 13.0
  %vm4750 = vcmp.le.f32.partialorder %v4321, 13.0
  %vm4751 = vcmp.le.f32.partialorder %v4322, 13.0
  %vm4752 = vcmp.le.f32.partialorder %v4323, 13.0
  %vm4753 = vcmp.le.f32.partialorder %v4324, 13.0
  %vm4754 = vcmp.le.f32.partialorder %v4325, 13.0
  %vm4755 = vcmp.le.f32.partialorder %v4326, 13.0
  %vm4756 = vcmp.le.f32.partialorder %v4327, 13.0
  %vm4757 = vcmp.le.f32.partialorder %v4328, 13.0
  %vm4758 = vcmp.le.f32.partialorder %v4329, 13.0
  %vm4759 = vcmp.le.f32.partialorder %v4330, 13.0
  %vm4760 = vcmp.le.f32.partialorder %v4331, 13.0
  %vm4761 = vmand %vm4553, %vm4657
  %vm4762 = vmand %vm4554, %vm4658
  %vm4763 = vmand %vm4555, %vm4659
  %vm4764 = vmand %vm4556, %vm4660
  %vm4765 = vmand %vm4557, %vm4661
  %vm4766 = vmand %vm4558, %vm4662
  %vm4767 = vmand %vm4559, %vm4663
  %vm4768 = vmand %vm4560, %vm4664
  %vm4769 = vmand %vm4561, %vm4665
  %vm4770 = vmand %vm4562, %vm4666
  %vm4771 = vmand %vm4563, %vm4667
  %vm4772 = vmand %vm4564, %vm4668
  %vm4773 = vmand %vm4565, %vm4669
  %vm4774 = vmand %vm4566, %vm4670
  %vm4775 = vmand %vm4567, %vm4671
  %vm4776 = vmand %vm4568, %vm4672
  %vm4777 = vmand %vm4569, %vm4673
  %vm4778 = vmand %vm4570, %vm4674
  %vm4779 = vmand %vm4571, %vm4675
  %vm4780 = vmand %vm4572, %vm4676
  %vm4781 = vmand %vm4573, %vm4677
  %vm4782 = vmand %vm4574, %vm4678
  %vm4783 = vmand %vm4575, %vm4679
  %vm4784 = vmand %vm4576, %vm4680
  %vm4785 = vmand %vm4577, %vm4681
  %vm4786 = vmand %vm4578, %vm4682
  %vm4787 = vmand %vm4579, %vm4683
  %vm4788 = vmand %vm4580, %vm4684
  %vm4789 = vmand %vm4581, %vm4685
  %vm4790 = vmand %vm4582, %vm4686
  %vm4791 = vmand %vm4583, %vm4687
  %vm4792 = vmand %vm4584, %vm4688
  %vm4793 = vmand %vm4585, %vm4689
  %vm4794 = vmand %vm4586, %vm4690
  %vm4795 = vmand %vm4587, %vm4691
  %vm4796 = vmand %vm4588, %vm4692
  %vm4797 = vmand %vm4589, %vm4693
  %vm4798 = vmand %vm4590, %vm4694
  %vm4799 = vmand %vm4591, %vm4695
  %vm4800 = vmand %vm4592, %vm4696
  %vm4801 = vmand %vm4593, %vm4697
  %vm4802 = vmand %vm4594, %vm4698
  %vm4803 = vmand %vm4595, %vm4699
  %vm4804 = vmand %vm4596, %vm4700
  %vm4805 = vmand %vm4597, %vm4701
  %vm4806 = vmand %vm4598, %vm4702
  %vm4807 = vmand %vm4599, %vm4703
  %vm4808 = vmand %vm4600, %vm4704
  %vm4809 = vmand %vm4601, %vm4705
  %vm4810 = vmand %vm4602, %vm4706
  %vm4811 = vmand %vm4603, %vm4707
  %vm4812 = vmand %vm4604, %vm4708
  %vm4813 = vmand %vm4605, %vm4709
  %vm4814 = vmand %vm4606, %vm4710
  %vm4815 = vmand %vm4607, %vm4711
  %vm4816 = vmand %vm4608, %vm4712
  %vm4817 = vmand %vm4609, %vm4713
  %vm4818 = vmand %vm4610, %vm4714
  %vm4819 = vmand %vm4611, %vm4715
  %vm4820 = vmand %vm4612, %vm4716
  %vm4821 = vmand %vm4613, %vm4717
  %vm4822 = vmand %vm4614, %vm4718
  %vm4823 = vmand %vm4615, %vm4719
  %vm4824 = vmand %vm4616, %vm4720
  %vm4825 = vmand %vm4617, %vm4721
  %vm4826 = vmand %vm4618, %vm4722
  %vm4827 = vmand %vm4619, %vm4723
  %vm4828 = vmand %vm4620, %vm4724
  %vm4829 = vmand %vm4621, %vm4725
  %vm4830 = vmand %vm4622, %vm4726
  %vm4831 = vmand %vm4623, %vm4727
  %vm4832 = vmand %vm4624, %vm4728
  %vm4833 = vmand %vm4625, %vm4729
  %vm4834 = vmand %vm4626, %vm4730
  %vm4835 = vmand %vm4627, %vm4731
  %vm4836 = vmand %vm4628, %vm4732
  %vm4837 = vmand %vm4629, %vm4733
  %vm4838 = vmand %vm4630, %vm4734
  %vm4839 = vmand %vm4631, %vm4735
  %vm4840 = vmand %vm4632, %vm4736
  %vm4841 = vmand %vm4633, %vm4737
  %vm4842 = vmand %vm4634, %vm4738
  %vm4843 = vmand %vm4635, %vm4739
  %vm4844 = vmand %vm4636, %vm4740
  %vm4845 = vmand %vm4637, %vm4741
  %vm4846 = vmand %vm4638, %vm4742
  %vm4847 = vmand %vm4639, %vm4743
  %vm4848 = vmand %vm4640, %vm4744
  %vm4849 = vmand %vm4641, %vm4745
  %vm4850 = vmand %vm4642, %vm4746
  %vm4851 = vmand %vm4643, %vm4747
  %vm4852 = vmand %vm4644, %vm4748
  %vm4853 = vmand %vm4645, %vm4749
  %vm4854 = vmand %vm4646, %vm4750
  %vm4855 = vmand %vm4647, %vm4751
  %vm4856 = vmand %vm4648, %vm4752
  %vm4857 = vmand %vm4649, %vm4753
  %vm4858 = vmand %vm4650, %vm4754
  %vm4859 = vmand %vm4651, %vm4755
  %vm4860 = vmand %vm4652, %vm4756
  %vm4861 = vmand %vm4653, %vm4757
  %vm4862 = vmand %vm4654, %vm4758
  %vm4863 = vmand %vm4655, %vm4759
  %vm4864 = vmand %vm4656, %vm4760
  %vm4865 = vcmp.ge.f32.partialorder %v4449, 0.0
  %vm4866 = vcmp.ge.f32.partialorder %v4450, 0.0
  %vm4867 = vcmp.ge.f32.partialorder %v4451, 0.0
  %vm4868 = vcmp.ge.f32.partialorder %v4452, 0.0
  %vm4869 = vcmp.ge.f32.partialorder %v4453, 0.0
  %vm4870 = vcmp.ge.f32.partialorder %v4454, 0.0
  %vm4871 = vcmp.ge.f32.partialorder %v4455, 0.0
  %vm4872 = vcmp.ge.f32.partialorder %v4456, 0.0
  %vm4873 = vcmp.ge.f32.partialorder %v4457, 0.0
  %vm4874 = vcmp.ge.f32.partialorder %v4458, 0.0
  %vm4875 = vcmp.ge.f32.partialorder %v4459, 0.0
  %vm4876 = vcmp.ge.f32.partialorder %v4460, 0.0
  %vm4877 = vcmp.ge.f32.partialorder %v4461, 0.0
  %vm4878 = vcmp.ge.f32.partialorder %v4462, 0.0
  %vm4879 = vcmp.ge.f32.partialorder %v4463, 0.0
  %vm4880 = vcmp.ge.f32.partialorder %v4464, 0.0
  %vm4881 = vcmp.ge.f32.partialorder %v4465, 0.0
  %vm4882 = vcmp.ge.f32.partialorder %v4466, 0.0
  %vm4883 = vcmp.ge.f32.partialorder %v4467, 0.0
  %vm4884 = vcmp.ge.f32.partialorder %v4468, 0.0
  %vm4885 = vcmp.ge.f32.partialorder %v4469, 0.0
  %vm4886 = vcmp.ge.f32.partialorder %v4470, 0.0
  %vm4887 = vcmp.ge.f32.partialorder %v4471, 0.0
  %vm4888 = vcmp.ge.f32.partialorder %v4472, 0.0
  %vm4889 = vcmp.ge.f32.partialorder %v4473, 0.0
  %vm4890 = vcmp.ge.f32.partialorder %v4474, 0.0
  %vm4891 = vcmp.ge.f32.partialorder %v4475, 0.0
  %vm4892 = vcmp.ge.f32.partialorder %v4476, 0.0
  %vm4893 = vcmp.ge.f32.partialorder %v4477, 0.0
  %vm4894 = vcmp.ge.f32.partialorder %v4478, 0.0
  %vm4895 = vcmp.ge.f32.partialorder %v4479, 0.0
  %vm4896 = vcmp.ge.f32.partialorder %v4480, 0.0
  %vm4897 = vcmp.ge.f32.partialorder %v4481, 0.0
  %vm4898 = vcmp.ge.f32.partialorder %v4482, 0.0
  %vm4899 = vcmp.ge.f32.partialorder %v4483, 0.0
  %vm4900 = vcmp.ge.f32.partialorder %v4484, 0.0
  %vm4901 = vcmp.ge.f32.partialorder %v4485, 0.0
  %vm4902 = vcmp.ge.f32.partialorder %v4486, 0.0
  %vm4903 = vcmp.ge.f32.partialorder %v4487, 0.0
  %vm4904 = vcmp.ge.f32.partialorder %v4488, 0.0
  %vm4905 = vcmp.ge.f32.partialorder %v4489, 0.0
  %vm4906 = vcmp.ge.f32.partialorder %v4490, 0.0
  %vm4907 = vcmp.ge.f32.partialorder %v4491, 0.0
  %vm4908 = vcmp.ge.f32.partialorder %v4492, 0.0
  %vm4909 = vcmp.ge.f32.partialorder %v4493, 0.0
  %vm4910 = vcmp.ge.f32.partialorder %v4494, 0.0
  %vm4911 = vcmp.ge.f32.partialorder %v4495, 0.0
  %vm4912 = vcmp.ge.f32.partialorder %v4496, 0.0
  %vm4913 = vcmp.ge.f32.partialorder %v4497, 0.0
  %vm4914 = vcmp.ge.f32.partialorder %v4498, 0.0
  %vm4915 = vcmp.ge.f32.partialorder %v4499, 0.0
  %vm4916 = vcmp.ge.f32.partialorder %v4500, 0.0
  %vm4917 = vcmp.ge.f32.partialorder %v4501, 0.0
  %vm4918 = vcmp.ge.f32.partialorder %v4502, 0.0
  %vm4919 = vcmp.ge.f32.partialorder %v4503, 0.0
  %vm4920 = vcmp.ge.f32.partialorder %v4504, 0.0
  %vm4921 = vcmp.ge.f32.partialorder %v4505, 0.0
  %vm4922 = vcmp.ge.f32.partialorder %v4506, 0.0
  %vm4923 = vcmp.ge.f32.partialorder %v4507, 0.0
  %vm4924 = vcmp.ge.f32.partialorder %v4508, 0.0
  %vm4925 = vcmp.ge.f32.partialorder %v4509, 0.0
  %vm4926 = vcmp.ge.f32.partialorder %v4510, 0.0
  %vm4927 = vcmp.ge.f32.partialorder %v4511, 0.0
  %vm4928 = vcmp.ge.f32.partialorder %v4512, 0.0
  %vm4929 = vcmp.ge.f32.partialorder %v4513, 0.0
  %vm4930 = vcmp.ge.f32.partialorder %v4514, 0.0
  %vm4931 = vcmp.ge.f32.partialorder %v4515, 0.0
  %vm4932 = vcmp.ge.f32.partialorder %v4516, 0.0
  %vm4933 = vcmp.ge.f32.partialorder %v4517, 0.0
  %vm4934 = vcmp.ge.f32.partialorder %v4518, 0.0
  %vm4935 = vcmp.ge.f32.partialorder %v4519, 0.0
  %vm4936 = vcmp.ge.f32.partialorder %v4520, 0.0
  %vm4937 = vcmp.ge.f32.partialorder %v4521, 0.0
  %vm4938 = vcmp.ge.f32.partialorder %v4522, 0.0
  %vm4939 = vcmp.ge.f32.partialorder %v4523, 0.0
  %vm4940 = vcmp.ge.f32.partialorder %v4524, 0.0
  %vm4941 = vcmp.ge.f32.partialorder %v4525, 0.0
  %vm4942 = vcmp.ge.f32.partialorder %v4526, 0.0
  %vm4943 = vcmp.ge.f32.partialorder %v4527, 0.0
  %vm4944 = vcmp.ge.f32.partialorder %v4528, 0.0
  %vm4945 = vcmp.ge.f32.partialorder %v4529, 0.0
  %vm4946 = vcmp.ge.f32.partialorder %v4530, 0.0
  %vm4947 = vcmp.ge.f32.partialorder %v4531, 0.0
  %vm4948 = vcmp.ge.f32.partialorder %v4532, 0.0
  %vm4949 = vcmp.ge.f32.partialorder %v4533, 0.0
  %vm4950 = vcmp.ge.f32.partialorder %v4534, 0.0
  %vm4951 = vcmp.ge.f32.partialorder %v4535, 0.0
  %vm4952 = vcmp.ge.f32.partialorder %v4536, 0.0
  %vm4953 = vcmp.ge.f32.partialorder %v4537, 0.0
  %vm4954 = vcmp.ge.f32.partialorder %v4538, 0.0
  %vm4955 = vcmp.ge.f32.partialorder %v4539, 0.0
  %vm4956 = vcmp.ge.f32.partialorder %v4540, 0.0
  %vm4957 = vcmp.ge.f32.partialorder %v4541, 0.0
  %vm4958 = vcmp.ge.f32.partialorder %v4542, 0.0
  %vm4959 = vcmp.ge.f32.partialorder %v4543, 0.0
  %vm4960 = vcmp.ge.f32.partialorder %v4544, 0.0
  %vm4961 = vcmp.ge.f32.partialorder %v4545, 0.0
  %vm4962 = vcmp.ge.f32.partialorder %v4546, 0.0
  %vm4963 = vcmp.ge.f32.partialorder %v4547, 0.0
  %vm4964 = vcmp.ge.f32.partialorder %v4548, 0.0
  %vm4965 = vcmp.ge.f32.partialorder %v4549, 0.0
  %vm4966 = vcmp.ge.f32.partialorder %v4550, 0.0
  %vm4967 = vcmp.ge.f32.partialorder %v4551, 0.0
  %vm4968 = vcmp.ge.f32.partialorder %v4552, 0.0
  %vm4969 = vmand %vm4761, %vm4865
  %vm4970 = vmand %vm4762, %vm4866
  %vm4971 = vmand %vm4763, %vm4867
  %vm4972 = vmand %vm4764, %vm4868
  %vm4973 = vmand %vm4765, %vm4869
  %vm4974 = vmand %vm4766, %vm4870
  %vm4975 = vmand %vm4767, %vm4871
  %vm4976 = vmand %vm4768, %vm4872
  %vm4977 = vmand %vm4769, %vm4873
  %vm4978 = vmand %vm4770, %vm4874
  %vm4979 = vmand %vm4771, %vm4875
  %vm4980 = vmand %vm4772, %vm4876
  %vm4981 = vmand %vm4773, %vm4877
  %vm4982 = vmand %vm4774, %vm4878
  %vm4983 = vmand %vm4775, %vm4879
  %vm4984 = vmand %vm4776, %vm4880
  %vm4985 = vmand %vm4777, %vm4881
  %vm4986 = vmand %vm4778, %vm4882
  %vm4987 = vmand %vm4779, %vm4883
  %vm4988 = vmand %vm4780, %vm4884
  %vm4989 = vmand %vm4781, %vm4885
  %vm4990 = vmand %vm4782, %vm4886
  %vm4991 = vmand %vm4783, %vm4887
  %vm4992 = vmand %vm4784, %vm4888
  %vm4993 = vmand %vm4785, %vm4889
  %vm4994 = vmand %vm4786, %vm4890
  %vm4995 = vmand %vm4787, %vm4891
  %vm4996 = vmand %vm4788, %vm4892
  %vm4997 = vmand %vm4789, %vm4893
  %vm4998 = vmand %vm4790, %vm4894
  %vm4999 = vmand %vm4791, %vm4895
  %vm5000 = vmand %vm4792, %vm4896
  %vm5001 = vmand %vm4793, %vm4897
  %vm5002 = vmand %vm4794, %vm4898
  %vm5003 = vmand %vm4795, %vm4899
  %vm5004 = vmand %vm4796, %vm4900
  %vm5005 = vmand %vm4797, %vm4901
  %vm5006 = vmand %vm4798, %vm4902
  %vm5007 = vmand %vm4799, %vm4903
  %vm5008 = vmand %vm4800, %vm4904
  %vm5009 = vmand %vm4801, %vm4905
  %vm5010 = vmand %vm4802, %vm4906
  %vm5011 = vmand %vm4803, %vm4907
  %vm5012 = vmand %vm4804, %vm4908
  %vm5013 = vmand %vm4805, %vm4909
  %vm5014 = vmand %vm4806, %vm4910
  %vm5015 = vmand %vm4807, %vm4911
  %vm5016 = vmand %vm4808, %vm4912
  %vm5017 = vmand %vm4809, %vm4913
  %vm5018 = vmand %vm4810, %vm4914
  %vm5019 = vmand %vm4811, %vm4915
  %vm5020 = vmand %vm4812, %vm4916
  %vm5021 = vmand %vm4813, %vm4917
  %vm5022 = vmand %vm4814, %vm4918
  %vm5023 = vmand %vm4815, %vm4919
  %vm5024 = vmand %vm4816, %vm4920
  %vm5025 = vmand %vm4817, %vm4921
  %vm5026 = vmand %vm4818, %vm4922
  %vm5027 = vmand %vm4819, %vm4923
  %vm5028 = vmand %vm4820, %vm4924
  %vm5029 = vmand %vm4821, %vm4925
  %vm5030 = vmand %vm4822, %vm4926
  %vm5031 = vmand %vm4823, %vm4927
  %vm5032 = vmand %vm4824, %vm4928
  %vm5033 = vmand %vm4825, %vm4929
  %vm5034 = vmand %vm4826, %vm4930
  %vm5035 = vmand %vm4827, %vm4931
  %vm5036 = vmand %vm4828, %vm4932
  %vm5037 = vmand %vm4829, %vm4933
  %vm5038 = vmand %vm4830, %vm4934
  %vm5039 = vmand %vm4831, %vm4935
  %vm5040 = vmand %vm4832, %vm4936
  %vm5041 = vmand %vm4833, %vm4937
  %vm5042 = vmand %vm4834, %vm4938
  %vm5043 = vmand %vm4835, %vm4939
  %vm5044 = vmand %vm4836, %vm4940
  %vm5045 = vmand %vm4837, %vm4941
  %vm5046 = vmand %vm4838, %vm4942
  %vm5047 = vmand %vm4839, %vm4943
  %vm5048 = vmand %vm4840, %vm4944
  %vm5049 = vmand %vm4841, %vm4945
  %vm5050 = vmand %vm4842, %vm4946
  %vm5051 = vmand %vm4843, %vm4947
  %vm5052 = vmand %vm4844, %vm4948
  %vm5053 = vmand %vm4845, %vm4949
  %vm5054 = vmand %vm4846, %vm4950
  %vm5055 = vmand %vm4847, %vm4951
  %vm5056 = vmand %vm4848, %vm4952
  %vm5057 = vmand %vm4849, %vm4953
  %vm5058 = vmand %vm4850, %vm4954
  %vm5059 = vmand %vm4851, %vm4955
  %vm5060 = vmand %vm4852, %vm4956
  %vm5061 = vmand %vm4853, %vm4957
  %vm5062 = vmand %vm4854, %vm4958
  %vm5063 = vmand %vm4855, %vm4959
  %vm5064 = vmand %vm4856, %vm4960
  %vm5065 = vmand %vm4857, %vm4961
  %vm5066 = vmand %vm4858, %vm4962
  %vm5067 = vmand %vm4859, %vm4963
  %vm5068 = vmand %vm4860, %vm4964
  %vm5069 = vmand %vm4861, %vm4965
  %vm5070 = vmand %vm4862, %vm4966
  %vm5071 = vmand %vm4863, %vm4967
  %vm5072 = vmand %vm4864, %vm4968
  %vm5073 = vcmp.le.f32.partialorder %v4449, 13.0
  %vm5074 = vcmp.le.f32.partialorder %v4450, 13.0
  %vm5075 = vcmp.le.f32.partialorder %v4451, 13.0
  %vm5076 = vcmp.le.f32.partialorder %v4452, 13.0
  %vm5077 = vcmp.le.f32.partialorder %v4453, 13.0
  %vm5078 = vcmp.le.f32.partialorder %v4454, 13.0
  %vm5079 = vcmp.le.f32.partialorder %v4455, 13.0
  %vm5080 = vcmp.le.f32.partialorder %v4456, 13.0
  %vm5081 = vcmp.le.f32.partialorder %v4457, 13.0
  %vm5082 = vcmp.le.f32.partialorder %v4458, 13.0
  %vm5083 = vcmp.le.f32.partialorder %v4459, 13.0
  %vm5084 = vcmp.le.f32.partialorder %v4460, 13.0
  %vm5085 = vcmp.le.f32.partialorder %v4461, 13.0
  %vm5086 = vcmp.le.f32.partialorder %v4462, 13.0
  %vm5087 = vcmp.le.f32.partialorder %v4463, 13.0
  %vm5088 = vcmp.le.f32.partialorder %v4464, 13.0
  %vm5089 = vcmp.le.f32.partialorder %v4465, 13.0
  %vm5090 = vcmp.le.f32.partialorder %v4466, 13.0
  %vm5091 = vcmp.le.f32.partialorder %v4467, 13.0
  %vm5092 = vcmp.le.f32.partialorder %v4468, 13.0
  %vm5093 = vcmp.le.f32.partialorder %v4469, 13.0
  %vm5094 = vcmp.le.f32.partialorder %v4470, 13.0
  %vm5095 = vcmp.le.f32.partialorder %v4471, 13.0
  %vm5096 = vcmp.le.f32.partialorder %v4472, 13.0
  %vm5097 = vcmp.le.f32.partialorder %v4473, 13.0
  %vm5098 = vcmp.le.f32.partialorder %v4474, 13.0
  %vm5099 = vcmp.le.f32.partialorder %v4475, 13.0
  %vm5100 = vcmp.le.f32.partialorder %v4476, 13.0
  %vm5101 = vcmp.le.f32.partialorder %v4477, 13.0
  %vm5102 = vcmp.le.f32.partialorder %v4478, 13.0
  %vm5103 = vcmp.le.f32.partialorder %v4479, 13.0
  %vm5104 = vcmp.le.f32.partialorder %v4480, 13.0
  %vm5105 = vcmp.le.f32.partialorder %v4481, 13.0
  %vm5106 = vcmp.le.f32.partialorder %v4482, 13.0
  %vm5107 = vcmp.le.f32.partialorder %v4483, 13.0
  %vm5108 = vcmp.le.f32.partialorder %v4484, 13.0
  %vm5109 = vcmp.le.f32.partialorder %v4485, 13.0
  %vm5110 = vcmp.le.f32.partialorder %v4486, 13.0
  %vm5111 = vcmp.le.f32.partialorder %v4487, 13.0
  %vm5112 = vcmp.le.f32.partialorder %v4488, 13.0
  %vm5113 = vcmp.le.f32.partialorder %v4489, 13.0
  %vm5114 = vcmp.le.f32.partialorder %v4490, 13.0
  %vm5115 = vcmp.le.f32.partialorder %v4491, 13.0
  %vm5116 = vcmp.le.f32.partialorder %v4492, 13.0
  %vm5117 = vcmp.le.f32.partialorder %v4493, 13.0
  %vm5118 = vcmp.le.f32.partialorder %v4494, 13.0
  %vm5119 = vcmp.le.f32.partialorder %v4495, 13.0
  %vm5120 = vcmp.le.f32.partialorder %v4496, 13.0
  %vm5121 = vcmp.le.f32.partialorder %v4497, 13.0
  %vm5122 = vcmp.le.f32.partialorder %v4498, 13.0
  %vm5123 = vcmp.le.f32.partialorder %v4499, 13.0
  %vm5124 = vcmp.le.f32.partialorder %v4500, 13.0
  %vm5125 = vcmp.le.f32.partialorder %v4501, 13.0
  %vm5126 = vcmp.le.f32.partialorder %v4502, 13.0
  %vm5127 = vcmp.le.f32.partialorder %v4503, 13.0
  %vm5128 = vcmp.le.f32.partialorder %v4504, 13.0
  %vm5129 = vcmp.le.f32.partialorder %v4505, 13.0
  %vm5130 = vcmp.le.f32.partialorder %v4506, 13.0
  %vm5131 = vcmp.le.f32.partialorder %v4507, 13.0
  %vm5132 = vcmp.le.f32.partialorder %v4508, 13.0
  %vm5133 = vcmp.le.f32.partialorder %v4509, 13.0
  %vm5134 = vcmp.le.f32.partialorder %v4510, 13.0
  %vm5135 = vcmp.le.f32.partialorder %v4511, 13.0
  %vm5136 = vcmp.le.f32.partialorder %v4512, 13.0
  %vm5137 = vcmp.le.f32.partialorder %v4513, 13.0
  %vm5138 = vcmp.le.f32.partialorder %v4514, 13.0
  %vm5139 = vcmp.le.f32.partialorder %v4515, 13.0
  %vm5140 = vcmp.le.f32.partialorder %v4516, 13.0
  %vm5141 = vcmp.le.f32.partialorder %v4517, 13.0
  %vm5142 = vcmp.le.f32.partialorder %v4518, 13.0
  %vm5143 = vcmp.le.f32.partialorder %v4519, 13.0
  %vm5144 = vcmp.le.f32.partialorder %v4520, 13.0
  %vm5145 = vcmp.le.f32.partialorder %v4521, 13.0
  %vm5146 = vcmp.le.f32.partialorder %v4522, 13.0
  %vm5147 = vcmp.le.f32.partialorder %v4523, 13.0
  %vm5148 = vcmp.le.f32.partialorder %v4524, 13.0
  %vm5149 = vcmp.le.f32.partialorder %v4525, 13.0
  %vm5150 = vcmp.le.f32.partialorder %v4526, 13.0
  %vm5151 = vcmp.le.f32.partialorder %v4527, 13.0
  %vm5152 = vcmp.le.f32.partialorder %v4528, 13.0
  %vm5153 = vcmp.le.f32.partialorder %v4529, 13.0
  %vm5154 = vcmp.le.f32.partialorder %v4530, 13.0
  %vm5155 = vcmp.le.f32.partialorder %v4531, 13.0
  %vm5156 = vcmp.le.f32.partialorder %v4532, 13.0
  %vm5157 = vcmp.le.f32.partialorder %v4533, 13.0
  %vm5158 = vcmp.le.f32.partialorder %v4534, 13.0
  %vm5159 = vcmp.le.f32.partialorder %v4535, 13.0
  %vm5160 = vcmp.le.f32.partialorder %v4536, 13.0
  %vm5161 = vcmp.le.f32.partialorder %v4537, 13.0
  %vm5162 = vcmp.le.f32.partialorder %v4538, 13.0
  %vm5163 = vcmp.le.f32.partialorder %v4539, 13.0
  %vm5164 = vcmp.le.f32.partialorder %v4540, 13.0
  %vm5165 = vcmp.le.f32.partialorder %v4541, 13.0
  %vm5166 = vcmp.le.f32.partialorder %v4542, 13.0
  %vm5167 = vcmp.le.f32.partialorder %v4543, 13.0
  %vm5168 = vcmp.le.f32.partialorder %v4544, 13.0
  %vm5169 = vcmp.le.f32.partialorder %v4545, 13.0
  %vm5170 = vcmp.le.f32.partialorder %v4546, 13.0
  %vm5171 = vcmp.le.f32.partialorder %v4547, 13.0
  %vm5172 = vcmp.le.f32.partialorder %v4548, 13.0
  %vm5173 = vcmp.le.f32.partialorder %v4549, 13.0
  %vm5174 = vcmp.le.f32.partialorder %v4550, 13.0
  %vm5175 = vcmp.le.f32.partialorder %v4551, 13.0
  %vm5176 = vcmp.le.f32.partialorder %v4552, 13.0
  %vm5177 = vmand %vm4969, %vm5073
  %vm5178 = vmand %vm4970, %vm5074
  %vm5179 = vmand %vm4971, %vm5075
  %vm5180 = vmand %vm4972, %vm5076
  %vm5181 = vmand %vm4973, %vm5077
  %vm5182 = vmand %vm4974, %vm5078
  %vm5183 = vmand %vm4975, %vm5079
  %vm5184 = vmand %vm4976, %vm5080
  %vm5185 = vmand %vm4977, %vm5081
  %vm5186 = vmand %vm4978, %vm5082
  %vm5187 = vmand %vm4979, %vm5083
  %vm5188 = vmand %vm4980, %vm5084
  %vm5189 = vmand %vm4981, %vm5085
  %vm5190 = vmand %vm4982, %vm5086
  %vm5191 = vmand %vm4983, %vm5087
  %vm5192 = vmand %vm4984, %vm5088
  %vm5193 = vmand %vm4985, %vm5089
  %vm5194 = vmand %vm4986, %vm5090
  %vm5195 = vmand %vm4987, %vm5091
  %vm5196 = vmand %vm4988, %vm5092
  %vm5197 = vmand %vm4989, %vm5093
  %vm5198 = vmand %vm4990, %vm5094
  %vm5199 = vmand %vm4991, %vm5095
  %vm5200 = vmand %vm4992, %vm5096
  %vm5201 = vmand %vm4993, %vm5097
  %vm5202 = vmand %vm4994, %vm5098
  %vm5203 = vmand %vm4995, %vm5099
  %vm5204 = vmand %vm4996, %vm5100
  %vm5205 = vmand %vm4997, %vm5101
  %vm5206 = vmand %vm4998, %vm5102
  %vm5207 = vmand %vm4999, %vm5103
  %vm5208 = vmand %vm5000, %vm5104
  %vm5209 = vmand %vm5001, %vm5105
  %vm5210 = vmand %vm5002, %vm5106
  %vm5211 = vmand %vm5003, %vm5107
  %vm5212 = vmand %vm5004, %vm5108
  %vm5213 = vmand %vm5005, %vm5109
  %vm5214 = vmand %vm5006, %vm5110
  %vm5215 = vmand %vm5007, %vm5111
  %vm5216 = vmand %vm5008, %vm5112
  %vm5217 = vmand %vm5009, %vm5113
  %vm5218 = vmand %vm5010, %vm5114
  %vm5219 = vmand %vm5011, %vm5115
  %vm5220 = vmand %vm5012, %vm5116
  %vm5221 = vmand %vm5013, %vm5117
  %vm5222 = vmand %vm5014, %vm5118
  %vm5223 = vmand %vm5015, %vm5119
  %vm5224 = vmand %vm5016, %vm5120
  %vm5225 = vmand %vm5017, %vm5121
  %vm5226 = vmand %vm5018, %vm5122
  %vm5227 = vmand %vm5019, %vm5123
  %vm5228 = vmand %vm5020, %vm5124
  %vm5229 = vmand %vm5021, %vm5125
  %vm5230 = vmand %vm5022, %vm5126
  %vm5231 = vmand %vm5023, %vm5127
  %vm5232 = vmand %vm5024, %vm5128
  %vm5233 = vmand %vm5025, %vm5129
  %vm5234 = vmand %vm5026, %vm5130
  %vm5235 = vmand %vm5027, %vm5131
  %vm5236 = vmand %vm5028, %vm5132
  %vm5237 = vmand %vm5029, %vm5133
  %vm5238 = vmand %vm5030, %vm5134
  %vm5239 = vmand %vm5031, %vm5135
  %vm5240 = vmand %vm5032, %vm5136
  %vm5241 = vmand %vm5033, %vm5137
  %vm5242 = vmand %vm5034, %vm5138
  %vm5243 = vmand %vm5035, %vm5139
  %vm5244 = vmand %vm5036, %vm5140
  %vm5245 = vmand %vm5037, %vm5141
  %vm5246 = vmand %vm5038, %vm5142
  %vm5247 = vmand %vm5039, %vm5143
  %vm5248 = vmand %vm5040, %vm5144
  %vm5249 = vmand %vm5041, %vm5145
  %vm5250 = vmand %vm5042, %vm5146
  %vm5251 = vmand %vm5043, %vm5147
  %vm5252 = vmand %vm5044, %vm5148
  %vm5253 = vmand %vm5045, %vm5149
  %vm5254 = vmand %vm5046, %vm5150
  %vm5255 = vmand %vm5047, %vm5151
  %vm5256 = vmand %vm5048, %vm5152
  %vm5257 = vmand %vm5049, %vm5153
  %vm5258 = vmand %vm5050, %vm5154
  %vm5259 = vmand %vm5051, %vm5155
  %vm5260 = vmand %vm5052, %vm5156
  %vm5261 = vmand %vm5053, %vm5157
  %vm5262 = vmand %vm5054, %vm5158
  %vm5263 = vmand %vm5055, %vm5159
  %vm5264 = vmand %vm5056, %vm5160
  %vm5265 = vmand %vm5057, %vm5161
  %vm5266 = vmand %vm5058, %vm5162
  %vm5267 = vmand %vm5059, %vm5163
  %vm5268 = vmand %vm5060, %vm5164
  %vm5269 = vmand %vm5061, %vm5165
  %vm5270 = vmand %vm5062, %vm5166
  %vm5271 = vmand %vm5063, %vm5167
  %vm5272 = vmand %vm5064, %vm5168
  %vm5273 = vmand %vm5065, %vm5169
  %vm5274 = vmand %vm5066, %vm5170
  %vm5275 = vmand %vm5067, %vm5171
  %vm5276 = vmand %vm5068, %vm5172
  %vm5277 = vmand %vm5069, %vm5173
  %vm5278 = vmand %vm5070, %vm5174
  %vm5279 = vmand %vm5071, %vm5175
  %vm5280 = vmand %vm5072, %vm5176
  %v5281 = vld [vmem:[#allocation4] sm:$0xff]
  %v5282 = vld [vmem:[#allocation4 + $0x8] sm:$0xff]
  %v5283 = vld [vmem:[#allocation4 + $0x10] sm:$0xff]
  %v5284 = vld [vmem:[#allocation4 + $0x18] sm:$0xff]
  %v5285 = vld [vmem:[#allocation4 + $0x20] sm:$0xff]
  %v5286 = vld [vmem:[#allocation4 + $0x28] sm:$0xff]
  %v5287 = vld [vmem:[#allocation4 + $0x30] sm:$0xff]
  %v5288 = vld [vmem:[#allocation4 + $0x38] sm:$0xff]
  %v5289 = vld [vmem:[#allocation4 + $0x40] sm:$0xff]
  %v5290 = vld [vmem:[#allocation4 + $0x48] sm:$0xff]
  %v5291 = vld [vmem:[#allocation4 + $0x50] sm:$0xff]
  %v5292 = vld [vmem:[#allocation4 + $0x58] sm:$0xff]
  %v5293 = vld [vmem:[#allocation4 + $0x60] sm:$0xff]
  %v5294 = vld [vmem:[#allocation4 + $0x68] sm:$0xff]
  %v5295 = vld [vmem:[#allocation4 + $0x70] sm:$0xff]
  %v5296 = vld [vmem:[#allocation4 + $0x78] sm:$0xff]
  %v5297 = vld [vmem:[#allocation4 + $0x80] sm:$0xff]
  %v5298 = vld [vmem:[#allocation4 + $0x88] sm:$0xff]
  %v5299 = vld [vmem:[#allocation4 + $0x90] sm:$0xff]
  %v5300 = vld [vmem:[#allocation4 + $0x98] sm:$0xff]
  %v5301 = vld [vmem:[#allocation4 + $0xa0] sm:$0xff]
  %v5302 = vld [vmem:[#allocation4 + $0xa8] sm:$0xff]
  %v5303 = vld [vmem:[#allocation4 + $0xb0] sm:$0xff]
  %v5304 = vld [vmem:[#allocation4 + $0xb8] sm:$0xff]
  %v5305 = vld [vmem:[#allocation4 + $0xc0] sm:$0xff]
  %v5306 = vld [vmem:[#allocation4 + $0xc8] sm:$0xff]
  %v5307 = vld [vmem:[#allocation4 + $0xd0] sm:$0xff]
  %v5308 = vld [vmem:[#allocation4 + $0xd8] sm:$0xff]
  %v5309 = vld [vmem:[#allocation4 + $0xe0] sm:$0xff]
  %v5310 = vld [vmem:[#allocation4 + $0xe8] sm:$0xff]
  %v5311 = vld [vmem:[#allocation4 + $0xf0] sm:$0xff]
  %v5312 = vld [vmem:[#allocation4 + $0xf8] sm:$0xff]
  %v5313 = vld [vmem:[#allocation4 + $0x100] sm:$0xff]
  %v5314 = vld [vmem:[#allocation4 + $0x108] sm:$0xff]
  %v5315 = vld [vmem:[#allocation4 + $0x110] sm:$0xff]
  %v5316 = vld [vmem:[#allocation4 + $0x118] sm:$0xff]
  %v5317 = vld [vmem:[#allocation4 + $0x120] sm:$0xff]
  %v5318 = vld [vmem:[#allocation4 + $0x128] sm:$0xff]
  %v5319 = vld [vmem:[#allocation4 + $0x130] sm:$0xff]
  %v5320 = vld [vmem:[#allocation4 + $0x138] sm:$0xff]
  %v5321 = vld [vmem:[#allocation4 + $0x140] sm:$0xff]
  %v5322 = vld [vmem:[#allocation4 + $0x148] sm:$0xff]
  %v5323 = vld [vmem:[#allocation4 + $0x150] sm:$0xff]
  %v5324 = vld [vmem:[#allocation4 + $0x158] sm:$0xff]
  %v5325 = vld [vmem:[#allocation4 + $0x160] sm:$0xff]
  %v5326 = vld [vmem:[#allocation4 + $0x168] sm:$0xff]
  %v5327 = vld [vmem:[#allocation4 + $0x170] sm:$0xff]
  %v5328 = vld [vmem:[#allocation4 + $0x178] sm:$0xff]
  %v5329 = vld [vmem:[#allocation4 + $0x180] sm:$0x11]
  %v5330 = vld [vmem:[#allocation4 + $0x188] sm:$0x11]
  %v5331 = vld [vmem:[#allocation4 + $0x190] sm:$0x11]
  %v5332 = vld [vmem:[#allocation4 + $0x198] sm:$0x11]
  %vm5333 = vmpackc.low %vm5178, %vm5177
  %vm5334 = vmpackc.low %vm5180, %vm5179
  %vm5335 = vmpackc.low %vm5182, %vm5181
  %vm5336 = vmpackc.low %vm5184, %vm5183
  %vm5337 = vmpackc.low %vm5186, %vm5185
  %vm5338 = vmpackc.low %vm5188, %vm5187
  %vm5339 = vmpackc.low %vm5190, %vm5189
  %vm5340 = vmpackc.low %vm5192, %vm5191
  %vm5341 = vmpackc.low %vm5194, %vm5193
  %vm5342 = vmpackc.low %vm5196, %vm5195
  %vm5343 = vmpackc.low %vm5198, %vm5197
  %vm5344 = vmpackc.low %vm5200, %vm5199
  %vm5345 = vmpackc.low %vm5202, %vm5201
  %vm5346 = vmpackc.low %vm5204, %vm5203
  %vm5347 = vmpackc.low %vm5206, %vm5205
  %vm5348 = vmpackc.low %vm5208, %vm5207
  %vm5349 = vmpackc.low %vm5210, %vm5209
  %vm5350 = vmpackc.low %vm5212, %vm5211
  %vm5351 = vmpackc.low %vm5214, %vm5213
  %vm5352 = vmpackc.low %vm5216, %vm5215
  %vm5353 = vmpackc.low %vm5218, %vm5217
  %vm5354 = vmpackc.low %vm5220, %vm5219
  %vm5355 = vmpackc.low %vm5222, %vm5221
  %vm5356 = vmpackc.low %vm5224, %vm5223
  %vm5357 = vmpackc.low %vm5226, %vm5225
  %vm5358 = vmpackc.low %vm5228, %vm5227
  %vm5359 = vmpackc.low %vm5230, %vm5229
  %vm5360 = vmpackc.low %vm5232, %vm5231
  %vm5361 = vmpackc.low %vm5234, %vm5233
  %vm5362 = vmpackc.low %vm5236, %vm5235
  %vm5363 = vmpackc.low %vm5238, %vm5237
  %vm5364 = vmpackc.low %vm5240, %vm5239
  %vm5365 = vmpackc.low %vm5242, %vm5241
  %vm5366 = vmpackc.low %vm5244, %vm5243
  %vm5367 = vmpackc.low %vm5246, %vm5245
  %vm5368 = vmpackc.low %vm5248, %vm5247
  %vm5369 = vmpackc.low %vm5250, %vm5249
  %vm5370 = vmpackc.low %vm5252, %vm5251
  %vm5371 = vmpackc.low %vm5254, %vm5253
  %vm5372 = vmpackc.low %vm5256, %vm5255
  %vm5373 = vmpackc.low %vm5258, %vm5257
  %vm5374 = vmpackc.low %vm5260, %vm5259
  %vm5375 = vmpackc.low %vm5262, %vm5261
  %vm5376 = vmpackc.low %vm5264, %vm5263
  %vm5377 = vmpackc.low %vm5266, %vm5265
  %vm5378 = vmpackc.low %vm5268, %vm5267
  %vm5379 = vmpackc.low %vm5270, %vm5269
  %vm5380 = vmpackc.low %vm5272, %vm5271
  %vm5381 = vmpackc.low %vm5274, %vm5273
  %vm5382 = vmpackc.low %vm5276, %vm5275
  %vm5383 = vmpackc.low %vm5278, %vm5277
  %vm5384 = vmpackc.low %vm5280, %vm5279
  %v5385 = vsel %vm5333, %v5281, 0
  %v5386 = vsel %vm5334, %v5282, 0
  %v5387 = vsel %vm5335, %v5283, 0
  %v5388 = vsel %vm5336, %v5284, 0
  %v5389 = vsel %vm5337, %v5285, 0
  %v5390 = vsel %vm5338, %v5286, 0
  %v5391 = vsel %vm5339, %v5287, 0
  %v5392 = vsel %vm5340, %v5288, 0
  %v5393 = vsel %vm5341, %v5289, 0
  %v5394 = vsel %vm5342, %v5290, 0
  %v5395 = vsel %vm5343, %v5291, 0
  %v5396 = vsel %vm5344, %v5292, 0
  %v5397 = vsel %vm5345, %v5293, 0
  %v5398 = vsel %vm5346, %v5294, 0
  %v5399 = vsel %vm5347, %v5295, 0
  %v5400 = vsel %vm5348, %v5296, 0
  %v5401 = vsel %vm5349, %v5297, 0
  %v5402 = vsel %vm5350, %v5298, 0
  %v5403 = vsel %vm5351, %v5299, 0
  %v5404 = vsel %vm5352, %v5300, 0
  %v5405 = vsel %vm5353, %v5301, 0
  %v5406 = vsel %vm5354, %v5302, 0
  %v5407 = vsel %vm5355, %v5303, 0
  %v5408 = vsel %vm5356, %v5304, 0
  %v5409 = vsel %vm5357, %v5305, 0
  %v5410 = vsel %vm5358, %v5306, 0
  %v5411 = vsel %vm5359, %v5307, 0
  %v5412 = vsel %vm5360, %v5308, 0
  %v5413 = vsel %vm5361, %v5309, 0
  %v5414 = vsel %vm5362, %v5310, 0
  %v5415 = vsel %vm5363, %v5311, 0
  %v5416 = vsel %vm5364, %v5312, 0
  %v5417 = vsel %vm5365, %v5313, 0
  %v5418 = vsel %vm5366, %v5314, 0
  %v5419 = vsel %vm5367, %v5315, 0
  %v5420 = vsel %vm5368, %v5316, 0
  %v5421 = vsel %vm5369, %v5317, 0
  %v5422 = vsel %vm5370, %v5318, 0
  %v5423 = vsel %vm5371, %v5319, 0
  %v5424 = vsel %vm5372, %v5320, 0
  %v5425 = vsel %vm5373, %v5321, 0
  %v5426 = vsel %vm5374, %v5322, 0
  %v5427 = vsel %vm5375, %v5323, 0
  %v5428 = vsel %vm5376, %v5324, 0
  %v5429 = vsel %vm5377, %v5325, 0
  %v5430 = vsel %vm5378, %v5326, 0
  %v5431 = vsel %vm5379, %v5327, 0
  %v5432 = vsel %vm5380, %v5328, 0
  %v5433 = vsel %vm5381, %v5329, 0
  %v5434 = vsel %vm5382, %v5330, 0
  %v5435 = vsel %vm5383, %v5331, 0
  %v5436 = vsel %vm5384, %v5332, 0
  %v5437 = vld [vmem:[%s3] sm:$0xf]
  %v5438 = vld [vmem:[%s3 + $0x4] sm:$0xf]
  %v5439 = vld [vmem:[%s3 + $0x8] sm:$0xf]
  %v5440 = vld [vmem:[%s3 + $0xc] sm:$0xf]
  %v5441 = vld [vmem:[%s3 + $0x10] sm:$0xf]
  %v5442 = vld [vmem:[%s3 + $0x14] sm:$0xf]
  %v5443 = vld [vmem:[%s3 + $0x18] sm:$0xf]
  %v5444 = vld [vmem:[%s3 + $0x1c] sm:$0xf]
  %v5445 = vld [vmem:[%s3 + $0x20] sm:$0xf]
  %v5446 = vld [vmem:[%s3 + $0x24] sm:$0xf]
  %v5447 = vld [vmem:[%s3 + $0x28] sm:$0xf]
  %v5448 = vld [vmem:[%s3 + $0x2c] sm:$0xf]
  %v5449 = vld [vmem:[%s3 + $0x30] sm:$0xf]
  %v5450 = vld [vmem:[%s3 + $0x34] sm:$0xf]
  %v5451 = vld [vmem:[%s3 + $0x38] sm:$0xf]
  %v5452 = vld [vmem:[%s3 + $0x3c] sm:$0xf]
  %v5453 = vld [vmem:[%s3 + $0x40] sm:$0xf]
  %v5454 = vld [vmem:[%s3 + $0x44] sm:$0xf]
  %v5455 = vld [vmem:[%s3 + $0x48] sm:$0xf]
  %v5456 = vld [vmem:[%s3 + $0x4c] sm:$0xf]
  %v5457 = vld [vmem:[%s3 + $0x50] sm:$0xf]
  %v5458 = vld [vmem:[%s3 + $0x54] sm:$0xf]
  %v5459 = vld [vmem:[%s3 + $0x58] sm:$0xf]
  %v5460 = vld [vmem:[%s3 + $0x5c] sm:$0xf]
  %v5461 = vld [vmem:[%s3 + $0x60] sm:$0xf]
  %v5462 = vld [vmem:[%s3 + $0x64] sm:$0xf]
  %v5463 = vld [vmem:[%s3 + $0x68] sm:$0xf]
  %v5464 = vld [vmem:[%s3 + $0x6c] sm:$0xf]
  %v5465 = vld [vmem:[%s3 + $0x70] sm:$0xf]
  %v5466 = vld [vmem:[%s3 + $0x74] sm:$0xf]
  %v5467 = vld [vmem:[%s3 + $0x78] sm:$0xf]
  %v5468 = vld [vmem:[%s3 + $0x7c] sm:$0xf]
  %v5469 = vld [vmem:[%s3 + $0x80] sm:$0xf]
  %v5470 = vld [vmem:[%s3 + $0x84] sm:$0xf]
  %v5471 = vld [vmem:[%s3 + $0x88] sm:$0xf]
  %v5472 = vld [vmem:[%s3 + $0x8c] sm:$0xf]
  %v5473 = vld [vmem:[%s3 + $0x90] sm:$0xf]
  %v5474 = vld [vmem:[%s3 + $0x94] sm:$0xf]
  %v5475 = vld [vmem:[%s3 + $0x98] sm:$0xf]
  %v5476 = vld [vmem:[%s3 + $0x9c] sm:$0xf]
  %v5477 = vld [vmem:[%s3 + $0xa0] sm:$0xf]
  %v5478 = vld [vmem:[%s3 + $0xa4] sm:$0xf]
  %v5479 = vld [vmem:[%s3 + $0xa8] sm:$0xf]
  %v5480 = vld [vmem:[%s3 + $0xac] sm:$0xf]
  %v5481 = vld [vmem:[%s3 + $0xb0] sm:$0xf]
  %v5482 = vld [vmem:[%s3 + $0xb4] sm:$0xf]
  %v5483 = vld [vmem:[%s3 + $0xb8] sm:$0xf]
  %v5484 = vld [vmem:[%s3 + $0xbc] sm:$0xf]
  %v5485 = vld [vmem:[%s3 + $0xc0] sm:$0xf]
  %v5486 = vld [vmem:[%s3 + $0xc4] sm:$0xf]
  %v5487 = vld [vmem:[%s3 + $0xc8] sm:$0xf]
  %v5488 = vld [vmem:[%s3 + $0xcc] sm:$0xf]
  %v5489 = vld [vmem:[%s3 + $0xd0] sm:$0xf]
  %v5490 = vld [vmem:[%s3 + $0xd4] sm:$0xf]
  %v5491 = vld [vmem:[%s3 + $0xd8] sm:$0xf]
  %v5492 = vld [vmem:[%s3 + $0xdc] sm:$0xf]
  %v5493 = vld [vmem:[%s3 + $0xe0] sm:$0xf]
  %v5494 = vld [vmem:[%s3 + $0xe4] sm:$0xf]
  %v5495 = vld [vmem:[%s3 + $0xe8] sm:$0xf]
  %v5496 = vld [vmem:[%s3 + $0xec] sm:$0xf]
  %v5497 = vld [vmem:[%s3 + $0xf0] sm:$0xf]
  %v5498 = vld [vmem:[%s3 + $0xf4] sm:$0xf]
  %v5499 = vld [vmem:[%s3 + $0xf8] sm:$0xf]
  %v5500 = vld [vmem:[%s3 + $0xfc] sm:$0xf]
  %v5501 = vld [vmem:[%s3 + $0x100] sm:$0xf]
  %v5502 = vld [vmem:[%s3 + $0x104] sm:$0xf]
  %v5503 = vld [vmem:[%s3 + $0x108] sm:$0xf]
  %v5504 = vld [vmem:[%s3 + $0x10c] sm:$0xf]
  %v5505 = vld [vmem:[%s3 + $0x110] sm:$0xf]
  %v5506 = vld [vmem:[%s3 + $0x114] sm:$0xf]
  %v5507 = vld [vmem:[%s3 + $0x118] sm:$0xf]
  %v5508 = vld [vmem:[%s3 + $0x11c] sm:$0xf]
  %v5509 = vld [vmem:[%s3 + $0x120] sm:$0xf]
  %v5510 = vld [vmem:[%s3 + $0x124] sm:$0xf]
  %v5511 = vld [vmem:[%s3 + $0x128] sm:$0xf]
  %v5512 = vld [vmem:[%s3 + $0x12c] sm:$0xf]
  %v5513 = vld [vmem:[%s3 + $0x130] sm:$0xf]
  %v5514 = vld [vmem:[%s3 + $0x134] sm:$0xf]
  %v5515 = vld [vmem:[%s3 + $0x138] sm:$0xf]
  %v5516 = vld [vmem:[%s3 + $0x13c] sm:$0xf]
  %v5517 = vld [vmem:[%s3 + $0x140] sm:$0xf]
  %v5518 = vld [vmem:[%s3 + $0x144] sm:$0xf]
  %v5519 = vld [vmem:[%s3 + $0x148] sm:$0xf]
  %v5520 = vld [vmem:[%s3 + $0x14c] sm:$0xf]
  %v5521 = vld [vmem:[%s3 + $0x150] sm:$0xf]
  %v5522 = vld [vmem:[%s3 + $0x154] sm:$0xf]
  %v5523 = vld [vmem:[%s3 + $0x158] sm:$0xf]
  %v5524 = vld [vmem:[%s3 + $0x15c] sm:$0xf]
  %v5525 = vld [vmem:[%s3 + $0x160] sm:$0xf]
  %v5526 = vld [vmem:[%s3 + $0x164] sm:$0xf]
  %v5527 = vld [vmem:[%s3 + $0x168] sm:$0xf]
  %v5528 = vld [vmem:[%s3 + $0x16c] sm:$0xf]
  %v5529 = vld [vmem:[%s3 + $0x170] sm:$0xf]
  %v5530 = vld [vmem:[%s3 + $0x174] sm:$0xf]
  %v5531 = vld [vmem:[%s3 + $0x178] sm:$0xf]
  %v5532 = vld [vmem:[%s3 + $0x17c] sm:$0xf]
  %v5533 = vld [vmem:[%s3 + $0x180] sm:$0xf]
  %v5534 = vld [vmem:[%s3 + $0x184] sm:$0xf]
  %v5535 = vld [vmem:[%s3 + $0x188] sm:$0xf]
  %v5536 = vld [vmem:[%s3 + $0x18c] sm:$0xf]
  %v5537 = vld [vmem:[%s3 + $0x190] sm:$0xf]
  %v5538 = vld [vmem:[%s3 + $0x194] sm:$0xf]
  %v5539 = vld [vmem:[%s3 + $0x198] sm:$0xf]
  %v5540 = vld [vmem:[%s3 + $0x19c] sm:$0xf]
  %v5541 = vld [vmem:[%s3 + $0x1a0] sm:$0xf]
  %v5542 = vld [vmem:[%s3 + $0x1a4] sm:$0xf]
  %v5543 = vld [vmem:[%s3 + $0x1a8] sm:$0xf]
  %v5544 = vld [vmem:[%s3 + $0x1ac] sm:$0xf]
  %v5545 = vld [vmem:[%s3 + $0x1b0] sm:$0xf]
  %v5546 = vld [vmem:[%s3 + $0x1b4] sm:$0xf]
  %v5547 = vld [vmem:[%s3 + $0x1b8] sm:$0xf]
  %v5548 = vld [vmem:[%s3 + $0x1bc] sm:$0xf]
  %v5549 = vld [vmem:[%s3 + $0x1c0] sm:$0xf]
  %v5550 = vld [vmem:[%s3 + $0x1c4] sm:$0xf]
  %v5551 = vld [vmem:[%s3 + $0x1c8] sm:$0xf]
  %v5552 = vld [vmem:[%s3 + $0x1cc] sm:$0xf]
  %v5553 = vld [vmem:[%s3 + $0x1d0] sm:$0xf]
  %v5554 = vld [vmem:[%s3 + $0x1d4] sm:$0xf]
  %v5555 = vld [vmem:[%s3 + $0x1d8] sm:$0xf]
  %v5556 = vld [vmem:[%s3 + $0x1dc] sm:$0xf]
  %v5557 = vld [vmem:[%s3 + $0x1e0] sm:$0xf]
  %v5558 = vld [vmem:[%s3 + $0x1e4] sm:$0xf]
  %v5559 = vld [vmem:[%s3 + $0x1e8] sm:$0xf]
  %v5560 = vld [vmem:[%s3 + $0x1ec] sm:$0xf]
  %v5561 = vld [vmem:[%s3 + $0x1f0] sm:$0xf]
  %v5562 = vld [vmem:[%s3 + $0x1f4] sm:$0xf]
  %v5563 = vld [vmem:[%s3 + $0x1f8] sm:$0xf]
  %v5564 = vld [vmem:[%s3 + $0x1fc] sm:$0xf]
  %v5565 = vld [vmem:[%s4] sm:$0x1]
  %v5567 = vperm.slane %v5565, 0
  %v5621 = vunpack.c.l.b16 %v5385
  %v5622 = vunpack.c.h.b16 %v5385
  %v5623 = vunpack.c.l.b16 %v5386
  %v5624 = vunpack.c.h.b16 %v5386
  %v5625 = vunpack.c.l.b16 %v5387
  %v5626 = vunpack.c.h.b16 %v5387
  %v5627 = vunpack.c.l.b16 %v5388
  %v5628 = vunpack.c.h.b16 %v5388
  %v5629 = vunpack.c.l.b16 %v5389
  %v5630 = vunpack.c.h.b16 %v5389
  %v5631 = vunpack.c.l.b16 %v5390
  %v5632 = vunpack.c.h.b16 %v5390
  %v5633 = vunpack.c.l.b16 %v5391
  %v5634 = vunpack.c.h.b16 %v5391
  %v5635 = vunpack.c.l.b16 %v5392
  %v5636 = vunpack.c.h.b16 %v5392
  %v5637 = vunpack.c.l.b16 %v5393
  %v5638 = vunpack.c.h.b16 %v5393
  %v5639 = vunpack.c.l.b16 %v5394
  %v5640 = vunpack.c.h.b16 %v5394
  %v5641 = vunpack.c.l.b16 %v5395
  %v5642 = vunpack.c.h.b16 %v5395
  %v5643 = vunpack.c.l.b16 %v5396
  %v5644 = vunpack.c.h.b16 %v5396
  %v5645 = vunpack.c.l.b16 %v5397
  %v5646 = vunpack.c.h.b16 %v5397
  %v5647 = vunpack.c.l.b16 %v5398
  %v5648 = vunpack.c.h.b16 %v5398
  %v5649 = vunpack.c.l.b16 %v5399
  %v5650 = vunpack.c.h.b16 %v5399
  %v5651 = vunpack.c.l.b16 %v5400
  %v5652 = vunpack.c.h.b16 %v5400
  %v5653 = vunpack.c.l.b16 %v5401
  %v5654 = vunpack.c.h.b16 %v5401
  %v5655 = vunpack.c.l.b16 %v5402
  %v5656 = vunpack.c.h.b16 %v5402
  %v5657 = vunpack.c.l.b16 %v5403
  %v5658 = vunpack.c.h.b16 %v5403
  %v5659 = vunpack.c.l.b16 %v5404
  %v5660 = vunpack.c.h.b16 %v5404
  %v5661 = vunpack.c.l.b16 %v5405
  %v5662 = vunpack.c.h.b16 %v5405
  %v5663 = vunpack.c.l.b16 %v5406
  %v5664 = vunpack.c.h.b16 %v5406
  %v5665 = vunpack.c.l.b16 %v5407
  %v5666 = vunpack.c.h.b16 %v5407
  %v5667 = vunpack.c.l.b16 %v5408
  %v5668 = vunpack.c.h.b16 %v5408
  %v5669 = vunpack.c.l.b16 %v5409
  %v5670 = vunpack.c.h.b16 %v5409
  %v5671 = vunpack.c.l.b16 %v5410
  %v5672 = vunpack.c.h.b16 %v5410
  %v5673 = vunpack.c.l.b16 %v5411
  %v5674 = vunpack.c.h.b16 %v5411
  %v5675 = vunpack.c.l.b16 %v5412
  %v5676 = vunpack.c.h.b16 %v5412
  %v5677 = vunpack.c.l.b16 %v5413
  %v5678 = vunpack.c.h.b16 %v5413
  %v5679 = vunpack.c.l.b16 %v5414
  %v5680 = vunpack.c.h.b16 %v5414
  %v5681 = vunpack.c.l.b16 %v5415
  %v5682 = vunpack.c.h.b16 %v5415
  %v5683 = vunpack.c.l.b16 %v5416
  %v5684 = vunpack.c.h.b16 %v5416
  %v5685 = vunpack.c.l.b16 %v5417
  %v5686 = vunpack.c.h.b16 %v5417
  %v5687 = vunpack.c.l.b16 %v5418
  %v5688 = vunpack.c.h.b16 %v5418
  %v5689 = vunpack.c.l.b16 %v5419
  %v5690 = vunpack.c.h.b16 %v5419
  %v5691 = vunpack.c.l.b16 %v5420
  %v5692 = vunpack.c.h.b16 %v5420
  %v5693 = vunpack.c.l.b16 %v5421
  %v5694 = vunpack.c.h.b16 %v5421
  %v5695 = vunpack.c.l.b16 %v5422
  %v5696 = vunpack.c.h.b16 %v5422
  %v5697 = vunpack.c.l.b16 %v5423
  %v5698 = vunpack.c.h.b16 %v5423
  %v5699 = vunpack.c.l.b16 %v5424
  %v5700 = vunpack.c.h.b16 %v5424
  %v5701 = vunpack.c.l.b16 %v5425
  %v5702 = vunpack.c.h.b16 %v5425
  %v5703 = vunpack.c.l.b16 %v5426
  %v5704 = vunpack.c.h.b16 %v5426
  %v5705 = vunpack.c.l.b16 %v5427
  %v5706 = vunpack.c.h.b16 %v5427
  %v5707 = vunpack.c.l.b16 %v5428
  %v5708 = vunpack.c.h.b16 %v5428
  %v5709 = vunpack.c.l.b16 %v5429
  %v5710 = vunpack.c.h.b16 %v5429
  %v5711 = vunpack.c.l.b16 %v5430
  %v5712 = vunpack.c.h.b16 %v5430
  %v5713 = vunpack.c.l.b16 %v5431
  %v5714 = vunpack.c.h.b16 %v5431
  %v5715 = vunpack.c.l.b16 %v5432
  %v5716 = vunpack.c.h.b16 %v5432
  %v5717 = vunpack.c.l.b16 %v5433
  %v5718 = vunpack.c.h.b16 %v5433
  %v5719 = vunpack.c.l.b16 %v5434
  %v5720 = vunpack.c.h.b16 %v5434
  %v5721 = vunpack.c.l.b16 %v5435
  %v5722 = vunpack.c.h.b16 %v5435
  %v5723 = vunpack.c.l.b16 %v5436
  %v5724 = vunpack.c.h.b16 %v5436
  %v5725 = vpack.c.b16 %v5629, %v5621
  %v5726 = vpack.c.b16 %v5630, %v5622
  %v5727 = vpack.c.b16 %v5631, %v5623
  %v5728 = vpack.c.b16 %v5632, %v5624
  %v5729 = vpack.c.b16 %v5633, %v5625
  %v5730 = vpack.c.b16 %v5634, %v5626
  %v5731 = vpack.c.b16 %v5635, %v5627
  %v5732 = vpack.c.b16 %v5636, %v5628
  %v5733 = vpack.c.b16 %v5645, %v5637
  %v5734 = vpack.c.b16 %v5646, %v5638
  %v5735 = vpack.c.b16 %v5647, %v5639
  %v5736 = vpack.c.b16 %v5648, %v5640
  %v5737 = vpack.c.b16 %v5649, %v5641
  %v5738 = vpack.c.b16 %v5650, %v5642
  %v5739 = vpack.c.b16 %v5651, %v5643
  %v5740 = vpack.c.b16 %v5652, %v5644
  %v5741 = vpack.c.b16 %v5661, %v5653
  %v5742 = vpack.c.b16 %v5662, %v5654
  %v5743 = vpack.c.b16 %v5663, %v5655
  %v5744 = vpack.c.b16 %v5664, %v5656
  %v5745 = vpack.c.b16 %v5665, %v5657
  %v5746 = vpack.c.b16 %v5666, %v5658
  %v5747 = vpack.c.b16 %v5667, %v5659
  %v5748 = vpack.c.b16 %v5668, %v5660
  %v5749 = vpack.c.b16 %v5677, %v5669
  %v5750 = vpack.c.b16 %v5678, %v5670
  %v5751 = vpack.c.b16 %v5679, %v5671
  %v5752 = vpack.c.b16 %v5680, %v5672
  %v5753 = vpack.c.b16 %v5681, %v5673
  %v5754 = vpack.c.b16 %v5682, %v5674
  %v5755 = vpack.c.b16 %v5683, %v5675
  %v5756 = vpack.c.b16 %v5684, %v5676
  %v5757 = vpack.c.b16 %v5693, %v5685
  %v5758 = vpack.c.b16 %v5694, %v5686
  %v5759 = vpack.c.b16 %v5695, %v5687
  %v5760 = vpack.c.b16 %v5696, %v5688
  %v5761 = vpack.c.b16 %v5697, %v5689
  %v5762 = vpack.c.b16 %v5698, %v5690
  %v5763 = vpack.c.b16 %v5699, %v5691
  %v5764 = vpack.c.b16 %v5700, %v5692
  %v5765 = vpack.c.b16 %v5709, %v5701
  %v5766 = vpack.c.b16 %v5710, %v5702
  %v5767 = vpack.c.b16 %v5711, %v5703
  %v5768 = vpack.c.b16 %v5712, %v5704
  %v5769 = vpack.c.b16 %v5713, %v5705
  %v5770 = vpack.c.b16 %v5714, %v5706
  %v5771 = vpack.c.b16 %v5715, %v5707
  %v5772 = vpack.c.b16 %v5716, %v5708
  %v5773 = vpack.c.b16 %v5717, %v5717
  %v5774 = vpack.c.b16 %v5718, %v5718
  %v5775 = vpack.c.b16 %v5719, %v5719
  %v5776 = vpack.c.b16 %v5720, %v5720
  %v5777 = vpack.c.b16 %v5721, %v5721
  %v5778 = vpack.c.b16 %v5722, %v5722
  %v5779 = vpack.c.b16 %v5723, %v5723
  %v5780 = vpack.c.b16 %v5724, %v5724
  %v5965 = vunpack.c.l.b16 %v5437
  %v5966 = vunpack.c.l.b16 %v5438
  %v5967 = vunpack.c.l.b16 %v5439
  %v5968 = vunpack.c.l.b16 %v5440
  %v5969 = vunpack.c.l.b16 %v5441
  %v5970 = vunpack.c.l.b16 %v5442
  %v5971 = vunpack.c.l.b16 %v5443
  %v5972 = vunpack.c.l.b16 %v5444
  %v5973 = vunpack.c.l.b16 %v5445
  %v5974 = vunpack.c.l.b16 %v5446
  %v5975 = vunpack.c.l.b16 %v5447
  %v5976 = vunpack.c.l.b16 %v5448
  %v5977 = vunpack.c.l.b16 %v5449
  %v5978 = vunpack.c.l.b16 %v5450
  %v5979 = vunpack.c.l.b16 %v5451
  %v5980 = vunpack.c.l.b16 %v5452
  %v5981 = vunpack.c.l.b16 %v5453
  %v5982 = vunpack.c.l.b16 %v5454
  %v5983 = vunpack.c.l.b16 %v5455
  %v5984 = vunpack.c.l.b16 %v5456
  %v5985 = vunpack.c.l.b16 %v5457
  %v5986 = vunpack.c.l.b16 %v5458
  %v5987 = vunpack.c.l.b16 %v5459
  %v5988 = vunpack.c.l.b16 %v5460
  %v5989 = vunpack.c.l.b16 %v5461
  %v5990 = vunpack.c.l.b16 %v5462
  %v5991 = vunpack.c.l.b16 %v5463
  %v5992 = vunpack.c.l.b16 %v5464
  %v5993 = vunpack.c.l.b16 %v5465
  %v5994 = vunpack.c.l.b16 %v5466
  %v5995 = vunpack.c.l.b16 %v5467
  %v5996 = vunpack.c.l.b16 %v5468
  %v5997 = vunpack.c.l.b16 %v5469
  %v5998 = vunpack.c.l.b16 %v5470
  %v5999 = vunpack.c.l.b16 %v5471
  %v6000 = vunpack.c.l.b16 %v5472
  %v6001 = vunpack.c.l.b16 %v5473
  %v6002 = vunpack.c.l.b16 %v5474
  %v6003 = vunpack.c.l.b16 %v5475
  %v6004 = vunpack.c.l.b16 %v5476
  %v6005 = vunpack.c.l.b16 %v5477
  %v6006 = vunpack.c.l.b16 %v5478
  %v6007 = vunpack.c.l.b16 %v5479
  %v6008 = vunpack.c.l.b16 %v5480
  %v6009 = vunpack.c.l.b16 %v5481
  %v6010 = vunpack.c.l.b16 %v5482
  %v6011 = vunpack.c.l.b16 %v5483
  %v6012 = vunpack.c.l.b16 %v5484
  %v6013 = vunpack.c.l.b16 %v5485
  %v6014 = vunpack.c.l.b16 %v5486
  %v6015 = vunpack.c.l.b16 %v5487
  %v6016 = vunpack.c.l.b16 %v5488
  %v6017 = vunpack.c.l.b16 %v5489
  %v6018 = vunpack.c.l.b16 %v5490
  %v6019 = vunpack.c.l.b16 %v5491
  %v6020 = vunpack.c.l.b16 %v5492
  %v6021 = vunpack.c.l.b16 %v5493
  %v6022 = vunpack.c.l.b16 %v5494
  %v6023 = vunpack.c.l.b16 %v5495
  %v6024 = vunpack.c.l.b16 %v5496
  %v6025 = vunpack.c.l.b16 %v5497
  %v6026 = vunpack.c.l.b16 %v5498
  %v6027 = vunpack.c.l.b16 %v5499
  %v6028 = vunpack.c.l.b16 %v5500
  %v6029 = vunpack.c.l.b16 %v5501
  %v6030 = vunpack.c.l.b16 %v5502
  %v6031 = vunpack.c.l.b16 %v5503
  %v6032 = vunpack.c.l.b16 %v5504
  %v6033 = vunpack.c.l.b16 %v5505
  %v6034 = vunpack.c.l.b16 %v5506
  %v6035 = vunpack.c.l.b16 %v5507
  %v6036 = vunpack.c.l.b16 %v5508
  %v6037 = vunpack.c.l.b16 %v5509
  %v6038 = vunpack.c.l.b16 %v5510
  %v6039 = vunpack.c.l.b16 %v5511
  %v6040 = vunpack.c.l.b16 %v5512
  %v6041 = vunpack.c.l.b16 %v5513
  %v6042 = vunpack.c.l.b16 %v5514
  %v6043 = vunpack.c.l.b16 %v5515
  %v6044 = vunpack.c.l.b16 %v5516
  %v6045 = vunpack.c.l.b16 %v5517
  %v6046 = vunpack.c.l.b16 %v5518
  %v6047 = vunpack.c.l.b16 %v5519
  %v6048 = vunpack.c.l.b16 %v5520
  %v6049 = vunpack.c.l.b16 %v5521
  %v6050 = vunpack.c.l.b16 %v5522
  %v6051 = vunpack.c.l.b16 %v5523
  %v6052 = vunpack.c.l.b16 %v5524
  %v6053 = vunpack.c.l.b16 %v5525
  %v6054 = vunpack.c.l.b16 %v5526
  %v6055 = vunpack.c.l.b16 %v5527
  %v6056 = vunpack.c.l.b16 %v5528
  %v6057 = vunpack.c.l.b16 %v5529
  %v6058 = vunpack.c.l.b16 %v5530
  %v6059 = vunpack.c.l.b16 %v5531
  %v6060 = vunpack.c.l.b16 %v5532
  %v6061 = vunpack.c.l.b16 %v5533
  %v6062 = vunpack.c.l.b16 %v5534
  %v6063 = vunpack.c.l.b16 %v5535
  %v6064 = vunpack.c.l.b16 %v5536
  %v6065 = vunpack.c.l.b16 %v5537
  %v6066 = vunpack.c.l.b16 %v5538
  %v6067 = vunpack.c.l.b16 %v5539
  %v6068 = vunpack.c.l.b16 %v5540
  %v6069 = vunpack.c.l.b16 %v5541
  %v6070 = vunpack.c.l.b16 %v5542
  %v6071 = vunpack.c.l.b16 %v5543
  %v6072 = vunpack.c.l.b16 %v5544
  %v6073 = vunpack.c.l.b16 %v5545
  %v6074 = vunpack.c.l.b16 %v5546
  %v6075 = vunpack.c.l.b16 %v5547
  %v6076 = vunpack.c.l.b16 %v5548
  %v6077 = vunpack.c.l.b16 %v5549
  %v6078 = vunpack.c.l.b16 %v5550
  %v6079 = vunpack.c.l.b16 %v5551
  %v6080 = vunpack.c.l.b16 %v5552
  %v6081 = vunpack.c.l.b16 %v5553
  %v6082 = vunpack.c.l.b16 %v5554
  %v6083 = vunpack.c.l.b16 %v5555
  %v6084 = vunpack.c.l.b16 %v5556
  %v6085 = vunpack.c.l.b16 %v5557
  %v6086 = vunpack.c.l.b16 %v5558
  %v6087 = vunpack.c.l.b16 %v5559
  %v6088 = vunpack.c.l.b16 %v5560
  %v6089 = vunpack.c.l.b16 %v5561
  %v6090 = vunpack.c.l.b16 %v5562
  %v6091 = vunpack.c.l.b16 %v5563
  %v6092 = vunpack.c.l.b16 %v5564
  %v6093 = vpack.c.b16 %v5966, %v5965
  %v6094 = vpack.c.b16 %v5968, %v5967
  %v6095 = vpack.c.b16 %v5970, %v5969
  %v6096 = vpack.c.b16 %v5972, %v5971
  %v6097 = vpack.c.b16 %v5974, %v5973
  %v6098 = vpack.c.b16 %v5976, %v5975
  %v6099 = vpack.c.b16 %v5978, %v5977
  %v6100 = vpack.c.b16 %v5980, %v5979
  %v6101 = vpack.c.b16 %v5982, %v5981
  %v6102 = vpack.c.b16 %v5984, %v5983
  %v6103 = vpack.c.b16 %v5986, %v5985
  %v6104 = vpack.c.b16 %v5988, %v5987
  %v6105 = vpack.c.b16 %v5990, %v5989
  %v6106 = vpack.c.b16 %v5992, %v5991
  %v6107 = vpack.c.b16 %v5994, %v5993
  %v6108 = vpack.c.b16 %v5996, %v5995
  %v6109 = vpack.c.b16 %v5998, %v5997
  %v6110 = vpack.c.b16 %v6000, %v5999
  %v6111 = vpack.c.b16 %v6002, %v6001
  %v6112 = vpack.c.b16 %v6004, %v6003
  %v6113 = vpack.c.b16 %v6006, %v6005
  %v6114 = vpack.c.b16 %v6008, %v6007
  %v6115 = vpack.c.b16 %v6010, %v6009
  %v6116 = vpack.c.b16 %v6012, %v6011
  %v6117 = vpack.c.b16 %v6014, %v6013
  %v6118 = vpack.c.b16 %v6016, %v6015
  %v6119 = vpack.c.b16 %v6018, %v6017
  %v6120 = vpack.c.b16 %v6020, %v6019
  %v6121 = vpack.c.b16 %v6022, %v6021
  %v6122 = vpack.c.b16 %v6024, %v6023
  %v6123 = vpack.c.b16 %v6026, %v6025
  %v6124 = vpack.c.b16 %v6028, %v6027
  %v6125 = vpack.c.b16 %v6030, %v6029
  %v6126 = vpack.c.b16 %v6032, %v6031
  %v6127 = vpack.c.b16 %v6034, %v6033
  %v6128 = vpack.c.b16 %v6036, %v6035
  %v6129 = vpack.c.b16 %v6038, %v6037
  %v6130 = vpack.c.b16 %v6040, %v6039
  %v6131 = vpack.c.b16 %v6042, %v6041
  %v6132 = vpack.c.b16 %v6044, %v6043
  %v6133 = vpack.c.b16 %v6046, %v6045
  %v6134 = vpack.c.b16 %v6048, %v6047
  %v6135 = vpack.c.b16 %v6050, %v6049
  %v6136 = vpack.c.b16 %v6052, %v6051
  %v6137 = vpack.c.b16 %v6054, %v6053
  %v6138 = vpack.c.b16 %v6056, %v6055
  %v6139 = vpack.c.b16 %v6058, %v6057
  %v6140 = vpack.c.b16 %v6060, %v6059
  %v6141 = vpack.c.b16 %v6062, %v6061
  %v6142 = vpack.c.b16 %v6064, %v6063
  %v6143 = vpack.c.b16 %v6066, %v6065
  %v6144 = vpack.c.b16 %v6068, %v6067
  %v6145 = vpack.c.b16 %v6070, %v6069
  %v6146 = vpack.c.b16 %v6072, %v6071
  %v6147 = vpack.c.b16 %v6074, %v6073
  %v6148 = vpack.c.b16 %v6076, %v6075
  %v6149 = vpack.c.b16 %v6078, %v6077
  %v6150 = vpack.c.b16 %v6080, %v6079
  %v6151 = vpack.c.b16 %v6082, %v6081
  %v6152 = vpack.c.b16 %v6084, %v6083
  %v6153 = vpack.c.b16 %v6086, %v6085
  %v6154 = vpack.c.b16 %v6088, %v6087
  %v6155 = vpack.c.b16 %v6090, %v6089
  %v6156 = vpack.c.b16 %v6092, %v6091
  %6221 = vmatpush.bf16.msra.mxu0 %v6100
  %6222 = vmatpush.bf16.msra.mxu0 %v6099
  %6223 = vmatpush.bf16.msra.mxu0 %v6098
  %6224 = vmatpush.bf16.msra.mxu0 %v6097
  %6225 = vmatpush.bf16.msra.mxu0 %v6096
  %6226 = vmatpush.bf16.msra.mxu0 %v6095
  %6227 = vmatpush.bf16.msra.mxu0 %v6094
  %6228 = vmatpush.bf16.msra.mxu0 %v6093
  %6229 = vmatmul.bf16.gmra.mxu0 %v5725
  %v6230 = vpop.f32.mrf.mxu0
  %v6231 = vadd.f32 %v5567, %v6230
  %v6232 = vpop.f32.mrf.mxu0
  %v6233 = vadd.f32 %v5567, %v6232
  %6234 = vmatmul.bf16.gmra.mxu0 %v5733
  %v6235 = vpop.f32.mrf.mxu0
  %v6236 = vadd.f32 %v5567, %v6235
  %v6237 = vpop.f32.mrf.mxu0
  %v6238 = vadd.f32 %v5567, %v6237
  %6239 = vmatmul.bf16.gmra.mxu0 %v5741
  %v6240 = vpop.f32.mrf.mxu0
  %v6241 = vadd.f32 %v5567, %v6240
  %v6242 = vpop.f32.mrf.mxu0
  %v6243 = vadd.f32 %v5567, %v6242
  %6244 = vmatmul.bf16.gmra.mxu0 %v5749
  %v6245 = vpop.f32.mrf.mxu0
  %v6246 = vadd.f32 %v5567, %v6245
  %v6247 = vpop.f32.mrf.mxu0
  %v6248 = vadd.f32 %v5567, %v6247
  %6249 = vmatmul.bf16.gmra.mxu0 %v5757
  %v6250 = vpop.f32.mrf.mxu0
  %v6251 = vadd.f32 %v5567, %v6250
  %v6252 = vpop.f32.mrf.mxu0
  %v6253 = vadd.f32 %v5567, %v6252
  %6254 = vmatmul.bf16.gmra.mxu0 %v5765
  %v6255 = vpop.f32.mrf.mxu0
  %v6256 = vadd.f32 %v5567, %v6255
  %v6257 = vpop.f32.mrf.mxu0
  %v6258 = vadd.f32 %v5567, %v6257
  %6259 = vmatmul.bf16.gmra.mxu0 %v5773
  %v6260 = vpop.f32.mrf.mxu0
  %v6261 = vadd.f32 %v5567, %v6260
  %v6262 = vpop.f32.mrf.mxu0
  %6263 = vdwg.mxu0
  %6264 = vmatpush.bf16.msra.mxu0 %v6108
  %6265 = vmatpush.bf16.msra.mxu0 %v6107
  %6266 = vmatpush.bf16.msra.mxu0 %v6106
  %6267 = vmatpush.bf16.msra.mxu0 %v6105
  %6268 = vmatpush.bf16.msra.mxu0 %v6104
  %6269 = vmatpush.bf16.msra.mxu0 %v6103
  %6270 = vmatpush.bf16.msra.mxu0 %v6102
  %6271 = vmatpush.bf16.msra.mxu0 %v6101
  %6272 = vmatmul.bf16.gmra.mxu0 %v5726
  %v6273 = vpop.f32.mrf.mxu0
  %v6274 = vadd.f32 %v6231, %v6273
  %v6275 = vpop.f32.mrf.mxu0
  %v6276 = vadd.f32 %v6233, %v6275
  %6277 = vmatmul.bf16.gmra.mxu0 %v5734
  %v6278 = vpop.f32.mrf.mxu0
  %v6279 = vadd.f32 %v6236, %v6278
  %v6280 = vpop.f32.mrf.mxu0
  %v6281 = vadd.f32 %v6238, %v6280
  %6282 = vmatmul.bf16.gmra.mxu0 %v5742
  %v6283 = vpop.f32.mrf.mxu0
  %v6284 = vadd.f32 %v6241, %v6283
  %v6285 = vpop.f32.mrf.mxu0
  %v6286 = vadd.f32 %v6243, %v6285
  %6287 = vmatmul.bf16.gmra.mxu0 %v5750
  %v6288 = vpop.f32.mrf.mxu0
  %v6289 = vadd.f32 %v6246, %v6288
  %v6290 = vpop.f32.mrf.mxu0
  %v6291 = vadd.f32 %v6248, %v6290
  %6292 = vmatmul.bf16.gmra.mxu0 %v5758
  %v6293 = vpop.f32.mrf.mxu0
  %v6294 = vadd.f32 %v6251, %v6293
  %v6295 = vpop.f32.mrf.mxu0
  %v6296 = vadd.f32 %v6253, %v6295
  %6297 = vmatmul.bf16.gmra.mxu0 %v5766
  %v6298 = vpop.f32.mrf.mxu0
  %v6299 = vadd.f32 %v6256, %v6298
  %v6300 = vpop.f32.mrf.mxu0
  %v6301 = vadd.f32 %v6258, %v6300
  %6302 = vmatmul.bf16.gmra.mxu0 %v5774
  %v6303 = vpop.f32.mrf.mxu0
  %v6304 = vadd.f32 %v6261, %v6303
  %v6305 = vpop.f32.mrf.mxu0
  %6306 = vdwg.mxu0
  %6307 = vmatpush.bf16.msra.mxu0 %v6116
  %6308 = vmatpush.bf16.msra.mxu0 %v6115
  %6309 = vmatpush.bf16.msra.mxu0 %v6114
  %6310 = vmatpush.bf16.msra.mxu0 %v6113
  %6311 = vmatpush.bf16.msra.mxu0 %v6112
  %6312 = vmatpush.bf16.msra.mxu0 %v6111
  %6313 = vmatpush.bf16.msra.mxu0 %v6110
  %6314 = vmatpush.bf16.msra.mxu0 %v6109
  %6315 = vmatmul.bf16.gmra.mxu0 %v5727
  %v6316 = vpop.f32.mrf.mxu0
  %v6317 = vadd.f32 %v6274, %v6316
  %v6318 = vpop.f32.mrf.mxu0
  %v6319 = vadd.f32 %v6276, %v6318
  %6320 = vmatmul.bf16.gmra.mxu0 %v5735
  %v6321 = vpop.f32.mrf.mxu0
  %v6322 = vadd.f32 %v6279, %v6321
  %v6323 = vpop.f32.mrf.mxu0
  %v6324 = vadd.f32 %v6281, %v6323
  %6325 = vmatmul.bf16.gmra.mxu0 %v5743
  %v6326 = vpop.f32.mrf.mxu0
  %v6327 = vadd.f32 %v6284, %v6326
  %v6328 = vpop.f32.mrf.mxu0
  %v6329 = vadd.f32 %v6286, %v6328
  %6330 = vmatmul.bf16.gmra.mxu0 %v5751
  %v6331 = vpop.f32.mrf.mxu0
  %v6332 = vadd.f32 %v6289, %v6331
  %v6333 = vpop.f32.mrf.mxu0
  %v6334 = vadd.f32 %v6291, %v6333
  %6335 = vmatmul.bf16.gmra.mxu0 %v5759
  %v6336 = vpop.f32.mrf.mxu0
  %v6337 = vadd.f32 %v6294, %v6336
  %v6338 = vpop.f32.mrf.mxu0
  %v6339 = vadd.f32 %v6296, %v6338
  %6340 = vmatmul.bf16.gmra.mxu0 %v5767
  %v6341 = vpop.f32.mrf.mxu0
  %v6342 = vadd.f32 %v6299, %v6341
  %v6343 = vpop.f32.mrf.mxu0
  %v6344 = vadd.f32 %v6301, %v6343
  %6345 = vmatmul.bf16.gmra.mxu0 %v5775
  %v6346 = vpop.f32.mrf.mxu0
  %v6347 = vadd.f32 %v6304, %v6346
  %v6348 = vpop.f32.mrf.mxu0
  %6349 = vdwg.mxu0
  %6350 = vmatpush.bf16.msra.mxu0 %v6124
  %6351 = vmatpush.bf16.msra.mxu0 %v6123
  %6352 = vmatpush.bf16.msra.mxu0 %v6122
  %6353 = vmatpush.bf16.msra.mxu0 %v6121
  %6354 = vmatpush.bf16.msra.mxu0 %v6120
  %6355 = vmatpush.bf16.msra.mxu0 %v6119
  %6356 = vmatpush.bf16.msra.mxu0 %v6118
  %6357 = vmatpush.bf16.msra.mxu0 %v6117
  %6358 = vmatmul.bf16.gmra.mxu0 %v5728
  %v6359 = vpop.f32.mrf.mxu0
  %v6360 = vadd.f32 %v6317, %v6359
  %v6361 = vpop.f32.mrf.mxu0
  %v6362 = vadd.f32 %v6319, %v6361
  %6363 = vmatmul.bf16.gmra.mxu0 %v5736
  %v6364 = vpop.f32.mrf.mxu0
  %v6365 = vadd.f32 %v6322, %v6364
  %v6366 = vpop.f32.mrf.mxu0
  %v6367 = vadd.f32 %v6324, %v6366
  %6368 = vmatmul.bf16.gmra.mxu0 %v5744
  %v6369 = vpop.f32.mrf.mxu0
  %v6370 = vadd.f32 %v6327, %v6369
  %v6371 = vpop.f32.mrf.mxu0
  %v6372 = vadd.f32 %v6329, %v6371
  %6373 = vmatmul.bf16.gmra.mxu0 %v5752
  %v6374 = vpop.f32.mrf.mxu0
  %v6375 = vadd.f32 %v6332, %v6374
  %v6376 = vpop.f32.mrf.mxu0
  %v6377 = vadd.f32 %v6334, %v6376
  %6378 = vmatmul.bf16.gmra.mxu0 %v5760
  %v6379 = vpop.f32.mrf.mxu0
  %v6380 = vadd.f32 %v6337, %v6379
  %v6381 = vpop.f32.mrf.mxu0
  %v6382 = vadd.f32 %v6339, %v6381
  %6383 = vmatmul.bf16.gmra.mxu0 %v5768
  %v6384 = vpop.f32.mrf.mxu0
  %v6385 = vadd.f32 %v6342, %v6384
  %v6386 = vpop.f32.mrf.mxu0
  %v6387 = vadd.f32 %v6344, %v6386
  %6388 = vmatmul.bf16.gmra.mxu0 %v5776
  %v6389 = vpop.f32.mrf.mxu0
  %v6390 = vadd.f32 %v6347, %v6389
  %v6391 = vpop.f32.mrf.mxu0
  %6392 = vdwg.mxu0
  %6393 = vmatpush.bf16.msra.mxu0 %v6132
  %6394 = vmatpush.bf16.msra.mxu0 %v6131
  %6395 = vmatpush.bf16.msra.mxu0 %v6130
  %6396 = vmatpush.bf16.msra.mxu0 %v6129
  %6397 = vmatpush.bf16.msra.mxu0 %v6128
  %6398 = vmatpush.bf16.msra.mxu0 %v6127
  %6399 = vmatpush.bf16.msra.mxu0 %v6126
  %6400 = vmatpush.bf16.msra.mxu0 %v6125
  %6401 = vmatmul.bf16.gmra.mxu0 %v5729
  %v6402 = vpop.f32.mrf.mxu0
  %v6403 = vadd.f32 %v6360, %v6402
  %v6404 = vpop.f32.mrf.mxu0
  %v6405 = vadd.f32 %v6362, %v6404
  %6406 = vmatmul.bf16.gmra.mxu0 %v5737
  %v6407 = vpop.f32.mrf.mxu0
  %v6408 = vadd.f32 %v6365, %v6407
  %v6409 = vpop.f32.mrf.mxu0
  %v6410 = vadd.f32 %v6367, %v6409
  %6411 = vmatmul.bf16.gmra.mxu0 %v5745
  %v6412 = vpop.f32.mrf.mxu0
  %v6413 = vadd.f32 %v6370, %v6412
  %v6414 = vpop.f32.mrf.mxu0
  %v6415 = vadd.f32 %v6372, %v6414
  %6416 = vmatmul.bf16.gmra.mxu0 %v5753
  %v6417 = vpop.f32.mrf.mxu0
  %v6418 = vadd.f32 %v6375, %v6417
  %v6419 = vpop.f32.mrf.mxu0
  %v6420 = vadd.f32 %v6377, %v6419
  %6421 = vmatmul.bf16.gmra.mxu0 %v5761
  %v6422 = vpop.f32.mrf.mxu0
  %v6423 = vadd.f32 %v6380, %v6422
  %v6424 = vpop.f32.mrf.mxu0
  %v6425 = vadd.f32 %v6382, %v6424
  %6426 = vmatmul.bf16.gmra.mxu0 %v5769
  %v6427 = vpop.f32.mrf.mxu0
  %v6428 = vadd.f32 %v6385, %v6427
  %v6429 = vpop.f32.mrf.mxu0
  %v6430 = vadd.f32 %v6387, %v6429
  %6431 = vmatmul.bf16.gmra.mxu0 %v5777
  %v6432 = vpop.f32.mrf.mxu0
  %v6433 = vadd.f32 %v6390, %v6432
  %v6434 = vpop.f32.mrf.mxu0
  %6435 = vdwg.mxu0
  %6436 = vmatpush.bf16.msra.mxu0 %v6140
  %6437 = vmatpush.bf16.msra.mxu0 %v6139
  %6438 = vmatpush.bf16.msra.mxu0 %v6138
  %6439 = vmatpush.bf16.msra.mxu0 %v6137
  %6440 = vmatpush.bf16.msra.mxu0 %v6136
  %6441 = vmatpush.bf16.msra.mxu0 %v6135
  %6442 = vmatpush.bf16.msra.mxu0 %v6134
  %6443 = vmatpush.bf16.msra.mxu0 %v6133
  %6444 = vmatmul.bf16.gmra.mxu0 %v5730
  %v6445 = vpop.f32.mrf.mxu0
  %v6446 = vadd.f32 %v6403, %v6445
  %v6447 = vpop.f32.mrf.mxu0
  %v6448 = vadd.f32 %v6405, %v6447
  %6449 = vmatmul.bf16.gmra.mxu0 %v5738
  %v6450 = vpop.f32.mrf.mxu0
  %v6451 = vadd.f32 %v6408, %v6450
  %v6452 = vpop.f32.mrf.mxu0
  %v6453 = vadd.f32 %v6410, %v6452
  %6454 = vmatmul.bf16.gmra.mxu0 %v5746
  %v6455 = vpop.f32.mrf.mxu0
  %v6456 = vadd.f32 %v6413, %v6455
  %v6457 = vpop.f32.mrf.mxu0
  %v6458 = vadd.f32 %v6415, %v6457
  %6459 = vmatmul.bf16.gmra.mxu0 %v5754
  %v6460 = vpop.f32.mrf.mxu0
  %v6461 = vadd.f32 %v6418, %v6460
  %v6462 = vpop.f32.mrf.mxu0
  %v6463 = vadd.f32 %v6420, %v6462
  %6464 = vmatmul.bf16.gmra.mxu0 %v5762
  %v6465 = vpop.f32.mrf.mxu0
  %v6466 = vadd.f32 %v6423, %v6465
  %v6467 = vpop.f32.mrf.mxu0
  %v6468 = vadd.f32 %v6425, %v6467
  %6469 = vmatmul.bf16.gmra.mxu0 %v5770
  %v6470 = vpop.f32.mrf.mxu0
  %v6471 = vadd.f32 %v6428, %v6470
  %v6472 = vpop.f32.mrf.mxu0
  %v6473 = vadd.f32 %v6430, %v6472
  %6474 = vmatmul.bf16.gmra.mxu0 %v5778
  %v6475 = vpop.f32.mrf.mxu0
  %v6476 = vadd.f32 %v6433, %v6475
  %v6477 = vpop.f32.mrf.mxu0
  %6478 = vdwg.mxu0
  %6479 = vmatpush.bf16.msra.mxu0 %v6148
  %6480 = vmatpush.bf16.msra.mxu0 %v6147
  %6481 = vmatpush.bf16.msra.mxu0 %v6146
  %6482 = vmatpush.bf16.msra.mxu0 %v6145
  %6483 = vmatpush.bf16.msra.mxu0 %v6144
  %6484 = vmatpush.bf16.msra.mxu0 %v6143
  %6485 = vmatpush.bf16.msra.mxu0 %v6142
  %6486 = vmatpush.bf16.msra.mxu0 %v6141
  %6487 = vmatmul.bf16.gmra.mxu0 %v5731
  %v6488 = vpop.f32.mrf.mxu0
  %v6489 = vadd.f32 %v6446, %v6488
  %v6490 = vpop.f32.mrf.mxu0
  %v6491 = vadd.f32 %v6448, %v6490
  %6492 = vmatmul.bf16.gmra.mxu0 %v5739
  %v6493 = vpop.f32.mrf.mxu0
  %v6494 = vadd.f32 %v6451, %v6493
  %v6495 = vpop.f32.mrf.mxu0
  %v6496 = vadd.f32 %v6453, %v6495
  %6497 = vmatmul.bf16.gmra.mxu0 %v5747
  %v6498 = vpop.f32.mrf.mxu0
  %v6499 = vadd.f32 %v6456, %v6498
  %v6500 = vpop.f32.mrf.mxu0
  %v6501 = vadd.f32 %v6458, %v6500
  %6502 = vmatmul.bf16.gmra.mxu0 %v5755
  %v6503 = vpop.f32.mrf.mxu0
  %v6504 = vadd.f32 %v6461, %v6503
  %v6505 = vpop.f32.mrf.mxu0
  %v6506 = vadd.f32 %v6463, %v6505
  %6507 = vmatmul.bf16.gmra.mxu0 %v5763
  %v6508 = vpop.f32.mrf.mxu0
  %v6509 = vadd.f32 %v6466, %v6508
  %v6510 = vpop.f32.mrf.mxu0
  %v6511 = vadd.f32 %v6468, %v6510
  %6512 = vmatmul.bf16.gmra.mxu0 %v5771
  %v6513 = vpop.f32.mrf.mxu0
  %v6514 = vadd.f32 %v6471, %v6513
  %v6515 = vpop.f32.mrf.mxu0
  %v6516 = vadd.f32 %v6473, %v6515
  %6517 = vmatmul.bf16.gmra.mxu0 %v5779
  %v6518 = vpop.f32.mrf.mxu0
  %v6519 = vadd.f32 %v6476, %v6518
  %v6520 = vpop.f32.mrf.mxu0
  %6521 = vdwg.mxu0
  %6522 = vmatpush.bf16.msra.mxu0 %v6156
  %6523 = vmatpush.bf16.msra.mxu0 %v6155
  %6524 = vmatpush.bf16.msra.mxu0 %v6154
  %6525 = vmatpush.bf16.msra.mxu0 %v6153
  %6526 = vmatpush.bf16.msra.mxu0 %v6152
  %6527 = vmatpush.bf16.msra.mxu0 %v6151
  %6528 = vmatpush.bf16.msra.mxu0 %v6150
  %6529 = vmatpush.bf16.msra.mxu0 %v6149
  %6530 = vmatmul.bf16.gmra.mxu0 %v5732
  %v6531 = vpop.f32.mrf.mxu0
  %v6532 = vadd.f32 %v6489, %v6531
  %v6533 = vpop.f32.mrf.mxu0
  %v6534 = vadd.f32 %v6491, %v6533
  %6535 = vmatmul.bf16.gmra.mxu0 %v5740
  %v6536 = vpop.f32.mrf.mxu0
  %v6537 = vadd.f32 %v6494, %v6536
  %v6538 = vpop.f32.mrf.mxu0
  %v6539 = vadd.f32 %v6496, %v6538
  %6540 = vmatmul.bf16.gmra.mxu0 %v5748
  %v6541 = vpop.f32.mrf.mxu0
  %v6542 = vadd.f32 %v6499, %v6541
  %v6543 = vpop.f32.mrf.mxu0
  %v6544 = vadd.f32 %v6501, %v6543
  %6545 = vmatmul.bf16.gmra.mxu0 %v5756
  %v6546 = vpop.f32.mrf.mxu0
  %v6547 = vadd.f32 %v6504, %v6546
  %v6548 = vpop.f32.mrf.mxu0
  %v6549 = vadd.f32 %v6506, %v6548
  %6550 = vmatmul.bf16.gmra.mxu0 %v5764
  %v6551 = vpop.f32.mrf.mxu0
  %v6552 = vadd.f32 %v6509, %v6551
  %v6553 = vpop.f32.mrf.mxu0
  %v6554 = vadd.f32 %v6511, %v6553
  %6555 = vmatmul.bf16.gmra.mxu0 %v5772
  %v6556 = vpop.f32.mrf.mxu0
  %v6557 = vadd.f32 %v6514, %v6556
  %v6558 = vpop.f32.mrf.mxu0
  %v6559 = vadd.f32 %v6516, %v6558
  %6560 = vmatmul.bf16.gmra.mxu0 %v5780
  %v6561 = vpop.f32.mrf.mxu0
  %v6562 = vadd.f32 %v6519, %v6561
  %v6563 = vpop.f32.mrf.mxu0
  %6564 = vdwg.mxu0
  %vm6565 = vcmp.gt.f32.partialorder %v6532, 0.0
  %vm6566 = vcmp.gt.f32.partialorder %v6534, 0.0
  %vm6567 = vcmp.gt.f32.partialorder %v6537, 0.0
  %vm6568 = vcmp.gt.f32.partialorder %v6539, 0.0
  %vm6569 = vcmp.gt.f32.partialorder %v6542, 0.0
  %vm6570 = vcmp.gt.f32.partialorder %v6544, 0.0
  %vm6571 = vcmp.gt.f32.partialorder %v6547, 0.0
  %vm6572 = vcmp.gt.f32.partialorder %v6549, 0.0
  %vm6573 = vcmp.gt.f32.partialorder %v6552, 0.0
  %vm6574 = vcmp.gt.f32.partialorder %v6554, 0.0
  %vm6575 = vcmp.gt.f32.partialorder %v6557, 0.0
  %vm6576 = vcmp.gt.f32.partialorder %v6559, 0.0
  %vm6577 = vcmp.gt.f32.partialorder %v6562, 0.0
  %v6578 = vmul.f32 %v6532, 0.01
  %v6579 = vmul.f32 %v6534, 0.01
  %v6580 = vmul.f32 %v6537, 0.01
  %v6581 = vmul.f32 %v6539, 0.01
  %v6582 = vmul.f32 %v6542, 0.01
  %v6583 = vmul.f32 %v6544, 0.01
  %v6584 = vmul.f32 %v6547, 0.01
  %v6585 = vmul.f32 %v6549, 0.01
  %v6586 = vmul.f32 %v6552, 0.01
  %v6587 = vmul.f32 %v6554, 0.01
  %v6588 = vmul.f32 %v6557, 0.01
  %v6589 = vmul.f32 %v6559, 0.01
  %v6590 = vmul.f32 %v6562, 0.01
  %v6591 = vsel %vm6565, %v6532, %v6578
  %v6592 = vsel %vm6566, %v6534, %v6579
  %v6593 = vsel %vm6567, %v6537, %v6580
  %v6594 = vsel %vm6568, %v6539, %v6581
  %v6595 = vsel %vm6569, %v6542, %v6582
  %v6596 = vsel %vm6570, %v6544, %v6583
  %v6597 = vsel %vm6571, %v6547, %v6584
  %v6598 = vsel %vm6572, %v6549, %v6585
  %v6599 = vsel %vm6573, %v6552, %v6586
  %v6600 = vsel %vm6574, %v6554, %v6587
  %v6601 = vsel %vm6575, %v6557, %v6588
  %v6602 = vsel %vm6576, %v6559, %v6589
  %v6603 = vsel %vm6577, %v6562, %v6590
  %v6604 = vpack.c.bf16 %v6592, %v6591
  %v6605 = vpack.c.bf16 %v6594, %v6593
  %v6606 = vpack.c.bf16 %v6596, %v6595
  %v6607 = vpack.c.bf16 %v6598, %v6597
  %v6608 = vpack.c.bf16 %v6600, %v6599
  %v6609 = vpack.c.bf16 %v6602, %v6601
  %v6610 = vpack.c.bf16 %v6603, %v6603
  %v6611 = vld [vmem:[%s5] sm:$0xf]
  %v6612 = vld [vmem:[%s5 + $0x4] sm:$0xf]
  %v6613 = vld [vmem:[%s5 + $0x8] sm:$0xf]
  %v6614 = vld [vmem:[%s5 + $0xc] sm:$0xf]
  %v6615 = vld [vmem:[%s5 + $0x10] sm:$0xf]
  %v6616 = vld [vmem:[%s5 + $0x14] sm:$0xf]
  %v6617 = vld [vmem:[%s5 + $0x18] sm:$0xf]
  %v6618 = vld [vmem:[%s5 + $0x1c] sm:$0xf]
  %v6619 = vld [vmem:[%s5 + $0x20] sm:$0xf]
  %v6620 = vld [vmem:[%s5 + $0x24] sm:$0xf]
  %v6621 = vld [vmem:[%s5 + $0x28] sm:$0xf]
  %v6622 = vld [vmem:[%s5 + $0x2c] sm:$0xf]
  %v6623 = vld [vmem:[%s5 + $0x30] sm:$0xf]
  %v6624 = vld [vmem:[%s5 + $0x34] sm:$0xf]
  %v6625 = vld [vmem:[%s5 + $0x38] sm:$0xf]
  %v6626 = vld [vmem:[%s5 + $0x3c] sm:$0xf]
  %v6627 = vld [vmem:[%s5 + $0x40] sm:$0xf]
  %v6628 = vld [vmem:[%s5 + $0x44] sm:$0xf]
  %v6629 = vld [vmem:[%s5 + $0x48] sm:$0xf]
  %v6630 = vld [vmem:[%s5 + $0x4c] sm:$0xf]
  %v6631 = vld [vmem:[%s5 + $0x50] sm:$0xf]
  %v6632 = vld [vmem:[%s5 + $0x54] sm:$0xf]
  %v6633 = vld [vmem:[%s5 + $0x58] sm:$0xf]
  %v6634 = vld [vmem:[%s5 + $0x5c] sm:$0xf]
  %v6635 = vld [vmem:[%s5 + $0x60] sm:$0xf]
  %v6636 = vld [vmem:[%s5 + $0x64] sm:$0xf]
  %v6637 = vld [vmem:[%s5 + $0x68] sm:$0xf]
  %v6638 = vld [vmem:[%s5 + $0x6c] sm:$0xf]
  %v6639 = vld [vmem:[%s5 + $0x70] sm:$0xf]
  %v6640 = vld [vmem:[%s5 + $0x74] sm:$0xf]
  %v6641 = vld [vmem:[%s5 + $0x78] sm:$0xf]
  %v6642 = vld [vmem:[%s5 + $0x7c] sm:$0xf]
  %v6643 = vld [vmem:[%s5 + $0x80] sm:$0xf]
  %v6644 = vld [vmem:[%s5 + $0x84] sm:$0xf]
  %v6645 = vld [vmem:[%s5 + $0x88] sm:$0xf]
  %v6646 = vld [vmem:[%s5 + $0x8c] sm:$0xf]
  %v6683 = vunpack.c.l.b16 %v6611
  %v6684 = vunpack.c.l.b16 %v6612
  %v6685 = vunpack.c.l.b16 %v6613
  %v6686 = vunpack.c.l.b16 %v6614
  %v6687 = vunpack.c.l.b16 %v6615
  %v6688 = vunpack.c.l.b16 %v6616
  %v6689 = vunpack.c.l.b16 %v6617
  %v6690 = vunpack.c.l.b16 %v6618
  %v6691 = vunpack.c.l.b16 %v6619
  %v6692 = vunpack.c.l.b16 %v6620
  %v6693 = vunpack.c.l.b16 %v6621
  %v6694 = vunpack.c.l.b16 %v6622
  %v6695 = vunpack.c.l.b16 %v6623
  %v6696 = vunpack.c.l.b16 %v6624
  %v6697 = vunpack.c.l.b16 %v6625
  %v6698 = vunpack.c.l.b16 %v6626
  %v6699 = vunpack.c.l.b16 %v6627
  %v6700 = vunpack.c.l.b16 %v6628
  %v6701 = vunpack.c.l.b16 %v6629
  %v6702 = vunpack.c.l.b16 %v6630
  %v6703 = vunpack.c.l.b16 %v6631
  %v6704 = vunpack.c.l.b16 %v6632
  %v6705 = vunpack.c.l.b16 %v6633
  %v6706 = vunpack.c.l.b16 %v6634
  %v6707 = vunpack.c.l.b16 %v6635
  %v6708 = vunpack.c.l.b16 %v6636
  %v6709 = vunpack.c.l.b16 %v6637
  %v6710 = vunpack.c.l.b16 %v6638
  %v6711 = vunpack.c.l.b16 %v6639
  %v6712 = vunpack.c.l.b16 %v6640
  %v6713 = vunpack.c.l.b16 %v6641
  %v6714 = vunpack.c.l.b16 %v6642
  %v6715 = vunpack.c.l.b16 %v6643
  %v6716 = vunpack.c.l.b16 %v6644
  %v6717 = vunpack.c.l.b16 %v6645
  %v6718 = vunpack.c.l.b16 %v6646
  %v6719 = vpack.c.b16 %v6684, %v6683
  %v6720 = vpack.c.b16 %v6686, %v6685
  %v6721 = vpack.c.b16 %v6688, %v6687
  %v6722 = vpack.c.b16 %v6690, %v6689
  %v6723 = vpack.c.b16 %v6692, %v6691
  %v6724 = vpack.c.b16 %v6694, %v6693
  %v6725 = vpack.c.b16 %v6696, %v6695
  %v6726 = vpack.c.b16 %v6698, %v6697
  %v6727 = vpack.c.b16 %v6700, %v6699
  %v6728 = vpack.c.b16 %v6702, %v6701
  %v6729 = vpack.c.b16 %v6704, %v6703
  %v6730 = vpack.c.b16 %v6706, %v6705
  %v6731 = vpack.c.b16 %v6708, %v6707
  %v6732 = vpack.c.b16 %v6710, %v6709
  %v6733 = vpack.c.b16 %v6712, %v6711
  %v6734 = vpack.c.b16 %v6714, %v6713
  %v6735 = vpack.c.b16 %v6716, %v6715
  %v6736 = vpack.c.b16 %v6718, %v6717
  %vm6737 = vcmask 801792
  %v6739 = vsel %vm6737, %v6719, 0
  %v6742 = vsel %vm6737, %v6720, 0
  %v6745 = vsel %vm6737, %v6721, 0
  %v6748 = vsel %vm6737, %v6722, 0
  %v6751 = vsel %vm6737, %v6723, 0
  %v6754 = vsel %vm6737, %v6724, 0
  %v6757 = vsel %vm6737, %v6725, 0
  %v6760 = vsel %vm6737, %v6726, 0
  %v6763 = vsel %vm6737, %v6727, 0
  %v6766 = vsel %vm6737, %v6728, 0
  %v6769 = vsel %vm6737, %v6729, 0
  %v6772 = vsel %vm6737, %v6730, 0
  %v6775 = vsel %vm6737, %v6731, 0
  %v6778 = vsel %vm6737, %v6732, 0
  %v6781 = vsel %vm6737, %v6733, 0
  %v6784 = vsel %vm6737, %v6734, 0
  %v6787 = vsel %vm6737, %v6735, 0
  %v6790 = vsel %vm6737, %v6736, 0
  %vm6792 = vcmask 1040384
  %v6794 = vsel %vm6792, %v6610, 0
  %6796 = vmatpush.bf16.msra.mxu0 0
  %6797 = vmatpush.bf16.msra.mxu0 %v6794
  %6798 = vmatpush.bf16.msra.mxu0 %v6609
  %6799 = vmatpush.bf16.msra.mxu0 %v6608
  %6800 = vmatpush.bf16.msra.mxu0 %v6607
  %6801 = vmatpush.bf16.msra.mxu0 %v6606
  %6802 = vmatpush.bf16.msra.mxu0 %v6605
  %6803 = vmatpush.bf16.msra.mxu0 %v6604
  %6804 = vmatmul.bf16.gmra.mxu0 %v6739
  %v6805 = vpop.f32.mrf.mxu0
  %v6806 = vadd.f32 0.0, %v6805
  %v6807 = vpop.f32.mrf.mxu0
  %v6808 = vadd.f32 0.0, %v6807
  %6809 = vmatmul.bf16.gmra.mxu0 %v6742
  %v6810 = vpop.f32.mrf.mxu0
  %v6811 = vadd.f32 0.0, %v6810
  %v6812 = vpop.f32.mrf.mxu0
  %v6813 = vadd.f32 0.0, %v6812
  %6814 = vmatmul.bf16.gmra.mxu0 %v6745
  %v6815 = vpop.f32.mrf.mxu0
  %v6816 = vadd.f32 0.0, %v6815
  %v6817 = vpop.f32.mrf.mxu0
  %v6818 = vadd.f32 0.0, %v6817
  %6819 = vmatmul.bf16.gmra.mxu0 %v6748
  %v6820 = vpop.f32.mrf.mxu0
  %v6821 = vadd.f32 0.0, %v6820
  %v6822 = vpop.f32.mrf.mxu0
  %v6823 = vadd.f32 0.0, %v6822
  %6824 = vmatmul.bf16.gmra.mxu0 %v6751
  %v6825 = vpop.f32.mrf.mxu0
  %v6826 = vadd.f32 0.0, %v6825
  %v6827 = vpop.f32.mrf.mxu0
  %v6828 = vadd.f32 0.0, %v6827
  %6829 = vmatmul.bf16.gmra.mxu0 %v6754
  %v6830 = vpop.f32.mrf.mxu0
  %v6831 = vadd.f32 0.0, %v6830
  %v6832 = vpop.f32.mrf.mxu0
  %v6833 = vadd.f32 0.0, %v6832
  %6834 = vmatmul.bf16.gmra.mxu0 %v6757
  %v6835 = vpop.f32.mrf.mxu0
  %v6836 = vadd.f32 0.0, %v6835
  %v6837 = vpop.f32.mrf.mxu0
  %v6838 = vadd.f32 0.0, %v6837
  %6839 = vmatmul.bf16.gmra.mxu0 %v6760
  %v6840 = vpop.f32.mrf.mxu0
  %v6841 = vadd.f32 0.0, %v6840
  %v6842 = vpop.f32.mrf.mxu0
  %v6843 = vadd.f32 0.0, %v6842
  %6844 = vmatmul.bf16.gmra.mxu0 %v6763
  %v6845 = vpop.f32.mrf.mxu0
  %v6846 = vadd.f32 0.0, %v6845
  %v6847 = vpop.f32.mrf.mxu0
  %v6848 = vadd.f32 0.0, %v6847
  %6849 = vmatmul.bf16.gmra.mxu0 %v6766
  %v6850 = vpop.f32.mrf.mxu0
  %v6851 = vadd.f32 0.0, %v6850
  %v6852 = vpop.f32.mrf.mxu0
  %v6853 = vadd.f32 0.0, %v6852
  %6854 = vmatmul.bf16.gmra.mxu0 %v6769
  %v6855 = vpop.f32.mrf.mxu0
  %v6856 = vadd.f32 0.0, %v6855
  %v6857 = vpop.f32.mrf.mxu0
  %v6858 = vadd.f32 0.0, %v6857
  %6859 = vmatmul.bf16.gmra.mxu0 %v6772
  %v6860 = vpop.f32.mrf.mxu0
  %v6861 = vadd.f32 0.0, %v6860
  %v6862 = vpop.f32.mrf.mxu0
  %v6863 = vadd.f32 0.0, %v6862
  %6864 = vmatmul.bf16.gmra.mxu0 %v6775
  %v6865 = vpop.f32.mrf.mxu0
  %v6866 = vadd.f32 0.0, %v6865
  %v6867 = vpop.f32.mrf.mxu0
  %v6868 = vadd.f32 0.0, %v6867
  %6869 = vmatmul.bf16.gmra.mxu0 %v6778
  %v6870 = vpop.f32.mrf.mxu0
  %v6871 = vadd.f32 0.0, %v6870
  %v6872 = vpop.f32.mrf.mxu0
  %v6873 = vadd.f32 0.0, %v6872
  %6874 = vmatmul.bf16.gmra.mxu0 %v6781
  %v6875 = vpop.f32.mrf.mxu0
  %v6876 = vadd.f32 0.0, %v6875
  %v6877 = vpop.f32.mrf.mxu0
  %v6878 = vadd.f32 0.0, %v6877
  %6879 = vmatmul.bf16.gmra.mxu0 %v6784
  %v6880 = vpop.f32.mrf.mxu0
  %v6881 = vadd.f32 0.0, %v6880
  %v6882 = vpop.f32.mrf.mxu0
  %v6883 = vadd.f32 0.0, %v6882
  %6884 = vmatmul.bf16.gmra.mxu0 %v6787
  %v6885 = vpop.f32.mrf.mxu0
  %v6886 = vadd.f32 0.0, %v6885
  %v6887 = vpop.f32.mrf.mxu0
  %v6888 = vadd.f32 0.0, %v6887
  %6889 = vmatmul.bf16.gmra.mxu0 %v6790
  %v6890 = vpop.f32.mrf.mxu0
  %v6891 = vadd.f32 0.0, %v6890
  %v6892 = vpop.f32.mrf.mxu0
  %v6893 = vadd.f32 0.0, %v6892
  %6894 = vdwg.mxu0
  %v6895 = vpack.c.bf16 %v6806, %v6806
  %v6896 = vpack.c.bf16 %v6808, %v6808
  %v6897 = vpack.c.bf16 %v6811, %v6811
  %v6898 = vpack.c.bf16 %v6813, %v6813
  %v6899 = vpack.c.bf16 %v6816, %v6816
  %v6900 = vpack.c.bf16 %v6818, %v6818
  %v6901 = vpack.c.bf16 %v6821, %v6821
  %v6902 = vpack.c.bf16 %v6823, %v6823
  %v6903 = vpack.c.bf16 %v6826, %v6826
  %v6904 = vpack.c.bf16 %v6828, %v6828
  %v6905 = vpack.c.bf16 %v6831, %v6831
  %v6906 = vpack.c.bf16 %v6833, %v6833
  %v6907 = vpack.c.bf16 %v6836, %v6836
  %v6908 = vpack.c.bf16 %v6838, %v6838
  %v6909 = vpack.c.bf16 %v6841, %v6841
  %v6910 = vpack.c.bf16 %v6843, %v6843
  %v6911 = vpack.c.bf16 %v6846, %v6846
  %v6912 = vpack.c.bf16 %v6848, %v6848
  %v6913 = vpack.c.bf16 %v6851, %v6851
  %v6914 = vpack.c.bf16 %v6853, %v6853
  %v6915 = vpack.c.bf16 %v6856, %v6856
  %v6916 = vpack.c.bf16 %v6858, %v6858
  %v6917 = vpack.c.bf16 %v6861, %v6861
  %v6918 = vpack.c.bf16 %v6863, %v6863
  %v6919 = vpack.c.bf16 %v6866, %v6866
  %v6920 = vpack.c.bf16 %v6868, %v6868
  %v6921 = vpack.c.bf16 %v6871, %v6871
  %v6922 = vpack.c.bf16 %v6873, %v6873
  %v6923 = vpack.c.bf16 %v6876, %v6876
  %v6924 = vpack.c.bf16 %v6878, %v6878
  %v6925 = vpack.c.bf16 %v6881, %v6881
  %v6926 = vpack.c.bf16 %v6883, %v6883
  %v6927 = vpack.c.bf16 %v6886, %v6886
  %v6928 = vpack.c.bf16 %v6888, %v6888
  %v6929 = vpack.c.bf16 %v6891, %v6891
  %v6930 = vpack.c.bf16 %v6893, %v6893
  %6931 = vst [vmem:[#allocation3] sm:$0xf] %v6895
  %6932 = vst [vmem:[#allocation3 + $0x4] sm:$0xf] %v6896
  %6933 = vst [vmem:[#allocation3 + $0x8] sm:$0xf] %v6897
  %6934 = vst [vmem:[#allocation3 + $0xc] sm:$0xf] %v6898
  %6935 = vst [vmem:[#allocation3 + $0x10] sm:$0xf] %v6899
  %6936 = vst [vmem:[#allocation3 + $0x14] sm:$0xf] %v6900
  %6937 = vst [vmem:[#allocation3 + $0x18] sm:$0xf] %v6901
  %6938 = vst [vmem:[#allocation3 + $0x1c] sm:$0xf] %v6902
  %6939 = vst [vmem:[#allocation3 + $0x20] sm:$0xf] %v6903
  %6940 = vst [vmem:[#allocation3 + $0x24] sm:$0xf] %v6904
  %6941 = vst [vmem:[#allocation3 + $0x28] sm:$0xf] %v6905
  %6942 = vst [vmem:[#allocation3 + $0x2c] sm:$0xf] %v6906
  %6943 = vst [vmem:[#allocation3 + $0x30] sm:$0xf] %v6907
  %6944 = vst [vmem:[#allocation3 + $0x34] sm:$0xf] %v6908
  %6945 = vst [vmem:[#allocation3 + $0x38] sm:$0xf] %v6909
  %6946 = vst [vmem:[#allocation3 + $0x3c] sm:$0xf] %v6910
  %6947 = vst [vmem:[#allocation3 + $0x40] sm:$0xf] %v6911
  %6948 = vst [vmem:[#allocation3 + $0x44] sm:$0xf] %v6912
  %6949 = vst [vmem:[#allocation3 + $0x48] sm:$0xf] %v6913
  %6950 = vst [vmem:[#allocation3 + $0x4c] sm:$0xf] %v6914
  %6951 = vst [vmem:[#allocation3 + $0x50] sm:$0xf] %v6915
  %6952 = vst [vmem:[#allocation3 + $0x54] sm:$0xf] %v6916
  %6953 = vst [vmem:[#allocation3 + $0x58] sm:$0xf] %v6917
  %6954 = vst [vmem:[#allocation3 + $0x5c] sm:$0xf] %v6918
  %6955 = vst [vmem:[#allocation3 + $0x60] sm:$0xf] %v6919
  %6956 = vst [vmem:[#allocation3 + $0x64] sm:$0xf] %v6920
  %6957 = vst [vmem:[#allocation3 + $0x68] sm:$0xf] %v6921
  %6958 = vst [vmem:[#allocation3 + $0x6c] sm:$0xf] %v6922
  %6959 = vst [vmem:[#allocation3 + $0x70] sm:$0xf] %v6923
  %6960 = vst [vmem:[#allocation3 + $0x74] sm:$0xf] %v6924
  %6961 = vst [vmem:[#allocation3 + $0x78] sm:$0xf] %v6925
  %6962 = vst [vmem:[#allocation3 + $0x7c] sm:$0xf] %v6926
  %6963 = vst [vmem:[#allocation3 + $0x80] sm:$0xf] %v6927
  %6964 = vst [vmem:[#allocation3 + $0x84] sm:$0xf] %v6928
  %6965 = vst [vmem:[#allocation3 + $0x88] sm:$0xf] %v6929
  %6966 = vst [vmem:[#allocation3 + $0x8c] sm:$0xf] %v6930
  %v6967 = vld [vmem:[#allocation3] sm:$0xf]
  %v6968 = vld [vmem:[#allocation3 + $0x4] sm:$0xf]
  %v6969 = vld [vmem:[#allocation3 + $0x8] sm:$0xf]
  %v6970 = vld [vmem:[#allocation3 + $0xc] sm:$0xf]
  %6971 = vst [vmem:[#allocation5] sm:$0xf] %v6967
  %6972 = vst [vmem:[#allocation5 + $0x24] sm:$0xf] %v6968
  %6973 = vst [vmem:[#allocation5 + $0x48] sm:$0xf] %v6969
  %6974 = vst [vmem:[#allocation5 + $0x6c] sm:$0xf] %v6970
  %v6975 = vld [vmem:[#allocation3 + $0x10] sm:$0xf]
  %v6976 = vld [vmem:[#allocation3 + $0x14] sm:$0xf]
  %v6977 = vld [vmem:[#allocation3 + $0x18] sm:$0xf]
  %v6978 = vld [vmem:[#allocation3 + $0x1c] sm:$0xf]
  %6979 = vst [vmem:[#allocation5 + $0x4] sm:$0xf] %v6975
  %6980 = vst [vmem:[#allocation5 + $0x28] sm:$0xf] %v6976
  %6981 = vst [vmem:[#allocation5 + $0x4c] sm:$0xf] %v6977
  %6982 = vst [vmem:[#allocation5 + $0x70] sm:$0xf] %v6978
  %v6983 = vld [vmem:[#allocation3 + $0x20] sm:$0xf]
  %v6984 = vld [vmem:[#allocation3 + $0x24] sm:$0xf]
  %v6985 = vld [vmem:[#allocation3 + $0x28] sm:$0xf]
  %v6986 = vld [vmem:[#allocation3 + $0x2c] sm:$0xf]
  %6987 = vst [vmem:[#allocation5 + $0x8] sm:$0xf] %v6983
  %6988 = vst [vmem:[#allocation5 + $0x2c] sm:$0xf] %v6984
  %6989 = vst [vmem:[#allocation5 + $0x50] sm:$0xf] %v6985
  %6990 = vst [vmem:[#allocation5 + $0x74] sm:$0xf] %v6986
  %v6991 = vld [vmem:[#allocation3 + $0x30] sm:$0xf]
  %v6992 = vld [vmem:[#allocation3 + $0x34] sm:$0xf]
  %v6993 = vld [vmem:[#allocation3 + $0x38] sm:$0xf]
  %v6994 = vld [vmem:[#allocation3 + $0x3c] sm:$0xf]
  %6995 = vst [vmem:[#allocation5 + $0xc] sm:$0xf] %v6991
  %6996 = vst [vmem:[#allocation5 + $0x30] sm:$0xf] %v6992
  %6997 = vst [vmem:[#allocation5 + $0x54] sm:$0xf] %v6993
  %6998 = vst [vmem:[#allocation5 + $0x78] sm:$0xf] %v6994
  %v6999 = vld [vmem:[#allocation3 + $0x40] sm:$0xf]
  %v7000 = vld [vmem:[#allocation3 + $0x44] sm:$0xf]
  %v7001 = vld [vmem:[#allocation3 + $0x48] sm:$0xf]
  %v7002 = vld [vmem:[#allocation3 + $0x4c] sm:$0xf]
  %7003 = vst [vmem:[#allocation5 + $0x10] sm:$0xf] %v6999
  %7004 = vst [vmem:[#allocation5 + $0x34] sm:$0xf] %v7000
  %7005 = vst [vmem:[#allocation5 + $0x58] sm:$0xf] %v7001
  %7006 = vst [vmem:[#allocation5 + $0x7c] sm:$0xf] %v7002
  %v7007 = vld [vmem:[#allocation3 + $0x50] sm:$0xf]
  %v7008 = vld [vmem:[#allocation3 + $0x54] sm:$0xf]
  %v7009 = vld [vmem:[#allocation3 + $0x58] sm:$0xf]
  %v7010 = vld [vmem:[#allocation3 + $0x5c] sm:$0xf]
  %7011 = vst [vmem:[#allocation5 + $0x14] sm:$0xf] %v7007
  %7012 = vst [vmem:[#allocation5 + $0x38] sm:$0xf] %v7008
  %7013 = vst [vmem:[#allocation5 + $0x5c] sm:$0xf] %v7009
  %7014 = vst [vmem:[#allocation5 + $0x80] sm:$0xf] %v7010
  %v7015 = vld [vmem:[#allocation3 + $0x60] sm:$0xf]
  %v7016 = vld [vmem:[#allocation3 + $0x64] sm:$0xf]
  %v7017 = vld [vmem:[#allocation3 + $0x68] sm:$0xf]
  %v7018 = vld [vmem:[#allocation3 + $0x6c] sm:$0xf]
  %7019 = vst [vmem:[#allocation5 + $0x18] sm:$0xf] %v7015
  %7020 = vst [vmem:[#allocation5 + $0x3c] sm:$0xf] %v7016
  %7021 = vst [vmem:[#allocation5 + $0x60] sm:$0xf] %v7017
  %7022 = vst [vmem:[#allocation5 + $0x84] sm:$0xf] %v7018
  %v7023 = vld [vmem:[#allocation3 + $0x70] sm:$0xf]
  %v7024 = vld [vmem:[#allocation3 + $0x74] sm:$0xf]
  %v7025 = vld [vmem:[#allocation3 + $0x78] sm:$0xf]
  %v7026 = vld [vmem:[#allocation3 + $0x7c] sm:$0xf]
  %7027 = vst [vmem:[#allocation5 + $0x1c] sm:$0xf] %v7023
  %7028 = vst [vmem:[#allocation5 + $0x40] sm:$0xf] %v7024
  %7029 = vst [vmem:[#allocation5 + $0x64] sm:$0xf] %v7025
  %7030 = vst [vmem:[#allocation5 + $0x88] sm:$0xf] %v7026
  %v7031 = vld [vmem:[#allocation3 + $0x80] sm:$0xf]
  %v7032 = vld [vmem:[#allocation3 + $0x84] sm:$0xf]
  %v7033 = vld [vmem:[#allocation3 + $0x88] sm:$0xf]
  %v7034 = vld [vmem:[#allocation3 + $0x8c] sm:$0xf]
  %7035 = vst [vmem:[#allocation5 + $0x20] sm:$0xf] %v7031
  %7036 = vst [vmem:[#allocation5 + $0x44] sm:$0xf] %v7032
  %7037 = vst [vmem:[#allocation5 + $0x68] sm:$0xf] %v7033
  %7038 = vst [vmem:[#allocation5 + $0x8c] sm:$0xf] %v7034
  %v7039 = vld [vmem:[#allocation5] sm:$0xff]
  %v7040 = vld [vmem:[#allocation5 + $0x8] sm:$0xff]
  %v7041 = vld [vmem:[#allocation5 + $0x10] sm:$0xff]
  %v7042 = vld [vmem:[#allocation5 + $0x18] sm:$0xff]
  %v7043 = vld [vmem:[#allocation5 + $0x20] sm:$0xf]
  %v7044 = vld [vmem:[#allocation5 + $0x24] sm:$0xff]
  %v7045 = vld [vmem:[#allocation5 + $0x2c] sm:$0xff]
  %v7046 = vld [vmem:[#allocation5 + $0x34] sm:$0xff]
  %v7047 = vld [vmem:[#allocation5 + $0x3c] sm:$0xff]
  %v7048 = vld [vmem:[#allocation5 + $0x44] sm:$0xf]
  %v7049 = vld [vmem:[#allocation5 + $0x48] sm:$0xff]
  %v7050 = vld [vmem:[#allocation5 + $0x50] sm:$0xff]
  %v7051 = vld [vmem:[#allocation5 + $0x58] sm:$0xff]
  %v7052 = vld [vmem:[#allocation5 + $0x60] sm:$0xff]
  %v7053 = vld [vmem:[#allocation5 + $0x68] sm:$0xf]
  %v7054 = vld [vmem:[#allocation5 + $0x6c] sm:$0xff]
  %v7055 = vld [vmem:[#allocation5 + $0x74] sm:$0xff]
  %v7056 = vld [vmem:[#allocation5 + $0x7c] sm:$0xff]
  %v7057 = vld [vmem:[#allocation5 + $0x84] sm:$0xff]
  %v7058 = vld [vmem:[#allocation5 + $0x8c] sm:$0xf]
  %v7059 = vld [vmem:[%s6] sm:$0xff]
  %v7060 = vld [vmem:[%s6 + $0x8] sm:$0xff]
  %v7061 = vld [vmem:[%s6 + $0x10] sm:$0xff]
  %v7062 = vld [vmem:[%s6 + $0x18] sm:$0xff]
  %v7063 = vld [vmem:[%s6 + $0x20] sm:$0xff]
  %v7064 = vld [vmem:[%s6 + $0x28] sm:$0xff]
  %v7065 = vld [vmem:[%s6 + $0x30] sm:$0xff]
  %v7066 = vld [vmem:[%s6 + $0x38] sm:$0xff]
  %v7067 = vld [vmem:[%s6 + $0x40] sm:$0xff]
  %v7068 = vld [vmem:[%s6 + $0x48] sm:$0xff]
  %v7069 = vld [vmem:[%s6 + $0x50] sm:$0xff]
  %v7070 = vld [vmem:[%s6 + $0x58] sm:$0xff]
  %v7071 = vld [vmem:[%s6 + $0x60] sm:$0xff]
  %v7072 = vld [vmem:[%s6 + $0x68] sm:$0xff]
  %v7073 = vld [vmem:[%s6 + $0x70] sm:$0xff]
  %v7074 = vld [vmem:[%s6 + $0x78] sm:$0xff]
  %v7075 = vld [vmem:[%s6 + $0x80] sm:$0xff]
  %v7076 = vld [vmem:[%s6 + $0x88] sm:$0xff]
  %v7077 = vld [vmem:[%s6 + $0x90] sm:$0xff]
  %v7078 = vld [vmem:[%s6 + $0x98] sm:$0xff]
  %v7079 = vld [vmem:[%s6 + $0xa0] sm:$0xff]
  %v7080 = vld [vmem:[%s6 + $0xa8] sm:$0xff]
  %v7081 = vld [vmem:[%s6 + $0xb0] sm:$0xff]
  %v7082 = vld [vmem:[%s6 + $0xb8] sm:$0xff]
  %v7083 = vld [vmem:[%s6 + $0xc0] sm:$0xff]
  %v7084 = vld [vmem:[%s6 + $0xc8] sm:$0xff]
  %v7085 = vld [vmem:[%s6 + $0xd0] sm:$0xff]
  %v7086 = vld [vmem:[%s6 + $0xd8] sm:$0xff]
  %v7087 = vld [vmem:[%s6 + $0xe0] sm:$0xff]
  %v7088 = vld [vmem:[%s6 + $0xe8] sm:$0xff]
  %v7089 = vld [vmem:[%s6 + $0xf0] sm:$0xff]
  %v7090 = vld [vmem:[%s6 + $0xf8] sm:$0xff]
  %v7091 = vld [vmem:[%s6 + $0x100] sm:$0xff]
  %v7092 = vld [vmem:[%s6 + $0x108] sm:$0xff]
  %v7093 = vld [vmem:[%s6 + $0x110] sm:$0xff]
  %v7094 = vld [vmem:[%s6 + $0x118] sm:$0xff]
  %v7095 = vld [vmem:[%s6 + $0x120] sm:$0xff]
  %v7096 = vld [vmem:[%s6 + $0x128] sm:$0xff]
  %v7097 = vld [vmem:[%s6 + $0x130] sm:$0xff]
  %v7098 = vld [vmem:[%s6 + $0x138] sm:$0xff]
  %v7099 = vld [vmem:[%s6 + $0x140] sm:$0xff]
  %v7100 = vld [vmem:[%s6 + $0x148] sm:$0xff]
  %v7101 = vld [vmem:[%s6 + $0x150] sm:$0xff]
  %v7102 = vld [vmem:[%s6 + $0x158] sm:$0xff]
  %v7103 = vld [vmem:[%s6 + $0x160] sm:$0xff]
  %v7104 = vld [vmem:[%s6 + $0x168] sm:$0xff]
  %v7105 = vld [vmem:[%s6 + $0x170] sm:$0xff]
  %v7106 = vld [vmem:[%s6 + $0x178] sm:$0xff]
  %v7107 = vld [vmem:[%s6 + $0x180] sm:$0xff]
  %v7108 = vld [vmem:[%s6 + $0x188] sm:$0xff]
  %v7109 = vld [vmem:[%s6 + $0x190] sm:$0xff]
  %v7110 = vld [vmem:[%s6 + $0x198] sm:$0xff]
  %v7111 = vld [vmem:[%s6 + $0x1a0] sm:$0xff]
  %v7112 = vld [vmem:[%s6 + $0x1a8] sm:$0xff]
  %v7113 = vld [vmem:[%s6 + $0x1b0] sm:$0xff]
  %v7114 = vld [vmem:[%s6 + $0x1b8] sm:$0xff]
  %v7115 = vld [vmem:[%s6 + $0x1c0] sm:$0xff]
  %v7116 = vld [vmem:[%s6 + $0x1c8] sm:$0xff]
  %v7117 = vld [vmem:[%s6 + $0x1d0] sm:$0xff]
  %v7118 = vld [vmem:[%s6 + $0x1d8] sm:$0xff]
  %v7119 = vld [vmem:[%s6 + $0x1e0] sm:$0xff]
  %v7120 = vld [vmem:[%s6 + $0x1e8] sm:$0xff]
  %v7121 = vld [vmem:[%s6 + $0x1f0] sm:$0xff]
  %v7122 = vld [vmem:[%s6 + $0x1f8] sm:$0xff]
  %v7123 = vld [vmem:[%s6 + $0x200] sm:$0xff]
  %v7124 = vld [vmem:[%s6 + $0x208] sm:$0xff]
  %v7125 = vld [vmem:[%s6 + $0x210] sm:$0xff]
  %v7126 = vld [vmem:[%s6 + $0x218] sm:$0xff]
  %v7127 = vld [vmem:[%s6 + $0x220] sm:$0xff]
  %v7128 = vld [vmem:[%s6 + $0x228] sm:$0xff]
  %v7129 = vld [vmem:[%s6 + $0x230] sm:$0xff]
  %v7130 = vld [vmem:[%s6 + $0x238] sm:$0xff]
  %v7131 = vld [vmem:[%s6 + $0x240] sm:$0xff]
  %v7132 = vld [vmem:[%s6 + $0x248] sm:$0xff]
  %v7133 = vld [vmem:[%s6 + $0x250] sm:$0xff]
  %v7134 = vld [vmem:[%s6 + $0x258] sm:$0xff]
  %v7135 = vld [vmem:[%s6 + $0x260] sm:$0xff]
  %v7136 = vld [vmem:[%s6 + $0x268] sm:$0xff]
  %v7137 = vld [vmem:[%s6 + $0x270] sm:$0xff]
  %v7138 = vld [vmem:[%s6 + $0x278] sm:$0xff]
  %v7139 = vld [vmem:[%s6 + $0x280] sm:$0xff]
  %v7140 = vld [vmem:[%s6 + $0x288] sm:$0xff]
  %v7141 = vld [vmem:[%s6 + $0x290] sm:$0xff]
  %v7142 = vld [vmem:[%s6 + $0x298] sm:$0xff]
  %v7143 = vld [vmem:[%s6 + $0x2a0] sm:$0xff]
  %v7144 = vld [vmem:[%s6 + $0x2a8] sm:$0xff]
  %v7145 = vld [vmem:[%s6 + $0x2b0] sm:$0xff]
  %v7146 = vld [vmem:[%s6 + $0x2b8] sm:$0xff]
  %v7147 = vld [vmem:[%s6 + $0x2c0] sm:$0xff]
  %v7148 = vld [vmem:[%s6 + $0x2c8] sm:$0xff]
  %v7149 = vld [vmem:[%s6 + $0x2d0] sm:$0xff]
  %v7150 = vld [vmem:[%s6 + $0x2d8] sm:$0xff]
  %v7151 = vld [vmem:[%s6 + $0x2e0] sm:$0xff]
  %v7152 = vld [vmem:[%s6 + $0x2e8] sm:$0xff]
  %v7153 = vld [vmem:[%s6 + $0x2f0] sm:$0xff]
  %v7154 = vld [vmem:[%s6 + $0x2f8] sm:$0xff]
  %v7155 = vld [vmem:[%s6 + $0x300] sm:$0xff]
  %v7156 = vld [vmem:[%s6 + $0x308] sm:$0xff]
  %v7157 = vld [vmem:[%s6 + $0x310] sm:$0xff]
  %v7158 = vld [vmem:[%s6 + $0x318] sm:$0xff]
  %v7159 = vld [vmem:[%s6 + $0x320] sm:$0xff]
  %v7160 = vld [vmem:[%s6 + $0x328] sm:$0xff]
  %v7161 = vld [vmem:[%s6 + $0x330] sm:$0xff]
  %v7162 = vld [vmem:[%s6 + $0x338] sm:$0xff]
  %v7163 = vld [vmem:[%s6 + $0x340] sm:$0xff]
  %v7164 = vld [vmem:[%s6 + $0x348] sm:$0xff]
  %v7165 = vld [vmem:[%s6 + $0x350] sm:$0xff]
  %v7166 = vld [vmem:[%s6 + $0x358] sm:$0xff]
  %v7167 = vld [vmem:[%s6 + $0x360] sm:$0xff]
  %v7168 = vld [vmem:[%s6 + $0x368] sm:$0xff]
  %v7169 = vld [vmem:[%s6 + $0x370] sm:$0xff]
  %v7170 = vld [vmem:[%s6 + $0x378] sm:$0xff]
  %v7171 = vld [vmem:[%s6 + $0x380] sm:$0xff]
  %v7172 = vld [vmem:[%s6 + $0x388] sm:$0xff]
  %v7173 = vld [vmem:[%s6 + $0x390] sm:$0xff]
  %v7174 = vld [vmem:[%s6 + $0x398] sm:$0xff]
  %v7175 = vld [vmem:[%s6 + $0x3a0] sm:$0xff]
  %v7176 = vld [vmem:[%s6 + $0x3a8] sm:$0xff]
  %v7177 = vld [vmem:[%s6 + $0x3b0] sm:$0xff]
  %v7178 = vld [vmem:[%s6 + $0x3b8] sm:$0xff]
  %v7179 = vld [vmem:[%s6 + $0x3c0] sm:$0xff]
  %v7180 = vld [vmem:[%s6 + $0x3c8] sm:$0xff]
  %v7181 = vld [vmem:[%s6 + $0x3d0] sm:$0xff]
  %v7182 = vld [vmem:[%s6 + $0x3d8] sm:$0xff]
  %v7183 = vld [vmem:[%s6 + $0x3e0] sm:$0xff]
  %v7184 = vld [vmem:[%s6 + $0x3e8] sm:$0xff]
  %v7185 = vld [vmem:[%s6 + $0x3f0] sm:$0xff]
  %v7186 = vld [vmem:[%s6 + $0x3f8] sm:$0xff]
  %v7187 = vld [vmem:[%s6 + $0x400] sm:$0xff]
  %v7188 = vld [vmem:[%s6 + $0x408] sm:$0xff]
  %v7189 = vld [vmem:[%s6 + $0x410] sm:$0xff]
  %v7190 = vld [vmem:[%s6 + $0x418] sm:$0xff]
  %v7191 = vld [vmem:[%s6 + $0x420] sm:$0xff]
  %v7192 = vld [vmem:[%s6 + $0x428] sm:$0xff]
  %v7193 = vld [vmem:[%s6 + $0x430] sm:$0xff]
  %v7194 = vld [vmem:[%s6 + $0x438] sm:$0xff]
  %v7195 = vld [vmem:[%s6 + $0x440] sm:$0xff]
  %v7196 = vld [vmem:[%s6 + $0x448] sm:$0xff]
  %v7197 = vld [vmem:[%s6 + $0x450] sm:$0xff]
  %v7198 = vld [vmem:[%s6 + $0x458] sm:$0xff]
  %v7199 = vld [vmem:[%s6 + $0x460] sm:$0xff]
  %v7200 = vld [vmem:[%s6 + $0x468] sm:$0xff]
  %v7201 = vld [vmem:[%s6 + $0x470] sm:$0xff]
  %v7202 = vld [vmem:[%s6 + $0x478] sm:$0xff]
  %v7203 = vld [vmem:[%s7] sm:$0x3]
  %v7205 = vperm.slane %v7203, 0
  %v7206 = vperm.slane %v7203, 1
  %v7229 = vunpack.c.l.b16 %v7039
  %v7230 = vunpack.c.h.b16 %v7039
  %v7231 = vunpack.c.l.b16 %v7040
  %v7232 = vunpack.c.h.b16 %v7040
  %v7233 = vunpack.c.l.b16 %v7041
  %v7234 = vunpack.c.h.b16 %v7041
  %v7235 = vunpack.c.l.b16 %v7042
  %v7236 = vunpack.c.h.b16 %v7042
  %v7237 = vunpack.c.l.b16 %v7043
  %v7238 = vunpack.c.l.b16 %v7044
  %v7239 = vunpack.c.h.b16 %v7044
  %v7240 = vunpack.c.l.b16 %v7045
  %v7241 = vunpack.c.h.b16 %v7045
  %v7242 = vunpack.c.l.b16 %v7046
  %v7243 = vunpack.c.h.b16 %v7046
  %v7244 = vunpack.c.l.b16 %v7047
  %v7245 = vunpack.c.h.b16 %v7047
  %v7246 = vunpack.c.l.b16 %v7048
  %v7247 = vunpack.c.l.b16 %v7049
  %v7248 = vunpack.c.h.b16 %v7049
  %v7249 = vunpack.c.l.b16 %v7050
  %v7250 = vunpack.c.h.b16 %v7050
  %v7251 = vunpack.c.l.b16 %v7051
  %v7252 = vunpack.c.h.b16 %v7051
  %v7253 = vunpack.c.l.b16 %v7052
  %v7254 = vunpack.c.h.b16 %v7052
  %v7255 = vunpack.c.l.b16 %v7053
  %v7256 = vunpack.c.l.b16 %v7054
  %v7257 = vunpack.c.h.b16 %v7054
  %v7258 = vunpack.c.l.b16 %v7055
  %v7259 = vunpack.c.h.b16 %v7055
  %v7260 = vunpack.c.l.b16 %v7056
  %v7261 = vunpack.c.h.b16 %v7056
  %v7262 = vunpack.c.l.b16 %v7057
  %v7263 = vunpack.c.h.b16 %v7057
  %v7264 = vunpack.c.l.b16 %v7058
  %v7265 = vpack.c.b16 %v7238, %v7229
  %v7266 = vpack.c.b16 %v7239, %v7230
  %v7267 = vpack.c.b16 %v7240, %v7231
  %v7268 = vpack.c.b16 %v7241, %v7232
  %v7269 = vpack.c.b16 %v7242, %v7233
  %v7270 = vpack.c.b16 %v7243, %v7234
  %v7271 = vpack.c.b16 %v7244, %v7235
  %v7272 = vpack.c.b16 %v7245, %v7236
  %v7273 = vpack.c.b16 %v7246, %v7237
  %v7274 = vpack.c.b16 %v7256, %v7247
  %v7275 = vpack.c.b16 %v7257, %v7248
  %v7276 = vpack.c.b16 %v7258, %v7249
  %v7277 = vpack.c.b16 %v7259, %v7250
  %v7278 = vpack.c.b16 %v7260, %v7251
  %v7279 = vpack.c.b16 %v7261, %v7252
  %v7280 = vpack.c.b16 %v7262, %v7253
  %v7281 = vpack.c.b16 %v7263, %v7254
  %v7282 = vpack.c.b16 %v7264, %v7255
  %v7445 = vunpack.c.l.b16 %v7059
  %v7446 = vunpack.c.h.b16 %v7059
  %v7447 = vunpack.c.l.b16 %v7060
  %v7448 = vunpack.c.h.b16 %v7060
  %v7449 = vunpack.c.l.b16 %v7061
  %v7450 = vunpack.c.h.b16 %v7061
  %v7451 = vunpack.c.l.b16 %v7062
  %v7452 = vunpack.c.h.b16 %v7062
  %v7453 = vunpack.c.l.b16 %v7063
  %v7454 = vunpack.c.h.b16 %v7063
  %v7455 = vunpack.c.l.b16 %v7064
  %v7456 = vunpack.c.h.b16 %v7064
  %v7457 = vunpack.c.l.b16 %v7065
  %v7458 = vunpack.c.h.b16 %v7065
  %v7459 = vunpack.c.l.b16 %v7066
  %v7460 = vunpack.c.h.b16 %v7066
  %v7461 = vunpack.c.l.b16 %v7067
  %v7462 = vunpack.c.h.b16 %v7067
  %v7463 = vunpack.c.l.b16 %v7068
  %v7464 = vunpack.c.h.b16 %v7068
  %v7465 = vunpack.c.l.b16 %v7069
  %v7466 = vunpack.c.h.b16 %v7069
  %v7467 = vunpack.c.l.b16 %v7070
  %v7468 = vunpack.c.h.b16 %v7070
  %v7469 = vunpack.c.l.b16 %v7071
  %v7470 = vunpack.c.h.b16 %v7071
  %v7471 = vunpack.c.l.b16 %v7072
  %v7472 = vunpack.c.h.b16 %v7072
  %v7473 = vunpack.c.l.b16 %v7073
  %v7474 = vunpack.c.h.b16 %v7073
  %v7475 = vunpack.c.l.b16 %v7074
  %v7476 = vunpack.c.h.b16 %v7074
  %v7477 = vunpack.c.l.b16 %v7075
  %v7478 = vunpack.c.h.b16 %v7075
  %v7479 = vunpack.c.l.b16 %v7076
  %v7480 = vunpack.c.h.b16 %v7076
  %v7481 = vunpack.c.l.b16 %v7077
  %v7482 = vunpack.c.h.b16 %v7077
  %v7483 = vunpack.c.l.b16 %v7078
  %v7484 = vunpack.c.h.b16 %v7078
  %v7485 = vunpack.c.l.b16 %v7079
  %v7486 = vunpack.c.h.b16 %v7079
  %v7487 = vunpack.c.l.b16 %v7080
  %v7488 = vunpack.c.h.b16 %v7080
  %v7489 = vunpack.c.l.b16 %v7081
  %v7490 = vunpack.c.h.b16 %v7081
  %v7491 = vunpack.c.l.b16 %v7082
  %v7492 = vunpack.c.h.b16 %v7082
  %v7493 = vunpack.c.l.b16 %v7083
  %v7494 = vunpack.c.h.b16 %v7083
  %v7495 = vunpack.c.l.b16 %v7084
  %v7496 = vunpack.c.h.b16 %v7084
  %v7497 = vunpack.c.l.b16 %v7085
  %v7498 = vunpack.c.h.b16 %v7085
  %v7499 = vunpack.c.l.b16 %v7086
  %v7500 = vunpack.c.h.b16 %v7086
  %v7501 = vunpack.c.l.b16 %v7087
  %v7502 = vunpack.c.h.b16 %v7087
  %v7503 = vunpack.c.l.b16 %v7088
  %v7504 = vunpack.c.h.b16 %v7088
  %v7505 = vunpack.c.l.b16 %v7089
  %v7506 = vunpack.c.h.b16 %v7089
  %v7507 = vunpack.c.l.b16 %v7090
  %v7508 = vunpack.c.h.b16 %v7090
  %v7509 = vunpack.c.l.b16 %v7091
  %v7510 = vunpack.c.h.b16 %v7091
  %v7511 = vunpack.c.l.b16 %v7092
  %v7512 = vunpack.c.h.b16 %v7092
  %v7513 = vunpack.c.l.b16 %v7093
  %v7514 = vunpack.c.h.b16 %v7093
  %v7515 = vunpack.c.l.b16 %v7094
  %v7516 = vunpack.c.h.b16 %v7094
  %v7517 = vunpack.c.l.b16 %v7095
  %v7518 = vunpack.c.h.b16 %v7095
  %v7519 = vunpack.c.l.b16 %v7096
  %v7520 = vunpack.c.h.b16 %v7096
  %v7521 = vunpack.c.l.b16 %v7097
  %v7522 = vunpack.c.h.b16 %v7097
  %v7523 = vunpack.c.l.b16 %v7098
  %v7524 = vunpack.c.h.b16 %v7098
  %v7525 = vunpack.c.l.b16 %v7099
  %v7526 = vunpack.c.h.b16 %v7099
  %v7527 = vunpack.c.l.b16 %v7100
  %v7528 = vunpack.c.h.b16 %v7100
  %v7529 = vunpack.c.l.b16 %v7101
  %v7530 = vunpack.c.h.b16 %v7101
  %v7531 = vunpack.c.l.b16 %v7102
  %v7532 = vunpack.c.h.b16 %v7102
  %v7533 = vunpack.c.l.b16 %v7103
  %v7534 = vunpack.c.h.b16 %v7103
  %v7535 = vunpack.c.l.b16 %v7104
  %v7536 = vunpack.c.h.b16 %v7104
  %v7537 = vunpack.c.l.b16 %v7105
  %v7538 = vunpack.c.h.b16 %v7105
  %v7539 = vunpack.c.l.b16 %v7106
  %v7540 = vunpack.c.h.b16 %v7106
  %v7541 = vunpack.c.l.b16 %v7107
  %v7542 = vunpack.c.h.b16 %v7107
  %v7543 = vunpack.c.l.b16 %v7108
  %v7544 = vunpack.c.h.b16 %v7108
  %v7545 = vunpack.c.l.b16 %v7109
  %v7546 = vunpack.c.h.b16 %v7109
  %v7547 = vunpack.c.l.b16 %v7110
  %v7548 = vunpack.c.h.b16 %v7110
  %v7549 = vunpack.c.l.b16 %v7111
  %v7550 = vunpack.c.h.b16 %v7111
  %v7551 = vunpack.c.l.b16 %v7112
  %v7552 = vunpack.c.h.b16 %v7112
  %v7553 = vunpack.c.l.b16 %v7113
  %v7554 = vunpack.c.h.b16 %v7113
  %v7555 = vunpack.c.l.b16 %v7114
  %v7556 = vunpack.c.h.b16 %v7114
  %v7557 = vunpack.c.l.b16 %v7115
  %v7558 = vunpack.c.h.b16 %v7115
  %v7559 = vunpack.c.l.b16 %v7116
  %v7560 = vunpack.c.h.b16 %v7116
  %v7561 = vunpack.c.l.b16 %v7117
  %v7562 = vunpack.c.h.b16 %v7117
  %v7563 = vunpack.c.l.b16 %v7118
  %v7564 = vunpack.c.h.b16 %v7118
  %v7565 = vunpack.c.l.b16 %v7119
  %v7566 = vunpack.c.h.b16 %v7119
  %v7567 = vunpack.c.l.b16 %v7120
  %v7568 = vunpack.c.h.b16 %v7120
  %v7569 = vunpack.c.l.b16 %v7121
  %v7570 = vunpack.c.h.b16 %v7121
  %v7571 = vunpack.c.l.b16 %v7122
  %v7572 = vunpack.c.h.b16 %v7122
  %v7573 = vunpack.c.l.b16 %v7123
  %v7574 = vunpack.c.h.b16 %v7123
  %v7575 = vunpack.c.l.b16 %v7124
  %v7576 = vunpack.c.h.b16 %v7124
  %v7577 = vunpack.c.l.b16 %v7125
  %v7578 = vunpack.c.h.b16 %v7125
  %v7579 = vunpack.c.l.b16 %v7126
  %v7580 = vunpack.c.h.b16 %v7126
  %v7581 = vunpack.c.l.b16 %v7127
  %v7582 = vunpack.c.h.b16 %v7127
  %v7583 = vunpack.c.l.b16 %v7128
  %v7584 = vunpack.c.h.b16 %v7128
  %v7585 = vunpack.c.l.b16 %v7129
  %v7586 = vunpack.c.h.b16 %v7129
  %v7587 = vunpack.c.l.b16 %v7130
  %v7588 = vunpack.c.h.b16 %v7130
  %v7589 = vunpack.c.l.b16 %v7131
  %v7590 = vunpack.c.h.b16 %v7131
  %v7591 = vunpack.c.l.b16 %v7132
  %v7592 = vunpack.c.h.b16 %v7132
  %v7593 = vunpack.c.l.b16 %v7133
  %v7594 = vunpack.c.h.b16 %v7133
  %v7595 = vunpack.c.l.b16 %v7134
  %v7596 = vunpack.c.h.b16 %v7134
  %v7597 = vunpack.c.l.b16 %v7135
  %v7598 = vunpack.c.h.b16 %v7135
  %v7599 = vunpack.c.l.b16 %v7136
  %v7600 = vunpack.c.h.b16 %v7136
  %v7601 = vunpack.c.l.b16 %v7137
  %v7602 = vunpack.c.h.b16 %v7137
  %v7603 = vunpack.c.l.b16 %v7138
  %v7604 = vunpack.c.h.b16 %v7138
  %v7605 = vunpack.c.l.b16 %v7139
  %v7606 = vunpack.c.h.b16 %v7139
  %v7607 = vunpack.c.l.b16 %v7140
  %v7608 = vunpack.c.h.b16 %v7140
  %v7609 = vunpack.c.l.b16 %v7141
  %v7610 = vunpack.c.h.b16 %v7141
  %v7611 = vunpack.c.l.b16 %v7142
  %v7612 = vunpack.c.h.b16 %v7142
  %v7613 = vunpack.c.l.b16 %v7143
  %v7614 = vunpack.c.h.b16 %v7143
  %v7615 = vunpack.c.l.b16 %v7144
  %v7616 = vunpack.c.h.b16 %v7144
  %v7617 = vunpack.c.l.b16 %v7145
  %v7618 = vunpack.c.h.b16 %v7145
  %v7619 = vunpack.c.l.b16 %v7146
  %v7620 = vunpack.c.h.b16 %v7146
  %v7621 = vunpack.c.l.b16 %v7147
  %v7622 = vunpack.c.h.b16 %v7147
  %v7623 = vunpack.c.l.b16 %v7148
  %v7624 = vunpack.c.h.b16 %v7148
  %v7625 = vunpack.c.l.b16 %v7149
  %v7626 = vunpack.c.h.b16 %v7149
  %v7627 = vunpack.c.l.b16 %v7150
  %v7628 = vunpack.c.h.b16 %v7150
  %v7629 = vunpack.c.l.b16 %v7151
  %v7630 = vunpack.c.h.b16 %v7151
  %v7631 = vunpack.c.l.b16 %v7152
  %v7632 = vunpack.c.h.b16 %v7152
  %v7633 = vunpack.c.l.b16 %v7153
  %v7634 = vunpack.c.h.b16 %v7153
  %v7635 = vunpack.c.l.b16 %v7154
  %v7636 = vunpack.c.h.b16 %v7154
  %v7637 = vunpack.c.l.b16 %v7155
  %v7638 = vunpack.c.h.b16 %v7155
  %v7639 = vunpack.c.l.b16 %v7156
  %v7640 = vunpack.c.h.b16 %v7156
  %v7641 = vunpack.c.l.b16 %v7157
  %v7642 = vunpack.c.h.b16 %v7157
  %v7643 = vunpack.c.l.b16 %v7158
  %v7644 = vunpack.c.h.b16 %v7158
  %v7645 = vunpack.c.l.b16 %v7159
  %v7646 = vunpack.c.h.b16 %v7159
  %v7647 = vunpack.c.l.b16 %v7160
  %v7648 = vunpack.c.h.b16 %v7160
  %v7649 = vunpack.c.l.b16 %v7161
  %v7650 = vunpack.c.h.b16 %v7161
  %v7651 = vunpack.c.l.b16 %v7162
  %v7652 = vunpack.c.h.b16 %v7162
  %v7653 = vunpack.c.l.b16 %v7163
  %v7654 = vunpack.c.h.b16 %v7163
  %v7655 = vunpack.c.l.b16 %v7164
  %v7656 = vunpack.c.h.b16 %v7164
  %v7657 = vunpack.c.l.b16 %v7165
  %v7658 = vunpack.c.h.b16 %v7165
  %v7659 = vunpack.c.l.b16 %v7166
  %v7660 = vunpack.c.h.b16 %v7166
  %v7661 = vunpack.c.l.b16 %v7167
  %v7662 = vunpack.c.h.b16 %v7167
  %v7663 = vunpack.c.l.b16 %v7168
  %v7664 = vunpack.c.h.b16 %v7168
  %v7665 = vunpack.c.l.b16 %v7169
  %v7666 = vunpack.c.h.b16 %v7169
  %v7667 = vunpack.c.l.b16 %v7170
  %v7668 = vunpack.c.h.b16 %v7170
  %v7669 = vunpack.c.l.b16 %v7171
  %v7670 = vunpack.c.h.b16 %v7171
  %v7671 = vunpack.c.l.b16 %v7172
  %v7672 = vunpack.c.h.b16 %v7172
  %v7673 = vunpack.c.l.b16 %v7173
  %v7674 = vunpack.c.h.b16 %v7173
  %v7675 = vunpack.c.l.b16 %v7174
  %v7676 = vunpack.c.h.b16 %v7174
  %v7677 = vunpack.c.l.b16 %v7175
  %v7678 = vunpack.c.h.b16 %v7175
  %v7679 = vunpack.c.l.b16 %v7176
  %v7680 = vunpack.c.h.b16 %v7176
  %v7681 = vunpack.c.l.b16 %v7177
  %v7682 = vunpack.c.h.b16 %v7177
  %v7683 = vunpack.c.l.b16 %v7178
  %v7684 = vunpack.c.h.b16 %v7178
  %v7685 = vunpack.c.l.b16 %v7179
  %v7686 = vunpack.c.h.b16 %v7179
  %v7687 = vunpack.c.l.b16 %v7180
  %v7688 = vunpack.c.h.b16 %v7180
  %v7689 = vunpack.c.l.b16 %v7181
  %v7690 = vunpack.c.h.b16 %v7181
  %v7691 = vunpack.c.l.b16 %v7182
  %v7692 = vunpack.c.h.b16 %v7182
  %v7693 = vunpack.c.l.b16 %v7183
  %v7694 = vunpack.c.h.b16 %v7183
  %v7695 = vunpack.c.l.b16 %v7184
  %v7696 = vunpack.c.h.b16 %v7184
  %v7697 = vunpack.c.l.b16 %v7185
  %v7698 = vunpack.c.h.b16 %v7185
  %v7699 = vunpack.c.l.b16 %v7186
  %v7700 = vunpack.c.h.b16 %v7186
  %v7701 = vunpack.c.l.b16 %v7187
  %v7702 = vunpack.c.h.b16 %v7187
  %v7703 = vunpack.c.l.b16 %v7188
  %v7704 = vunpack.c.h.b16 %v7188
  %v7705 = vunpack.c.l.b16 %v7189
  %v7706 = vunpack.c.h.b16 %v7189
  %v7707 = vunpack.c.l.b16 %v7190
  %v7708 = vunpack.c.h.b16 %v7190
  %v7709 = vunpack.c.l.b16 %v7191
  %v7710 = vunpack.c.h.b16 %v7191
  %v7711 = vunpack.c.l.b16 %v7192
  %v7712 = vunpack.c.h.b16 %v7192
  %v7713 = vunpack.c.l.b16 %v7193
  %v7714 = vunpack.c.h.b16 %v7193
  %v7715 = vunpack.c.l.b16 %v7194
  %v7716 = vunpack.c.h.b16 %v7194
  %v7717 = vunpack.c.l.b16 %v7195
  %v7718 = vunpack.c.h.b16 %v7195
  %v7719 = vunpack.c.l.b16 %v7196
  %v7720 = vunpack.c.h.b16 %v7196
  %v7721 = vunpack.c.l.b16 %v7197
  %v7722 = vunpack.c.h.b16 %v7197
  %v7723 = vunpack.c.l.b16 %v7198
  %v7724 = vunpack.c.h.b16 %v7198
  %v7725 = vunpack.c.l.b16 %v7199
  %v7726 = vunpack.c.h.b16 %v7199
  %v7727 = vunpack.c.l.b16 %v7200
  %v7728 = vunpack.c.h.b16 %v7200
  %v7729 = vunpack.c.l.b16 %v7201
  %v7730 = vunpack.c.h.b16 %v7201
  %v7731 = vunpack.c.l.b16 %v7202
  %v7732 = vunpack.c.h.b16 %v7202
  %v7733 = vpack.c.b16 %v7447, %v7445
  %v7734 = vpack.c.b16 %v7448, %v7446
  %v7735 = vpack.c.b16 %v7451, %v7449
  %v7736 = vpack.c.b16 %v7452, %v7450
  %v7737 = vpack.c.b16 %v7455, %v7453
  %v7738 = vpack.c.b16 %v7456, %v7454
  %v7739 = vpack.c.b16 %v7459, %v7457
  %v7740 = vpack.c.b16 %v7460, %v7458
  %v7741 = vpack.c.b16 %v7463, %v7461
  %v7742 = vpack.c.b16 %v7464, %v7462
  %v7743 = vpack.c.b16 %v7467, %v7465
  %v7744 = vpack.c.b16 %v7468, %v7466
  %v7745 = vpack.c.b16 %v7471, %v7469
  %v7746 = vpack.c.b16 %v7472, %v7470
  %v7747 = vpack.c.b16 %v7475, %v7473
  %v7748 = vpack.c.b16 %v7476, %v7474
  %v7749 = vpack.c.b16 %v7479, %v7477
  %v7750 = vpack.c.b16 %v7480, %v7478
  %v7751 = vpack.c.b16 %v7483, %v7481
  %v7752 = vpack.c.b16 %v7484, %v7482
  %v7753 = vpack.c.b16 %v7487, %v7485
  %v7754 = vpack.c.b16 %v7488, %v7486
  %v7755 = vpack.c.b16 %v7491, %v7489
  %v7756 = vpack.c.b16 %v7492, %v7490
  %v7757 = vpack.c.b16 %v7495, %v7493
  %v7758 = vpack.c.b16 %v7496, %v7494
  %v7759 = vpack.c.b16 %v7499, %v7497
  %v7760 = vpack.c.b16 %v7500, %v7498
  %v7761 = vpack.c.b16 %v7503, %v7501
  %v7762 = vpack.c.b16 %v7504, %v7502
  %v7763 = vpack.c.b16 %v7507, %v7505
  %v7764 = vpack.c.b16 %v7508, %v7506
  %v7765 = vpack.c.b16 %v7511, %v7509
  %v7766 = vpack.c.b16 %v7512, %v7510
  %v7767 = vpack.c.b16 %v7515, %v7513
  %v7768 = vpack.c.b16 %v7516, %v7514
  %v7769 = vpack.c.b16 %v7519, %v7517
  %v7770 = vpack.c.b16 %v7520, %v7518
  %v7771 = vpack.c.b16 %v7523, %v7521
  %v7772 = vpack.c.b16 %v7524, %v7522
  %v7773 = vpack.c.b16 %v7527, %v7525
  %v7774 = vpack.c.b16 %v7528, %v7526
  %v7775 = vpack.c.b16 %v7531, %v7529
  %v7776 = vpack.c.b16 %v7532, %v7530
  %v7777 = vpack.c.b16 %v7535, %v7533
  %v7778 = vpack.c.b16 %v7536, %v7534
  %v7779 = vpack.c.b16 %v7539, %v7537
  %v7780 = vpack.c.b16 %v7540, %v7538
  %v7781 = vpack.c.b16 %v7543, %v7541
  %v7782 = vpack.c.b16 %v7544, %v7542
  %v7783 = vpack.c.b16 %v7547, %v7545
  %v7784 = vpack.c.b16 %v7548, %v7546
  %v7785 = vpack.c.b16 %v7551, %v7549
  %v7786 = vpack.c.b16 %v7552, %v7550
  %v7787 = vpack.c.b16 %v7555, %v7553
  %v7788 = vpack.c.b16 %v7556, %v7554
  %v7789 = vpack.c.b16 %v7559, %v7557
  %v7790 = vpack.c.b16 %v7560, %v7558
  %v7791 = vpack.c.b16 %v7563, %v7561
  %v7792 = vpack.c.b16 %v7564, %v7562
  %v7793 = vpack.c.b16 %v7567, %v7565
  %v7794 = vpack.c.b16 %v7568, %v7566
  %v7795 = vpack.c.b16 %v7571, %v7569
  %v7796 = vpack.c.b16 %v7572, %v7570
  %v7797 = vpack.c.b16 %v7575, %v7573
  %v7798 = vpack.c.b16 %v7576, %v7574
  %v7799 = vpack.c.b16 %v7579, %v7577
  %v7800 = vpack.c.b16 %v7580, %v7578
  %v7801 = vpack.c.b16 %v7583, %v7581
  %v7802 = vpack.c.b16 %v7584, %v7582
  %v7803 = vpack.c.b16 %v7587, %v7585
  %v7804 = vpack.c.b16 %v7588, %v7586
  %v7805 = vpack.c.b16 %v7591, %v7589
  %v7806 = vpack.c.b16 %v7592, %v7590
  %v7807 = vpack.c.b16 %v7595, %v7593
  %v7808 = vpack.c.b16 %v7596, %v7594
  %v7809 = vpack.c.b16 %v7599, %v7597
  %v7810 = vpack.c.b16 %v7600, %v7598
  %v7811 = vpack.c.b16 %v7603, %v7601
  %v7812 = vpack.c.b16 %v7604, %v7602
  %v7813 = vpack.c.b16 %v7607, %v7605
  %v7814 = vpack.c.b16 %v7608, %v7606
  %v7815 = vpack.c.b16 %v7611, %v7609
  %v7816 = vpack.c.b16 %v7612, %v7610
  %v7817 = vpack.c.b16 %v7615, %v7613
  %v7818 = vpack.c.b16 %v7616, %v7614
  %v7819 = vpack.c.b16 %v7619, %v7617
  %v7820 = vpack.c.b16 %v7620, %v7618
  %v7821 = vpack.c.b16 %v7623, %v7621
  %v7822 = vpack.c.b16 %v7624, %v7622
  %v7823 = vpack.c.b16 %v7627, %v7625
  %v7824 = vpack.c.b16 %v7628, %v7626
  %v7825 = vpack.c.b16 %v7631, %v7629
  %v7826 = vpack.c.b16 %v7632, %v7630
  %v7827 = vpack.c.b16 %v7635, %v7633
  %v7828 = vpack.c.b16 %v7636, %v7634
  %v7829 = vpack.c.b16 %v7639, %v7637
  %v7830 = vpack.c.b16 %v7640, %v7638
  %v7831 = vpack.c.b16 %v7643, %v7641
  %v7832 = vpack.c.b16 %v7644, %v7642
  %v7833 = vpack.c.b16 %v7647, %v7645
  %v7834 = vpack.c.b16 %v7648, %v7646
  %v7835 = vpack.c.b16 %v7651, %v7649
  %v7836 = vpack.c.b16 %v7652, %v7650
  %v7837 = vpack.c.b16 %v7655, %v7653
  %v7838 = vpack.c.b16 %v7656, %v7654
  %v7839 = vpack.c.b16 %v7659, %v7657
  %v7840 = vpack.c.b16 %v7660, %v7658
  %v7841 = vpack.c.b16 %v7663, %v7661
  %v7842 = vpack.c.b16 %v7664, %v7662
  %v7843 = vpack.c.b16 %v7667, %v7665
  %v7844 = vpack.c.b16 %v7668, %v7666
  %v7845 = vpack.c.b16 %v7671, %v7669
  %v7846 = vpack.c.b16 %v7672, %v7670
  %v7847 = vpack.c.b16 %v7675, %v7673
  %v7848 = vpack.c.b16 %v7676, %v7674
  %v7849 = vpack.c.b16 %v7679, %v7677
  %v7850 = vpack.c.b16 %v7680, %v7678
  %v7851 = vpack.c.b16 %v7683, %v7681
  %v7852 = vpack.c.b16 %v7684, %v7682
  %v7853 = vpack.c.b16 %v7687, %v7685
  %v7854 = vpack.c.b16 %v7688, %v7686
  %v7855 = vpack.c.b16 %v7691, %v7689
  %v7856 = vpack.c.b16 %v7692, %v7690
  %v7857 = vpack.c.b16 %v7695, %v7693
  %v7858 = vpack.c.b16 %v7696, %v7694
  %v7859 = vpack.c.b16 %v7699, %v7697
  %v7860 = vpack.c.b16 %v7700, %v7698
  %v7861 = vpack.c.b16 %v7703, %v7701
  %v7862 = vpack.c.b16 %v7704, %v7702
  %v7863 = vpack.c.b16 %v7707, %v7705
  %v7864 = vpack.c.b16 %v7708, %v7706
  %v7865 = vpack.c.b16 %v7711, %v7709
  %v7866 = vpack.c.b16 %v7712, %v7710
  %v7867 = vpack.c.b16 %v7715, %v7713
  %v7868 = vpack.c.b16 %v7716, %v7714
  %v7869 = vpack.c.b16 %v7719, %v7717
  %v7870 = vpack.c.b16 %v7720, %v7718
  %v7871 = vpack.c.b16 %v7723, %v7721
  %v7872 = vpack.c.b16 %v7724, %v7722
  %v7873 = vpack.c.b16 %v7727, %v7725
  %v7874 = vpack.c.b16 %v7728, %v7726
  %v7875 = vpack.c.b16 %v7731, %v7729
  %v7876 = vpack.c.b16 %v7732, %v7730
  %8021 = vmatpush.bf16.msra.mxu0 %v7747
  %8022 = vmatpush.bf16.msra.mxu0 %v7745
  %8023 = vmatpush.bf16.msra.mxu0 %v7743
  %8024 = vmatpush.bf16.msra.mxu0 %v7741
  %8025 = vmatpush.bf16.msra.mxu0 %v7739
  %8026 = vmatpush.bf16.msra.mxu0 %v7737
  %8027 = vmatpush.bf16.msra.mxu0 %v7735
  %8028 = vmatpush.bf16.msra.mxu0 %v7733
  %8029 = vmatmul.bf16.gmra.mxu0 %v7265
  %v8030 = vpop.f32.mrf.mxu0
  %v8031 = vadd.f32 %v7205, %v8030
  %v8032 = vpop.f32.mrf.mxu0
  %v8033 = vadd.f32 %v7205, %v8032
  %8034 = vmatmul.bf16.gmra.mxu0 %v7274
  %v8035 = vpop.f32.mrf.mxu0
  %v8036 = vadd.f32 %v7205, %v8035
  %v8037 = vpop.f32.mrf.mxu0
  %v8038 = vadd.f32 %v7205, %v8037
  %8039 = vdwg.mxu0
  %8040 = vmatpush.bf16.msra.mxu0 %v7763
  %8041 = vmatpush.bf16.msra.mxu0 %v7761
  %8042 = vmatpush.bf16.msra.mxu0 %v7759
  %8043 = vmatpush.bf16.msra.mxu0 %v7757
  %8044 = vmatpush.bf16.msra.mxu0 %v7755
  %8045 = vmatpush.bf16.msra.mxu0 %v7753
  %8046 = vmatpush.bf16.msra.mxu0 %v7751
  %8047 = vmatpush.bf16.msra.mxu0 %v7749
  %8048 = vmatmul.bf16.gmra.mxu0 %v7266
  %v8049 = vpop.f32.mrf.mxu0
  %v8050 = vadd.f32 %v8031, %v8049
  %v8051 = vpop.f32.mrf.mxu0
  %v8052 = vadd.f32 %v8033, %v8051
  %8053 = vmatmul.bf16.gmra.mxu0 %v7275
  %v8054 = vpop.f32.mrf.mxu0
  %v8055 = vadd.f32 %v8036, %v8054
  %v8056 = vpop.f32.mrf.mxu0
  %v8057 = vadd.f32 %v8038, %v8056
  %8058 = vdwg.mxu0
  %8059 = vmatpush.bf16.msra.mxu0 %v7779
  %8060 = vmatpush.bf16.msra.mxu0 %v7777
  %8061 = vmatpush.bf16.msra.mxu0 %v7775
  %8062 = vmatpush.bf16.msra.mxu0 %v7773
  %8063 = vmatpush.bf16.msra.mxu0 %v7771
  %8064 = vmatpush.bf16.msra.mxu0 %v7769
  %8065 = vmatpush.bf16.msra.mxu0 %v7767
  %8066 = vmatpush.bf16.msra.mxu0 %v7765
  %8067 = vmatmul.bf16.gmra.mxu0 %v7267
  %v8068 = vpop.f32.mrf.mxu0
  %v8069 = vadd.f32 %v8050, %v8068
  %v8070 = vpop.f32.mrf.mxu0
  %v8071 = vadd.f32 %v8052, %v8070
  %8072 = vmatmul.bf16.gmra.mxu0 %v7276
  %v8073 = vpop.f32.mrf.mxu0
  %v8074 = vadd.f32 %v8055, %v8073
  %v8075 = vpop.f32.mrf.mxu0
  %v8076 = vadd.f32 %v8057, %v8075
  %8077 = vdwg.mxu0
  %8078 = vmatpush.bf16.msra.mxu0 %v7795
  %8079 = vmatpush.bf16.msra.mxu0 %v7793
  %8080 = vmatpush.bf16.msra.mxu0 %v7791
  %8081 = vmatpush.bf16.msra.mxu0 %v7789
  %8082 = vmatpush.bf16.msra.mxu0 %v7787
  %8083 = vmatpush.bf16.msra.mxu0 %v7785
  %8084 = vmatpush.bf16.msra.mxu0 %v7783
  %8085 = vmatpush.bf16.msra.mxu0 %v7781
  %8086 = vmatmul.bf16.gmra.mxu0 %v7268
  %v8087 = vpop.f32.mrf.mxu0
  %v8088 = vadd.f32 %v8069, %v8087
  %v8089 = vpop.f32.mrf.mxu0
  %v8090 = vadd.f32 %v8071, %v8089
  %8091 = vmatmul.bf16.gmra.mxu0 %v7277
  %v8092 = vpop.f32.mrf.mxu0
  %v8093 = vadd.f32 %v8074, %v8092
  %v8094 = vpop.f32.mrf.mxu0
  %v8095 = vadd.f32 %v8076, %v8094
  %8096 = vdwg.mxu0
  %8097 = vmatpush.bf16.msra.mxu0 %v7811
  %8098 = vmatpush.bf16.msra.mxu0 %v7809
  %8099 = vmatpush.bf16.msra.mxu0 %v7807
  %8100 = vmatpush.bf16.msra.mxu0 %v7805
  %8101 = vmatpush.bf16.msra.mxu0 %v7803
  %8102 = vmatpush.bf16.msra.mxu0 %v7801
  %8103 = vmatpush.bf16.msra.mxu0 %v7799
  %8104 = vmatpush.bf16.msra.mxu0 %v7797
  %8105 = vmatmul.bf16.gmra.mxu0 %v7269
  %v8106 = vpop.f32.mrf.mxu0
  %v8107 = vadd.f32 %v8088, %v8106
  %v8108 = vpop.f32.mrf.mxu0
  %v8109 = vadd.f32 %v8090, %v8108
  %8110 = vmatmul.bf16.gmra.mxu0 %v7278
  %v8111 = vpop.f32.mrf.mxu0
  %v8112 = vadd.f32 %v8093, %v8111
  %v8113 = vpop.f32.mrf.mxu0
  %v8114 = vadd.f32 %v8095, %v8113
  %8115 = vdwg.mxu0
  %8116 = vmatpush.bf16.msra.mxu0 %v7827
  %8117 = vmatpush.bf16.msra.mxu0 %v7825
  %8118 = vmatpush.bf16.msra.mxu0 %v7823
  %8119 = vmatpush.bf16.msra.mxu0 %v7821
  %8120 = vmatpush.bf16.msra.mxu0 %v7819
  %8121 = vmatpush.bf16.msra.mxu0 %v7817
  %8122 = vmatpush.bf16.msra.mxu0 %v7815
  %8123 = vmatpush.bf16.msra.mxu0 %v7813
  %8124 = vmatmul.bf16.gmra.mxu0 %v7270
  %v8125 = vpop.f32.mrf.mxu0
  %v8126 = vadd.f32 %v8107, %v8125
  %v8127 = vpop.f32.mrf.mxu0
  %v8128 = vadd.f32 %v8109, %v8127
  %8129 = vmatmul.bf16.gmra.mxu0 %v7279
  %v8130 = vpop.f32.mrf.mxu0
  %v8131 = vadd.f32 %v8112, %v8130
  %v8132 = vpop.f32.mrf.mxu0
  %v8133 = vadd.f32 %v8114, %v8132
  %8134 = vdwg.mxu0
  %8135 = vmatpush.bf16.msra.mxu0 %v7843
  %8136 = vmatpush.bf16.msra.mxu0 %v7841
  %8137 = vmatpush.bf16.msra.mxu0 %v7839
  %8138 = vmatpush.bf16.msra.mxu0 %v7837
  %8139 = vmatpush.bf16.msra.mxu0 %v7835
  %8140 = vmatpush.bf16.msra.mxu0 %v7833
  %8141 = vmatpush.bf16.msra.mxu0 %v7831
  %8142 = vmatpush.bf16.msra.mxu0 %v7829
  %8143 = vmatmul.bf16.gmra.mxu0 %v7271
  %v8144 = vpop.f32.mrf.mxu0
  %v8145 = vadd.f32 %v8126, %v8144
  %v8146 = vpop.f32.mrf.mxu0
  %v8147 = vadd.f32 %v8128, %v8146
  %8148 = vmatmul.bf16.gmra.mxu0 %v7280
  %v8149 = vpop.f32.mrf.mxu0
  %v8150 = vadd.f32 %v8131, %v8149
  %v8151 = vpop.f32.mrf.mxu0
  %v8152 = vadd.f32 %v8133, %v8151
  %8153 = vdwg.mxu0
  %8154 = vmatpush.bf16.msra.mxu0 %v7859
  %8155 = vmatpush.bf16.msra.mxu0 %v7857
  %8156 = vmatpush.bf16.msra.mxu0 %v7855
  %8157 = vmatpush.bf16.msra.mxu0 %v7853
  %8158 = vmatpush.bf16.msra.mxu0 %v7851
  %8159 = vmatpush.bf16.msra.mxu0 %v7849
  %8160 = vmatpush.bf16.msra.mxu0 %v7847
  %8161 = vmatpush.bf16.msra.mxu0 %v7845
  %8162 = vmatmul.bf16.gmra.mxu0 %v7272
  %v8163 = vpop.f32.mrf.mxu0
  %v8164 = vadd.f32 %v8145, %v8163
  %v8165 = vpop.f32.mrf.mxu0
  %v8166 = vadd.f32 %v8147, %v8165
  %8167 = vmatmul.bf16.gmra.mxu0 %v7281
  %v8168 = vpop.f32.mrf.mxu0
  %v8169 = vadd.f32 %v8150, %v8168
  %v8170 = vpop.f32.mrf.mxu0
  %v8171 = vadd.f32 %v8152, %v8170
  %8172 = vdwg.mxu0
  %8173 = vmatpush.bf16.msra.mxu0 %v7875
  %8174 = vmatpush.bf16.msra.mxu0 %v7873
  %8175 = vmatpush.bf16.msra.mxu0 %v7871
  %8176 = vmatpush.bf16.msra.mxu0 %v7869
  %8177 = vmatpush.bf16.msra.mxu0 %v7867
  %8178 = vmatpush.bf16.msra.mxu0 %v7865
  %8179 = vmatpush.bf16.msra.mxu0 %v7863
  %8180 = vmatpush.bf16.msra.mxu0 %v7861
  %8181 = vmatmul.bf16.gmra.mxu0 %v7273
  %v8182 = vpop.f32.mrf.mxu0
  %v8183 = vadd.f32 %v8164, %v8182
  %v8184 = vpop.f32.mrf.mxu0
  %v8185 = vadd.f32 %v8166, %v8184
  %8186 = vmatmul.bf16.gmra.mxu0 %v7282
  %v8187 = vpop.f32.mrf.mxu0
  %v8188 = vadd.f32 %v8169, %v8187
  %v8189 = vpop.f32.mrf.mxu0
  %v8190 = vadd.f32 %v8171, %v8189
  %8191 = vdwg.mxu0
  %8192 = vmatpush.bf16.msra.mxu0 %v7748
  %8193 = vmatpush.bf16.msra.mxu0 %v7746
  %8194 = vmatpush.bf16.msra.mxu0 %v7744
  %8195 = vmatpush.bf16.msra.mxu0 %v7742
  %8196 = vmatpush.bf16.msra.mxu0 %v7740
  %8197 = vmatpush.bf16.msra.mxu0 %v7738
  %8198 = vmatpush.bf16.msra.mxu0 %v7736
  %8199 = vmatpush.bf16.msra.mxu0 %v7734
  %8200 = vmatmul.bf16.gmra.mxu0 %v7265
  %v8201 = vpop.f32.mrf.mxu0
  %v8202 = vadd.f32 %v7206, %v8201
  %v8203 = vpop.f32.mrf.mxu0
  %v8204 = vadd.f32 %v7206, %v8203
  %8205 = vmatmul.bf16.gmra.mxu0 %v7274
  %v8206 = vpop.f32.mrf.mxu0
  %v8207 = vadd.f32 %v7206, %v8206
  %v8208 = vpop.f32.mrf.mxu0
  %v8209 = vadd.f32 %v7206, %v8208
  %8210 = vdwg.mxu0
  %8211 = vmatpush.bf16.msra.mxu0 %v7764
  %8212 = vmatpush.bf16.msra.mxu0 %v7762
  %8213 = vmatpush.bf16.msra.mxu0 %v7760
  %8214 = vmatpush.bf16.msra.mxu0 %v7758
  %8215 = vmatpush.bf16.msra.mxu0 %v7756
  %8216 = vmatpush.bf16.msra.mxu0 %v7754
  %8217 = vmatpush.bf16.msra.mxu0 %v7752
  %8218 = vmatpush.bf16.msra.mxu0 %v7750
  %8219 = vmatmul.bf16.gmra.mxu0 %v7266
  %v8220 = vpop.f32.mrf.mxu0
  %v8221 = vadd.f32 %v8202, %v8220
  %v8222 = vpop.f32.mrf.mxu0
  %v8223 = vadd.f32 %v8204, %v8222
  %8224 = vmatmul.bf16.gmra.mxu0 %v7275
  %v8225 = vpop.f32.mrf.mxu0
  %v8226 = vadd.f32 %v8207, %v8225
  %v8227 = vpop.f32.mrf.mxu0
  %v8228 = vadd.f32 %v8209, %v8227
  %8229 = vdwg.mxu0
  %8230 = vmatpush.bf16.msra.mxu0 %v7780
  %8231 = vmatpush.bf16.msra.mxu0 %v7778
  %8232 = vmatpush.bf16.msra.mxu0 %v7776
  %8233 = vmatpush.bf16.msra.mxu0 %v7774
  %8234 = vmatpush.bf16.msra.mxu0 %v7772
  %8235 = vmatpush.bf16.msra.mxu0 %v7770
  %8236 = vmatpush.bf16.msra.mxu0 %v7768
  %8237 = vmatpush.bf16.msra.mxu0 %v7766
  %8238 = vmatmul.bf16.gmra.mxu0 %v7267
  %v8239 = vpop.f32.mrf.mxu0
  %v8240 = vadd.f32 %v8221, %v8239
  %v8241 = vpop.f32.mrf.mxu0
  %v8242 = vadd.f32 %v8223, %v8241
  %8243 = vmatmul.bf16.gmra.mxu0 %v7276
  %v8244 = vpop.f32.mrf.mxu0
  %v8245 = vadd.f32 %v8226, %v8244
  %v8246 = vpop.f32.mrf.mxu0
  %v8247 = vadd.f32 %v8228, %v8246
  %8248 = vdwg.mxu0
  %8249 = vmatpush.bf16.msra.mxu0 %v7796
  %8250 = vmatpush.bf16.msra.mxu0 %v7794
  %8251 = vmatpush.bf16.msra.mxu0 %v7792
  %8252 = vmatpush.bf16.msra.mxu0 %v7790
  %8253 = vmatpush.bf16.msra.mxu0 %v7788
  %8254 = vmatpush.bf16.msra.mxu0 %v7786
  %8255 = vmatpush.bf16.msra.mxu0 %v7784
  %8256 = vmatpush.bf16.msra.mxu0 %v7782
  %8257 = vmatmul.bf16.gmra.mxu0 %v7268
  %v8258 = vpop.f32.mrf.mxu0
  %v8259 = vadd.f32 %v8240, %v8258
  %v8260 = vpop.f32.mrf.mxu0
  %v8261 = vadd.f32 %v8242, %v8260
  %8262 = vmatmul.bf16.gmra.mxu0 %v7277
  %v8263 = vpop.f32.mrf.mxu0
  %v8264 = vadd.f32 %v8245, %v8263
  %v8265 = vpop.f32.mrf.mxu0
  %v8266 = vadd.f32 %v8247, %v8265
  %8267 = vdwg.mxu0
  %8268 = vmatpush.bf16.msra.mxu0 %v7812
  %8269 = vmatpush.bf16.msra.mxu0 %v7810
  %8270 = vmatpush.bf16.msra.mxu0 %v7808
  %8271 = vmatpush.bf16.msra.mxu0 %v7806
  %8272 = vmatpush.bf16.msra.mxu0 %v7804
  %8273 = vmatpush.bf16.msra.mxu0 %v7802
  %8274 = vmatpush.bf16.msra.mxu0 %v7800
  %8275 = vmatpush.bf16.msra.mxu0 %v7798
  %8276 = vmatmul.bf16.gmra.mxu0 %v7269
  %v8277 = vpop.f32.mrf.mxu0
  %v8278 = vadd.f32 %v8259, %v8277
  %v8279 = vpop.f32.mrf.mxu0
  %v8280 = vadd.f32 %v8261, %v8279
  %8281 = vmatmul.bf16.gmra.mxu0 %v7278
  %v8282 = vpop.f32.mrf.mxu0
  %v8283 = vadd.f32 %v8264, %v8282
  %v8284 = vpop.f32.mrf.mxu0
  %v8285 = vadd.f32 %v8266, %v8284
  %8286 = vdwg.mxu0
  %8287 = vmatpush.bf16.msra.mxu0 %v7828
  %8288 = vmatpush.bf16.msra.mxu0 %v7826
  %8289 = vmatpush.bf16.msra.mxu0 %v7824
  %8290 = vmatpush.bf16.msra.mxu0 %v7822
  %8291 = vmatpush.bf16.msra.mxu0 %v7820
  %8292 = vmatpush.bf16.msra.mxu0 %v7818
  %8293 = vmatpush.bf16.msra.mxu0 %v7816
  %8294 = vmatpush.bf16.msra.mxu0 %v7814
  %8295 = vmatmul.bf16.gmra.mxu0 %v7270
  %v8296 = vpop.f32.mrf.mxu0
  %v8297 = vadd.f32 %v8278, %v8296
  %v8298 = vpop.f32.mrf.mxu0
  %v8299 = vadd.f32 %v8280, %v8298
  %8300 = vmatmul.bf16.gmra.mxu0 %v7279
  %v8301 = vpop.f32.mrf.mxu0
  %v8302 = vadd.f32 %v8283, %v8301
  %v8303 = vpop.f32.mrf.mxu0
  %v8304 = vadd.f32 %v8285, %v8303
  %8305 = vdwg.mxu0
  %8306 = vmatpush.bf16.msra.mxu0 %v7844
  %8307 = vmatpush.bf16.msra.mxu0 %v7842
  %8308 = vmatpush.bf16.msra.mxu0 %v7840
  %8309 = vmatpush.bf16.msra.mxu0 %v7838
  %8310 = vmatpush.bf16.msra.mxu0 %v7836
  %8311 = vmatpush.bf16.msra.mxu0 %v7834
  %8312 = vmatpush.bf16.msra.mxu0 %v7832
  %8313 = vmatpush.bf16.msra.mxu0 %v7830
  %8314 = vmatmul.bf16.gmra.mxu0 %v7271
  %v8315 = vpop.f32.mrf.mxu0
  %v8316 = vadd.f32 %v8297, %v8315
  %v8317 = vpop.f32.mrf.mxu0
  %v8318 = vadd.f32 %v8299, %v8317
  %8319 = vmatmul.bf16.gmra.mxu0 %v7280
  %v8320 = vpop.f32.mrf.mxu0
  %v8321 = vadd.f32 %v8302, %v8320
  %v8322 = vpop.f32.mrf.mxu0
  %v8323 = vadd.f32 %v8304, %v8322
  %8324 = vdwg.mxu0
  %8325 = vmatpush.bf16.msra.mxu0 %v7860
  %8326 = vmatpush.bf16.msra.mxu0 %v7858
  %8327 = vmatpush.bf16.msra.mxu0 %v7856
  %8328 = vmatpush.bf16.msra.mxu0 %v7854
  %8329 = vmatpush.bf16.msra.mxu0 %v7852
  %8330 = vmatpush.bf16.msra.mxu0 %v7850
  %8331 = vmatpush.bf16.msra.mxu0 %v7848
  %8332 = vmatpush.bf16.msra.mxu0 %v7846
  %8333 = vmatmul.bf16.gmra.mxu0 %v7272
  %v8334 = vpop.f32.mrf.mxu0
  %v8335 = vadd.f32 %v8316, %v8334
  %v8336 = vpop.f32.mrf.mxu0
  %v8337 = vadd.f32 %v8318, %v8336
  %8338 = vmatmul.bf16.gmra.mxu0 %v7281
  %v8339 = vpop.f32.mrf.mxu0
  %v8340 = vadd.f32 %v8321, %v8339
  %v8341 = vpop.f32.mrf.mxu0
  %v8342 = vadd.f32 %v8323, %v8341
  %8343 = vdwg.mxu0
  %8344 = vmatpush.bf16.msra.mxu0 %v7876
  %8345 = vmatpush.bf16.msra.mxu0 %v7874
  %8346 = vmatpush.bf16.msra.mxu0 %v7872
  %8347 = vmatpush.bf16.msra.mxu0 %v7870
  %8348 = vmatpush.bf16.msra.mxu0 %v7868
  %8349 = vmatpush.bf16.msra.mxu0 %v7866
  %8350 = vmatpush.bf16.msra.mxu0 %v7864
  %8351 = vmatpush.bf16.msra.mxu0 %v7862
  %8352 = vmatmul.bf16.gmra.mxu0 %v7273
  %v8353 = vpop.f32.mrf.mxu0
  %v8354 = vadd.f32 %v8335, %v8353
  %v8355 = vpop.f32.mrf.mxu0
  %v8356 = vadd.f32 %v8337, %v8355
  %8357 = vmatmul.bf16.gmra.mxu0 %v7282
  %v8358 = vpop.f32.mrf.mxu0
  %v8359 = vadd.f32 %v8340, %v8358
  %v8360 = vpop.f32.mrf.mxu0
  %v8361 = vadd.f32 %v8342, %v8360
  %8362 = vdwg.mxu0
  %vm8363 = vcmp.gt.f32.partialorder %v8183, 0.0
  %vm8364 = vcmp.gt.f32.partialorder %v8354, 0.0
  %vm8365 = vcmp.gt.f32.partialorder %v8185, 0.0
  %vm8366 = vcmp.gt.f32.partialorder %v8356, 0.0
  %vm8367 = vcmp.gt.f32.partialorder %v8188, 0.0
  %vm8368 = vcmp.gt.f32.partialorder %v8359, 0.0
  %vm8369 = vcmp.gt.f32.partialorder %v8190, 0.0
  %vm8370 = vcmp.gt.f32.partialorder %v8361, 0.0
  %v8371 = vmul.f32 %v8183, 0.01
  %v8372 = vmul.f32 %v8354, 0.01
  %v8373 = vmul.f32 %v8185, 0.01
  %v8374 = vmul.f32 %v8356, 0.01
  %v8375 = vmul.f32 %v8188, 0.01
  %v8376 = vmul.f32 %v8359, 0.01
  %v8377 = vmul.f32 %v8190, 0.01
  %v8378 = vmul.f32 %v8361, 0.01
  %v8379 = vsel %vm8363, %v8183, %v8371
  %v8380 = vsel %vm8364, %v8354, %v8372
  %v8381 = vsel %vm8365, %v8185, %v8373
  %v8382 = vsel %vm8366, %v8356, %v8374
  %v8383 = vsel %vm8367, %v8188, %v8375
  %v8384 = vsel %vm8368, %v8359, %v8376
  %v8385 = vsel %vm8369, %v8190, %v8377
  %v8386 = vsel %vm8370, %v8361, %v8378
  %v8387 = vld [vmem:[%s8] sm:$0xff]
  %v8388 = vld [vmem:[%s8 + $0x8] sm:$0xff]
  %v8389 = vld [vmem:[%s8 + $0x10] sm:$0xff]
  %v8390 = vld [vmem:[%s8 + $0x18] sm:$0xff]
  %v8391 = vmul.f32 %v8379, %v8387
  %v8392 = vmul.f32 %v8380, %v8388
  %v8393 = vmul.f32 %v8381, %v8389
  %v8394 = vmul.f32 %v8382, %v8390
  %v8395 = vadd.f32 %v8391, %v8392
  %v8396 = vadd.f32 %v8395, %v8393
  %v8397 = vadd.f32 %v8396, %v8394
  %8398 = vadd.xlane.f32.xlu0 %v8397
  %v8399 = vpop.xlane.xlu0 %8398
  %v8400 = vrot.slane %v8399, 4
  %v8401 = vadd.f32 %v8399, %v8400
  %v8402 = vrot.slane %v8401, 2
  %v8403 = vadd.f32 %v8401, %v8402
  %v8404 = vrot.slane %v8403, 1
  %v8405 = vadd.f32 %v8403, %v8404
  %s8406 = vtos %v8405
  %v8407 = vstv %s8406
  %v8408 = vld [vmem:[#allocation6] sm:$0x1]
  %v8409 = vadd.f32 %v8407, %v8408
  %v8410 = vsub.f32 0.0, %v8409
  %v8411 = vmul.f32 %v8410, 1.442695
  %v8412 = vpow.pop %v8411
  %v8413 = vadd.f32 %v8412, 1.0
  %v8414 = vrcp.pop %v8413
  %v8415 = vmul.f32 %v8413, %v8414
  %v8416 = vsub.f32 1.0, %v8415
  %v8417 = vmul.f32 %v8414, %v8416
  %v8418 = vadd.f32 %v8414, %v8417
  %vm8419 = vweird.f32 %v8413
  %vm8420 = vweird.f32 %v8414
  %vm8421 = vmor %vm8419, %vm8420
  %v8422 = vsel %vm8421, %v8414, %v8418
  %v8423 = vand.u32 2147483647, %v8413
  %vm8424 = vcmp.eq.f32.partialorder %v8423, 8.507059e+37
  %v8425 = vand.u32 %v8413, 2147483648
  %v8426 = vor.u32 1.1754944e-38, %v8425
  %v8427 = vsel %vm8424, %v8426, %v8422
  %v8428 = vmul.f32 1.0, %v8427
  %vm8429 = vcmask 0
  %8430 = vst.msk [vmem:[%s10] sm:$0x1] %vm8429, %v8428
  %v8431 = vld [vmem:[%s8] sm:$0xff]
  %v8432 = vld [vmem:[%s8 + $0x8] sm:$0xff]
  %v8433 = vld [vmem:[%s8 + $0x10] sm:$0xff]
  %v8434 = vld [vmem:[%s8 + $0x18] sm:$0xff]
  %v8435 = vmul.f32 %v8383, %v8431
  %v8436 = vmul.f32 %v8384, %v8432
  %v8437 = vmul.f32 %v8385, %v8433
  %v8438 = vmul.f32 %v8386, %v8434
  %v8439 = vadd.f32 %v8435, %v8436
  %v8440 = vadd.f32 %v8439, %v8437
  %v8441 = vadd.f32 %v8440, %v8438
  %8442 = vadd.xlane.f32.xlu0 %v8441
  %v8443 = vpop.xlane.xlu0 %8442
  %v8444 = vrot.slane %v8443, 4
  %v8445 = vadd.f32 %v8443, %v8444
  %v8446 = vrot.slane %v8445, 2
  %v8447 = vadd.f32 %v8445, %v8446
  %v8448 = vrot.slane %v8447, 1
  %v8449 = vadd.f32 %v8447, %v8448
  %s8450 = vtos %v8449
  %v8451 = vstv %s8450
  %v8452 = vld [vmem:[#allocation6] sm:$0x1]
  %v8453 = vadd.f32 %v8451, %v8452
  %v8454 = vsub.f32 0.0, %v8453
  %v8455 = vmul.f32 %v8454, 1.442695
  %v8456 = vpow.pop %v8455
  %v8457 = vadd.f32 %v8456, 1.0
  %v8458 = vrcp.pop %v8457
  %v8459 = vmul.f32 %v8457, %v8458
  %v8460 = vsub.f32 1.0, %v8459
  %v8461 = vmul.f32 %v8458, %v8460
  %v8462 = vadd.f32 %v8458, %v8461
  %vm8463 = vweird.f32 %v8457
  %vm8464 = vweird.f32 %v8458
  %vm8465 = vmor %vm8463, %vm8464
  %v8466 = vsel %vm8465, %v8458, %v8462
  %v8467 = vand.u32 2147483647, %v8457
  %vm8468 = vcmp.eq.f32.partialorder %v8467, 8.507059e+37
  %v8469 = vand.u32 %v8457, 2147483648
  %v8470 = vor.u32 1.1754944e-38, %v8469
  %v8471 = vsel %vm8468, %v8470, %v8466
  %v8472 = vmul.f32 1.0, %v8471
  %8473 = vst.msk [vmem:[%s10 + $0x1] sm:$0x1] %vm8429, %v8472
  // Predicated region
  $region42: #{forward.1} parent=0 // pred_check
    _
  $region43: #{forward.1} parent=0 // pred_check_branch
    %8475 = sbr.rel (0) target = $region45
  $region44: #{forward.1} parent=0 // pred_region
    _
  $region45: #{forward.1} parent=0 // pred_fallthru
    _
  // Predicated region
  $region46: #{forward.1} parent=0 // pred_check
    _
  $region47: #{forward.1} parent=0 // pred_check_branch
    %8477 = sbr.rel (0) target = $region49
  $region48: #{forward.1} parent=0 // pred_region
    _
  $region49: #{forward.1} parent=0 // pred_fallthru
    _

</llo_original>
